<compile_context>
chip_gen: v7x
topology: tpu7x:2x2x1
jax: 0.10.0
libtpu: 0.0.40
codegen_flags: <defaults>
</compile_context>

<pallas_src>
import numpy as np
import jax
import jax.numpy as jnp
from jax.experimental import pallas as pl
from jax.experimental.pallas import tpu as pltpu

IN_FEATS = 9
HIDDEN = 600
HIDDEN_P = 640          # 600 padded up to 5*128 for dense 8x128 tiles
NUM_LAYERS = 5
CLS_HIDDEN = 256
NUM_TASKS = 8
TASKS_P = 128           # classifier output padded to a full 128-lane tile


def tmp_kernel(x_ref, a_ref, p_ref,
               w1_ref, b1_ref, w2_ref, b2_ref,
               wc1_ref, bc1_ref, wc2_ref, bc2_ref, wc3_ref, bc3_ref,
               out_ref, h_ref):
    f32 = jnp.float32
    layer = pl.program_id(0)
    last = pl.num_programs(0) - 1

    # Seed the carried node embedding with the (zero-padded) input features.
    @pl.when(layer == 0)
    def _():
        h_ref[...] = x_ref[...]

    h = h_ref[...]
    # GINConv aggregation (eps = 0): (1 + eps) * x + sum_{j in N(i)} x_j.
    # Identity is folded into A on the host, so this is one MXU matmul.
    agg = jnp.dot(a_ref[...], h, preferred_element_type=f32)

    # Inner MLP([in, 600, 600]): Linear -> ReLU -> Linear.
    # Weights stream in as per-layer bf16 blocks; compute stays in f32.
    w1 = w1_ref[0].astype(f32)
    w2 = w2_ref[0].astype(f32)
    z = jnp.maximum(jnp.dot(agg, w1, preferred_element_type=f32) + b1_ref[0], 0.0)
    h_new = jnp.dot(z, w2, preferred_element_type=f32) + b2_ref[0]

    # Inter-layer ReLU; dropout(p=0.1) is identity in eval mode. Last layer raw.
    @pl.when(layer < last)
    def _():
        h_ref[...] = jnp.maximum(h_new, 0.0)

    # Final grid step: global_add_pool + classifier MLP (BN folded on host).
    @pl.when(layer == last)
    def _():
        feats = jnp.dot(p_ref[...], h_new, preferred_element_type=f32)
        z1 = jnp.maximum(
            jnp.dot(feats, wc1_ref[...].astype(f32), preferred_element_type=f32)
            + bc1_ref[...], 0.0)
        z2 = jnp.maximum(
            jnp.dot(z1, wc2_ref[...].astype(f32), preferred_element_type=f32)
            + bc2_ref[...], 0.0)
        out_ref[...] = (
            jnp.dot(z2, wc3_ref[...].astype(f32), preferred_element_type=f32)
            + bc3_ref[...])


def tmp_forward(x_pad, A_hat, P, kp):
    n = x_pad.shape[0]
    g = P.shape[0]
    operands = (x_pad, A_hat, P,
                kp["W1"], kp["B1"], kp["W2"], kp["B2"],
                kp["wc1"], kp["bc1"], kp["wc2"], kp["bc2"],
                kp["wc3"], kp["bc3"])

    def resident(shape):
        # Same block every grid step -> fetched once, stays resident in VMEM.
        return pl.BlockSpec(shape, lambda l, _s=shape: (0,) * len(_s))

    in_specs = [
        resident((n, HIDDEN_P)),                                      # x (padded)
        resident((n, n)),                                             # A + I
        resident((g, n)),                                             # P
        pl.BlockSpec((1, HIDDEN_P, HIDDEN_P), lambda l: (l, 0, 0)),   # W1 stack
        pl.BlockSpec((1, 1, HIDDEN_P), lambda l: (l, 0, 0)),          # B1 stack
        pl.BlockSpec((1, HIDDEN_P, HIDDEN_P), lambda l: (l, 0, 0)),   # W2 stack
        pl.BlockSpec((1, 1, HIDDEN_P), lambda l: (l, 0, 0)),          # B2 stack
        resident((HIDDEN_P, CLS_HIDDEN)),                             # wc1
        resident((1, CLS_HIDDEN)),                                    # bc1
        resident((CLS_HIDDEN, CLS_HIDDEN)),                           # wc2
        resident((1, CLS_HIDDEN)),                                    # bc2
        resident((CLS_HIDDEN, TASKS_P)),                              # wc3 (padded)
        resident((1, TASKS_P)),                                       # bc3 (padded)
    ]

    flops = (NUM_LAYERS * (2 * n * n * HIDDEN_P + 4 * n * HIDDEN_P * HIDDEN_P)
             + 2 * g * n * HIDDEN_P
             + 2 * g * HIDDEN_P * CLS_HIDDEN
             + 2 * g * CLS_HIDDEN * CLS_HIDDEN
             + 2 * g * CLS_HIDDEN * TASKS_P)
    bytes_accessed = int(sum(int(op.size) * op.dtype.itemsize for op in operands)
                         + g * TASKS_P * 4)

    out = pl.pallas_call(
        tmp_kernel,
        out_shape=jax.ShapeDtypeStruct((g, TASKS_P), jnp.float32),
        grid_spec=pltpu.PrefetchScalarGridSpec(
            num_scalar_prefetch=0,
            grid=(NUM_LAYERS,),
            in_specs=in_specs,
            out_specs=pl.BlockSpec((g, TASKS_P), lambda l: (0, 0)),
            scratch_shapes=[pltpu.VMEM((n, HIDDEN_P), jnp.float32)]),
        compiler_params=pltpu.CompilerParams(
            dimension_semantics=("arbitrary",),
            vmem_limit_bytes=32 * 1024 * 1024),
        cost_estimate=pl.CostEstimate(
            flops=int(flops), transcendentals=0, bytes_accessed=bytes_accessed),
    )(*operands)
    return out[:, :NUM_TASKS]


def make_params(key):
    """Natural-shape parameters (PyTorch layout); weight matrices pre-rounded to bf16."""
    keys = jax.random.split(key, 40)
    ki = iter(keys)

    def rnd(shape, scale=0.05):
        return jax.random.normal(next(ki), shape, dtype=jnp.float32) * scale

    p = {"gin_w1": [], "gin_b1": [], "gin_w2": [], "gin_b2": []}
    for layer in range(NUM_LAYERS):
        in_dim = IN_FEATS if layer == 0 else HIDDEN
        p["gin_w1"].append(rnd((in_dim, HIDDEN)).astype(jnp.bfloat16))
        p["gin_b1"].append(rnd((HIDDEN,), 0.01))
        p["gin_w2"].append(rnd((HIDDEN, HIDDEN)).astype(jnp.bfloat16))
        p["gin_b2"].append(rnd((HIDDEN,), 0.01))

    # Classifier MLP([600, 256, 256, T]) with BatchNorm1d (eval) after layers 1, 2.
    # Eval BN is an affine map: fold exactly into the preceding linear.
    eps = 1e-5

    def fold_bn(W, b, gamma, beta, rm, rv):
        scale = gamma / jnp.sqrt(rv + eps)
        return W * scale[None, :], (b - rm) * scale + beta

    def bn_stats(dim):
        gamma = 1.0 + rnd((dim,), 0.1)
        beta = rnd((dim,), 0.1)
        rm = rnd((dim,), 0.1)
        rv = 1.0 + jnp.abs(rnd((dim,), 0.2))
        return gamma, beta, rm, rv

    wc1, bc1 = rnd((HIDDEN, CLS_HIDDEN)), rnd((CLS_HIDDEN,), 0.01)
    wc1, bc1 = fold_bn(wc1, bc1, *bn_stats(CLS_HIDDEN))
    wc2, bc2 = rnd((CLS_HIDDEN, CLS_HIDDEN)), rnd((CLS_HIDDEN,), 0.01)
    wc2, bc2 = fold_bn(wc2, bc2, *bn_stats(CLS_HIDDEN))
    wc3, bc3 = rnd((CLS_HIDDEN, NUM_TASKS)), rnd((NUM_TASKS,), 0.01)

    p["wc1"], p["bc1"] = wc1.astype(jnp.bfloat16), bc1.reshape(1, CLS_HIDDEN)
    p["wc2"], p["bc2"] = wc2.astype(jnp.bfloat16), bc2.reshape(1, CLS_HIDDEN)
    p["wc3"], p["bc3"] = wc3.astype(jnp.bfloat16), bc3.reshape(1, NUM_TASKS)
    return p


def pack_params(p):
    """Zero-pad to lane-dense shapes (600->640, 8->128, layer-0 in_dim folded), stack per layer."""
    def pad2(w, rows, cols):
        w = jnp.asarray(w, jnp.float32)
        out = jnp.zeros((rows, cols), jnp.float32)
        return out.at[: w.shape[0], : w.shape[1]].set(w)

    def pad1(b, cols):
        b = jnp.asarray(b, jnp.float32).reshape(-1)
        out = jnp.zeros((cols,), jnp.float32)
        return out.at[: b.shape[0]].set(b)

    W1 = jnp.stack([pad2(w, HIDDEN_P, HIDDEN_P) for w in p["gin_w1"]]).astype(jnp.bfloat16)
    W2 = jnp.stack([pad2(w, HIDDEN_P, HIDDEN_P) for w in p["gin_w2"]]).astype(jnp.bfloat16)
    B1 = jnp.stack([pad1(b, HIDDEN_P) for b in p["gin_b1"]]).reshape(NUM_LAYERS, 1, HIDDEN_P)
    B2 = jnp.stack([pad1(b, HIDDEN_P) for b in p["gin_b2"]]).reshape(NUM_LAYERS, 1, HIDDEN_P)
    return {
        "W1": W1, "B1": B1, "W2": W2, "B2": B2,
        "wc1": pad2(p["wc1"], HIDDEN_P, CLS_HIDDEN).astype(jnp.bfloat16),
        "bc1": p["bc1"],
        "wc2": jnp.asarray(p["wc2"], jnp.bfloat16),
        "bc2": p["bc2"],
        "wc3": pad2(p["wc3"], CLS_HIDDEN, TASKS_P).astype(jnp.bfloat16),
        "bc3": pad1(p["bc3"], TASKS_P).reshape(1, TASKS_P),
    }


def reference_forward(x, A, P, p):
    """Pure-JAX reference in natural (unpadded) shapes with identical math."""
    f32 = jnp.float32
    h = x
    for layer in range(NUM_LAYERS):
        agg = A @ h + h
        z = jnp.maximum(agg @ p["gin_w1"][layer].astype(f32) + p["gin_b1"][layer], 0.0)
        h = z @ p["gin_w2"][layer].astype(f32) + p["gin_b2"][layer]
        if layer < NUM_LAYERS - 1:
            h = jnp.maximum(h, 0.0)
    feats = P @ h
    z = jnp.maximum(feats @ p["wc1"].astype(f32) + p["bc1"], 0.0)
    z = jnp.maximum(z @ p["wc2"].astype(f32) + p["bc2"], 0.0)
    return z @ p["wc3"].astype(f32) + p["bc3"]


def build_graph_operands(key, num_graphs=16, nodes_per_graph=8):
    """Synthetic molecule batch: `num_graphs` ring graphs of `nodes_per_graph` atoms."""
    n = num_graphs * nodes_per_graph
    x = jax.random.normal(key, (n, IN_FEATS), dtype=jnp.float32)

    src, dst = [], []
    for g in range(num_graphs):
        base = g * nodes_per_graph
        for i in range(nodes_per_graph):
            a = base + i
            b = base + (i + 1) % nodes_per_graph
            src += [a, b]
            dst += [b, a]
    edge_index = np.stack([np.array(src), np.array(dst)])            # (2, E)
    batch_ind = np.repeat(np.arange(num_graphs), nodes_per_graph)    # (N,)

    # Dense adjacency for src->dst message aggregation: A[dst, src] += 1
    A = jnp.zeros((n, n), jnp.float32).at[edge_index[1], edge_index[0]].add(1.0)
    # Pooling matrix for global_add_pool
    P = (jnp.asarray(batch_ind)[None, :] == jnp.arange(num_graphs)[:, None]).astype(jnp.float32)
    return x, edge_index, batch_ind, A, P


if __name__ == "__main__":
    key = jax.random.PRNGKey(0)
    k_data, k_param = jax.random.split(key)

    # 16 ring graphs x 8 nodes = 128 nodes -> full 128-row MXU tiles per call.
    x, edge_index, batch_ind, A, P = build_graph_operands(k_data, num_graphs=16, nodes_per_graph=8)
    params = make_params(k_param)
    kparams = pack_params(params)

    # Zero-pad node features to the unified 640-wide hidden layout (exact).
    x_pad = jnp.zeros((x.shape[0], HIDDEN_P), jnp.float32).at[:, :IN_FEATS].set(x)
    # Fold the GIN self-term (eps = 0) into the adjacency: (A + I) @ h == A @ h + h.
    A_hat = A + jnp.eye(A.shape[0], dtype=jnp.float32)

    out = jax.block_until_ready(tmp_forward(x_pad, A_hat, P, kparams))

    ref = reference_forward(x, A, P, params)
    np.testing.assert_allclose(np.asarray(out), np.asarray(ref), rtol=2e-3, atol=2e-3)

    assert out.shape == (P.shape[0], NUM_TASKS)
    print("KERNEL_OK")
</pallas_src>

<mosaic_0001>
module attributes {stable_mosaic.version = 11 : i64} {
  func.func @tmp_kernel(%arg0: i32, %arg1: memref<128x640xf32, #tpu.memory_space<vmem>>, %arg2: memref<128x128xf32, #tpu.memory_space<vmem>>, %arg3: memref<16x128xf32, #tpu.memory_space<vmem>>, %arg4: memref<1x640x640xbf16, #tpu.memory_space<vmem>>, %arg5: memref<1x1x640xf32, #tpu.memory_space<vmem>>, %arg6: memref<1x640x640xbf16, #tpu.memory_space<vmem>>, %arg7: memref<1x1x640xf32, #tpu.memory_space<vmem>>, %arg8: memref<640x256xbf16, #tpu.memory_space<vmem>>, %arg9: memref<1x256xf32, #tpu.memory_space<vmem>>, %arg10: memref<256x256xbf16, #tpu.memory_space<vmem>>, %arg11: memref<1x256xf32, #tpu.memory_space<vmem>>, %arg12: memref<256x128xbf16, #tpu.memory_space<vmem>>, %arg13: memref<1x128xf32, #tpu.memory_space<vmem>>, %arg14: memref<16x128xf32, #tpu.memory_space<vmem>>, %arg15: memref<128x640xf32, #tpu.memory_space<vmem>>) attributes {dimension_semantics = [#tpu.dimension_semantics<arbitrary>], iteration_bounds = array<i64: 5>, scalar_prefetch = 0 : i64, scratch_operands = 1 : i64, tpu.core_type = #tpu.core_type<tc>, window_params = [{pipeline_mode = #tpu.pipeline_mode<synchronous>, transform_indices = @transform_0, window_bounds = array<i64: 128, 640>}, {pipeline_mode = #tpu.pipeline_mode<synchronous>, transform_indices = @transform_1, window_bounds = array<i64: 128, 128>}, {pipeline_mode = #tpu.pipeline_mode<synchronous>, transform_indices = @transform_2, window_bounds = array<i64: 16, 128>}, {transform_indices = @transform_3, window_bounds = array<i64: 1, 640, 640>}, {transform_indices = @transform_4, window_bounds = array<i64: 1, 1, 640>}, {transform_indices = @transform_5, window_bounds = array<i64: 1, 640, 640>}, {transform_indices = @transform_6, window_bounds = array<i64: 1, 1, 640>}, {pipeline_mode = #tpu.pipeline_mode<synchronous>, transform_indices = @transform_7, window_bounds = array<i64: 640, 256>}, {pipeline_mode = #tpu.pipeline_mode<synchronous>, transform_indices = @transform_8, window_bounds = array<i64: 1, 256>}, {pipeline_mode = #tpu.pipeline_mode<synchronous>, transform_indices = @transform_9, window_bounds = array<i64: 256, 256>}, {pipeline_mode = #tpu.pipeline_mode<synchronous>, transform_indices = @transform_10, window_bounds = array<i64: 1, 256>}, {pipeline_mode = #tpu.pipeline_mode<synchronous>, transform_indices = @transform_11, window_bounds = array<i64: 256, 128>}, {pipeline_mode = #tpu.pipeline_mode<synchronous>, transform_indices = @transform_12, window_bounds = array<i64: 1, 128>}, {pipeline_mode = #tpu.pipeline_mode<synchronous>, transform_indices = @transform_13, window_bounds = array<i64: 16, 128>}]} {
    %c0_i32 = arith.constant 0 : i32
    %0 = arith.cmpi eq, %arg0, %c0_i32 : i32
    %1 = arith.extui %0 : i1 to i32
    %c0_i32_0 = arith.constant 0 : i32
    %2 = arith.cmpi ne, %1, %c0_i32_0 : i32
    scf.if %2 {
      %c0_22 = arith.constant 0 : index
      %c0_23 = arith.constant 0 : index
      %30 = vector.load %arg1[%c0_22, %c0_23] : memref<128x640xf32, #tpu.memory_space<vmem>>, vector<128x640xf32>
      %c0_24 = arith.constant 0 : index
      %c0_25 = arith.constant 0 : index
      %31 = vector.load %arg15[%c0_24, %c0_25] : memref<128x640xf32, #tpu.memory_space<vmem>>, vector<128x640xf32>
      tpu.vector_store %arg15[%c0_24, %c0_25], %30 {strides = array<i32>} : memref<128x640xf32, #tpu.memory_space<vmem>>, vector<128x640xf32>,
    } else {
    }
    %c0 = arith.constant 0 : index
    %c0_1 = arith.constant 0 : index
    %3 = vector.load %arg15[%c0, %c0_1] : memref<128x640xf32, #tpu.memory_space<vmem>>, vector<128x640xf32>
    %c0_2 = arith.constant 0 : index
    %c0_3 = arith.constant 0 : index
    %4 = vector.load %arg2[%c0_2, %c0_3] : memref<128x128xf32, #tpu.memory_space<vmem>>, vector<128x128xf32>
    %cst = arith.constant dense<0.000000e+00> : vector<128x640xf32>
    %5 = tpu.matmul %4, %3, %cst {dimension_numbers = #tpu.dot_dimension_numbers<[1], [0], [0], [1], [0, 0, 1, 1], [], []>} : vector<128x128xf32>, vector<128x640xf32>, vector<128x640xf32> -> vector<128x640xf32>
    %c0_4 = arith.constant 0 : index
    %c0_5 = arith.constant 0 : index
    %c0_6 = arith.constant 0 : index
    %6 = vector.load %arg4[%c0_4, %c0_5, %c0_6] : memref<1x640x640xbf16, #tpu.memory_space<vmem>>, vector<1x640x640xbf16>
    %7 = vector.shape_cast %6 : vector<1x640x640xbf16> to vector<640x640xbf16>
    %8 = arith.extf %7 : vector<640x640xbf16> to vector<640x640xf32>
    %c0_7 = arith.constant 0 : index
    %c0_8 = arith.constant 0 : index
    %c0_9 = arith.constant 0 : index
    %9 = vector.load %arg6[%c0_7, %c0_8, %c0_9] : memref<1x640x640xbf16, #tpu.memory_space<vmem>>, vector<1x640x640xbf16>
    %10 = vector.shape_cast %9 : vector<1x640x640xbf16> to vector<640x640xbf16>
    %11 = arith.extf %10 : vector<640x640xbf16> to vector<640x640xf32>
    %cst_10 = arith.constant dense<0.000000e+00> : vector<128x640xf32>
    %12 = tpu.matmul %5, %8, %cst_10 {dimension_numbers = #tpu.dot_dimension_numbers<[1], [0], [0], [1], [0, 0, 1, 1], [], []>} : vector<128x640xf32>, vector<640x640xf32>, vector<128x640xf32> -> vector<128x640xf32>
    %c0_11 = arith.constant 0 : index
    %c0_12 = arith.constant 0 : index
    %c0_13 = arith.constant 0 : index
    %13 = vector.load %arg5[%c0_11, %c0_12, %c0_13] : memref<1x1x640xf32, #tpu.memory_space<vmem>>, vector<1x1x640xf32>
    %14 = vector.shape_cast %13 : vector<1x1x640xf32> to vector<1x640xf32>
    %15 = vector.broadcast %14 : vector<1x640xf32> to vector<128x640xf32>
    %16 = arith.addf %12, %15 : vector<128x640xf32>
    %cst_14 = arith.constant 0.000000e+00 : f32
    %17 = vector.broadcast %cst_14 : f32 to vector<128x640xf32>
    %18 = arith.maximumf %16, %17 : vector<128x640xf32>
    %cst_15 = arith.constant dense<0.000000e+00> : vector<128x640xf32>
    %19 = tpu.matmul %18, %11, %cst_15 {dimension_numbers = #tpu.dot_dimension_numbers<[1], [0], [0], [1], [0, 0, 1, 1], [], []>} : vector<128x640xf32>, vector<640x640xf32>, vector<128x640xf32> -> vector<128x640xf32>
    %c0_16 = arith.constant 0 : index
    %c0_17 = arith.constant 0 : index
    %c0_18 = arith.constant 0 : index
    %20 = vector.load %arg7[%c0_16, %c0_17, %c0_18] : memref<1x1x640xf32, #tpu.memory_space<vmem>>, vector<1x1x640xf32>
    %21 = vector.shape_cast %20 : vector<1x1x640xf32> to vector<1x640xf32>
    %22 = vector.broadcast %21 : vector<1x640xf32> to vector<128x640xf32>
    %23 = arith.addf %19, %22 : vector<128x640xf32>
    %c4_i32 = arith.constant 4 : i32
    %24 = arith.cmpi slt, %arg0, %c4_i32 : i32
    %25 = arith.extui %24 : i1 to i32
    %c0_i32_19 = arith.constant 0 : i32
    %26 = arith.cmpi ne, %25, %c0_i32_19 : i32
    scf.if %26 {
      %cst_22 = arith.constant 0.000000e+00 : f32
      %30 = vector.broadcast %cst_22 : f32 to vector<128x640xf32>
      %31 = arith.maximumf %23, %30 : vector<128x640xf32>
      %c0_23 = arith.constant 0 : index
      %c0_24 = arith.constant 0 : index
      %32 = vector.load %arg15[%c0_23, %c0_24] : memref<128x640xf32, #tpu.memory_space<vmem>>, vector<128x640xf32>
      tpu.vector_store %arg15[%c0_23, %c0_24], %31 {strides = array<i32>} : memref<128x640xf32, #tpu.memory_space<vmem>>, vector<128x640xf32>,
    } else {
    }
    %c4_i32_20 = arith.constant 4 : i32
    %27 = arith.cmpi eq, %arg0, %c4_i32_20 : i32
    %28 = arith.extui %27 : i1 to i32
    %c0_i32_21 = arith.constant 0 : i32
    %29 = arith.cmpi ne, %28, %c0_i32_21 : i32
    scf.if %29 {
      %c0_22 = arith.constant 0 : index
      %c0_23 = arith.constant 0 : index
      %30 = vector.load %arg3[%c0_22, %c0_23] : memref<16x128xf32, #tpu.memory_space<vmem>>, vector<16x128xf32>
      %cst_24 = arith.constant dense<0.000000e+00> : vector<16x640xf32>
      %31 = tpu.matmul %30, %23, %cst_24 {dimension_numbers = #tpu.dot_dimension_numbers<[1], [0], [0], [1], [0, 0, 1, 1], [], []>} : vector<16x128xf32>, vector<128x640xf32>, vector<16x640xf32> -> vector<16x640xf32>
      %c0_25 = arith.constant 0 : index
      %c0_26 = arith.constant 0 : index
      %32 = vector.load %arg8[%c0_25, %c0_26] : memref<640x256xbf16, #tpu.memory_space<vmem>>, vector<640x256xbf16>
      %33 = arith.extf %32 : vector<640x256xbf16> to vector<640x256xf32>
      %cst_27 = arith.constant dense<0.000000e+00> : vector<16x256xf32>
      %34 = tpu.matmul %31, %33, %cst_27 {dimension_numbers = #tpu.dot_dimension_numbers<[1], [0], [0], [1], [0, 0, 1, 1], [], []>} : vector<16x640xf32>, vector<640x256xf32>, vector<16x256xf32> -> vector<16x256xf32>
      %c0_28 = arith.constant 0 : index
      %c0_29 = arith.constant 0 : index
      %35 = vector.load %arg9[%c0_28, %c0_29] : memref<1x256xf32, #tpu.memory_space<vmem>>, vector<1x256xf32>
      %36 = vector.broadcast %35 : vector<1x256xf32> to vector<16x256xf32>
      %37 = arith.addf %34, %36 : vector<16x256xf32>
      %cst_30 = arith.constant 0.000000e+00 : f32
      %38 = vector.broadcast %cst_30 : f32 to vector<16x256xf32>
      %39 = arith.maximumf %37, %38 : vector<16x256xf32>
      %c0_31 = arith.constant 0 : index
      %c0_32 = arith.constant 0 : index
      %40 = vector.load %arg10[%c0_31, %c0_32] : memref<256x256xbf16, #tpu.memory_space<vmem>>, vector<256x256xbf16>
      %41 = arith.extf %40 : vector<256x256xbf16> to vector<256x256xf32>
      %cst_33 = arith.constant dense<0.000000e+00> : vector<16x256xf32>
      %42 = tpu.matmul %39, %41, %cst_33 {dimension_numbers = #tpu.dot_dimension_numbers<[1], [0], [0], [1], [0, 0, 1, 1], [], []>} : vector<16x256xf32>, vector<256x256xf32>, vector<16x256xf32> -> vector<16x256xf32>
      %c0_34 = arith.constant 0 : index
      %c0_35 = arith.constant 0 : index
      %43 = vector.load %arg11[%c0_34, %c0_35] : memref<1x256xf32, #tpu.memory_space<vmem>>, vector<1x256xf32>
      %44 = vector.broadcast %43 : vector<1x256xf32> to vector<16x256xf32>
      %45 = arith.addf %42, %44 : vector<16x256xf32>
      %cst_36 = arith.constant 0.000000e+00 : f32
      %46 = vector.broadcast %cst_36 : f32 to vector<16x256xf32>
      %47 = arith.maximumf %45, %46 : vector<16x256xf32>
      %c0_37 = arith.constant 0 : index
      %c0_38 = arith.constant 0 : index
      %48 = vector.load %arg12[%c0_37, %c0_38] : memref<256x128xbf16, #tpu.memory_space<vmem>>, vector<256x128xbf16>
      %49 = arith.extf %48 : vector<256x128xbf16> to vector<256x128xf32>
      %cst_39 = arith.constant dense<0.000000e+00> : vector<16x128xf32>
      %50 = tpu.matmul %47, %49, %cst_39 {dimension_numbers = #tpu.dot_dimension_numbers<[1], [0], [0], [1], [0, 0, 1, 1], [], []>} : vector<16x256xf32>, vector<256x128xf32>, vector<16x128xf32> -> vector<16x128xf32>
      %c0_40 = arith.constant 0 : index
      %c0_41 = arith.constant 0 : index
      %51 = vector.load %arg13[%c0_40, %c0_41] : memref<1x128xf32, #tpu.memory_space<vmem>>, vector<1x128xf32>
      %52 = vector.broadcast %51 : vector<1x128xf32> to vector<16x128xf32>
      %53 = arith.addf %50, %52 : vector<16x128xf32>
      %c0_42 = arith.constant 0 : index
      %c0_43 = arith.constant 0 : index
      %54 = vector.load %arg14[%c0_42, %c0_43] : memref<16x128xf32, #tpu.memory_space<vmem>>, vector<16x128xf32>
      tpu.vector_store %arg14[%c0_42, %c0_43], %53 {strides = array<i32>} : memref<16x128xf32, #tpu.memory_space<vmem>>, vector<16x128xf32>,
    } else {
    }
    return
  }
  func.func @transform_0(%arg0: i32) -> (i32, i32) {
    %c0_i32 = arith.constant 0 : i32
    %c0_i32_0 = arith.constant 0 : i32
    %c0_i32_1 = arith.constant 0 : i32
    return %c0_i32, %c0_i32_0 : i32, i32
  }
  func.func @transform_1(%arg0: i32) -> (i32, i32) {
    %c0_i32 = arith.constant 0 : i32
    %c0_i32_0 = arith.constant 0 : i32
    %c0_i32_1 = arith.constant 0 : i32
    return %c0_i32, %c0_i32_0 : i32, i32
  }
  func.func @transform_2(%arg0: i32) -> (i32, i32) {
    %c0_i32 = arith.constant 0 : i32
    %c0_i32_0 = arith.constant 0 : i32
    %c0_i32_1 = arith.constant 0 : i32
    return %c0_i32, %c0_i32_0 : i32, i32
  }
  func.func @transform_3(%arg0: i32) -> (i32, i32, i32) {
    %c0_i32 = arith.constant 0 : i32
    %c0_i32_0 = arith.constant 0 : i32
    %c0_i32_1 = arith.constant 0 : i32
    return %arg0, %c0_i32, %c0_i32_0 : i32, i32, i32
  }
  func.func @transform_4(%arg0: i32) -> (i32, i32, i32) {
    %c0_i32 = arith.constant 0 : i32
    %c0_i32_0 = arith.constant 0 : i32
    %c0_i32_1 = arith.constant 0 : i32
    return %arg0, %c0_i32, %c0_i32_0 : i32, i32, i32
  }
  func.func @transform_5(%arg0: i32) -> (i32, i32, i32) {
    %c0_i32 = arith.constant 0 : i32
    %c0_i32_0 = arith.constant 0 : i32
    %c0_i32_1 = arith.constant 0 : i32
    return %arg0, %c0_i32, %c0_i32_0 : i32, i32, i32
  }
  func.func @transform_6(%arg0: i32) -> (i32, i32, i32) {
    %c0_i32 = arith.constant 0 : i32
    %c0_i32_0 = arith.constant 0 : i32
    %c0_i32_1 = arith.constant 0 : i32
    return %arg0, %c0_i32, %c0_i32_0 : i32, i32, i32
  }
  func.func @transform_7(%arg0: i32) -> (i32, i32) {
    %c0_i32 = arith.constant 0 : i32
    %c0_i32_0 = arith.constant 0 : i32
    %c0_i32_1 = arith.constant 0 : i32
    return %c0_i32, %c0_i32_0 : i32, i32
  }
  func.func @transform_8(%arg0: i32) -> (i32, i32) {
    %c0_i32 = arith.constant 0 : i32
    %c0_i32_0 = arith.constant 0 : i32
    %c0_i32_1 = arith.constant 0 : i32
    return %c0_i32, %c0_i32_0 : i32, i32
  }
  func.func @transform_9(%arg0: i32) -> (i32, i32) {
    %c0_i32 = arith.constant 0 : i32
    %c0_i32_0 = arith.constant 0 : i32
    %c0_i32_1 = arith.constant 0 : i32
    return %c0_i32, %c0_i32_0 : i32, i32
  }
  func.func @transform_10(%arg0: i32) -> (i32, i32) {
    %c0_i32 = arith.constant 0 : i32
    %c0_i32_0 = arith.constant 0 : i32
    %c0_i32_1 = arith.constant 0 : i32
    return %c0_i32, %c0_i32_0 : i32, i32
  }
  func.func @transform_11(%arg0: i32) -> (i32, i32) {
    %c0_i32 = arith.constant 0 : i32
    %c0_i32_0 = arith.constant 0 : i32
    %c0_i32_1 = arith.constant 0 : i32
    return %c0_i32, %c0_i32_0 : i32, i32
  }
  func.func @transform_12(%arg0: i32) -> (i32, i32) {
    %c0_i32 = arith.constant 0 : i32
    %c0_i32_0 = arith.constant 0 : i32
    %c0_i32_1 = arith.constant 0 : i32
    return %c0_i32, %c0_i32_0 : i32, i32
  }
  func.func @transform_13(%arg0: i32) -> (i32, i32) {
    %c0_i32 = arith.constant 0 : i32
    %c0_i32_0 = arith.constant 0 : i32
    %c0_i32_1 = arith.constant 0 : i32
    return %c0_i32, %c0_i32_0 : i32, i32
  }
}

</mosaic_0001>

<llo_original>
// kernel: tpu_custom_call.1
$region0: #{tpu_custom_call.1}
  #allocation0 [shape = 'u32[]', space=smem, size = 0x4, offset = 0x4, fixed_abs, tag = 'smem constant byte address 0x4 - core index']
  #allocation1 [shape = 'u32[144,128]{1,0:T(1,128)}', space=vmem, size = 0x12000, scoped, tag = 'internal scratch']
  #allocation2 [shape = 'f32[128,640]{1,0:T(8,128)}', space=vmem, size = 0x50000, scoped, tag = 'scratch operand']
  %s0 = inlined_call_operand.hbm [shape: f32[128,640], index: 0, kind: input, shape index: {}]
  %s1 = inlined_call_operand.hbm [shape: f32[128,128], index: 1, kind: input, shape index: {}]
  %s2 = inlined_call_operand.hbm [shape: f32[16,128], index: 2, kind: input, shape index: {}]
  %s3 = inlined_call_operand.hbm [shape: bf16[5,640,640], index: 3, kind: input, shape index: {}]
  %s4 = inlined_call_operand.hbm [shape: f32[5,1,640], index: 4, kind: input, shape index: {}]
  %s5 = inlined_call_operand.hbm [shape: bf16[5,640,640], index: 5, kind: input, shape index: {}]
  %s6 = inlined_call_operand.hbm [shape: f32[5,1,640], index: 6, kind: input, shape index: {}]
  %s7 = inlined_call_operand.hbm [shape: bf16[640,256], index: 7, kind: input, shape index: {}]
  %s8 = inlined_call_operand.hbm [shape: f32[1,256], index: 8, kind: input, shape index: {}]
  %s9 = inlined_call_operand.hbm [shape: bf16[256,256], index: 9, kind: input, shape index: {}]
  %s10 = inlined_call_operand.hbm [shape: f32[1,256], index: 10, kind: input, shape index: {}]
  %s11 = inlined_call_operand.hbm [shape: bf16[256,128], index: 11, kind: input, shape index: {}]
  %s12 = inlined_call_operand.hbm [shape: f32[1,128], index: 12, kind: input, shape index: {}]
  %s13 = inlined_call_operand.hbm [shape: f32[16,128], index: 13, kind: output, shape index: {}]
  %s14 = sld [smem:[#allocation0]]
  $region149: #{tpu_custom_call.1} parent=0
    _
  %s16 = ssub.s32 1, %s14
  %s17 = scalar_select 0, %s16, %s14
  $region1: #{tpu_custom_call.1} parent=0
    #allocation3 [shape = 'u8[327680]{0}', space=vmem, size = 0x50000, scoped, tag = 'input window, operand 0, single buffered']
    #allocation4 [shape = 's32[2]{0}', space=sflag, size = 0x8, scoped, tag = 'scoped memory for tpu_custom_call.1']
    #allocation5 [shape = 's32[2]{0}', space=sflag, size = 0x8, scoped, tag = 'scoped memory for tpu_custom_call.1']
    #allocation6 [shape = 'u8[65536]{0}', space=vmem, size = 0x10000, scoped, tag = 'input window, operand 1, single buffered']
    #allocation7 [shape = 's32[1]{0}', space=sflag, size = 0x4, scoped, tag = 'scoped memory for tpu_custom_call.1']
    #allocation8 [shape = 'u8[8192]{0}', space=vmem, size = 0x2000, scoped, tag = 'input window, operand 2, single buffered']
    #allocation9 [shape = 'u8[1638400]{0}', space=vmem, size = 0x190000, scoped, tag = 'input window, operand 3']
    #allocation10 [shape = 's32[2]{0}', space=sflag, size = 0x8, scoped, tag = 'scoped memory for tpu_custom_call.1']
    #allocation11 [shape = 'u8[5120]{0}', space=vmem, size = 0x1400, scoped, tag = 'input window, operand 4']
    #allocation12 [shape = 'u8[1638400]{0}', space=vmem, size = 0x190000, scoped, tag = 'input window, operand 5']
    #allocation13 [shape = 's32[2]{0}', space=sflag, size = 0x8, scoped, tag = 'scoped memory for tpu_custom_call.1']
    #allocation14 [shape = 'u8[5120]{0}', space=vmem, size = 0x1400, scoped, tag = 'input window, operand 6']
    #allocation15 [shape = 'u8[327680]{0}', space=vmem, size = 0x50000, scoped, tag = 'input window, operand 7, single buffered']
    #allocation16 [shape = 's32[1]{0}', space=sflag, size = 0x4, scoped, tag = 'scoped memory for tpu_custom_call.1']
    #allocation17 [shape = 'u8[1024]{0}', space=vmem, size = 0x400, scoped, tag = 'input window, operand 8, single buffered']
    #allocation18 [shape = 'u8[131072]{0}', space=vmem, size = 0x20000, scoped, tag = 'input window, operand 9, single buffered']
    #allocation19 [shape = 's32[1]{0}', space=sflag, size = 0x4, scoped, tag = 'scoped memory for tpu_custom_call.1']
    #allocation20 [shape = 'u8[1024]{0}', space=vmem, size = 0x400, scoped, tag = 'input window, operand 10, single buffered']
    #allocation21 [shape = 'u8[65536]{0}', space=vmem, size = 0x10000, scoped, tag = 'input window, operand 11, single buffered']
    #allocation22 [shape = 's32[1]{0}', space=sflag, size = 0x4, scoped, tag = 'scoped memory for tpu_custom_call.1']
    #allocation23 [shape = 'u8[512]{0}', space=vmem, size = 0x400, scoped, tag = 'input window, operand 12, single buffered']
    #allocation24 [shape = 'u8[8192]{0}', space=vmem, size = 0x2000, scoped, tag = 'output window, operand 0, single buffered']
    %18 = vsyncpa [#allocation4], 0
    %19 = vsyncpa [#allocation7], 0
    %20 = vsyncpa [#allocation10], 0
    %s21 = scalar_lea.sflag [#allocation10], 1
    %22 = vsyncpa %s21, 0
    %23 = vsyncpa [#allocation13], 0
    %s24 = scalar_lea.sflag [#allocation13], 1
    %25 = vsyncpa %s24, 0
    %26 = vsyncpa [#allocation16], 0
    %27 = vsyncpa [#allocation19], 0
    %28 = vsyncpa [#allocation22], 0
    %29 = vsyncpa [#allocation5], 0
    loop: start=0, step=1, limit=7
    $region2: #{tpu_custom_call.1} parent=1 // loop_pre_header
      _
    $region3: #{tpu_custom_call.1} parent=1 // loop_header
      %s31 = sphi 0, %s35
      %p32 = scmp.ge.s32.totalorder %s31, 7
      %s39 = sphi 0, %s39
      %s41 = sphi 0, %s39
      %s42 = sphi 0, %s41
      %s56 = sphi 0, %s42
      %s60 = sphi 0, %s60
      %s62 = sphi 0, %s60
      %s63 = sphi 0, %s62
      %s77 = sphi 0, %s63
      %s81 = sphi 0, %s81
      %s83 = sphi 0, %s81
      %s84 = sphi 0, %s83
      %s98 = sphi 0, %s84
      %s104 = sphi 0, %s106
      %s107 = sphi 0, %s104
      %s108 = sphi 0, %s107
      %s124 = sphi 0, %s108
      %s130 = sphi 0, %s132
      %s133 = sphi 0, %s130
      %s134 = sphi 0, %s133
      %s150 = sphi 0, %s134
      %s156 = sphi 0, %s158
      %s159 = sphi 0, %s156
      %s160 = sphi 0, %s159
      %s176 = sphi 0, %s160
      %s182 = sphi 0, %s184
      %s185 = sphi 0, %s182
      %s186 = sphi 0, %s185
      %s202 = sphi 0, %s186
      %s206 = sphi 0, %s206
      %s208 = sphi 0, %s206
      %s209 = sphi 0, %s208
      %s223 = sphi 0, %s209
      %s227 = sphi 0, %s227
      %s229 = sphi 0, %s227
      %s230 = sphi 0, %s229
      %s244 = sphi 0, %s230
      %s248 = sphi 0, %s248
      %s250 = sphi 0, %s248
      %s251 = sphi 0, %s250
      %s265 = sphi 0, %s251
      %s269 = sphi 0, %s269
      %s271 = sphi 0, %s269
      %s272 = sphi 0, %s271
      %s286 = sphi 0, %s272
      %s290 = sphi 0, %s290
      %s292 = sphi 0, %s290
      %s293 = sphi 0, %s292
      %s307 = sphi 0, %s293
      %s311 = sphi 0, %s311
      %s313 = sphi 0, %s311
      %s314 = sphi 0, %s313
      %s328 = sphi 0, %s314
      %s332 = sphi 0, %s332
      %s334 = sphi 0, %s332
      %s335 = sphi 0, %s334
      %s349 = sphi 0, %s335
    $region4: #{tpu_custom_call.1} parent=1 // loop_header_branch
      %34 = sbr.rel (%p32) target = $region8
    $region5: #{tpu_custom_call.1} parent=1 // loop_body
      %s36 = ssub.s32 %s31, 1
      %s37 = ssub.s32 %s31, 2
      %s38 = sadd.s32 %s31, 1
      %s40 = sadd.s32 %s39, 1
      %p43 = scmp.eq.s32.totalorder %s31, 4
      %p44 = scmp.ne.s32.totalorder %s39, %s41
      %p45 = scmp.eq.s32.totalorder %s31, 0
      %p46 = por %p44, %p45
      %p47 = scmp.ne.s32.totalorder %s39, %s41
      %p48 = scmp.eq.s32.totalorder %s36, 4
      %p49 = por %p47, %p48
      %p50 = scmp.ne.s32.totalorder %s41, %s42
      %p51 = scmp.eq.s32.totalorder %s36, 0
      %p52 = por %p50, %p51
      %p53 = scmp.ne.s32.totalorder %s41, %s42
      %p54 = scmp.eq.s32.totalorder %s37, 4
      %p55 = por %p53, %p54
      %p57 = scmp.ne.s32.totalorder %s42, %s56
      %p58 = scmp.eq.s32.totalorder %s37, 0
      %p59 = por %p57, %p58
      %s61 = sadd.s32 %s60, 1
      %p64 = scmp.eq.s32.totalorder %s31, 4
      %p65 = scmp.ne.s32.totalorder %s60, %s62
      %p66 = scmp.eq.s32.totalorder %s31, 0
      %p67 = por %p65, %p66
      %p68 = scmp.ne.s32.totalorder %s60, %s62
      %p69 = scmp.eq.s32.totalorder %s36, 4
      %p70 = por %p68, %p69
      %p71 = scmp.ne.s32.totalorder %s62, %s63
      %p72 = scmp.eq.s32.totalorder %s36, 0
      %p73 = por %p71, %p72
      %p74 = scmp.ne.s32.totalorder %s62, %s63
      %p75 = scmp.eq.s32.totalorder %s37, 4
      %p76 = por %p74, %p75
      %p78 = scmp.ne.s32.totalorder %s63, %s77
      %p79 = scmp.eq.s32.totalorder %s37, 0
      %p80 = por %p78, %p79
      %s82 = sadd.s32 %s81, 1
      %p85 = scmp.eq.s32.totalorder %s31, 4
      %p86 = scmp.ne.s32.totalorder %s81, %s83
      %p87 = scmp.eq.s32.totalorder %s31, 0
      %p88 = por %p86, %p87
      %p89 = scmp.ne.s32.totalorder %s81, %s83
      %p90 = scmp.eq.s32.totalorder %s36, 4
      %p91 = por %p89, %p90
      %p92 = scmp.ne.s32.totalorder %s83, %s84
      %p93 = scmp.eq.s32.totalorder %s36, 0
      %p94 = por %p92, %p93
      %p95 = scmp.ne.s32.totalorder %s83, %s84
      %p96 = scmp.eq.s32.totalorder %s37, 4
      %p97 = por %p95, %p96
      %p99 = scmp.ne.s32.totalorder %s84, %s98
      %p100 = scmp.eq.s32.totalorder %s37, 0
      %p101 = por %p99, %p100
      %s102 = ssub.s32 %s31, %s38
      %p103 = scmp.eq.s32.totalorder %s102, 0
      %s105 = sadd.s32 %s104, 1
      %s106 = scalar_select %p103, %s104, %s105
      %p109 = pneg %p103
      %p110 = scmp.eq.s32.totalorder %s31, 4
      %p111 = por %p109, %p110
      %p112 = scmp.ne.s32.totalorder %s104, %s107
      %p113 = scmp.eq.s32.totalorder %s31, 0
      %p114 = por %p112, %p113
      %p115 = scmp.ne.s32.totalorder %s104, %s107
      %p116 = scmp.eq.s32.totalorder %s36, 4
      %p117 = por %p115, %p116
      %p118 = scmp.ne.s32.totalorder %s107, %s108
      %p119 = scmp.eq.s32.totalorder %s36, 0
      %p120 = por %p118, %p119
      %p121 = scmp.ne.s32.totalorder %s107, %s108
      %p122 = scmp.eq.s32.totalorder %s37, 4
      %p123 = por %p121, %p122
      %p125 = scmp.ne.s32.totalorder %s108, %s124
      %p126 = scmp.eq.s32.totalorder %s37, 0
      %p127 = por %p125, %p126
      %s128 = ssub.s32 %s31, %s38
      %p129 = scmp.eq.s32.totalorder %s128, 0
      %s131 = sadd.s32 %s130, 1
      %s132 = scalar_select %p129, %s130, %s131
      %p135 = pneg %p129
      %p136 = scmp.eq.s32.totalorder %s31, 4
      %p137 = por %p135, %p136
      %p138 = scmp.ne.s32.totalorder %s130, %s133
      %p139 = scmp.eq.s32.totalorder %s31, 0
      %p140 = por %p138, %p139
      %p141 = scmp.ne.s32.totalorder %s130, %s133
      %p142 = scmp.eq.s32.totalorder %s36, 4
      %p143 = por %p141, %p142
      %p144 = scmp.ne.s32.totalorder %s133, %s134
      %p145 = scmp.eq.s32.totalorder %s36, 0
      %p146 = por %p144, %p145
      %p147 = scmp.ne.s32.totalorder %s133, %s134
      %p148 = scmp.eq.s32.totalorder %s37, 4
      %p149 = por %p147, %p148
      %p151 = scmp.ne.s32.totalorder %s134, %s150
      %p152 = scmp.eq.s32.totalorder %s37, 0
      %p153 = por %p151, %p152
      %s154 = ssub.s32 %s31, %s38
      %p155 = scmp.eq.s32.totalorder %s154, 0
      %s157 = sadd.s32 %s156, 1
      %s158 = scalar_select %p155, %s156, %s157
      %p161 = pneg %p155
      %p162 = scmp.eq.s32.totalorder %s31, 4
      %p163 = por %p161, %p162
      %p164 = scmp.ne.s32.totalorder %s156, %s159
      %p165 = scmp.eq.s32.totalorder %s31, 0
      %p166 = por %p164, %p165
      %p167 = scmp.ne.s32.totalorder %s156, %s159
      %p168 = scmp.eq.s32.totalorder %s36, 4
      %p169 = por %p167, %p168
      %p170 = scmp.ne.s32.totalorder %s159, %s160
      %p171 = scmp.eq.s32.totalorder %s36, 0
      %p172 = por %p170, %p171
      %p173 = scmp.ne.s32.totalorder %s159, %s160
      %p174 = scmp.eq.s32.totalorder %s37, 4
      %p175 = por %p173, %p174
      %p177 = scmp.ne.s32.totalorder %s160, %s176
      %p178 = scmp.eq.s32.totalorder %s37, 0
      %p179 = por %p177, %p178
      %s180 = ssub.s32 %s31, %s38
      %p181 = scmp.eq.s32.totalorder %s180, 0
      %s183 = sadd.s32 %s182, 1
      %s184 = scalar_select %p181, %s182, %s183
      %p187 = pneg %p181
      %p188 = scmp.eq.s32.totalorder %s31, 4
      %p189 = por %p187, %p188
      %p190 = scmp.ne.s32.totalorder %s182, %s185
      %p191 = scmp.eq.s32.totalorder %s31, 0
      %p192 = por %p190, %p191
      %p193 = scmp.ne.s32.totalorder %s182, %s185
      %p194 = scmp.eq.s32.totalorder %s36, 4
      %p195 = por %p193, %p194
      %p196 = scmp.ne.s32.totalorder %s185, %s186
      %p197 = scmp.eq.s32.totalorder %s36, 0
      %p198 = por %p196, %p197
      %p199 = scmp.ne.s32.totalorder %s185, %s186
      %p200 = scmp.eq.s32.totalorder %s37, 4
      %p201 = por %p199, %p200
      %p203 = scmp.ne.s32.totalorder %s186, %s202
      %p204 = scmp.eq.s32.totalorder %s37, 0
      %p205 = por %p203, %p204
      %s207 = sadd.s32 %s206, 1
      %p210 = scmp.eq.s32.totalorder %s31, 4
      %p211 = scmp.ne.s32.totalorder %s206, %s208
      %p212 = scmp.eq.s32.totalorder %s31, 0
      %p213 = por %p211, %p212
      %p214 = scmp.ne.s32.totalorder %s206, %s208
      %p215 = scmp.eq.s32.totalorder %s36, 4
      %p216 = por %p214, %p215
      %p217 = scmp.ne.s32.totalorder %s208, %s209
      %p218 = scmp.eq.s32.totalorder %s36, 0
      %p219 = por %p217, %p218
      %p220 = scmp.ne.s32.totalorder %s208, %s209
      %p221 = scmp.eq.s32.totalorder %s37, 4
      %p222 = por %p220, %p221
      %p224 = scmp.ne.s32.totalorder %s209, %s223
      %p225 = scmp.eq.s32.totalorder %s37, 0
      %p226 = por %p224, %p225
      %s228 = sadd.s32 %s227, 1
      %p231 = scmp.eq.s32.totalorder %s31, 4
      %p232 = scmp.ne.s32.totalorder %s227, %s229
      %p233 = scmp.eq.s32.totalorder %s31, 0
      %p234 = por %p232, %p233
      %p235 = scmp.ne.s32.totalorder %s227, %s229
      %p236 = scmp.eq.s32.totalorder %s36, 4
      %p237 = por %p235, %p236
      %p238 = scmp.ne.s32.totalorder %s229, %s230
      %p239 = scmp.eq.s32.totalorder %s36, 0
      %p240 = por %p238, %p239
      %p241 = scmp.ne.s32.totalorder %s229, %s230
      %p242 = scmp.eq.s32.totalorder %s37, 4
      %p243 = por %p241, %p242
      %p245 = scmp.ne.s32.totalorder %s230, %s244
      %p246 = scmp.eq.s32.totalorder %s37, 0
      %p247 = por %p245, %p246
      %s249 = sadd.s32 %s248, 1
      %p252 = scmp.eq.s32.totalorder %s31, 4
      %p253 = scmp.ne.s32.totalorder %s248, %s250
      %p254 = scmp.eq.s32.totalorder %s31, 0
      %p255 = por %p253, %p254
      %p256 = scmp.ne.s32.totalorder %s248, %s250
      %p257 = scmp.eq.s32.totalorder %s36, 4
      %p258 = por %p256, %p257
      %p259 = scmp.ne.s32.totalorder %s250, %s251
      %p260 = scmp.eq.s32.totalorder %s36, 0
      %p261 = por %p259, %p260
      %p262 = scmp.ne.s32.totalorder %s250, %s251
      %p263 = scmp.eq.s32.totalorder %s37, 4
      %p264 = por %p262, %p263
      %p266 = scmp.ne.s32.totalorder %s251, %s265
      %p267 = scmp.eq.s32.totalorder %s37, 0
      %p268 = por %p266, %p267
      %s270 = sadd.s32 %s269, 1
      %p273 = scmp.eq.s32.totalorder %s31, 4
      %p274 = scmp.ne.s32.totalorder %s269, %s271
      %p275 = scmp.eq.s32.totalorder %s31, 0
      %p276 = por %p274, %p275
      %p277 = scmp.ne.s32.totalorder %s269, %s271
      %p278 = scmp.eq.s32.totalorder %s36, 4
      %p279 = por %p277, %p278
      %p280 = scmp.ne.s32.totalorder %s271, %s272
      %p281 = scmp.eq.s32.totalorder %s36, 0
      %p282 = por %p280, %p281
      %p283 = scmp.ne.s32.totalorder %s271, %s272
      %p284 = scmp.eq.s32.totalorder %s37, 4
      %p285 = por %p283, %p284
      %p287 = scmp.ne.s32.totalorder %s272, %s286
      %p288 = scmp.eq.s32.totalorder %s37, 0
      %p289 = por %p287, %p288
      %s291 = sadd.s32 %s290, 1
      %p294 = scmp.eq.s32.totalorder %s31, 4
      %p295 = scmp.ne.s32.totalorder %s290, %s292
      %p296 = scmp.eq.s32.totalorder %s31, 0
      %p297 = por %p295, %p296
      %p298 = scmp.ne.s32.totalorder %s290, %s292
      %p299 = scmp.eq.s32.totalorder %s36, 4
      %p300 = por %p298, %p299
      %p301 = scmp.ne.s32.totalorder %s292, %s293
      %p302 = scmp.eq.s32.totalorder %s36, 0
      %p303 = por %p301, %p302
      %p304 = scmp.ne.s32.totalorder %s292, %s293
      %p305 = scmp.eq.s32.totalorder %s37, 4
      %p306 = por %p304, %p305
      %p308 = scmp.ne.s32.totalorder %s293, %s307
      %p309 = scmp.eq.s32.totalorder %s37, 0
      %p310 = por %p308, %p309
      %s312 = sadd.s32 %s311, 1
      %p315 = scmp.eq.s32.totalorder %s31, 4
      %p316 = scmp.ne.s32.totalorder %s311, %s313
      %p317 = scmp.eq.s32.totalorder %s31, 0
      %p318 = por %p316, %p317
      %p319 = scmp.ne.s32.totalorder %s311, %s313
      %p320 = scmp.eq.s32.totalorder %s36, 4
      %p321 = por %p319, %p320
      %p322 = scmp.ne.s32.totalorder %s313, %s314
      %p323 = scmp.eq.s32.totalorder %s36, 0
      %p324 = por %p322, %p323
      %p325 = scmp.ne.s32.totalorder %s313, %s314
      %p326 = scmp.eq.s32.totalorder %s37, 4
      %p327 = por %p325, %p326
      %p329 = scmp.ne.s32.totalorder %s314, %s328
      %p330 = scmp.eq.s32.totalorder %s37, 0
      %p331 = por %p329, %p330
      %s333 = sadd.s32 %s332, 1
      %p336 = scmp.eq.s32.totalorder %s31, 4
      %p337 = scmp.ne.s32.totalorder %s332, %s334
      %p338 = scmp.eq.s32.totalorder %s31, 0
      %p339 = por %p337, %p338
      %p340 = scmp.ne.s32.totalorder %s332, %s334
      %p341 = scmp.eq.s32.totalorder %s36, 4
      %p342 = por %p340, %p341
      %p343 = scmp.ne.s32.totalorder %s334, %s335
      %p344 = scmp.eq.s32.totalorder %s36, 0
      %p345 = por %p343, %p344
      %p346 = scmp.ne.s32.totalorder %s334, %s335
      %p347 = scmp.eq.s32.totalorder %s37, 4
      %p348 = por %p346, %p347
      %p350 = scmp.ne.s32.totalorder %s335, %s349
      %p351 = scmp.eq.s32.totalorder %s37, 0
      %p352 = por %p350, %p351
      %p353 = scmp.le.s32.totalorder 1, %s31
      %p354 = scmp.lt.s32.totalorder %s31, 6
      %p355 = pnand %p353, %p354
      %p356 = pneg %p355
      // Predicated region
      $region9: #{tpu_custom_call.1} parent=5 // pred_check
        _
      $region10: #{tpu_custom_call.1} parent=5 // pred_check_branch
        %358 = sbr.rel (%p355) target = $region12
      $region11: #{tpu_custom_call.1} parent=5 // pred_region
        %s359 = ssub.s32 %s31, 1
        // Predicated region
        $region13: #{tpu_custom_call.1} parent=11 // pred_check
          %p360 = pneg %p52
        $region14: #{tpu_custom_call.1} parent=11 // pred_check_branch
          %362 = sbr.rel (%p360) target = $region16
        $region15: #{tpu_custom_call.1} parent=11 // pred_region
          %s364 = ssub.s32 10240, 10240
          %365 = vsyncadd [#allocation4], %s364
          %s366 = sshll.u32 [#allocation3], 4
          %s367 = int_to_ptr.vmem [resolvable:$true] %s366
          %372 = dma.hbm_to_vmem [thread:$0]  %s0, 10240, %s367, [#allocation4], 640, 640, 40
        $region16: #{tpu_custom_call.1} parent=11 // pred_fallthru
          _
        // Predicated region
        $region17: #{tpu_custom_call.1} parent=11 // pred_check
          %p373 = pneg %p73
        $region18: #{tpu_custom_call.1} parent=11 // pred_check_branch
          %375 = sbr.rel (%p373) target = $region20
        $region19: #{tpu_custom_call.1} parent=11 // pred_region
          %s377 = ssub.s32 2048, 2048
          %378 = vsyncadd [#allocation7], %s377
          %s379 = sshll.u32 [#allocation6], 4
          %s380 = int_to_ptr.vmem [resolvable:$true] %s379
          %385 = dma.hbm_to_vmem [thread:$0]  %s1, 2048, %s380, [#allocation7], 128, 128, 8
        $region20: #{tpu_custom_call.1} parent=11 // pred_fallthru
          _
        // Predicated region
        $region21: #{tpu_custom_call.1} parent=11 // pred_check
          %p386 = pneg %p94
        $region22: #{tpu_custom_call.1} parent=11 // pred_check_branch
          %388 = sbr.rel (%p386) target = $region24
        $region23: #{tpu_custom_call.1} parent=11 // pred_region
          %s390 = ssub.s32 256, 256
          %391 = vsyncadd [#allocation7], %s390
          %s392 = sshll.u32 [#allocation8], 4
          %s393 = int_to_ptr.vmem [resolvable:$true] %s392
          %398 = dma.hbm_to_vmem [thread:$0]  %s2, 256, %s393, [#allocation7], 128, 128, 8
        $region24: #{tpu_custom_call.1} parent=11 // pred_fallthru
          _
        // Predicated region
        $region25: #{tpu_custom_call.1} parent=11 // pred_check
          %p399 = pneg %p219
        $region26: #{tpu_custom_call.1} parent=11 // pred_check_branch
          %401 = sbr.rel (%p399) target = $region28
        $region27: #{tpu_custom_call.1} parent=11 // pred_region
          %s403 = ssub.s32 10240, 10240
          %404 = vsyncadd [#allocation16], %s403
          %s405 = sshll.u32 [#allocation15], 4
          %s406 = int_to_ptr.vmem [resolvable:$true] %s405
          %411 = dma.hbm_to_vmem [thread:$0]  %s7, 10240, %s406, [#allocation16], 128, 128, 8
        $region28: #{tpu_custom_call.1} parent=11 // pred_fallthru
          _
        // Predicated region
        $region29: #{tpu_custom_call.1} parent=11 // pred_check
          %p412 = pneg %p240
        $region30: #{tpu_custom_call.1} parent=11 // pred_check_branch
          %414 = sbr.rel (%p412) target = $region32
        $region31: #{tpu_custom_call.1} parent=11 // pred_region
          %s416 = ssub.s32 32, 32
          %417 = vsyncadd [#allocation16], %s416
          %s419 = sshll.u32 [#allocation17], 4
          %s420 = int_to_ptr.vmem [resolvable:$true] %s419
          %422 = dma.hbm_to_vmem [thread:$0]  %s8, 32, %s420, [#allocation16]
        $region32: #{tpu_custom_call.1} parent=11 // pred_fallthru
          _
        // Predicated region
        $region33: #{tpu_custom_call.1} parent=11 // pred_check
          %p423 = pneg %p261
        $region34: #{tpu_custom_call.1} parent=11 // pred_check_branch
          %425 = sbr.rel (%p423) target = $region36
        $region35: #{tpu_custom_call.1} parent=11 // pred_region
          %s427 = ssub.s32 4096, 4096
          %428 = vsyncadd [#allocation19], %s427
          %s429 = sshll.u32 [#allocation18], 4
          %s430 = int_to_ptr.vmem [resolvable:$true] %s429
          %435 = dma.hbm_to_vmem [thread:$0]  %s9, 4096, %s430, [#allocation19], 128, 128, 8
        $region36: #{tpu_custom_call.1} parent=11 // pred_fallthru
          _
        // Predicated region
        $region37: #{tpu_custom_call.1} parent=11 // pred_check
          %p436 = pneg %p282
        $region38: #{tpu_custom_call.1} parent=11 // pred_check_branch
          %438 = sbr.rel (%p436) target = $region40
        $region39: #{tpu_custom_call.1} parent=11 // pred_region
          %s440 = ssub.s32 32, 32
          %441 = vsyncadd [#allocation19], %s440
          %s443 = sshll.u32 [#allocation20], 4
          %s444 = int_to_ptr.vmem [resolvable:$true] %s443
          %446 = dma.hbm_to_vmem [thread:$0]  %s10, 32, %s444, [#allocation19]
        $region40: #{tpu_custom_call.1} parent=11 // pred_fallthru
          _
        // Predicated region
        $region41: #{tpu_custom_call.1} parent=11 // pred_check
          %p447 = pneg %p303
        $region42: #{tpu_custom_call.1} parent=11 // pred_check_branch
          %449 = sbr.rel (%p447) target = $region44
        $region43: #{tpu_custom_call.1} parent=11 // pred_region
          %s451 = ssub.s32 2048, 2048
          %452 = vsyncadd [#allocation22], %s451
          %s453 = sshll.u32 [#allocation21], 4
          %s454 = int_to_ptr.vmem [resolvable:$true] %s453
          %459 = dma.hbm_to_vmem [thread:$0]  %s11, 2048, %s454, [#allocation22], 64, 64, 4
        $region44: #{tpu_custom_call.1} parent=11 // pred_fallthru
          _
        // Predicated region
        $region45: #{tpu_custom_call.1} parent=11 // pred_check
          %p460 = pneg %p324
        $region46: #{tpu_custom_call.1} parent=11 // pred_check_branch
          %462 = sbr.rel (%p460) target = $region48
        $region47: #{tpu_custom_call.1} parent=11 // pred_region
          %s464 = ssub.s32 16, 16
          %465 = vsyncadd [#allocation22], %s464
          %s467 = sshll.u32 [#allocation23], 4
          %s468 = int_to_ptr.vmem [resolvable:$true] %s467
          %470 = dma.hbm_to_vmem [thread:$0]  %s12, 16, %s468, [#allocation22]
        $region48: #{tpu_custom_call.1} parent=11 // pred_fallthru
          _
      $region12: #{tpu_custom_call.1} parent=5 // pred_fallthru
        _
      %p471 = scmp.lt.s32.totalorder %s31, 5
      // Predicated region
      $region49: #{tpu_custom_call.1} parent=5 // pred_check
        %p472 = pneg %p471
      $region50: #{tpu_custom_call.1} parent=5 // pred_check_branch
        %474 = sbr.rel (%p472) target = $region52
      $region51: #{tpu_custom_call.1} parent=5 // pred_region
        // Predicated region
        $region53: #{tpu_custom_call.1} parent=51 // pred_check
          %p475 = pneg %p114
        $region54: #{tpu_custom_call.1} parent=51 // pred_check_branch
          %477 = sbr.rel (%p475) target = $region56
        $region55: #{tpu_custom_call.1} parent=51 // pred_region
          %s478 = sand.u32 %s31, 1
          %s479 = scalar_lea.sflag [#allocation10], %s478
          %s480 = sand.u32 %s104, 1
          %s481 = smul.addr %s480, 1600
          %s482 = scalar_lea.vmem [#allocation9], %s481
          %s484 = ssub.s32 25600, 25600
          %485 = vsyncadd %s479, %s484
          %s486 = smul.addr %s31, 400
          %s487 = smul.addr %s486, 64
          %s488 = scalar_lea.hbm %s3, %s487
          %s489 = sshll.u32 %s482, 4
          %s490 = int_to_ptr.vmem [resolvable:$true] %s489
          %495 = dma.hbm_to_vmem [thread:$0]  %s488, 25600, %s490, %s479, 320, 320, 20
        $region56: #{tpu_custom_call.1} parent=51 // pred_fallthru
          _
        // Predicated region
        $region57: #{tpu_custom_call.1} parent=51 // pred_check
          %p496 = pneg %p140
        $region58: #{tpu_custom_call.1} parent=51 // pred_check_branch
          %498 = sbr.rel (%p496) target = $region60
        $region59: #{tpu_custom_call.1} parent=51 // pred_region
          %s499 = sand.u32 %s31, 1
          %s500 = scalar_lea.sflag [#allocation10], %s499
          %s501 = sand.u32 %s130, 1
          %s502 = smul.addr %s501, 5
          %s503 = scalar_lea.vmem [#allocation11], %s502
          %s505 = ssub.s32 80, 80
          %506 = vsyncadd %s500, %s505
          %s507 = smul.addr %s31, 5
          %s508 = smul.addr %s507, 16
          %s509 = scalar_lea.hbm %s4, %s508
          %s511 = sshll.u32 %s503, 4
          %s512 = int_to_ptr.vmem [resolvable:$true] %s511
          %514 = dma.hbm_to_vmem [thread:$0]  %s509, 80, %s512, %s500
        $region60: #{tpu_custom_call.1} parent=51 // pred_fallthru
          _
        // Predicated region
        $region61: #{tpu_custom_call.1} parent=51 // pred_check
          %p515 = pneg %p166
        $region62: #{tpu_custom_call.1} parent=51 // pred_check_branch
          %517 = sbr.rel (%p515) target = $region64
        $region63: #{tpu_custom_call.1} parent=51 // pred_region
          %s518 = sand.u32 %s31, 1
          %s519 = scalar_lea.sflag [#allocation13], %s518
          %s520 = sand.u32 %s156, 1
          %s521 = smul.addr %s520, 1600
          %s522 = scalar_lea.vmem [#allocation12], %s521
          %s524 = ssub.s32 25600, 25600
          %525 = vsyncadd %s519, %s524
          %s526 = smul.addr %s31, 400
          %s527 = smul.addr %s526, 64
          %s528 = scalar_lea.hbm %s5, %s527
          %s529 = sshll.u32 %s522, 4
          %s530 = int_to_ptr.vmem [resolvable:$true] %s529
          %535 = dma.hbm_to_vmem [thread:$0]  %s528, 25600, %s530, %s519, 320, 320, 20
        $region64: #{tpu_custom_call.1} parent=51 // pred_fallthru
          _
        // Predicated region
        $region65: #{tpu_custom_call.1} parent=51 // pred_check
          %p536 = pneg %p192
        $region66: #{tpu_custom_call.1} parent=51 // pred_check_branch
          %538 = sbr.rel (%p536) target = $region68
        $region67: #{tpu_custom_call.1} parent=51 // pred_region
          %s539 = sand.u32 %s31, 1
          %s540 = scalar_lea.sflag [#allocation13], %s539
          %s541 = sand.u32 %s182, 1
          %s542 = smul.addr %s541, 5
          %s543 = scalar_lea.vmem [#allocation14], %s542
          %s545 = ssub.s32 80, 80
          %546 = vsyncadd %s540, %s545
          %s547 = smul.addr %s31, 5
          %s548 = smul.addr %s547, 16
          %s549 = scalar_lea.hbm %s6, %s548
          %s551 = sshll.u32 %s543, 4
          %s552 = int_to_ptr.vmem [resolvable:$true] %s551
          %554 = dma.hbm_to_vmem [thread:$0]  %s549, 80, %s552, %s540
        $region68: #{tpu_custom_call.1} parent=51 // pred_fallthru
          _
      $region52: #{tpu_custom_call.1} parent=5 // pred_fallthru
        _
      %p555 = scmp.le.s32.totalorder 1, %s31
      %p556 = scmp.lt.s32.totalorder %s31, 6
      %p557 = pnand %p555, %p556
      %p558 = pneg %p557
      // Predicated region
      $region69: #{tpu_custom_call.1} parent=5 // pred_check
        _
      $region70: #{tpu_custom_call.1} parent=5 // pred_check_branch
        %560 = sbr.rel (%p557) target = $region72
      $region71: #{tpu_custom_call.1} parent=5 // pred_region
        %s561 = ssub.s32 %s31, 1
        // Predicated region
        $region73: #{tpu_custom_call.1} parent=71 // pred_check
          %p562 = pneg %p52
        $region74: #{tpu_custom_call.1} parent=71 // pred_check_branch
          %564 = sbr.rel (%p562) target = $region76
        $region75: #{tpu_custom_call.1} parent=71 // pred_region
          %565 = dma.done [#allocation4], 10240
        $region76: #{tpu_custom_call.1} parent=71 // pred_fallthru
          _
        // Predicated region
        $region77: #{tpu_custom_call.1} parent=71 // pred_check
          %p566 = pneg %p73
        $region78: #{tpu_custom_call.1} parent=71 // pred_check_branch
          %568 = sbr.rel (%p566) target = $region80
        $region79: #{tpu_custom_call.1} parent=71 // pred_region
          %569 = dma.done [#allocation7], 2048
        $region80: #{tpu_custom_call.1} parent=71 // pred_fallthru
          _
        // Predicated region
        $region81: #{tpu_custom_call.1} parent=71 // pred_check
          %p570 = pneg %p94
        $region82: #{tpu_custom_call.1} parent=71 // pred_check_branch
          %572 = sbr.rel (%p570) target = $region84
        $region83: #{tpu_custom_call.1} parent=71 // pred_region
          %573 = dma.done [#allocation7], 256
        $region84: #{tpu_custom_call.1} parent=71 // pred_fallthru
          _
        %s574 = sand.u32 %s36, 1
        %s575 = scalar_lea.sflag [#allocation10], %s574
        %s576 = sand.u32 %s107, 1
        %s577 = smul.addr %s576, 1600
        %s578 = scalar_lea.vmem [#allocation9], %s577
        // Predicated region
        $region85: #{tpu_custom_call.1} parent=71 // pred_check
          %p579 = pneg %p120
        $region86: #{tpu_custom_call.1} parent=71 // pred_check_branch
          %581 = sbr.rel (%p579) target = $region88
        $region87: #{tpu_custom_call.1} parent=71 // pred_region
          %582 = dma.done %s575, 25600
        $region88: #{tpu_custom_call.1} parent=71 // pred_fallthru
          _
        %s583 = sand.u32 %s36, 1
        %s584 = scalar_lea.sflag [#allocation10], %s583
        %s585 = sand.u32 %s133, 1
        %s586 = smul.addr %s585, 5
        %s587 = scalar_lea.vmem [#allocation11], %s586
        // Predicated region
        $region89: #{tpu_custom_call.1} parent=71 // pred_check
          %p588 = pneg %p146
        $region90: #{tpu_custom_call.1} parent=71 // pred_check_branch
          %590 = sbr.rel (%p588) target = $region92
        $region91: #{tpu_custom_call.1} parent=71 // pred_region
          %591 = dma.done %s584, 80
        $region92: #{tpu_custom_call.1} parent=71 // pred_fallthru
          _
        %s592 = sand.u32 %s36, 1
        %s593 = scalar_lea.sflag [#allocation13], %s592
        %s594 = sand.u32 %s159, 1
        %s595 = smul.addr %s594, 1600
        %s596 = scalar_lea.vmem [#allocation12], %s595
        // Predicated region
        $region93: #{tpu_custom_call.1} parent=71 // pred_check
          %p597 = pneg %p172
        $region94: #{tpu_custom_call.1} parent=71 // pred_check_branch
          %599 = sbr.rel (%p597) target = $region96
        $region95: #{tpu_custom_call.1} parent=71 // pred_region
          %600 = dma.done %s593, 25600
        $region96: #{tpu_custom_call.1} parent=71 // pred_fallthru
          _
        %s601 = sand.u32 %s36, 1
        %s602 = scalar_lea.sflag [#allocation13], %s601
        %s603 = sand.u32 %s185, 1
        %s604 = smul.addr %s603, 5
        %s605 = scalar_lea.vmem [#allocation14], %s604
        // Predicated region
        $region97: #{tpu_custom_call.1} parent=71 // pred_check
          %p606 = pneg %p198
        $region98: #{tpu_custom_call.1} parent=71 // pred_check_branch
          %608 = sbr.rel (%p606) target = $region100
        $region99: #{tpu_custom_call.1} parent=71 // pred_region
          %609 = dma.done %s602, 80
        $region100: #{tpu_custom_call.1} parent=71 // pred_fallthru
          _
        // Predicated region
        $region101: #{tpu_custom_call.1} parent=71 // pred_check
          %p610 = pneg %p219
        $region102: #{tpu_custom_call.1} parent=71 // pred_check_branch
          %612 = sbr.rel (%p610) target = $region104
        $region103: #{tpu_custom_call.1} parent=71 // pred_region
          %613 = dma.done [#allocation16], 10240
        $region104: #{tpu_custom_call.1} parent=71 // pred_fallthru
          _
        // Predicated region
        $region105: #{tpu_custom_call.1} parent=71 // pred_check
          %p614 = pneg %p240
        $region106: #{tpu_custom_call.1} parent=71 // pred_check_branch
          %616 = sbr.rel (%p614) target = $region108
        $region107: #{tpu_custom_call.1} parent=71 // pred_region
          %617 = dma.done [#allocation16], 32
        $region108: #{tpu_custom_call.1} parent=71 // pred_fallthru
          _
        // Predicated region
        $region109: #{tpu_custom_call.1} parent=71 // pred_check
          %p618 = pneg %p261
        $region110: #{tpu_custom_call.1} parent=71 // pred_check_branch
          %620 = sbr.rel (%p618) target = $region112
        $region111: #{tpu_custom_call.1} parent=71 // pred_region
          %621 = dma.done [#allocation19], 4096
        $region112: #{tpu_custom_call.1} parent=71 // pred_fallthru
          _
        // Predicated region
        $region113: #{tpu_custom_call.1} parent=71 // pred_check
          %p622 = pneg %p282
        $region114: #{tpu_custom_call.1} parent=71 // pred_check_branch
          %624 = sbr.rel (%p622) target = $region116
        $region115: #{tpu_custom_call.1} parent=71 // pred_region
          %625 = dma.done [#allocation19], 32
        $region116: #{tpu_custom_call.1} parent=71 // pred_fallthru
          _
        // Predicated region
        $region117: #{tpu_custom_call.1} parent=71 // pred_check
          %p626 = pneg %p303
        $region118: #{tpu_custom_call.1} parent=71 // pred_check_branch
          %628 = sbr.rel (%p626) target = $region120
        $region119: #{tpu_custom_call.1} parent=71 // pred_region
          %629 = dma.done [#allocation22], 2048
        $region120: #{tpu_custom_call.1} parent=71 // pred_fallthru
          _
        // Predicated region
        $region121: #{tpu_custom_call.1} parent=71 // pred_check
          %p630 = pneg %p324
        $region122: #{tpu_custom_call.1} parent=71 // pred_check_branch
          %632 = sbr.rel (%p630) target = $region124
        $region123: #{tpu_custom_call.1} parent=71 // pred_region
          %633 = dma.done [#allocation22], 16
        $region124: #{tpu_custom_call.1} parent=71 // pred_fallthru
          _
        %p634 = pneg %p52
        %p635 = pneg %p49
        %p636 = pneg %p73
        %p637 = pneg %p70
        %p638 = pneg %p94
        %p639 = pneg %p91
        %s640 = sand.u32 %s36, 1
        %s641 = scalar_lea.sflag [#allocation10], %s640
        %s642 = sand.u32 %s107, 1
        %s643 = smul.addr %s642, 1600
        %s644 = scalar_lea.vmem [#allocation9], %s643
        %p645 = pneg %p120
        %p646 = pneg %p117
        %s647 = sand.u32 %s36, 1
        %s648 = scalar_lea.sflag [#allocation10], %s647
        %s649 = sand.u32 %s133, 1
        %s650 = smul.addr %s649, 5
        %s651 = scalar_lea.vmem [#allocation11], %s650
        %p652 = pneg %p146
        %p653 = pneg %p143
        %s654 = sand.u32 %s36, 1
        %s655 = scalar_lea.sflag [#allocation13], %s654
        %s656 = sand.u32 %s159, 1
        %s657 = smul.addr %s656, 1600
        %s658 = scalar_lea.vmem [#allocation12], %s657
        %p659 = pneg %p172
        %p660 = pneg %p169
        %s661 = sand.u32 %s36, 1
        %s662 = scalar_lea.sflag [#allocation13], %s661
        %s663 = sand.u32 %s185, 1
        %s664 = smul.addr %s663, 5
        %s665 = scalar_lea.vmem [#allocation14], %s664
        %p666 = pneg %p198
        %p667 = pneg %p195
        %p668 = pneg %p219
        %p669 = pneg %p216
        %p670 = pneg %p240
        %p671 = pneg %p237
        %p672 = pneg %p261
        %p673 = pneg %p258
        %p674 = pneg %p282
        %p675 = pneg %p279
        %p676 = pneg %p303
        %p677 = pneg %p300
        %p678 = pneg %p324
        %p679 = pneg %p321
        %p680 = pneg %p345
        %p681 = pneg %p342
        %p682 = scmp.eq.s32.totalorder %s36, 0
        // Predicated region
        $region125: #{tpu_custom_call.1} parent=71 // pred_check
          %p683 = pneg %p682
        $region126: #{tpu_custom_call.1} parent=71 // pred_check_branch
          %685 = sbr.rel (%p683) target = $region128
        $region127: #{tpu_custom_call.1} parent=71 // pred_region
          %v686 = vld [vmem:[#allocation3] sm:$0xff]
          %v687 = vld [vmem:[#allocation3 + $0x8] sm:$0xff]
          %v688 = vld [vmem:[#allocation3 + $0x10] sm:$0xff]
          %v689 = vld [vmem:[#allocation3 + $0x18] sm:$0xff]
          %v690 = vld [vmem:[#allocation3 + $0x20] sm:$0xff]
          %v691 = vld [vmem:[#allocation3 + $0x28] sm:$0xff]
          %v692 = vld [vmem:[#allocation3 + $0x30] sm:$0xff]
          %v693 = vld [vmem:[#allocation3 + $0x38] sm:$0xff]
          %v694 = vld [vmem:[#allocation3 + $0x40] sm:$0xff]
          %v695 = vld [vmem:[#allocation3 + $0x48] sm:$0xff]
          %v696 = vld [vmem:[#allocation3 + $0x50] sm:$0xff]
          %v697 = vld [vmem:[#allocation3 + $0x58] sm:$0xff]
          %v698 = vld [vmem:[#allocation3 + $0x60] sm:$0xff]
          %v699 = vld [vmem:[#allocation3 + $0x68] sm:$0xff]
          %v700 = vld [vmem:[#allocation3 + $0x70] sm:$0xff]
          %v701 = vld [vmem:[#allocation3 + $0x78] sm:$0xff]
          %v702 = vld [vmem:[#allocation3 + $0x80] sm:$0xff]
          %v703 = vld [vmem:[#allocation3 + $0x88] sm:$0xff]
          %v704 = vld [vmem:[#allocation3 + $0x90] sm:$0xff]
          %v705 = vld [vmem:[#allocation3 + $0x98] sm:$0xff]
          %v706 = vld [vmem:[#allocation3 + $0xa0] sm:$0xff]
          %v707 = vld [vmem:[#allocation3 + $0xa8] sm:$0xff]
          %v708 = vld [vmem:[#allocation3 + $0xb0] sm:$0xff]
          %v709 = vld [vmem:[#allocation3 + $0xb8] sm:$0xff]
          %v710 = vld [vmem:[#allocation3 + $0xc0] sm:$0xff]
          %v711 = vld [vmem:[#allocation3 + $0xc8] sm:$0xff]
          %v712 = vld [vmem:[#allocation3 + $0xd0] sm:$0xff]
          %v713 = vld [vmem:[#allocation3 + $0xd8] sm:$0xff]
          %v714 = vld [vmem:[#allocation3 + $0xe0] sm:$0xff]
          %v715 = vld [vmem:[#allocation3 + $0xe8] sm:$0xff]
          %v716 = vld [vmem:[#allocation3 + $0xf0] sm:$0xff]
          %v717 = vld [vmem:[#allocation3 + $0xf8] sm:$0xff]
          %v718 = vld [vmem:[#allocation3 + $0x100] sm:$0xff]
          %v719 = vld [vmem:[#allocation3 + $0x108] sm:$0xff]
          %v720 = vld [vmem:[#allocation3 + $0x110] sm:$0xff]
          %v721 = vld [vmem:[#allocation3 + $0x118] sm:$0xff]
          %v722 = vld [vmem:[#allocation3 + $0x120] sm:$0xff]
          %v723 = vld [vmem:[#allocation3 + $0x128] sm:$0xff]
          %v724 = vld [vmem:[#allocation3 + $0x130] sm:$0xff]
          %v725 = vld [vmem:[#allocation3 + $0x138] sm:$0xff]
          %v726 = vld [vmem:[#allocation3 + $0x140] sm:$0xff]
          %v727 = vld [vmem:[#allocation3 + $0x148] sm:$0xff]
          %v728 = vld [vmem:[#allocation3 + $0x150] sm:$0xff]
          %v729 = vld [vmem:[#allocation3 + $0x158] sm:$0xff]
          %v730 = vld [vmem:[#allocation3 + $0x160] sm:$0xff]
          %v731 = vld [vmem:[#allocation3 + $0x168] sm:$0xff]
          %v732 = vld [vmem:[#allocation3 + $0x170] sm:$0xff]
          %v733 = vld [vmem:[#allocation3 + $0x178] sm:$0xff]
          %v734 = vld [vmem:[#allocation3 + $0x180] sm:$0xff]
          %v735 = vld [vmem:[#allocation3 + $0x188] sm:$0xff]
          %v736 = vld [vmem:[#allocation3 + $0x190] sm:$0xff]
          %v737 = vld [vmem:[#allocation3 + $0x198] sm:$0xff]
          %v738 = vld [vmem:[#allocation3 + $0x1a0] sm:$0xff]
          %v739 = vld [vmem:[#allocation3 + $0x1a8] sm:$0xff]
          %v740 = vld [vmem:[#allocation3 + $0x1b0] sm:$0xff]
          %v741 = vld [vmem:[#allocation3 + $0x1b8] sm:$0xff]
          %v742 = vld [vmem:[#allocation3 + $0x1c0] sm:$0xff]
          %v743 = vld [vmem:[#allocation3 + $0x1c8] sm:$0xff]
          %v744 = vld [vmem:[#allocation3 + $0x1d0] sm:$0xff]
          %v745 = vld [vmem:[#allocation3 + $0x1d8] sm:$0xff]
          %v746 = vld [vmem:[#allocation3 + $0x1e0] sm:$0xff]
          %v747 = vld [vmem:[#allocation3 + $0x1e8] sm:$0xff]
          %v748 = vld [vmem:[#allocation3 + $0x1f0] sm:$0xff]
          %v749 = vld [vmem:[#allocation3 + $0x1f8] sm:$0xff]
          %v750 = vld [vmem:[#allocation3 + $0x200] sm:$0xff]
          %v751 = vld [vmem:[#allocation3 + $0x208] sm:$0xff]
          %v752 = vld [vmem:[#allocation3 + $0x210] sm:$0xff]
          %v753 = vld [vmem:[#allocation3 + $0x218] sm:$0xff]
          %v754 = vld [vmem:[#allocation3 + $0x220] sm:$0xff]
          %v755 = vld [vmem:[#allocation3 + $0x228] sm:$0xff]
          %v756 = vld [vmem:[#allocation3 + $0x230] sm:$0xff]
          %v757 = vld [vmem:[#allocation3 + $0x238] sm:$0xff]
          %v758 = vld [vmem:[#allocation3 + $0x240] sm:$0xff]
          %v759 = vld [vmem:[#allocation3 + $0x248] sm:$0xff]
          %v760 = vld [vmem:[#allocation3 + $0x250] sm:$0xff]
          %v761 = vld [vmem:[#allocation3 + $0x258] sm:$0xff]
          %v762 = vld [vmem:[#allocation3 + $0x260] sm:$0xff]
          %v763 = vld [vmem:[#allocation3 + $0x268] sm:$0xff]
          %v764 = vld [vmem:[#allocation3 + $0x270] sm:$0xff]
          %v765 = vld [vmem:[#allocation3 + $0x278] sm:$0xff]
          %766 = vst [vmem:[#allocation2] sm:$0xff] %v686
          %767 = vst [vmem:[#allocation2 + $0x8] sm:$0xff] %v687
          %768 = vst [vmem:[#allocation2 + $0x10] sm:$0xff] %v688
          %769 = vst [vmem:[#allocation2 + $0x18] sm:$0xff] %v689
          %770 = vst [vmem:[#allocation2 + $0x20] sm:$0xff] %v690
          %771 = vst [vmem:[#allocation2 + $0x28] sm:$0xff] %v691
          %772 = vst [vmem:[#allocation2 + $0x30] sm:$0xff] %v692
          %773 = vst [vmem:[#allocation2 + $0x38] sm:$0xff] %v693
          %774 = vst [vmem:[#allocation2 + $0x40] sm:$0xff] %v694
          %775 = vst [vmem:[#allocation2 + $0x48] sm:$0xff] %v695
          %776 = vst [vmem:[#allocation2 + $0x50] sm:$0xff] %v696
          %777 = vst [vmem:[#allocation2 + $0x58] sm:$0xff] %v697
          %778 = vst [vmem:[#allocation2 + $0x60] sm:$0xff] %v698
          %779 = vst [vmem:[#allocation2 + $0x68] sm:$0xff] %v699
          %780 = vst [vmem:[#allocation2 + $0x70] sm:$0xff] %v700
          %781 = vst [vmem:[#allocation2 + $0x78] sm:$0xff] %v701
          %782 = vst [vmem:[#allocation2 + $0x80] sm:$0xff] %v702
          %783 = vst [vmem:[#allocation2 + $0x88] sm:$0xff] %v703
          %784 = vst [vmem:[#allocation2 + $0x90] sm:$0xff] %v704
          %785 = vst [vmem:[#allocation2 + $0x98] sm:$0xff] %v705
          %786 = vst [vmem:[#allocation2 + $0xa0] sm:$0xff] %v706
          %787 = vst [vmem:[#allocation2 + $0xa8] sm:$0xff] %v707
          %788 = vst [vmem:[#allocation2 + $0xb0] sm:$0xff] %v708
          %789 = vst [vmem:[#allocation2 + $0xb8] sm:$0xff] %v709
          %790 = vst [vmem:[#allocation2 + $0xc0] sm:$0xff] %v710
          %791 = vst [vmem:[#allocation2 + $0xc8] sm:$0xff] %v711
          %792 = vst [vmem:[#allocation2 + $0xd0] sm:$0xff] %v712
          %793 = vst [vmem:[#allocation2 + $0xd8] sm:$0xff] %v713
          %794 = vst [vmem:[#allocation2 + $0xe0] sm:$0xff] %v714
          %795 = vst [vmem:[#allocation2 + $0xe8] sm:$0xff] %v715
          %796 = vst [vmem:[#allocation2 + $0xf0] sm:$0xff] %v716
          %797 = vst [vmem:[#allocation2 + $0xf8] sm:$0xff] %v717
          %798 = vst [vmem:[#allocation2 + $0x100] sm:$0xff] %v718
          %799 = vst [vmem:[#allocation2 + $0x108] sm:$0xff] %v719
          %800 = vst [vmem:[#allocation2 + $0x110] sm:$0xff] %v720
          %801 = vst [vmem:[#allocation2 + $0x118] sm:$0xff] %v721
          %802 = vst [vmem:[#allocation2 + $0x120] sm:$0xff] %v722
          %803 = vst [vmem:[#allocation2 + $0x128] sm:$0xff] %v723
          %804 = vst [vmem:[#allocation2 + $0x130] sm:$0xff] %v724
          %805 = vst [vmem:[#allocation2 + $0x138] sm:$0xff] %v725
          %806 = vst [vmem:[#allocation2 + $0x140] sm:$0xff] %v726
          %807 = vst [vmem:[#allocation2 + $0x148] sm:$0xff] %v727
          %808 = vst [vmem:[#allocation2 + $0x150] sm:$0xff] %v728
          %809 = vst [vmem:[#allocation2 + $0x158] sm:$0xff] %v729
          %810 = vst [vmem:[#allocation2 + $0x160] sm:$0xff] %v730
          %811 = vst [vmem:[#allocation2 + $0x168] sm:$0xff] %v731
          %812 = vst [vmem:[#allocation2 + $0x170] sm:$0xff] %v732
          %813 = vst [vmem:[#allocation2 + $0x178] sm:$0xff] %v733
          %814 = vst [vmem:[#allocation2 + $0x180] sm:$0xff] %v734
          %815 = vst [vmem:[#allocation2 + $0x188] sm:$0xff] %v735
          %816 = vst [vmem:[#allocation2 + $0x190] sm:$0xff] %v736
          %817 = vst [vmem:[#allocation2 + $0x198] sm:$0xff] %v737
          %818 = vst [vmem:[#allocation2 + $0x1a0] sm:$0xff] %v738
          %819 = vst [vmem:[#allocation2 + $0x1a8] sm:$0xff] %v739
          %820 = vst [vmem:[#allocation2 + $0x1b0] sm:$0xff] %v740
          %821 = vst [vmem:[#allocation2 + $0x1b8] sm:$0xff] %v741
          %822 = vst [vmem:[#allocation2 + $0x1c0] sm:$0xff] %v742
          %823 = vst [vmem:[#allocation2 + $0x1c8] sm:$0xff] %v743
          %824 = vst [vmem:[#allocation2 + $0x1d0] sm:$0xff] %v744
          %825 = vst [vmem:[#allocation2 + $0x1d8] sm:$0xff] %v745
          %826 = vst [vmem:[#allocation2 + $0x1e0] sm:$0xff] %v746
          %827 = vst [vmem:[#allocation2 + $0x1e8] sm:$0xff] %v747
          %828 = vst [vmem:[#allocation2 + $0x1f0] sm:$0xff] %v748
          %829 = vst [vmem:[#allocation2 + $0x1f8] sm:$0xff] %v749
          %830 = vst [vmem:[#allocation2 + $0x200] sm:$0xff] %v750
          %831 = vst [vmem:[#allocation2 + $0x208] sm:$0xff] %v751
          %832 = vst [vmem:[#allocation2 + $0x210] sm:$0xff] %v752
          %833 = vst [vmem:[#allocation2 + $0x218] sm:$0xff] %v753
          %834 = vst [vmem:[#allocation2 + $0x220] sm:$0xff] %v754
          %835 = vst [vmem:[#allocation2 + $0x228] sm:$0xff] %v755
          %836 = vst [vmem:[#allocation2 + $0x230] sm:$0xff] %v756
          %837 = vst [vmem:[#allocation2 + $0x238] sm:$0xff] %v757
          %838 = vst [vmem:[#allocation2 + $0x240] sm:$0xff] %v758
          %839 = vst [vmem:[#allocation2 + $0x248] sm:$0xff] %v759
          %840 = vst [vmem:[#allocation2 + $0x250] sm:$0xff] %v760
          %841 = vst [vmem:[#allocation2 + $0x258] sm:$0xff] %v761
          %842 = vst [vmem:[#allocation2 + $0x260] sm:$0xff] %v762
          %843 = vst [vmem:[#allocation2 + $0x268] sm:$0xff] %v763
          %844 = vst [vmem:[#allocation2 + $0x270] sm:$0xff] %v764
          %845 = vst [vmem:[#allocation2 + $0x278] sm:$0xff] %v765
        $region128: #{tpu_custom_call.1} parent=71 // pred_fallthru
          _
        %v846 = vld [vmem:[#allocation2] sm:$0xff]
        %v847 = vld [vmem:[#allocation2 + $0x8] sm:$0xff]
        %v848 = vld [vmem:[#allocation2 + $0x10] sm:$0xff]
        %v849 = vld [vmem:[#allocation2 + $0x18] sm:$0xff]
        %v850 = vld [vmem:[#allocation2 + $0x20] sm:$0xff]
        %v851 = vld [vmem:[#allocation2 + $0x28] sm:$0xff]
        %v852 = vld [vmem:[#allocation2 + $0x30] sm:$0xff]
        %v853 = vld [vmem:[#allocation2 + $0x38] sm:$0xff]
        %v854 = vld [vmem:[#allocation2 + $0x40] sm:$0xff]
        %v855 = vld [vmem:[#allocation2 + $0x48] sm:$0xff]
        %v856 = vld [vmem:[#allocation2 + $0x50] sm:$0xff]
        %v857 = vld [vmem:[#allocation2 + $0x58] sm:$0xff]
        %v858 = vld [vmem:[#allocation2 + $0x60] sm:$0xff]
        %v859 = vld [vmem:[#allocation2 + $0x68] sm:$0xff]
        %v860 = vld [vmem:[#allocation2 + $0x70] sm:$0xff]
        %v861 = vld [vmem:[#allocation2 + $0x78] sm:$0xff]
        %v862 = vld [vmem:[#allocation2 + $0x80] sm:$0xff]
        %v863 = vld [vmem:[#allocation2 + $0x88] sm:$0xff]
        %v864 = vld [vmem:[#allocation2 + $0x90] sm:$0xff]
        %v865 = vld [vmem:[#allocation2 + $0x98] sm:$0xff]
        %v866 = vld [vmem:[#allocation2 + $0xa0] sm:$0xff]
        %v867 = vld [vmem:[#allocation2 + $0xa8] sm:$0xff]
        %v868 = vld [vmem:[#allocation2 + $0xb0] sm:$0xff]
        %v869 = vld [vmem:[#allocation2 + $0xb8] sm:$0xff]
        %v870 = vld [vmem:[#allocation2 + $0xc0] sm:$0xff]
        %v871 = vld [vmem:[#allocation2 + $0xc8] sm:$0xff]
        %v872 = vld [vmem:[#allocation2 + $0xd0] sm:$0xff]
        %v873 = vld [vmem:[#allocation2 + $0xd8] sm:$0xff]
        %v874 = vld [vmem:[#allocation2 + $0xe0] sm:$0xff]
        %v875 = vld [vmem:[#allocation2 + $0xe8] sm:$0xff]
        %v876 = vld [vmem:[#allocation2 + $0xf0] sm:$0xff]
        %v877 = vld [vmem:[#allocation2 + $0xf8] sm:$0xff]
        %v878 = vld [vmem:[#allocation2 + $0x100] sm:$0xff]
        %v879 = vld [vmem:[#allocation2 + $0x108] sm:$0xff]
        %v880 = vld [vmem:[#allocation2 + $0x110] sm:$0xff]
        %v881 = vld [vmem:[#allocation2 + $0x118] sm:$0xff]
        %v882 = vld [vmem:[#allocation2 + $0x120] sm:$0xff]
        %v883 = vld [vmem:[#allocation2 + $0x128] sm:$0xff]
        %v884 = vld [vmem:[#allocation2 + $0x130] sm:$0xff]
        %v885 = vld [vmem:[#allocation2 + $0x138] sm:$0xff]
        %v886 = vld [vmem:[#allocation2 + $0x140] sm:$0xff]
        %v887 = vld [vmem:[#allocation2 + $0x148] sm:$0xff]
        %v888 = vld [vmem:[#allocation2 + $0x150] sm:$0xff]
        %v889 = vld [vmem:[#allocation2 + $0x158] sm:$0xff]
        %v890 = vld [vmem:[#allocation2 + $0x160] sm:$0xff]
        %v891 = vld [vmem:[#allocation2 + $0x168] sm:$0xff]
        %v892 = vld [vmem:[#allocation2 + $0x170] sm:$0xff]
        %v893 = vld [vmem:[#allocation2 + $0x178] sm:$0xff]
        %v894 = vld [vmem:[#allocation2 + $0x180] sm:$0xff]
        %v895 = vld [vmem:[#allocation2 + $0x188] sm:$0xff]
        %v896 = vld [vmem:[#allocation2 + $0x190] sm:$0xff]
        %v897 = vld [vmem:[#allocation2 + $0x198] sm:$0xff]
        %v898 = vld [vmem:[#allocation2 + $0x1a0] sm:$0xff]
        %v899 = vld [vmem:[#allocation2 + $0x1a8] sm:$0xff]
        %v900 = vld [vmem:[#allocation2 + $0x1b0] sm:$0xff]
        %v901 = vld [vmem:[#allocation2 + $0x1b8] sm:$0xff]
        %v902 = vld [vmem:[#allocation2 + $0x1c0] sm:$0xff]
        %v903 = vld [vmem:[#allocation2 + $0x1c8] sm:$0xff]
        %v904 = vld [vmem:[#allocation2 + $0x1d0] sm:$0xff]
        %v905 = vld [vmem:[#allocation2 + $0x1d8] sm:$0xff]
        %v906 = vld [vmem:[#allocation2 + $0x1e0] sm:$0xff]
        %v907 = vld [vmem:[#allocation2 + $0x1e8] sm:$0xff]
        %v908 = vld [vmem:[#allocation2 + $0x1f0] sm:$0xff]
        %v909 = vld [vmem:[#allocation2 + $0x1f8] sm:$0xff]
        %v910 = vld [vmem:[#allocation2 + $0x200] sm:$0xff]
        %v911 = vld [vmem:[#allocation2 + $0x208] sm:$0xff]
        %v912 = vld [vmem:[#allocation2 + $0x210] sm:$0xff]
        %v913 = vld [vmem:[#allocation2 + $0x218] sm:$0xff]
        %v914 = vld [vmem:[#allocation2 + $0x220] sm:$0xff]
        %v915 = vld [vmem:[#allocation2 + $0x228] sm:$0xff]
        %v916 = vld [vmem:[#allocation2 + $0x230] sm:$0xff]
        %v917 = vld [vmem:[#allocation2 + $0x238] sm:$0xff]
        %v918 = vld [vmem:[#allocation2 + $0x240] sm:$0xff]
        %v919 = vld [vmem:[#allocation2 + $0x248] sm:$0xff]
        %v920 = vld [vmem:[#allocation2 + $0x250] sm:$0xff]
        %v921 = vld [vmem:[#allocation2 + $0x258] sm:$0xff]
        %v922 = vld [vmem:[#allocation2 + $0x260] sm:$0xff]
        %v923 = vld [vmem:[#allocation2 + $0x268] sm:$0xff]
        %v924 = vld [vmem:[#allocation2 + $0x270] sm:$0xff]
        %v925 = vld [vmem:[#allocation2 + $0x278] sm:$0xff]
        %v926 = vld [vmem:[#allocation6] sm:$0xff]
        %v927 = vld [vmem:[#allocation6 + $0x8] sm:$0xff]
        %v928 = vld [vmem:[#allocation6 + $0x10] sm:$0xff]
        %v929 = vld [vmem:[#allocation6 + $0x18] sm:$0xff]
        %v930 = vld [vmem:[#allocation6 + $0x20] sm:$0xff]
        %v931 = vld [vmem:[#allocation6 + $0x28] sm:$0xff]
        %v932 = vld [vmem:[#allocation6 + $0x30] sm:$0xff]
        %v933 = vld [vmem:[#allocation6 + $0x38] sm:$0xff]
        %v934 = vld [vmem:[#allocation6 + $0x40] sm:$0xff]
        %v935 = vld [vmem:[#allocation6 + $0x48] sm:$0xff]
        %v936 = vld [vmem:[#allocation6 + $0x50] sm:$0xff]
        %v937 = vld [vmem:[#allocation6 + $0x58] sm:$0xff]
        %v938 = vld [vmem:[#allocation6 + $0x60] sm:$0xff]
        %v939 = vld [vmem:[#allocation6 + $0x68] sm:$0xff]
        %v940 = vld [vmem:[#allocation6 + $0x70] sm:$0xff]
        %v941 = vld [vmem:[#allocation6 + $0x78] sm:$0xff]
        %942 = vmatprep.subr.mxu0 %v847
        %943 = vmatpush1.msra.mxu0 %v846
        %944 = vmatprep.subr.mxu0 %v852
        %945 = vmatpush1.msra.mxu0 %v851
        %946 = vmatprep.subr.mxu0 %v857
        %947 = vmatpush1.msra.mxu0 %v856
        %948 = vmatprep.subr.mxu0 %v862
        %949 = vmatpush1.msra.mxu0 %v861
        %950 = vmatprep.subr.mxu0 %v867
        %951 = vmatpush1.msra.mxu0 %v866
        %952 = vmatprep.subr.mxu0 %v872
        %953 = vmatpush1.msra.mxu0 %v871
        %954 = vmatprep.subr.mxu0 %v877
        %955 = vmatpush1.msra.mxu0 %v876
        %956 = vmatprep.subr.mxu0 %v882
        %957 = vmatpush1.msra.mxu0 %v881
        %958 = vmatprep.subr.mxu0 %v887
        %959 = vmatpush1.msra.mxu0 %v886
        %960 = vmatprep.subr.mxu0 %v892
        %961 = vmatpush1.msra.mxu0 %v891
        %962 = vmatprep.subr.mxu0 %v897
        %963 = vmatpush1.msra.mxu0 %v896
        %964 = vmatprep.subr.mxu0 %v902
        %965 = vmatpush1.msra.mxu0 %v901
        %966 = vmatprep.subr.mxu0 %v907
        %967 = vmatpush1.msra.mxu0 %v906
        %968 = vmatprep.subr.mxu0 %v912
        %969 = vmatpush1.msra.mxu0 %v911
        %970 = vmatprep.subr.mxu0 %v917
        %971 = vmatpush1.msra.mxu0 %v916
        %972 = vmatprep.subr.mxu0 %v922
        %973 = vmatpush1.msra.mxu0 %v921
        %974 = vmatprep.subr.mxu0 0.0
        %975 = vmatpush1.msra.mxu0 0.0
        %976 = vmatprep.subr.mxu0 0.0
        %977 = vmatpush1.msra.mxu0 0.0
        %978 = vmatprep.subr.mxu0 0.0
        %979 = vmatpush1.msra.mxu0 0.0
        %980 = vmatprep.subr.mxu0 0.0
        %981 = vmatpush1.msra.mxu0 0.0
        %982 = vmatprep.subr.mxu0 0.0
        %983 = vmatpush1.msra.mxu0 0.0
        %984 = vmatprep.subr.mxu0 0.0
        %985 = vmatpush1.msra.mxu0 0.0
        %986 = vmatprep.subr.mxu0 0.0
        %987 = vmatpush1.msra.mxu0 0.0
        %988 = vmatprep.subr.mxu0 0.0
        %989 = vmatpush1.msra.mxu0 0.0
        %990 = vmatprep.subr.mxu0 0.0
        %991 = vmatpush1.msra.mxu0 0.0
        %992 = vmatprep.subr.mxu0 0.0
        %993 = vmatpush1.msra.mxu0 0.0
        %994 = vmatprep.subr.mxu0 0.0
        %995 = vmatpush1.msra.mxu0 0.0
        %996 = vmatprep.subr.mxu0 0.0
        %997 = vmatpush1.msra.mxu0 0.0
        %998 = vmatprep.subr.mxu0 0.0
        %999 = vmatpush1.msra.mxu0 0.0
        %1000 = vmatprep.subr.mxu0 0.0
        %1001 = vmatpush1.msra.mxu0 0.0
        %1002 = vmatprep.subr.mxu0 0.0
        %1003 = vmatpush1.msra.mxu0 0.0
        %1004 = vmatprep.subr.mxu0 0.0
        %1005 = vmatpush1.msra.mxu0 0.0
        %1006 = vmatprep.mubr.f32.mxu0 0.0
        %1007 = vmatmul.mubr.f32.gmra.mrb[0].mxu0 %v926
        %v1008 = vpop.f32.mrb[0].mxu0
        %v1009 = vadd.f32 0.0, %v1008
        %v1010 = vpop.f32.mrb[0].mxu0
        %v1011 = vadd.f32 0.0, %v1010
        %1012 = vmatprep.mubr.f32.mxu0 0.0
        %1013 = vmatmul.mubr.f32.gmra.mrb[0].mxu0 %v927
        %v1014 = vpop.f32.mrb[0].mxu0
        %v1015 = vadd.f32 0.0, %v1014
        %v1016 = vpop.f32.mrb[0].mxu0
        %v1017 = vadd.f32 0.0, %v1016
        %1018 = vmatprep.mubr.f32.mxu0 0.0
        %1019 = vmatmul.mubr.f32.gmra.mrb[0].mxu0 %v928
        %v1020 = vpop.f32.mrb[0].mxu0
        %v1021 = vadd.f32 0.0, %v1020
        %v1022 = vpop.f32.mrb[0].mxu0
        %v1023 = vadd.f32 0.0, %v1022
        %1024 = vmatprep.mubr.f32.mxu0 0.0
        %1025 = vmatmul.mubr.f32.gmra.mrb[0].mxu0 %v929
        %v1026 = vpop.f32.mrb[0].mxu0
        %v1027 = vadd.f32 0.0, %v1026
        %v1028 = vpop.f32.mrb[0].mxu0
        %v1029 = vadd.f32 0.0, %v1028
        %1030 = vmatprep.mubr.f32.mxu0 0.0
        %1031 = vmatmul.mubr.f32.gmra.mrb[0].mxu0 %v930
        %v1032 = vpop.f32.mrb[0].mxu0
        %v1033 = vadd.f32 0.0, %v1032
        %v1034 = vpop.f32.mrb[0].mxu0
        %v1035 = vadd.f32 0.0, %v1034
        %1036 = vmatprep.mubr.f32.mxu0 0.0
        %1037 = vmatmul.mubr.f32.gmra.mrb[0].mxu0 %v931
        %v1038 = vpop.f32.mrb[0].mxu0
        %v1039 = vadd.f32 0.0, %v1038
        %v1040 = vpop.f32.mrb[0].mxu0
        %v1041 = vadd.f32 0.0, %v1040
        %1042 = vmatprep.mubr.f32.mxu0 0.0
        %1043 = vmatmul.mubr.f32.gmra.mrb[0].mxu0 %v932
        %v1044 = vpop.f32.mrb[0].mxu0
        %v1045 = vadd.f32 0.0, %v1044
        %v1046 = vpop.f32.mrb[0].mxu0
        %v1047 = vadd.f32 0.0, %v1046
        %1048 = vmatprep.mubr.f32.mxu0 0.0
        %1049 = vmatmul.mubr.f32.gmra.mrb[0].mxu0 %v933
        %v1050 = vpop.f32.mrb[0].mxu0
        %v1051 = vadd.f32 0.0, %v1050
        %v1052 = vpop.f32.mrb[0].mxu0
        %v1053 = vadd.f32 0.0, %v1052
        %1054 = vmatprep.mubr.f32.mxu0 0.0
        %1055 = vmatmul.mubr.f32.gmra.mrb[0].mxu0 %v934
        %v1056 = vpop.f32.mrb[0].mxu0
        %v1057 = vadd.f32 0.0, %v1056
        %v1058 = vpop.f32.mrb[0].mxu0
        %v1059 = vadd.f32 0.0, %v1058
        %1060 = vmatprep.mubr.f32.mxu0 0.0
        %1061 = vmatmul.mubr.f32.gmra.mrb[0].mxu0 %v935
        %v1062 = vpop.f32.mrb[0].mxu0
        %v1063 = vadd.f32 0.0, %v1062
        %v1064 = vpop.f32.mrb[0].mxu0
        %v1065 = vadd.f32 0.0, %v1064
        %1066 = vmatprep.mubr.f32.mxu0 0.0
        %1067 = vmatmul.mubr.f32.gmra.mrb[0].mxu0 %v936
        %v1068 = vpop.f32.mrb[0].mxu0
        %v1069 = vadd.f32 0.0, %v1068
        %v1070 = vpop.f32.mrb[0].mxu0
        %v1071 = vadd.f32 0.0, %v1070
        %1072 = vmatprep.mubr.f32.mxu0 0.0
        %1073 = vmatmul.mubr.f32.gmra.mrb[0].mxu0 %v937
        %v1074 = vpop.f32.mrb[0].mxu0
        %v1075 = vadd.f32 0.0, %v1074
        %v1076 = vpop.f32.mrb[0].mxu0
        %v1077 = vadd.f32 0.0, %v1076
        %1078 = vmatprep.mubr.f32.mxu0 0.0
        %1079 = vmatmul.mubr.f32.gmra.mrb[0].mxu0 %v938
        %v1080 = vpop.f32.mrb[0].mxu0
        %v1081 = vadd.f32 0.0, %v1080
        %v1082 = vpop.f32.mrb[0].mxu0
        %v1083 = vadd.f32 0.0, %v1082
        %1084 = vmatprep.mubr.f32.mxu0 0.0
        %1085 = vmatmul.mubr.f32.gmra.mrb[0].mxu0 %v939
        %v1086 = vpop.f32.mrb[0].mxu0
        %v1087 = vadd.f32 0.0, %v1086
        %v1088 = vpop.f32.mrb[0].mxu0
        %v1089 = vadd.f32 0.0, %v1088
        %1090 = vmatprep.mubr.f32.mxu0 0.0
        %1091 = vmatmul.mubr.f32.gmra.mrb[0].mxu0 %v940
        %v1092 = vpop.f32.mrb[0].mxu0
        %v1093 = vadd.f32 0.0, %v1092
        %v1094 = vpop.f32.mrb[0].mxu0
        %v1095 = vadd.f32 0.0, %v1094
        %1096 = vmatprep.mubr.f32.mxu0 0.0
        %1097 = vmatmul.mubr.f32.gmra.mrb[0].mxu0 %v941
        %v1098 = vpop.f32.mrb[0].mxu0
        %v1099 = vadd.f32 0.0, %v1098
        %v1100 = vpop.f32.mrb[0].mxu0
        %v1101 = vadd.f32 0.0, %v1100
        %1102 = vdwg.mxu0
        %1103 = vmatprep.subr.mxu0 %v849
        %1104 = vmatpush1.msra.mxu0 %v848
        %1105 = vmatprep.subr.mxu0 %v854
        %1106 = vmatpush1.msra.mxu0 %v853
        %1107 = vmatprep.subr.mxu0 %v859
        %1108 = vmatpush1.msra.mxu0 %v858
        %1109 = vmatprep.subr.mxu0 %v864
        %1110 = vmatpush1.msra.mxu0 %v863
        %1111 = vmatprep.subr.mxu0 %v869
        %1112 = vmatpush1.msra.mxu0 %v868
        %1113 = vmatprep.subr.mxu0 %v874
        %1114 = vmatpush1.msra.mxu0 %v873
        %1115 = vmatprep.subr.mxu0 %v879
        %1116 = vmatpush1.msra.mxu0 %v878
        %1117 = vmatprep.subr.mxu0 %v884
        %1118 = vmatpush1.msra.mxu0 %v883
        %1119 = vmatprep.subr.mxu0 %v889
        %1120 = vmatpush1.msra.mxu0 %v888
        %1121 = vmatprep.subr.mxu0 %v894
        %1122 = vmatpush1.msra.mxu0 %v893
        %1123 = vmatprep.subr.mxu0 %v899
        %1124 = vmatpush1.msra.mxu0 %v898
        %1125 = vmatprep.subr.mxu0 %v904
        %1126 = vmatpush1.msra.mxu0 %v903
        %1127 = vmatprep.subr.mxu0 %v909
        %1128 = vmatpush1.msra.mxu0 %v908
        %1129 = vmatprep.subr.mxu0 %v914
        %1130 = vmatpush1.msra.mxu0 %v913
        %1131 = vmatprep.subr.mxu0 %v919
        %1132 = vmatpush1.msra.mxu0 %v918
        %1133 = vmatprep.subr.mxu0 %v924
        %1134 = vmatpush1.msra.mxu0 %v923
        %1135 = vmatprep.subr.mxu0 0.0
        %1136 = vmatpush1.msra.mxu0 0.0
        %1137 = vmatprep.subr.mxu0 0.0
        %1138 = vmatpush1.msra.mxu0 0.0
        %1139 = vmatprep.subr.mxu0 0.0
        %1140 = vmatpush1.msra.mxu0 0.0
        %1141 = vmatprep.subr.mxu0 0.0
        %1142 = vmatpush1.msra.mxu0 0.0
        %1143 = vmatprep.subr.mxu0 0.0
        %1144 = vmatpush1.msra.mxu0 0.0
        %1145 = vmatprep.subr.mxu0 0.0
        %1146 = vmatpush1.msra.mxu0 0.0
        %1147 = vmatprep.subr.mxu0 0.0
        %1148 = vmatpush1.msra.mxu0 0.0
        %1149 = vmatprep.subr.mxu0 0.0
        %1150 = vmatpush1.msra.mxu0 0.0
        %1151 = vmatprep.subr.mxu0 0.0
        %1152 = vmatpush1.msra.mxu0 0.0
        %1153 = vmatprep.subr.mxu0 0.0
        %1154 = vmatpush1.msra.mxu0 0.0
        %1155 = vmatprep.subr.mxu0 0.0
        %1156 = vmatpush1.msra.mxu0 0.0
        %1157 = vmatprep.subr.mxu0 0.0
        %1158 = vmatpush1.msra.mxu0 0.0
        %1159 = vmatprep.subr.mxu0 0.0
        %1160 = vmatpush1.msra.mxu0 0.0
        %1161 = vmatprep.subr.mxu0 0.0
        %1162 = vmatpush1.msra.mxu0 0.0
        %1163 = vmatprep.subr.mxu0 0.0
        %1164 = vmatpush1.msra.mxu0 0.0
        %1165 = vmatprep.subr.mxu0 0.0
        %1166 = vmatpush1.msra.mxu0 0.0
        %1167 = vmatprep.mubr.f32.mxu0 0.0
        %1168 = vmatmul.mubr.f32.gmra.mrb[0].mxu0 %v926
        %v1169 = vpop.f32.mrb[0].mxu0
        %v1170 = vadd.f32 0.0, %v1169
        %v1171 = vpop.f32.mrb[0].mxu0
        %v1172 = vadd.f32 0.0, %v1171
        %1173 = vmatprep.mubr.f32.mxu0 0.0
        %1174 = vmatmul.mubr.f32.gmra.mrb[0].mxu0 %v927
        %v1175 = vpop.f32.mrb[0].mxu0
        %v1176 = vadd.f32 0.0, %v1175
        %v1177 = vpop.f32.mrb[0].mxu0
        %v1178 = vadd.f32 0.0, %v1177
        %1179 = vmatprep.mubr.f32.mxu0 0.0
        %1180 = vmatmul.mubr.f32.gmra.mrb[0].mxu0 %v928
        %v1181 = vpop.f32.mrb[0].mxu0
        %v1182 = vadd.f32 0.0, %v1181
        %v1183 = vpop.f32.mrb[0].mxu0
        %v1184 = vadd.f32 0.0, %v1183
        %1185 = vmatprep.mubr.f32.mxu0 0.0
        %1186 = vmatmul.mubr.f32.gmra.mrb[0].mxu0 %v929
        %v1187 = vpop.f32.mrb[0].mxu0
        %v1188 = vadd.f32 0.0, %v1187
        %v1189 = vpop.f32.mrb[0].mxu0
        %v1190 = vadd.f32 0.0, %v1189
        %1191 = vmatprep.mubr.f32.mxu0 0.0
        %1192 = vmatmul.mubr.f32.gmra.mrb[0].mxu0 %v930
        %v1193 = vpop.f32.mrb[0].mxu0
        %v1194 = vadd.f32 0.0, %v1193
        %v1195 = vpop.f32.mrb[0].mxu0
        %v1196 = vadd.f32 0.0, %v1195
        %1197 = vmatprep.mubr.f32.mxu0 0.0
        %1198 = vmatmul.mubr.f32.gmra.mrb[0].mxu0 %v931
        %v1199 = vpop.f32.mrb[0].mxu0
        %v1200 = vadd.f32 0.0, %v1199
        %v1201 = vpop.f32.mrb[0].mxu0
        %v1202 = vadd.f32 0.0, %v1201
        %1203 = vmatprep.mubr.f32.mxu0 0.0
        %1204 = vmatmul.mubr.f32.gmra.mrb[0].mxu0 %v932
        %v1205 = vpop.f32.mrb[0].mxu0
        %v1206 = vadd.f32 0.0, %v1205
        %v1207 = vpop.f32.mrb[0].mxu0
        %v1208 = vadd.f32 0.0, %v1207
        %1209 = vmatprep.mubr.f32.mxu0 0.0
        %1210 = vmatmul.mubr.f32.gmra.mrb[0].mxu0 %v933
        %v1211 = vpop.f32.mrb[0].mxu0
        %v1212 = vadd.f32 0.0, %v1211
        %v1213 = vpop.f32.mrb[0].mxu0
        %v1214 = vadd.f32 0.0, %v1213
        %1215 = vmatprep.mubr.f32.mxu0 0.0
        %1216 = vmatmul.mubr.f32.gmra.mrb[0].mxu0 %v934
        %v1217 = vpop.f32.mrb[0].mxu0
        %v1218 = vadd.f32 0.0, %v1217
        %v1219 = vpop.f32.mrb[0].mxu0
        %v1220 = vadd.f32 0.0, %v1219
        %1221 = vmatprep.mubr.f32.mxu0 0.0
        %1222 = vmatmul.mubr.f32.gmra.mrb[0].mxu0 %v935
        %v1223 = vpop.f32.mrb[0].mxu0
        %v1224 = vadd.f32 0.0, %v1223
        %v1225 = vpop.f32.mrb[0].mxu0
        %v1226 = vadd.f32 0.0, %v1225
        %1227 = vmatprep.mubr.f32.mxu0 0.0
        %1228 = vmatmul.mubr.f32.gmra.mrb[0].mxu0 %v936
        %v1229 = vpop.f32.mrb[0].mxu0
        %v1230 = vadd.f32 0.0, %v1229
        %v1231 = vpop.f32.mrb[0].mxu0
        %v1232 = vadd.f32 0.0, %v1231
        %1233 = vmatprep.mubr.f32.mxu0 0.0
        %1234 = vmatmul.mubr.f32.gmra.mrb[0].mxu0 %v937
        %v1235 = vpop.f32.mrb[0].mxu0
        %v1236 = vadd.f32 0.0, %v1235
        %v1237 = vpop.f32.mrb[0].mxu0
        %v1238 = vadd.f32 0.0, %v1237
        %1239 = vmatprep.mubr.f32.mxu0 0.0
        %1240 = vmatmul.mubr.f32.gmra.mrb[0].mxu0 %v938
        %v1241 = vpop.f32.mrb[0].mxu0
        %v1242 = vadd.f32 0.0, %v1241
        %v1243 = vpop.f32.mrb[0].mxu0
        %v1244 = vadd.f32 0.0, %v1243
        %1245 = vmatprep.mubr.f32.mxu0 0.0
        %1246 = vmatmul.mubr.f32.gmra.mrb[0].mxu0 %v939
        %v1247 = vpop.f32.mrb[0].mxu0
        %v1248 = vadd.f32 0.0, %v1247
        %v1249 = vpop.f32.mrb[0].mxu0
        %v1250 = vadd.f32 0.0, %v1249
        %1251 = vmatprep.mubr.f32.mxu0 0.0
        %1252 = vmatmul.mubr.f32.gmra.mrb[0].mxu0 %v940
        %v1253 = vpop.f32.mrb[0].mxu0
        %v1254 = vadd.f32 0.0, %v1253
        %v1255 = vpop.f32.mrb[0].mxu0
        %v1256 = vadd.f32 0.0, %v1255
        %1257 = vmatprep.mubr.f32.mxu0 0.0
        %1258 = vmatmul.mubr.f32.gmra.mrb[0].mxu0 %v941
        %v1259 = vpop.f32.mrb[0].mxu0
        %v1260 = vadd.f32 0.0, %v1259
        %v1261 = vpop.f32.mrb[0].mxu0
        %v1262 = vadd.f32 0.0, %v1261
        %1263 = vdwg.mxu0
        %1264 = vmatprep.subr.mxu0 0.0
        %1265 = vmatpush1.msra.mxu0 %v850
        %1266 = vmatprep.subr.mxu0 0.0
        %1267 = vmatpush1.msra.mxu0 %v855
        %1268 = vmatprep.subr.mxu0 0.0
        %1269 = vmatpush1.msra.mxu0 %v860
        %1270 = vmatprep.subr.mxu0 0.0
        %1271 = vmatpush1.msra.mxu0 %v865
        %1272 = vmatprep.subr.mxu0 0.0
        %1273 = vmatpush1.msra.mxu0 %v870
        %1274 = vmatprep.subr.mxu0 0.0
        %1275 = vmatpush1.msra.mxu0 %v875
        %1276 = vmatprep.subr.mxu0 0.0
        %1277 = vmatpush1.msra.mxu0 %v880
        %1278 = vmatprep.subr.mxu0 0.0
        %1279 = vmatpush1.msra.mxu0 %v885
        %1280 = vmatprep.subr.mxu0 0.0
        %1281 = vmatpush1.msra.mxu0 %v890
        %1282 = vmatprep.subr.mxu0 0.0
        %1283 = vmatpush1.msra.mxu0 %v895
        %1284 = vmatprep.subr.mxu0 0.0
        %1285 = vmatpush1.msra.mxu0 %v900
        %1286 = vmatprep.subr.mxu0 0.0
        %1287 = vmatpush1.msra.mxu0 %v905
        %1288 = vmatprep.subr.mxu0 0.0
        %1289 = vmatpush1.msra.mxu0 %v910
        %1290 = vmatprep.subr.mxu0 0.0
        %1291 = vmatpush1.msra.mxu0 %v915
        %1292 = vmatprep.subr.mxu0 0.0
        %1293 = vmatpush1.msra.mxu0 %v920
        %1294 = vmatprep.subr.mxu0 0.0
        %1295 = vmatpush1.msra.mxu0 %v925
        %1296 = vmatprep.subr.mxu0 0.0
        %1297 = vmatpush1.msra.mxu0 0.0
        %1298 = vmatprep.subr.mxu0 0.0
        %1299 = vmatpush1.msra.mxu0 0.0
        %1300 = vmatprep.subr.mxu0 0.0
        %1301 = vmatpush1.msra.mxu0 0.0
        %1302 = vmatprep.subr.mxu0 0.0
        %1303 = vmatpush1.msra.mxu0 0.0
        %1304 = vmatprep.subr.mxu0 0.0
        %1305 = vmatpush1.msra.mxu0 0.0
        %1306 = vmatprep.subr.mxu0 0.0
        %1307 = vmatpush1.msra.mxu0 0.0
        %1308 = vmatprep.subr.mxu0 0.0
        %1309 = vmatpush1.msra.mxu0 0.0
        %1310 = vmatprep.subr.mxu0 0.0
        %1311 = vmatpush1.msra.mxu0 0.0
        %1312 = vmatprep.subr.mxu0 0.0
        %1313 = vmatpush1.msra.mxu0 0.0
        %1314 = vmatprep.subr.mxu0 0.0
        %1315 = vmatpush1.msra.mxu0 0.0
        %1316 = vmatprep.subr.mxu0 0.0
        %1317 = vmatpush1.msra.mxu0 0.0
        %1318 = vmatprep.subr.mxu0 0.0
        %1319 = vmatpush1.msra.mxu0 0.0
        %1320 = vmatprep.subr.mxu0 0.0
        %1321 = vmatpush1.msra.mxu0 0.0
        %1322 = vmatprep.subr.mxu0 0.0
        %1323 = vmatpush1.msra.mxu0 0.0
        %1324 = vmatprep.subr.mxu0 0.0
        %1325 = vmatpush1.msra.mxu0 0.0
        %1326 = vmatprep.subr.mxu0 0.0
        %1327 = vmatpush1.msra.mxu0 0.0
        %1328 = vmatprep.mubr.f32.mxu0 0.0
        %1329 = vmatmul.mubr.f32.gmra.mrb[0].mxu0 %v926
        %v1330 = vpop.f32.mrb[0].mxu0
        %v1331 = vadd.f32 0.0, %v1330
        %v1332 = vpop.f32.mrb[0].mxu0
        %1333 = vmatprep.mubr.f32.mxu0 0.0
        %1334 = vmatmul.mubr.f32.gmra.mrb[0].mxu0 %v927
        %v1335 = vpop.f32.mrb[0].mxu0
        %v1336 = vadd.f32 0.0, %v1335
        %v1337 = vpop.f32.mrb[0].mxu0
        %1338 = vmatprep.mubr.f32.mxu0 0.0
        %1339 = vmatmul.mubr.f32.gmra.mrb[0].mxu0 %v928
        %v1340 = vpop.f32.mrb[0].mxu0
        %v1341 = vadd.f32 0.0, %v1340
        %v1342 = vpop.f32.mrb[0].mxu0
        %1343 = vmatprep.mubr.f32.mxu0 0.0
        %1344 = vmatmul.mubr.f32.gmra.mrb[0].mxu0 %v929
        %v1345 = vpop.f32.mrb[0].mxu0
        %v1346 = vadd.f32 0.0, %v1345
        %v1347 = vpop.f32.mrb[0].mxu0
        %1348 = vmatprep.mubr.f32.mxu0 0.0
        %1349 = vmatmul.mubr.f32.gmra.mrb[0].mxu0 %v930
        %v1350 = vpop.f32.mrb[0].mxu0
        %v1351 = vadd.f32 0.0, %v1350
        %v1352 = vpop.f32.mrb[0].mxu0
        %1353 = vmatprep.mubr.f32.mxu0 0.0
        %1354 = vmatmul.mubr.f32.gmra.mrb[0].mxu0 %v931
        %v1355 = vpop.f32.mrb[0].mxu0
        %v1356 = vadd.f32 0.0, %v1355
        %v1357 = vpop.f32.mrb[0].mxu0
        %1358 = vmatprep.mubr.f32.mxu0 0.0
        %1359 = vmatmul.mubr.f32.gmra.mrb[0].mxu0 %v932
        %v1360 = vpop.f32.mrb[0].mxu0
        %v1361 = vadd.f32 0.0, %v1360
        %v1362 = vpop.f32.mrb[0].mxu0
        %1363 = vmatprep.mubr.f32.mxu0 0.0
        %1364 = vmatmul.mubr.f32.gmra.mrb[0].mxu0 %v933
        %v1365 = vpop.f32.mrb[0].mxu0
        %v1366 = vadd.f32 0.0, %v1365
        %v1367 = vpop.f32.mrb[0].mxu0
        %1368 = vmatprep.mubr.f32.mxu0 0.0
        %1369 = vmatmul.mubr.f32.gmra.mrb[0].mxu0 %v934
        %v1370 = vpop.f32.mrb[0].mxu0
        %v1371 = vadd.f32 0.0, %v1370
        %v1372 = vpop.f32.mrb[0].mxu0
        %1373 = vmatprep.mubr.f32.mxu0 0.0
        %1374 = vmatmul.mubr.f32.gmra.mrb[0].mxu0 %v935
        %v1375 = vpop.f32.mrb[0].mxu0
        %v1376 = vadd.f32 0.0, %v1375
        %v1377 = vpop.f32.mrb[0].mxu0
        %1378 = vmatprep.mubr.f32.mxu0 0.0
        %1379 = vmatmul.mubr.f32.gmra.mrb[0].mxu0 %v936
        %v1380 = vpop.f32.mrb[0].mxu0
        %v1381 = vadd.f32 0.0, %v1380
        %v1382 = vpop.f32.mrb[0].mxu0
        %1383 = vmatprep.mubr.f32.mxu0 0.0
        %1384 = vmatmul.mubr.f32.gmra.mrb[0].mxu0 %v937
        %v1385 = vpop.f32.mrb[0].mxu0
        %v1386 = vadd.f32 0.0, %v1385
        %v1387 = vpop.f32.mrb[0].mxu0
        %1388 = vmatprep.mubr.f32.mxu0 0.0
        %1389 = vmatmul.mubr.f32.gmra.mrb[0].mxu0 %v938
        %v1390 = vpop.f32.mrb[0].mxu0
        %v1391 = vadd.f32 0.0, %v1390
        %v1392 = vpop.f32.mrb[0].mxu0
        %1393 = vmatprep.mubr.f32.mxu0 0.0
        %1394 = vmatmul.mubr.f32.gmra.mrb[0].mxu0 %v939
        %v1395 = vpop.f32.mrb[0].mxu0
        %v1396 = vadd.f32 0.0, %v1395
        %v1397 = vpop.f32.mrb[0].mxu0
        %1398 = vmatprep.mubr.f32.mxu0 0.0
        %1399 = vmatmul.mubr.f32.gmra.mrb[0].mxu0 %v940
        %v1400 = vpop.f32.mrb[0].mxu0
        %v1401 = vadd.f32 0.0, %v1400
        %v1402 = vpop.f32.mrb[0].mxu0
        %1403 = vmatprep.mubr.f32.mxu0 0.0
        %1404 = vmatmul.mubr.f32.gmra.mrb[0].mxu0 %v941
        %v1405 = vpop.f32.mrb[0].mxu0
        %v1406 = vadd.f32 0.0, %v1405
        %v1407 = vpop.f32.mrb[0].mxu0
        %1408 = vdwg.mxu0
        %v1409 = vld [vmem:[%s578] sm:$0xff]
        %v1410 = vld [vmem:[%s578 + $0x8] sm:$0xff]
        %v1411 = vld [vmem:[%s578 + $0x10] sm:$0xf]
        %v1412 = vld [vmem:[%s578 + $0x14] sm:$0xff]
        %v1413 = vld [vmem:[%s578 + $0x1c] sm:$0xff]
        %v1414 = vld [vmem:[%s578 + $0x24] sm:$0xf]
        %v1415 = vld [vmem:[%s578 + $0x28] sm:$0xff]
        %v1416 = vld [vmem:[%s578 + $0x30] sm:$0xff]
        %v1417 = vld [vmem:[%s578 + $0x38] sm:$0xf]
        %v1418 = vld [vmem:[%s578 + $0x3c] sm:$0xff]
        %v1419 = vld [vmem:[%s578 + $0x44] sm:$0xff]
        %v1420 = vld [vmem:[%s578 + $0x4c] sm:$0xf]
        %v1421 = vld [vmem:[%s578 + $0x50] sm:$0xff]
        %v1422 = vld [vmem:[%s578 + $0x58] sm:$0xff]
        %v1423 = vld [vmem:[%s578 + $0x60] sm:$0xf]
        %v1424 = vld [vmem:[%s578 + $0x64] sm:$0xff]
        %v1425 = vld [vmem:[%s578 + $0x6c] sm:$0xff]
        %v1426 = vld [vmem:[%s578 + $0x74] sm:$0xf]
        %v1427 = vld [vmem:[%s578 + $0x78] sm:$0xff]
        %v1428 = vld [vmem:[%s578 + $0x80] sm:$0xff]
        %v1429 = vld [vmem:[%s578 + $0x88] sm:$0xf]
        %v1430 = vld [vmem:[%s578 + $0x8c] sm:$0xff]
        %v1431 = vld [vmem:[%s578 + $0x94] sm:$0xff]
        %v1432 = vld [vmem:[%s578 + $0x9c] sm:$0xf]
        %v1433 = vld [vmem:[%s578 + $0xa0] sm:$0xff]
        %v1434 = vld [vmem:[%s578 + $0xa8] sm:$0xff]
        %v1435 = vld [vmem:[%s578 + $0xb0] sm:$0xf]
        %v1436 = vld [vmem:[%s578 + $0xb4] sm:$0xff]
        %v1437 = vld [vmem:[%s578 + $0xbc] sm:$0xff]
        %v1438 = vld [vmem:[%s578 + $0xc4] sm:$0xf]
        %v1439 = vld [vmem:[%s578 + $0xc8] sm:$0xff]
        %v1440 = vld [vmem:[%s578 + $0xd0] sm:$0xff]
        %v1441 = vld [vmem:[%s578 + $0xd8] sm:$0xf]
        %v1442 = vld [vmem:[%s578 + $0xdc] sm:$0xff]
        %v1443 = vld [vmem:[%s578 + $0xe4] sm:$0xff]
        %v1444 = vld [vmem:[%s578 + $0xec] sm:$0xf]
        %v1445 = vld [vmem:[%s578 + $0xf0] sm:$0xff]
        %v1446 = vld [vmem:[%s578 + $0xf8] sm:$0xff]
        %v1447 = vld [vmem:[%s578 + $0x100] sm:$0xf]
        %v1448 = vld [vmem:[%s578 + $0x104] sm:$0xff]
        %v1449 = vld [vmem:[%s578 + $0x10c] sm:$0xff]
        %v1450 = vld [vmem:[%s578 + $0x114] sm:$0xf]
        %v1451 = vld [vmem:[%s578 + $0x118] sm:$0xff]
        %v1452 = vld [vmem:[%s578 + $0x120] sm:$0xff]
        %v1453 = vld [vmem:[%s578 + $0x128] sm:$0xf]
        %v1454 = vld [vmem:[%s578 + $0x12c] sm:$0xff]
        %v1455 = vld [vmem:[%s578 + $0x134] sm:$0xff]
        %v1456 = vld [vmem:[%s578 + $0x13c] sm:$0xf]
        %v1457 = vld [vmem:[%s578 + $0x140] sm:$0xff]
        %v1458 = vld [vmem:[%s578 + $0x148] sm:$0xff]
        %v1459 = vld [vmem:[%s578 + $0x150] sm:$0xf]
        %v1460 = vld [vmem:[%s578 + $0x154] sm:$0xff]
        %v1461 = vld [vmem:[%s578 + $0x15c] sm:$0xff]
        %v1462 = vld [vmem:[%s578 + $0x164] sm:$0xf]
        %v1463 = vld [vmem:[%s578 + $0x168] sm:$0xff]
        %v1464 = vld [vmem:[%s578 + $0x170] sm:$0xff]
        %v1465 = vld [vmem:[%s578 + $0x178] sm:$0xf]
        %v1466 = vld [vmem:[%s578 + $0x17c] sm:$0xff]
        %v1467 = vld [vmem:[%s578 + $0x184] sm:$0xff]
        %v1468 = vld [vmem:[%s578 + $0x18c] sm:$0xf]
        %v1469 = vld [vmem:[%s578 + $0x190] sm:$0xff]
        %v1470 = vld [vmem:[%s578 + $0x198] sm:$0xff]
        %v1471 = vld [vmem:[%s578 + $0x1a0] sm:$0xf]
        %v1472 = vld [vmem:[%s578 + $0x1a4] sm:$0xff]
        %v1473 = vld [vmem:[%s578 + $0x1ac] sm:$0xff]
        %v1474 = vld [vmem:[%s578 + $0x1b4] sm:$0xf]
        %v1475 = vld [vmem:[%s578 + $0x1b8] sm:$0xff]
        %v1476 = vld [vmem:[%s578 + $0x1c0] sm:$0xff]
        %v1477 = vld [vmem:[%s578 + $0x1c8] sm:$0xf]
        %v1478 = vld [vmem:[%s578 + $0x1cc] sm:$0xff]
        %v1479 = vld [vmem:[%s578 + $0x1d4] sm:$0xff]
        %v1480 = vld [vmem:[%s578 + $0x1dc] sm:$0xf]
        %v1481 = vld [vmem:[%s578 + $0x1e0] sm:$0xff]
        %v1482 = vld [vmem:[%s578 + $0x1e8] sm:$0xff]
        %v1483 = vld [vmem:[%s578 + $0x1f0] sm:$0xf]
        %v1484 = vld [vmem:[%s578 + $0x1f4] sm:$0xff]
        %v1485 = vld [vmem:[%s578 + $0x1fc] sm:$0xff]
        %v1486 = vld [vmem:[%s578 + $0x204] sm:$0xf]
        %v1487 = vld [vmem:[%s578 + $0x208] sm:$0xff]
        %v1488 = vld [vmem:[%s578 + $0x210] sm:$0xff]
        %v1489 = vld [vmem:[%s578 + $0x218] sm:$0xf]
        %v1490 = vld [vmem:[%s578 + $0x21c] sm:$0xff]
        %v1491 = vld [vmem:[%s578 + $0x224] sm:$0xff]
        %v1492 = vld [vmem:[%s578 + $0x22c] sm:$0xf]
        %v1493 = vld [vmem:[%s578 + $0x230] sm:$0xff]
        %v1494 = vld [vmem:[%s578 + $0x238] sm:$0xff]
        %v1495 = vld [vmem:[%s578 + $0x240] sm:$0xf]
        %v1496 = vld [vmem:[%s578 + $0x244] sm:$0xff]
        %v1497 = vld [vmem:[%s578 + $0x24c] sm:$0xff]
        %v1498 = vld [vmem:[%s578 + $0x254] sm:$0xf]
        %v1499 = vld [vmem:[%s578 + $0x258] sm:$0xff]
        %v1500 = vld [vmem:[%s578 + $0x260] sm:$0xff]
        %v1501 = vld [vmem:[%s578 + $0x268] sm:$0xf]
        %v1502 = vld [vmem:[%s578 + $0x26c] sm:$0xff]
        %v1503 = vld [vmem:[%s578 + $0x274] sm:$0xff]
        %v1504 = vld [vmem:[%s578 + $0x27c] sm:$0xf]
        %v1505 = vld [vmem:[%s578 + $0x280] sm:$0xff]
        %v1506 = vld [vmem:[%s578 + $0x288] sm:$0xff]
        %v1507 = vld [vmem:[%s578 + $0x290] sm:$0xf]
        %v1508 = vld [vmem:[%s578 + $0x294] sm:$0xff]
        %v1509 = vld [vmem:[%s578 + $0x29c] sm:$0xff]
        %v1510 = vld [vmem:[%s578 + $0x2a4] sm:$0xf]
        %v1511 = vld [vmem:[%s578 + $0x2a8] sm:$0xff]
        %v1512 = vld [vmem:[%s578 + $0x2b0] sm:$0xff]
        %v1513 = vld [vmem:[%s578 + $0x2b8] sm:$0xf]
        %v1514 = vld [vmem:[%s578 + $0x2bc] sm:$0xff]
        %v1515 = vld [vmem:[%s578 + $0x2c4] sm:$0xff]
        %v1516 = vld [vmem:[%s578 + $0x2cc] sm:$0xf]
        %v1517 = vld [vmem:[%s578 + $0x2d0] sm:$0xff]
        %v1518 = vld [vmem:[%s578 + $0x2d8] sm:$0xff]
        %v1519 = vld [vmem:[%s578 + $0x2e0] sm:$0xf]
        %v1520 = vld [vmem:[%s578 + $0x2e4] sm:$0xff]
        %v1521 = vld [vmem:[%s578 + $0x2ec] sm:$0xff]
        %v1522 = vld [vmem:[%s578 + $0x2f4] sm:$0xf]
        %v1523 = vld [vmem:[%s578 + $0x2f8] sm:$0xff]
        %v1524 = vld [vmem:[%s578 + $0x300] sm:$0xff]
        %v1525 = vld [vmem:[%s578 + $0x308] sm:$0xf]
        %v1526 = vld [vmem:[%s578 + $0x30c] sm:$0xff]
        %v1527 = vld [vmem:[%s578 + $0x314] sm:$0xff]
        %v1528 = vld [vmem:[%s578 + $0x31c] sm:$0xf]
        %v1529 = vld [vmem:[%s578 + $0x320] sm:$0xff]
        %v1530 = vld [vmem:[%s578 + $0x328] sm:$0xff]
        %v1531 = vld [vmem:[%s578 + $0x330] sm:$0xf]
        %v1532 = vld [vmem:[%s578 + $0x334] sm:$0xff]
        %v1533 = vld [vmem:[%s578 + $0x33c] sm:$0xff]
        %v1534 = vld [vmem:[%s578 + $0x344] sm:$0xf]
        %v1535 = vld [vmem:[%s578 + $0x348] sm:$0xff]
        %v1536 = vld [vmem:[%s578 + $0x350] sm:$0xff]
        %v1537 = vld [vmem:[%s578 + $0x358] sm:$0xf]
        %v1538 = vld [vmem:[%s578 + $0x35c] sm:$0xff]
        %v1539 = vld [vmem:[%s578 + $0x364] sm:$0xff]
        %v1540 = vld [vmem:[%s578 + $0x36c] sm:$0xf]
        %v1541 = vld [vmem:[%s578 + $0x370] sm:$0xff]
        %v1542 = vld [vmem:[%s578 + $0x378] sm:$0xff]
        %v1543 = vld [vmem:[%s578 + $0x380] sm:$0xf]
        %v1544 = vld [vmem:[%s578 + $0x384] sm:$0xff]
        %v1545 = vld [vmem:[%s578 + $0x38c] sm:$0xff]
        %v1546 = vld [vmem:[%s578 + $0x394] sm:$0xf]
        %v1547 = vld [vmem:[%s578 + $0x398] sm:$0xff]
        %v1548 = vld [vmem:[%s578 + $0x3a0] sm:$0xff]
        %v1549 = vld [vmem:[%s578 + $0x3a8] sm:$0xf]
        %v1550 = vld [vmem:[%s578 + $0x3ac] sm:$0xff]
        %v1551 = vld [vmem:[%s578 + $0x3b4] sm:$0xff]
        %v1552 = vld [vmem:[%s578 + $0x3bc] sm:$0xf]
        %v1553 = vld [vmem:[%s578 + $0x3c0] sm:$0xff]
        %v1554 = vld [vmem:[%s578 + $0x3c8] sm:$0xff]
        %v1555 = vld [vmem:[%s578 + $0x3d0] sm:$0xf]
        %v1556 = vld [vmem:[%s578 + $0x3d4] sm:$0xff]
        %v1557 = vld [vmem:[%s578 + $0x3dc] sm:$0xff]
        %v1558 = vld [vmem:[%s578 + $0x3e4] sm:$0xf]
        %v1559 = vld [vmem:[%s578 + $0x3e8] sm:$0xff]
        %v1560 = vld [vmem:[%s578 + $0x3f0] sm:$0xff]
        %v1561 = vld [vmem:[%s578 + $0x3f8] sm:$0xf]
        %v1562 = vld [vmem:[%s578 + $0x3fc] sm:$0xff]
        %v1563 = vld [vmem:[%s578 + $0x404] sm:$0xff]
        %v1564 = vld [vmem:[%s578 + $0x40c] sm:$0xf]
        %v1565 = vld [vmem:[%s578 + $0x410] sm:$0xff]
        %v1566 = vld [vmem:[%s578 + $0x418] sm:$0xff]
        %v1567 = vld [vmem:[%s578 + $0x420] sm:$0xf]
        %v1568 = vld [vmem:[%s578 + $0x424] sm:$0xff]
        %v1569 = vld [vmem:[%s578 + $0x42c] sm:$0xff]
        %v1570 = vld [vmem:[%s578 + $0x434] sm:$0xf]
        %v1571 = vld [vmem:[%s578 + $0x438] sm:$0xff]
        %v1572 = vld [vmem:[%s578 + $0x440] sm:$0xff]
        %v1573 = vld [vmem:[%s578 + $0x448] sm:$0xf]
        %v1574 = vld [vmem:[%s578 + $0x44c] sm:$0xff]
        %v1575 = vld [vmem:[%s578 + $0x454] sm:$0xff]
        %v1576 = vld [vmem:[%s578 + $0x45c] sm:$0xf]
        %v1577 = vld [vmem:[%s578 + $0x460] sm:$0xff]
        %v1578 = vld [vmem:[%s578 + $0x468] sm:$0xff]
        %v1579 = vld [vmem:[%s578 + $0x470] sm:$0xf]
        %v1580 = vld [vmem:[%s578 + $0x474] sm:$0xff]
        %v1581 = vld [vmem:[%s578 + $0x47c] sm:$0xff]
        %v1582 = vld [vmem:[%s578 + $0x484] sm:$0xf]
        %v1583 = vld [vmem:[%s578 + $0x488] sm:$0xff]
        %v1584 = vld [vmem:[%s578 + $0x490] sm:$0xff]
        %v1585 = vld [vmem:[%s578 + $0x498] sm:$0xf]
        %v1586 = vld [vmem:[%s578 + $0x49c] sm:$0xff]
        %v1587 = vld [vmem:[%s578 + $0x4a4] sm:$0xff]
        %v1588 = vld [vmem:[%s578 + $0x4ac] sm:$0xf]
        %v1589 = vld [vmem:[%s578 + $0x4b0] sm:$0xff]
        %v1590 = vld [vmem:[%s578 + $0x4b8] sm:$0xff]
        %v1591 = vld [vmem:[%s578 + $0x4c0] sm:$0xf]
        %v1592 = vld [vmem:[%s578 + $0x4c4] sm:$0xff]
        %v1593 = vld [vmem:[%s578 + $0x4cc] sm:$0xff]
        %v1594 = vld [vmem:[%s578 + $0x4d4] sm:$0xf]
        %v1595 = vld [vmem:[%s578 + $0x4d8] sm:$0xff]
        %v1596 = vld [vmem:[%s578 + $0x4e0] sm:$0xff]
        %v1597 = vld [vmem:[%s578 + $0x4e8] sm:$0xf]
        %v1598 = vld [vmem:[%s578 + $0x4ec] sm:$0xff]
        %v1599 = vld [vmem:[%s578 + $0x4f4] sm:$0xff]
        %v1600 = vld [vmem:[%s578 + $0x4fc] sm:$0xf]
        %v1601 = vld [vmem:[%s578 + $0x500] sm:$0xff]
        %v1602 = vld [vmem:[%s578 + $0x508] sm:$0xff]
        %v1603 = vld [vmem:[%s578 + $0x510] sm:$0xf]
        %v1604 = vld [vmem:[%s578 + $0x514] sm:$0xff]
        %v1605 = vld [vmem:[%s578 + $0x51c] sm:$0xff]
        %v1606 = vld [vmem:[%s578 + $0x524] sm:$0xf]
        %v1607 = vld [vmem:[%s578 + $0x528] sm:$0xff]
        %v1608 = vld [vmem:[%s578 + $0x530] sm:$0xff]
        %v1609 = vld [vmem:[%s578 + $0x538] sm:$0xf]
        %v1610 = vld [vmem:[%s578 + $0x53c] sm:$0xff]
        %v1611 = vld [vmem:[%s578 + $0x544] sm:$0xff]
        %v1612 = vld [vmem:[%s578 + $0x54c] sm:$0xf]
        %v1613 = vld [vmem:[%s578 + $0x550] sm:$0xff]
        %v1614 = vld [vmem:[%s578 + $0x558] sm:$0xff]
        %v1615 = vld [vmem:[%s578 + $0x560] sm:$0xf]
        %v1616 = vld [vmem:[%s578 + $0x564] sm:$0xff]
        %v1617 = vld [vmem:[%s578 + $0x56c] sm:$0xff]
        %v1618 = vld [vmem:[%s578 + $0x574] sm:$0xf]
        %v1619 = vld [vmem:[%s578 + $0x578] sm:$0xff]
        %v1620 = vld [vmem:[%s578 + $0x580] sm:$0xff]
        %v1621 = vld [vmem:[%s578 + $0x588] sm:$0xf]
        %v1622 = vld [vmem:[%s578 + $0x58c] sm:$0xff]
        %v1623 = vld [vmem:[%s578 + $0x594] sm:$0xff]
        %v1624 = vld [vmem:[%s578 + $0x59c] sm:$0xf]
        %v1625 = vld [vmem:[%s578 + $0x5a0] sm:$0xff]
        %v1626 = vld [vmem:[%s578 + $0x5a8] sm:$0xff]
        %v1627 = vld [vmem:[%s578 + $0x5b0] sm:$0xf]
        %v1628 = vld [vmem:[%s578 + $0x5b4] sm:$0xff]
        %v1629 = vld [vmem:[%s578 + $0x5bc] sm:$0xff]
        %v1630 = vld [vmem:[%s578 + $0x5c4] sm:$0xf]
        %v1631 = vld [vmem:[%s578 + $0x5c8] sm:$0xff]
        %v1632 = vld [vmem:[%s578 + $0x5d0] sm:$0xff]
        %v1633 = vld [vmem:[%s578 + $0x5d8] sm:$0xf]
        %v1634 = vld [vmem:[%s578 + $0x5dc] sm:$0xff]
        %v1635 = vld [vmem:[%s578 + $0x5e4] sm:$0xff]
        %v1636 = vld [vmem:[%s578 + $0x5ec] sm:$0xf]
        %v1637 = vld [vmem:[%s578 + $0x5f0] sm:$0xff]
        %v1638 = vld [vmem:[%s578 + $0x5f8] sm:$0xff]
        %v1639 = vld [vmem:[%s578 + $0x600] sm:$0xf]
        %v1640 = vld [vmem:[%s578 + $0x604] sm:$0xff]
        %v1641 = vld [vmem:[%s578 + $0x60c] sm:$0xff]
        %v1642 = vld [vmem:[%s578 + $0x614] sm:$0xf]
        %v1643 = vld [vmem:[%s578 + $0x618] sm:$0xff]
        %v1644 = vld [vmem:[%s578 + $0x620] sm:$0xff]
        %v1645 = vld [vmem:[%s578 + $0x628] sm:$0xf]
        %v1646 = vld [vmem:[%s578 + $0x62c] sm:$0xff]
        %v1647 = vld [vmem:[%s578 + $0x634] sm:$0xff]
        %v1648 = vld [vmem:[%s578 + $0x63c] sm:$0xf]
        %v1649 = vunpack.c.l.bf16 %v1409
        %v1650 = vunpack.c.h.bf16 %v1409
        %v1651 = vunpack.c.l.bf16 %v1410
        %v1652 = vunpack.c.h.bf16 %v1410
        %v1653 = vunpack.c.l.bf16 %v1411
        %v1654 = vunpack.c.l.bf16 %v1412
        %v1655 = vunpack.c.h.bf16 %v1412
        %v1656 = vunpack.c.l.bf16 %v1413
        %v1657 = vunpack.c.h.bf16 %v1413
        %v1658 = vunpack.c.l.bf16 %v1414
        %v1659 = vunpack.c.l.bf16 %v1415
        %v1660 = vunpack.c.h.bf16 %v1415
        %v1661 = vunpack.c.l.bf16 %v1416
        %v1662 = vunpack.c.h.bf16 %v1416
        %v1663 = vunpack.c.l.bf16 %v1417
        %v1664 = vunpack.c.l.bf16 %v1418
        %v1665 = vunpack.c.h.bf16 %v1418
        %v1666 = vunpack.c.l.bf16 %v1419
        %v1667 = vunpack.c.h.bf16 %v1419
        %v1668 = vunpack.c.l.bf16 %v1420
        %v1669 = vunpack.c.l.bf16 %v1421
        %v1670 = vunpack.c.h.bf16 %v1421
        %v1671 = vunpack.c.l.bf16 %v1422
        %v1672 = vunpack.c.h.bf16 %v1422
        %v1673 = vunpack.c.l.bf16 %v1423
        %v1674 = vunpack.c.l.bf16 %v1424
        %v1675 = vunpack.c.h.bf16 %v1424
        %v1676 = vunpack.c.l.bf16 %v1425
        %v1677 = vunpack.c.h.bf16 %v1425
        %v1678 = vunpack.c.l.bf16 %v1426
        %v1679 = vunpack.c.l.bf16 %v1427
        %v1680 = vunpack.c.h.bf16 %v1427
        %v1681 = vunpack.c.l.bf16 %v1428
        %v1682 = vunpack.c.h.bf16 %v1428
        %v1683 = vunpack.c.l.bf16 %v1429
        %v1684 = vunpack.c.l.bf16 %v1430
        %v1685 = vunpack.c.h.bf16 %v1430
        %v1686 = vunpack.c.l.bf16 %v1431
        %v1687 = vunpack.c.h.bf16 %v1431
        %v1688 = vunpack.c.l.bf16 %v1432
        %v1689 = vunpack.c.l.bf16 %v1433
        %v1690 = vunpack.c.h.bf16 %v1433
        %v1691 = vunpack.c.l.bf16 %v1434
        %v1692 = vunpack.c.h.bf16 %v1434
        %v1693 = vunpack.c.l.bf16 %v1435
        %v1694 = vunpack.c.l.bf16 %v1436
        %v1695 = vunpack.c.h.bf16 %v1436
        %v1696 = vunpack.c.l.bf16 %v1437
        %v1697 = vunpack.c.h.bf16 %v1437
        %v1698 = vunpack.c.l.bf16 %v1438
        %v1699 = vunpack.c.l.bf16 %v1439
        %v1700 = vunpack.c.h.bf16 %v1439
        %v1701 = vunpack.c.l.bf16 %v1440
        %v1702 = vunpack.c.h.bf16 %v1440
        %v1703 = vunpack.c.l.bf16 %v1441
        %v1704 = vunpack.c.l.bf16 %v1442
        %v1705 = vunpack.c.h.bf16 %v1442
        %v1706 = vunpack.c.l.bf16 %v1443
        %v1707 = vunpack.c.h.bf16 %v1443
        %v1708 = vunpack.c.l.bf16 %v1444
        %v1709 = vunpack.c.l.bf16 %v1445
        %v1710 = vunpack.c.h.bf16 %v1445
        %v1711 = vunpack.c.l.bf16 %v1446
        %v1712 = vunpack.c.h.bf16 %v1446
        %v1713 = vunpack.c.l.bf16 %v1447
        %v1714 = vunpack.c.l.bf16 %v1448
        %v1715 = vunpack.c.h.bf16 %v1448
        %v1716 = vunpack.c.l.bf16 %v1449
        %v1717 = vunpack.c.h.bf16 %v1449
        %v1718 = vunpack.c.l.bf16 %v1450
        %v1719 = vunpack.c.l.bf16 %v1451
        %v1720 = vunpack.c.h.bf16 %v1451
        %v1721 = vunpack.c.l.bf16 %v1452
        %v1722 = vunpack.c.h.bf16 %v1452
        %v1723 = vunpack.c.l.bf16 %v1453
        %v1724 = vunpack.c.l.bf16 %v1454
        %v1725 = vunpack.c.h.bf16 %v1454
        %v1726 = vunpack.c.l.bf16 %v1455
        %v1727 = vunpack.c.h.bf16 %v1455
        %v1728 = vunpack.c.l.bf16 %v1456
        %v1729 = vunpack.c.l.bf16 %v1457
        %v1730 = vunpack.c.h.bf16 %v1457
        %v1731 = vunpack.c.l.bf16 %v1458
        %v1732 = vunpack.c.h.bf16 %v1458
        %v1733 = vunpack.c.l.bf16 %v1459
        %v1734 = vunpack.c.l.bf16 %v1460
        %v1735 = vunpack.c.h.bf16 %v1460
        %v1736 = vunpack.c.l.bf16 %v1461
        %v1737 = vunpack.c.h.bf16 %v1461
        %v1738 = vunpack.c.l.bf16 %v1462
        %v1739 = vunpack.c.l.bf16 %v1463
        %v1740 = vunpack.c.h.bf16 %v1463
        %v1741 = vunpack.c.l.bf16 %v1464
        %v1742 = vunpack.c.h.bf16 %v1464
        %v1743 = vunpack.c.l.bf16 %v1465
        %v1744 = vunpack.c.l.bf16 %v1466
        %v1745 = vunpack.c.h.bf16 %v1466
        %v1746 = vunpack.c.l.bf16 %v1467
        %v1747 = vunpack.c.h.bf16 %v1467
        %v1748 = vunpack.c.l.bf16 %v1468
        %v1749 = vunpack.c.l.bf16 %v1469
        %v1750 = vunpack.c.h.bf16 %v1469
        %v1751 = vunpack.c.l.bf16 %v1470
        %v1752 = vunpack.c.h.bf16 %v1470
        %v1753 = vunpack.c.l.bf16 %v1471
        %v1754 = vunpack.c.l.bf16 %v1472
        %v1755 = vunpack.c.h.bf16 %v1472
        %v1756 = vunpack.c.l.bf16 %v1473
        %v1757 = vunpack.c.h.bf16 %v1473
        %v1758 = vunpack.c.l.bf16 %v1474
        %v1759 = vunpack.c.l.bf16 %v1475
        %v1760 = vunpack.c.h.bf16 %v1475
        %v1761 = vunpack.c.l.bf16 %v1476
        %v1762 = vunpack.c.h.bf16 %v1476
        %v1763 = vunpack.c.l.bf16 %v1477
        %v1764 = vunpack.c.l.bf16 %v1478
        %v1765 = vunpack.c.h.bf16 %v1478
        %v1766 = vunpack.c.l.bf16 %v1479
        %v1767 = vunpack.c.h.bf16 %v1479
        %v1768 = vunpack.c.l.bf16 %v1480
        %v1769 = vunpack.c.l.bf16 %v1481
        %v1770 = vunpack.c.h.bf16 %v1481
        %v1771 = vunpack.c.l.bf16 %v1482
        %v1772 = vunpack.c.h.bf16 %v1482
        %v1773 = vunpack.c.l.bf16 %v1483
        %v1774 = vunpack.c.l.bf16 %v1484
        %v1775 = vunpack.c.h.bf16 %v1484
        %v1776 = vunpack.c.l.bf16 %v1485
        %v1777 = vunpack.c.h.bf16 %v1485
        %v1778 = vunpack.c.l.bf16 %v1486
        %v1779 = vunpack.c.l.bf16 %v1487
        %v1780 = vunpack.c.h.bf16 %v1487
        %v1781 = vunpack.c.l.bf16 %v1488
        %v1782 = vunpack.c.h.bf16 %v1488
        %v1783 = vunpack.c.l.bf16 %v1489
        %v1784 = vunpack.c.l.bf16 %v1490
        %v1785 = vunpack.c.h.bf16 %v1490
        %v1786 = vunpack.c.l.bf16 %v1491
        %v1787 = vunpack.c.h.bf16 %v1491
        %v1788 = vunpack.c.l.bf16 %v1492
        %v1789 = vunpack.c.l.bf16 %v1493
        %v1790 = vunpack.c.h.bf16 %v1493
        %v1791 = vunpack.c.l.bf16 %v1494
        %v1792 = vunpack.c.h.bf16 %v1494
        %v1793 = vunpack.c.l.bf16 %v1495
        %v1794 = vunpack.c.l.bf16 %v1496
        %v1795 = vunpack.c.h.bf16 %v1496
        %v1796 = vunpack.c.l.bf16 %v1497
        %v1797 = vunpack.c.h.bf16 %v1497
        %v1798 = vunpack.c.l.bf16 %v1498
        %v1799 = vunpack.c.l.bf16 %v1499
        %v1800 = vunpack.c.h.bf16 %v1499
        %v1801 = vunpack.c.l.bf16 %v1500
        %v1802 = vunpack.c.h.bf16 %v1500
        %v1803 = vunpack.c.l.bf16 %v1501
        %v1804 = vunpack.c.l.bf16 %v1502
        %v1805 = vunpack.c.h.bf16 %v1502
        %v1806 = vunpack.c.l.bf16 %v1503
        %v1807 = vunpack.c.h.bf16 %v1503
        %v1808 = vunpack.c.l.bf16 %v1504
        %v1809 = vunpack.c.l.bf16 %v1505
        %v1810 = vunpack.c.h.bf16 %v1505
        %v1811 = vunpack.c.l.bf16 %v1506
        %v1812 = vunpack.c.h.bf16 %v1506
        %v1813 = vunpack.c.l.bf16 %v1507
        %v1814 = vunpack.c.l.bf16 %v1508
        %v1815 = vunpack.c.h.bf16 %v1508
        %v1816 = vunpack.c.l.bf16 %v1509
        %v1817 = vunpack.c.h.bf16 %v1509
        %v1818 = vunpack.c.l.bf16 %v1510
        %v1819 = vunpack.c.l.bf16 %v1511
        %v1820 = vunpack.c.h.bf16 %v1511
        %v1821 = vunpack.c.l.bf16 %v1512
        %v1822 = vunpack.c.h.bf16 %v1512
        %v1823 = vunpack.c.l.bf16 %v1513
        %v1824 = vunpack.c.l.bf16 %v1514
        %v1825 = vunpack.c.h.bf16 %v1514
        %v1826 = vunpack.c.l.bf16 %v1515
        %v1827 = vunpack.c.h.bf16 %v1515
        %v1828 = vunpack.c.l.bf16 %v1516
        %v1829 = vunpack.c.l.bf16 %v1517
        %v1830 = vunpack.c.h.bf16 %v1517
        %v1831 = vunpack.c.l.bf16 %v1518
        %v1832 = vunpack.c.h.bf16 %v1518
        %v1833 = vunpack.c.l.bf16 %v1519
        %v1834 = vunpack.c.l.bf16 %v1520
        %v1835 = vunpack.c.h.bf16 %v1520
        %v1836 = vunpack.c.l.bf16 %v1521
        %v1837 = vunpack.c.h.bf16 %v1521
        %v1838 = vunpack.c.l.bf16 %v1522
        %v1839 = vunpack.c.l.bf16 %v1523
        %v1840 = vunpack.c.h.bf16 %v1523
        %v1841 = vunpack.c.l.bf16 %v1524
        %v1842 = vunpack.c.h.bf16 %v1524
        %v1843 = vunpack.c.l.bf16 %v1525
        %v1844 = vunpack.c.l.bf16 %v1526
        %v1845 = vunpack.c.h.bf16 %v1526
        %v1846 = vunpack.c.l.bf16 %v1527
        %v1847 = vunpack.c.h.bf16 %v1527
        %v1848 = vunpack.c.l.bf16 %v1528
        %v1849 = vunpack.c.l.bf16 %v1529
        %v1850 = vunpack.c.h.bf16 %v1529
        %v1851 = vunpack.c.l.bf16 %v1530
        %v1852 = vunpack.c.h.bf16 %v1530
        %v1853 = vunpack.c.l.bf16 %v1531
        %v1854 = vunpack.c.l.bf16 %v1532
        %v1855 = vunpack.c.h.bf16 %v1532
        %v1856 = vunpack.c.l.bf16 %v1533
        %v1857 = vunpack.c.h.bf16 %v1533
        %v1858 = vunpack.c.l.bf16 %v1534
        %v1859 = vunpack.c.l.bf16 %v1535
        %v1860 = vunpack.c.h.bf16 %v1535
        %v1861 = vunpack.c.l.bf16 %v1536
        %v1862 = vunpack.c.h.bf16 %v1536
        %v1863 = vunpack.c.l.bf16 %v1537
        %v1864 = vunpack.c.l.bf16 %v1538
        %v1865 = vunpack.c.h.bf16 %v1538
        %v1866 = vunpack.c.l.bf16 %v1539
        %v1867 = vunpack.c.h.bf16 %v1539
        %v1868 = vunpack.c.l.bf16 %v1540
        %v1869 = vunpack.c.l.bf16 %v1541
        %v1870 = vunpack.c.h.bf16 %v1541
        %v1871 = vunpack.c.l.bf16 %v1542
        %v1872 = vunpack.c.h.bf16 %v1542
        %v1873 = vunpack.c.l.bf16 %v1543
        %v1874 = vunpack.c.l.bf16 %v1544
        %v1875 = vunpack.c.h.bf16 %v1544
        %v1876 = vunpack.c.l.bf16 %v1545
        %v1877 = vunpack.c.h.bf16 %v1545
        %v1878 = vunpack.c.l.bf16 %v1546
        %v1879 = vunpack.c.l.bf16 %v1547
        %v1880 = vunpack.c.h.bf16 %v1547
        %v1881 = vunpack.c.l.bf16 %v1548
        %v1882 = vunpack.c.h.bf16 %v1548
        %v1883 = vunpack.c.l.bf16 %v1549
        %v1884 = vunpack.c.l.bf16 %v1550
        %v1885 = vunpack.c.h.bf16 %v1550
        %v1886 = vunpack.c.l.bf16 %v1551
        %v1887 = vunpack.c.h.bf16 %v1551
        %v1888 = vunpack.c.l.bf16 %v1552
        %v1889 = vunpack.c.l.bf16 %v1553
        %v1890 = vunpack.c.h.bf16 %v1553
        %v1891 = vunpack.c.l.bf16 %v1554
        %v1892 = vunpack.c.h.bf16 %v1554
        %v1893 = vunpack.c.l.bf16 %v1555
        %v1894 = vunpack.c.l.bf16 %v1556
        %v1895 = vunpack.c.h.bf16 %v1556
        %v1896 = vunpack.c.l.bf16 %v1557
        %v1897 = vunpack.c.h.bf16 %v1557
        %v1898 = vunpack.c.l.bf16 %v1558
        %v1899 = vunpack.c.l.bf16 %v1559
        %v1900 = vunpack.c.h.bf16 %v1559
        %v1901 = vunpack.c.l.bf16 %v1560
        %v1902 = vunpack.c.h.bf16 %v1560
        %v1903 = vunpack.c.l.bf16 %v1561
        %v1904 = vunpack.c.l.bf16 %v1562
        %v1905 = vunpack.c.h.bf16 %v1562
        %v1906 = vunpack.c.l.bf16 %v1563
        %v1907 = vunpack.c.h.bf16 %v1563
        %v1908 = vunpack.c.l.bf16 %v1564
        %v1909 = vunpack.c.l.bf16 %v1565
        %v1910 = vunpack.c.h.bf16 %v1565
        %v1911 = vunpack.c.l.bf16 %v1566
        %v1912 = vunpack.c.h.bf16 %v1566
        %v1913 = vunpack.c.l.bf16 %v1567
        %v1914 = vunpack.c.l.bf16 %v1568
        %v1915 = vunpack.c.h.bf16 %v1568
        %v1916 = vunpack.c.l.bf16 %v1569
        %v1917 = vunpack.c.h.bf16 %v1569
        %v1918 = vunpack.c.l.bf16 %v1570
        %v1919 = vunpack.c.l.bf16 %v1571
        %v1920 = vunpack.c.h.bf16 %v1571
        %v1921 = vunpack.c.l.bf16 %v1572
        %v1922 = vunpack.c.h.bf16 %v1572
        %v1923 = vunpack.c.l.bf16 %v1573
        %v1924 = vunpack.c.l.bf16 %v1574
        %v1925 = vunpack.c.h.bf16 %v1574
        %v1926 = vunpack.c.l.bf16 %v1575
        %v1927 = vunpack.c.h.bf16 %v1575
        %v1928 = vunpack.c.l.bf16 %v1576
        %v1929 = vunpack.c.l.bf16 %v1577
        %v1930 = vunpack.c.h.bf16 %v1577
        %v1931 = vunpack.c.l.bf16 %v1578
        %v1932 = vunpack.c.h.bf16 %v1578
        %v1933 = vunpack.c.l.bf16 %v1579
        %v1934 = vunpack.c.l.bf16 %v1580
        %v1935 = vunpack.c.h.bf16 %v1580
        %v1936 = vunpack.c.l.bf16 %v1581
        %v1937 = vunpack.c.h.bf16 %v1581
        %v1938 = vunpack.c.l.bf16 %v1582
        %v1939 = vunpack.c.l.bf16 %v1583
        %v1940 = vunpack.c.h.bf16 %v1583
        %v1941 = vunpack.c.l.bf16 %v1584
        %v1942 = vunpack.c.h.bf16 %v1584
        %v1943 = vunpack.c.l.bf16 %v1585
        %v1944 = vunpack.c.l.bf16 %v1586
        %v1945 = vunpack.c.h.bf16 %v1586
        %v1946 = vunpack.c.l.bf16 %v1587
        %v1947 = vunpack.c.h.bf16 %v1587
        %v1948 = vunpack.c.l.bf16 %v1588
        %v1949 = vunpack.c.l.bf16 %v1589
        %v1950 = vunpack.c.h.bf16 %v1589
        %v1951 = vunpack.c.l.bf16 %v1590
        %v1952 = vunpack.c.h.bf16 %v1590
        %v1953 = vunpack.c.l.bf16 %v1591
        %v1954 = vunpack.c.l.bf16 %v1592
        %v1955 = vunpack.c.h.bf16 %v1592
        %v1956 = vunpack.c.l.bf16 %v1593
        %v1957 = vunpack.c.h.bf16 %v1593
        %v1958 = vunpack.c.l.bf16 %v1594
        %v1959 = vunpack.c.l.bf16 %v1595
        %v1960 = vunpack.c.h.bf16 %v1595
        %v1961 = vunpack.c.l.bf16 %v1596
        %v1962 = vunpack.c.h.bf16 %v1596
        %v1963 = vunpack.c.l.bf16 %v1597
        %v1964 = vunpack.c.l.bf16 %v1598
        %v1965 = vunpack.c.h.bf16 %v1598
        %v1966 = vunpack.c.l.bf16 %v1599
        %v1967 = vunpack.c.h.bf16 %v1599
        %v1968 = vunpack.c.l.bf16 %v1600
        %v1969 = vunpack.c.l.bf16 %v1601
        %v1970 = vunpack.c.h.bf16 %v1601
        %v1971 = vunpack.c.l.bf16 %v1602
        %v1972 = vunpack.c.h.bf16 %v1602
        %v1973 = vunpack.c.l.bf16 %v1603
        %v1974 = vunpack.c.l.bf16 %v1604
        %v1975 = vunpack.c.h.bf16 %v1604
        %v1976 = vunpack.c.l.bf16 %v1605
        %v1977 = vunpack.c.h.bf16 %v1605
        %v1978 = vunpack.c.l.bf16 %v1606
        %v1979 = vunpack.c.l.bf16 %v1607
        %v1980 = vunpack.c.h.bf16 %v1607
        %v1981 = vunpack.c.l.bf16 %v1608
        %v1982 = vunpack.c.h.bf16 %v1608
        %v1983 = vunpack.c.l.bf16 %v1609
        %v1984 = vunpack.c.l.bf16 %v1610
        %v1985 = vunpack.c.h.bf16 %v1610
        %v1986 = vunpack.c.l.bf16 %v1611
        %v1987 = vunpack.c.h.bf16 %v1611
        %v1988 = vunpack.c.l.bf16 %v1612
        %v1989 = vunpack.c.l.bf16 %v1613
        %v1990 = vunpack.c.h.bf16 %v1613
        %v1991 = vunpack.c.l.bf16 %v1614
        %v1992 = vunpack.c.h.bf16 %v1614
        %v1993 = vunpack.c.l.bf16 %v1615
        %v1994 = vunpack.c.l.bf16 %v1616
        %v1995 = vunpack.c.h.bf16 %v1616
        %v1996 = vunpack.c.l.bf16 %v1617
        %v1997 = vunpack.c.h.bf16 %v1617
        %v1998 = vunpack.c.l.bf16 %v1618
        %v1999 = vunpack.c.l.bf16 %v1619
        %v2000 = vunpack.c.h.bf16 %v1619
        %v2001 = vunpack.c.l.bf16 %v1620
        %v2002 = vunpack.c.h.bf16 %v1620
        %v2003 = vunpack.c.l.bf16 %v1621
        %v2004 = vunpack.c.l.bf16 %v1622
        %v2005 = vunpack.c.h.bf16 %v1622
        %v2006 = vunpack.c.l.bf16 %v1623
        %v2007 = vunpack.c.h.bf16 %v1623
        %v2008 = vunpack.c.l.bf16 %v1624
        %v2009 = vunpack.c.l.bf16 %v1625
        %v2010 = vunpack.c.h.bf16 %v1625
        %v2011 = vunpack.c.l.bf16 %v1626
        %v2012 = vunpack.c.h.bf16 %v1626
        %v2013 = vunpack.c.l.bf16 %v1627
        %v2014 = vunpack.c.l.bf16 %v1628
        %v2015 = vunpack.c.h.bf16 %v1628
        %v2016 = vunpack.c.l.bf16 %v1629
        %v2017 = vunpack.c.h.bf16 %v1629
        %v2018 = vunpack.c.l.bf16 %v1630
        %v2019 = vunpack.c.l.bf16 %v1631
        %v2020 = vunpack.c.h.bf16 %v1631
        %v2021 = vunpack.c.l.bf16 %v1632
        %v2022 = vunpack.c.h.bf16 %v1632
        %v2023 = vunpack.c.l.bf16 %v1633
        %v2024 = vunpack.c.l.bf16 %v1634
        %v2025 = vunpack.c.h.bf16 %v1634
        %v2026 = vunpack.c.l.bf16 %v1635
        %v2027 = vunpack.c.h.bf16 %v1635
        %v2028 = vunpack.c.l.bf16 %v1636
        %v2029 = vunpack.c.l.bf16 %v1637
        %v2030 = vunpack.c.h.bf16 %v1637
        %v2031 = vunpack.c.l.bf16 %v1638
        %v2032 = vunpack.c.h.bf16 %v1638
        %v2033 = vunpack.c.l.bf16 %v1639
        %v2034 = vunpack.c.l.bf16 %v1640
        %v2035 = vunpack.c.h.bf16 %v1640
        %v2036 = vunpack.c.l.bf16 %v1641
        %v2037 = vunpack.c.h.bf16 %v1641
        %v2038 = vunpack.c.l.bf16 %v1642
        %v2039 = vunpack.c.l.bf16 %v1643
        %v2040 = vunpack.c.h.bf16 %v1643
        %v2041 = vunpack.c.l.bf16 %v1644
        %v2042 = vunpack.c.h.bf16 %v1644
        %v2043 = vunpack.c.l.bf16 %v1645
        %v2044 = vunpack.c.l.bf16 %v1646
        %v2045 = vunpack.c.h.bf16 %v1646
        %v2046 = vunpack.c.l.bf16 %v1647
        %v2047 = vunpack.c.h.bf16 %v1647
        %v2048 = vunpack.c.l.bf16 %v1648
        %v2049 = vld [vmem:[%s596] sm:$0xff]
        %v2050 = vld [vmem:[%s596 + $0x8] sm:$0xff]
        %v2051 = vld [vmem:[%s596 + $0x10] sm:$0xf]
        %v2052 = vld [vmem:[%s596 + $0x14] sm:$0xff]
        %v2053 = vld [vmem:[%s596 + $0x1c] sm:$0xff]
        %v2054 = vld [vmem:[%s596 + $0x24] sm:$0xf]
        %v2055 = vld [vmem:[%s596 + $0x28] sm:$0xff]
        %v2056 = vld [vmem:[%s596 + $0x30] sm:$0xff]
        %v2057 = vld [vmem:[%s596 + $0x38] sm:$0xf]
        %v2058 = vld [vmem:[%s596 + $0x3c] sm:$0xff]
        %v2059 = vld [vmem:[%s596 + $0x44] sm:$0xff]
        %v2060 = vld [vmem:[%s596 + $0x4c] sm:$0xf]
        %v2061 = vld [vmem:[%s596 + $0x50] sm:$0xff]
        %v2062 = vld [vmem:[%s596 + $0x58] sm:$0xff]
        %v2063 = vld [vmem:[%s596 + $0x60] sm:$0xf]
        %v2064 = vld [vmem:[%s596 + $0x64] sm:$0xff]
        %v2065 = vld [vmem:[%s596 + $0x6c] sm:$0xff]
        %v2066 = vld [vmem:[%s596 + $0x74] sm:$0xf]
        %v2067 = vld [vmem:[%s596 + $0x78] sm:$0xff]
        %v2068 = vld [vmem:[%s596 + $0x80] sm:$0xff]
        %v2069 = vld [vmem:[%s596 + $0x88] sm:$0xf]
        %v2070 = vld [vmem:[%s596 + $0x8c] sm:$0xff]
        %v2071 = vld [vmem:[%s596 + $0x94] sm:$0xff]
        %v2072 = vld [vmem:[%s596 + $0x9c] sm:$0xf]
        %v2073 = vld [vmem:[%s596 + $0xa0] sm:$0xff]
        %v2074 = vld [vmem:[%s596 + $0xa8] sm:$0xff]
        %v2075 = vld [vmem:[%s596 + $0xb0] sm:$0xf]
        %v2076 = vld [vmem:[%s596 + $0xb4] sm:$0xff]
        %v2077 = vld [vmem:[%s596 + $0xbc] sm:$0xff]
        %v2078 = vld [vmem:[%s596 + $0xc4] sm:$0xf]
        %v2079 = vld [vmem:[%s596 + $0xc8] sm:$0xff]
        %v2080 = vld [vmem:[%s596 + $0xd0] sm:$0xff]
        %v2081 = vld [vmem:[%s596 + $0xd8] sm:$0xf]
        %v2082 = vld [vmem:[%s596 + $0xdc] sm:$0xff]
        %v2083 = vld [vmem:[%s596 + $0xe4] sm:$0xff]
        %v2084 = vld [vmem:[%s596 + $0xec] sm:$0xf]
        %v2085 = vld [vmem:[%s596 + $0xf0] sm:$0xff]
        %v2086 = vld [vmem:[%s596 + $0xf8] sm:$0xff]
        %v2087 = vld [vmem:[%s596 + $0x100] sm:$0xf]
        %v2088 = vld [vmem:[%s596 + $0x104] sm:$0xff]
        %v2089 = vld [vmem:[%s596 + $0x10c] sm:$0xff]
        %v2090 = vld [vmem:[%s596 + $0x114] sm:$0xf]
        %v2091 = vld [vmem:[%s596 + $0x118] sm:$0xff]
        %v2092 = vld [vmem:[%s596 + $0x120] sm:$0xff]
        %v2093 = vld [vmem:[%s596 + $0x128] sm:$0xf]
        %v2094 = vld [vmem:[%s596 + $0x12c] sm:$0xff]
        %v2095 = vld [vmem:[%s596 + $0x134] sm:$0xff]
        %v2096 = vld [vmem:[%s596 + $0x13c] sm:$0xf]
        %v2097 = vld [vmem:[%s596 + $0x140] sm:$0xff]
        %v2098 = vld [vmem:[%s596 + $0x148] sm:$0xff]
        %v2099 = vld [vmem:[%s596 + $0x150] sm:$0xf]
        %v2100 = vld [vmem:[%s596 + $0x154] sm:$0xff]
        %v2101 = vld [vmem:[%s596 + $0x15c] sm:$0xff]
        %v2102 = vld [vmem:[%s596 + $0x164] sm:$0xf]
        %v2103 = vld [vmem:[%s596 + $0x168] sm:$0xff]
        %v2104 = vld [vmem:[%s596 + $0x170] sm:$0xff]
        %v2105 = vld [vmem:[%s596 + $0x178] sm:$0xf]
        %v2106 = vld [vmem:[%s596 + $0x17c] sm:$0xff]
        %v2107 = vld [vmem:[%s596 + $0x184] sm:$0xff]
        %v2108 = vld [vmem:[%s596 + $0x18c] sm:$0xf]
        %v2109 = vld [vmem:[%s596 + $0x190] sm:$0xff]
        %v2110 = vld [vmem:[%s596 + $0x198] sm:$0xff]
        %v2111 = vld [vmem:[%s596 + $0x1a0] sm:$0xf]
        %v2112 = vld [vmem:[%s596 + $0x1a4] sm:$0xff]
        %v2113 = vld [vmem:[%s596 + $0x1ac] sm:$0xff]
        %v2114 = vld [vmem:[%s596 + $0x1b4] sm:$0xf]
        %v2115 = vld [vmem:[%s596 + $0x1b8] sm:$0xff]
        %v2116 = vld [vmem:[%s596 + $0x1c0] sm:$0xff]
        %v2117 = vld [vmem:[%s596 + $0x1c8] sm:$0xf]
        %v2118 = vld [vmem:[%s596 + $0x1cc] sm:$0xff]
        %v2119 = vld [vmem:[%s596 + $0x1d4] sm:$0xff]
        %v2120 = vld [vmem:[%s596 + $0x1dc] sm:$0xf]
        %v2121 = vld [vmem:[%s596 + $0x1e0] sm:$0xff]
        %v2122 = vld [vmem:[%s596 + $0x1e8] sm:$0xff]
        %v2123 = vld [vmem:[%s596 + $0x1f0] sm:$0xf]
        %v2124 = vld [vmem:[%s596 + $0x1f4] sm:$0xff]
        %v2125 = vld [vmem:[%s596 + $0x1fc] sm:$0xff]
        %v2126 = vld [vmem:[%s596 + $0x204] sm:$0xf]
        %v2127 = vld [vmem:[%s596 + $0x208] sm:$0xff]
        %v2128 = vld [vmem:[%s596 + $0x210] sm:$0xff]
        %v2129 = vld [vmem:[%s596 + $0x218] sm:$0xf]
        %v2130 = vld [vmem:[%s596 + $0x21c] sm:$0xff]
        %v2131 = vld [vmem:[%s596 + $0x224] sm:$0xff]
        %v2132 = vld [vmem:[%s596 + $0x22c] sm:$0xf]
        %v2133 = vld [vmem:[%s596 + $0x230] sm:$0xff]
        %v2134 = vld [vmem:[%s596 + $0x238] sm:$0xff]
        %v2135 = vld [vmem:[%s596 + $0x240] sm:$0xf]
        %v2136 = vld [vmem:[%s596 + $0x244] sm:$0xff]
        %v2137 = vld [vmem:[%s596 + $0x24c] sm:$0xff]
        %v2138 = vld [vmem:[%s596 + $0x254] sm:$0xf]
        %v2139 = vld [vmem:[%s596 + $0x258] sm:$0xff]
        %v2140 = vld [vmem:[%s596 + $0x260] sm:$0xff]
        %v2141 = vld [vmem:[%s596 + $0x268] sm:$0xf]
        %v2142 = vld [vmem:[%s596 + $0x26c] sm:$0xff]
        %v2143 = vld [vmem:[%s596 + $0x274] sm:$0xff]
        %v2144 = vld [vmem:[%s596 + $0x27c] sm:$0xf]
        %v2145 = vld [vmem:[%s596 + $0x280] sm:$0xff]
        %v2146 = vld [vmem:[%s596 + $0x288] sm:$0xff]
        %v2147 = vld [vmem:[%s596 + $0x290] sm:$0xf]
        %v2148 = vld [vmem:[%s596 + $0x294] sm:$0xff]
        %v2149 = vld [vmem:[%s596 + $0x29c] sm:$0xff]
        %v2150 = vld [vmem:[%s596 + $0x2a4] sm:$0xf]
        %v2151 = vld [vmem:[%s596 + $0x2a8] sm:$0xff]
        %v2152 = vld [vmem:[%s596 + $0x2b0] sm:$0xff]
        %v2153 = vld [vmem:[%s596 + $0x2b8] sm:$0xf]
        %v2154 = vld [vmem:[%s596 + $0x2bc] sm:$0xff]
        %v2155 = vld [vmem:[%s596 + $0x2c4] sm:$0xff]
        %v2156 = vld [vmem:[%s596 + $0x2cc] sm:$0xf]
        %v2157 = vld [vmem:[%s596 + $0x2d0] sm:$0xff]
        %v2158 = vld [vmem:[%s596 + $0x2d8] sm:$0xff]
        %v2159 = vld [vmem:[%s596 + $0x2e0] sm:$0xf]
        %v2160 = vld [vmem:[%s596 + $0x2e4] sm:$0xff]
        %v2161 = vld [vmem:[%s596 + $0x2ec] sm:$0xff]
        %v2162 = vld [vmem:[%s596 + $0x2f4] sm:$0xf]
        %v2163 = vld [vmem:[%s596 + $0x2f8] sm:$0xff]
        %v2164 = vld [vmem:[%s596 + $0x300] sm:$0xff]
        %v2165 = vld [vmem:[%s596 + $0x308] sm:$0xf]
        %v2166 = vld [vmem:[%s596 + $0x30c] sm:$0xff]
        %v2167 = vld [vmem:[%s596 + $0x314] sm:$0xff]
        %v2168 = vld [vmem:[%s596 + $0x31c] sm:$0xf]
        %v2169 = vld [vmem:[%s596 + $0x320] sm:$0xff]
        %v2170 = vld [vmem:[%s596 + $0x328] sm:$0xff]
        %v2171 = vld [vmem:[%s596 + $0x330] sm:$0xf]
        %v2172 = vld [vmem:[%s596 + $0x334] sm:$0xff]
        %v2173 = vld [vmem:[%s596 + $0x33c] sm:$0xff]
        %v2174 = vld [vmem:[%s596 + $0x344] sm:$0xf]
        %v2175 = vld [vmem:[%s596 + $0x348] sm:$0xff]
        %v2176 = vld [vmem:[%s596 + $0x350] sm:$0xff]
        %v2177 = vld [vmem:[%s596 + $0x358] sm:$0xf]
        %v2178 = vld [vmem:[%s596 + $0x35c] sm:$0xff]
        %v2179 = vld [vmem:[%s596 + $0x364] sm:$0xff]
        %v2180 = vld [vmem:[%s596 + $0x36c] sm:$0xf]
        %v2181 = vld [vmem:[%s596 + $0x370] sm:$0xff]
        %v2182 = vld [vmem:[%s596 + $0x378] sm:$0xff]
        %v2183 = vld [vmem:[%s596 + $0x380] sm:$0xf]
        %v2184 = vld [vmem:[%s596 + $0x384] sm:$0xff]
        %v2185 = vld [vmem:[%s596 + $0x38c] sm:$0xff]
        %v2186 = vld [vmem:[%s596 + $0x394] sm:$0xf]
        %v2187 = vld [vmem:[%s596 + $0x398] sm:$0xff]
        %v2188 = vld [vmem:[%s596 + $0x3a0] sm:$0xff]
        %v2189 = vld [vmem:[%s596 + $0x3a8] sm:$0xf]
        %v2190 = vld [vmem:[%s596 + $0x3ac] sm:$0xff]
        %v2191 = vld [vmem:[%s596 + $0x3b4] sm:$0xff]
        %v2192 = vld [vmem:[%s596 + $0x3bc] sm:$0xf]
        %v2193 = vld [vmem:[%s596 + $0x3c0] sm:$0xff]
        %v2194 = vld [vmem:[%s596 + $0x3c8] sm:$0xff]
        %v2195 = vld [vmem:[%s596 + $0x3d0] sm:$0xf]
        %v2196 = vld [vmem:[%s596 + $0x3d4] sm:$0xff]
        %v2197 = vld [vmem:[%s596 + $0x3dc] sm:$0xff]
        %v2198 = vld [vmem:[%s596 + $0x3e4] sm:$0xf]
        %v2199 = vld [vmem:[%s596 + $0x3e8] sm:$0xff]
        %v2200 = vld [vmem:[%s596 + $0x3f0] sm:$0xff]
        %v2201 = vld [vmem:[%s596 + $0x3f8] sm:$0xf]
        %v2202 = vld [vmem:[%s596 + $0x3fc] sm:$0xff]
        %v2203 = vld [vmem:[%s596 + $0x404] sm:$0xff]
        %v2204 = vld [vmem:[%s596 + $0x40c] sm:$0xf]
        %v2205 = vld [vmem:[%s596 + $0x410] sm:$0xff]
        %v2206 = vld [vmem:[%s596 + $0x418] sm:$0xff]
        %v2207 = vld [vmem:[%s596 + $0x420] sm:$0xf]
        %v2208 = vld [vmem:[%s596 + $0x424] sm:$0xff]
        %v2209 = vld [vmem:[%s596 + $0x42c] sm:$0xff]
        %v2210 = vld [vmem:[%s596 + $0x434] sm:$0xf]
        %v2211 = vld [vmem:[%s596 + $0x438] sm:$0xff]
        %v2212 = vld [vmem:[%s596 + $0x440] sm:$0xff]
        %v2213 = vld [vmem:[%s596 + $0x448] sm:$0xf]
        %v2214 = vld [vmem:[%s596 + $0x44c] sm:$0xff]
        %v2215 = vld [vmem:[%s596 + $0x454] sm:$0xff]
        %v2216 = vld [vmem:[%s596 + $0x45c] sm:$0xf]
        %v2217 = vld [vmem:[%s596 + $0x460] sm:$0xff]
        %v2218 = vld [vmem:[%s596 + $0x468] sm:$0xff]
        %v2219 = vld [vmem:[%s596 + $0x470] sm:$0xf]
        %v2220 = vld [vmem:[%s596 + $0x474] sm:$0xff]
        %v2221 = vld [vmem:[%s596 + $0x47c] sm:$0xff]
        %v2222 = vld [vmem:[%s596 + $0x484] sm:$0xf]
        %v2223 = vld [vmem:[%s596 + $0x488] sm:$0xff]
        %v2224 = vld [vmem:[%s596 + $0x490] sm:$0xff]
        %v2225 = vld [vmem:[%s596 + $0x498] sm:$0xf]
        %v2226 = vld [vmem:[%s596 + $0x49c] sm:$0xff]
        %v2227 = vld [vmem:[%s596 + $0x4a4] sm:$0xff]
        %v2228 = vld [vmem:[%s596 + $0x4ac] sm:$0xf]
        %v2229 = vld [vmem:[%s596 + $0x4b0] sm:$0xff]
        %v2230 = vld [vmem:[%s596 + $0x4b8] sm:$0xff]
        %v2231 = vld [vmem:[%s596 + $0x4c0] sm:$0xf]
        %v2232 = vld [vmem:[%s596 + $0x4c4] sm:$0xff]
        %v2233 = vld [vmem:[%s596 + $0x4cc] sm:$0xff]
        %v2234 = vld [vmem:[%s596 + $0x4d4] sm:$0xf]
        %v2235 = vld [vmem:[%s596 + $0x4d8] sm:$0xff]
        %v2236 = vld [vmem:[%s596 + $0x4e0] sm:$0xff]
        %v2237 = vld [vmem:[%s596 + $0x4e8] sm:$0xf]
        %v2238 = vld [vmem:[%s596 + $0x4ec] sm:$0xff]
        %v2239 = vld [vmem:[%s596 + $0x4f4] sm:$0xff]
        %v2240 = vld [vmem:[%s596 + $0x4fc] sm:$0xf]
        %v2241 = vld [vmem:[%s596 + $0x500] sm:$0xff]
        %v2242 = vld [vmem:[%s596 + $0x508] sm:$0xff]
        %v2243 = vld [vmem:[%s596 + $0x510] sm:$0xf]
        %v2244 = vld [vmem:[%s596 + $0x514] sm:$0xff]
        %v2245 = vld [vmem:[%s596 + $0x51c] sm:$0xff]
        %v2246 = vld [vmem:[%s596 + $0x524] sm:$0xf]
        %v2247 = vld [vmem:[%s596 + $0x528] sm:$0xff]
        %v2248 = vld [vmem:[%s596 + $0x530] sm:$0xff]
        %v2249 = vld [vmem:[%s596 + $0x538] sm:$0xf]
        %v2250 = vld [vmem:[%s596 + $0x53c] sm:$0xff]
        %v2251 = vld [vmem:[%s596 + $0x544] sm:$0xff]
        %v2252 = vld [vmem:[%s596 + $0x54c] sm:$0xf]
        %v2253 = vld [vmem:[%s596 + $0x550] sm:$0xff]
        %v2254 = vld [vmem:[%s596 + $0x558] sm:$0xff]
        %v2255 = vld [vmem:[%s596 + $0x560] sm:$0xf]
        %v2256 = vld [vmem:[%s596 + $0x564] sm:$0xff]
        %v2257 = vld [vmem:[%s596 + $0x56c] sm:$0xff]
        %v2258 = vld [vmem:[%s596 + $0x574] sm:$0xf]
        %v2259 = vld [vmem:[%s596 + $0x578] sm:$0xff]
        %v2260 = vld [vmem:[%s596 + $0x580] sm:$0xff]
        %v2261 = vld [vmem:[%s596 + $0x588] sm:$0xf]
        %v2262 = vld [vmem:[%s596 + $0x58c] sm:$0xff]
        %v2263 = vld [vmem:[%s596 + $0x594] sm:$0xff]
        %v2264 = vld [vmem:[%s596 + $0x59c] sm:$0xf]
        %v2265 = vld [vmem:[%s596 + $0x5a0] sm:$0xff]
        %v2266 = vld [vmem:[%s596 + $0x5a8] sm:$0xff]
        %v2267 = vld [vmem:[%s596 + $0x5b0] sm:$0xf]
        %v2268 = vld [vmem:[%s596 + $0x5b4] sm:$0xff]
        %v2269 = vld [vmem:[%s596 + $0x5bc] sm:$0xff]
        %v2270 = vld [vmem:[%s596 + $0x5c4] sm:$0xf]
        %v2271 = vld [vmem:[%s596 + $0x5c8] sm:$0xff]
        %v2272 = vld [vmem:[%s596 + $0x5d0] sm:$0xff]
        %v2273 = vld [vmem:[%s596 + $0x5d8] sm:$0xf]
        %v2274 = vld [vmem:[%s596 + $0x5dc] sm:$0xff]
        %v2275 = vld [vmem:[%s596 + $0x5e4] sm:$0xff]
        %v2276 = vld [vmem:[%s596 + $0x5ec] sm:$0xf]
        %v2277 = vld [vmem:[%s596 + $0x5f0] sm:$0xff]
        %v2278 = vld [vmem:[%s596 + $0x5f8] sm:$0xff]
        %v2279 = vld [vmem:[%s596 + $0x600] sm:$0xf]
        %v2280 = vld [vmem:[%s596 + $0x604] sm:$0xff]
        %v2281 = vld [vmem:[%s596 + $0x60c] sm:$0xff]
        %v2282 = vld [vmem:[%s596 + $0x614] sm:$0xf]
        %v2283 = vld [vmem:[%s596 + $0x618] sm:$0xff]
        %v2284 = vld [vmem:[%s596 + $0x620] sm:$0xff]
        %v2285 = vld [vmem:[%s596 + $0x628] sm:$0xf]
        %v2286 = vld [vmem:[%s596 + $0x62c] sm:$0xff]
        %v2287 = vld [vmem:[%s596 + $0x634] sm:$0xff]
        %v2288 = vld [vmem:[%s596 + $0x63c] sm:$0xf]
        %v2289 = vunpack.c.l.bf16 %v2049
        %v2290 = vunpack.c.h.bf16 %v2049
        %v2291 = vunpack.c.l.bf16 %v2050
        %v2292 = vunpack.c.h.bf16 %v2050
        %v2293 = vunpack.c.l.bf16 %v2051
        %v2294 = vunpack.c.l.bf16 %v2052
        %v2295 = vunpack.c.h.bf16 %v2052
        %v2296 = vunpack.c.l.bf16 %v2053
        %v2297 = vunpack.c.h.bf16 %v2053
        %v2298 = vunpack.c.l.bf16 %v2054
        %v2299 = vunpack.c.l.bf16 %v2055
        %v2300 = vunpack.c.h.bf16 %v2055
        %v2301 = vunpack.c.l.bf16 %v2056
        %v2302 = vunpack.c.h.bf16 %v2056
        %v2303 = vunpack.c.l.bf16 %v2057
        %v2304 = vunpack.c.l.bf16 %v2058
        %v2305 = vunpack.c.h.bf16 %v2058
        %v2306 = vunpack.c.l.bf16 %v2059
        %v2307 = vunpack.c.h.bf16 %v2059
        %v2308 = vunpack.c.l.bf16 %v2060
        %v2309 = vunpack.c.l.bf16 %v2061
        %v2310 = vunpack.c.h.bf16 %v2061
        %v2311 = vunpack.c.l.bf16 %v2062
        %v2312 = vunpack.c.h.bf16 %v2062
        %v2313 = vunpack.c.l.bf16 %v2063
        %v2314 = vunpack.c.l.bf16 %v2064
        %v2315 = vunpack.c.h.bf16 %v2064
        %v2316 = vunpack.c.l.bf16 %v2065
        %v2317 = vunpack.c.h.bf16 %v2065
        %v2318 = vunpack.c.l.bf16 %v2066
        %v2319 = vunpack.c.l.bf16 %v2067
        %v2320 = vunpack.c.h.bf16 %v2067
        %v2321 = vunpack.c.l.bf16 %v2068
        %v2322 = vunpack.c.h.bf16 %v2068
        %v2323 = vunpack.c.l.bf16 %v2069
        %v2324 = vunpack.c.l.bf16 %v2070
        %v2325 = vunpack.c.h.bf16 %v2070
        %v2326 = vunpack.c.l.bf16 %v2071
        %v2327 = vunpack.c.h.bf16 %v2071
        %v2328 = vunpack.c.l.bf16 %v2072
        %v2329 = vunpack.c.l.bf16 %v2073
        %v2330 = vunpack.c.h.bf16 %v2073
        %v2331 = vunpack.c.l.bf16 %v2074
        %v2332 = vunpack.c.h.bf16 %v2074
        %v2333 = vunpack.c.l.bf16 %v2075
        %v2334 = vunpack.c.l.bf16 %v2076
        %v2335 = vunpack.c.h.bf16 %v2076
        %v2336 = vunpack.c.l.bf16 %v2077
        %v2337 = vunpack.c.h.bf16 %v2077
        %v2338 = vunpack.c.l.bf16 %v2078
        %v2339 = vunpack.c.l.bf16 %v2079
        %v2340 = vunpack.c.h.bf16 %v2079
        %v2341 = vunpack.c.l.bf16 %v2080
        %v2342 = vunpack.c.h.bf16 %v2080
        %v2343 = vunpack.c.l.bf16 %v2081
        %v2344 = vunpack.c.l.bf16 %v2082
        %v2345 = vunpack.c.h.bf16 %v2082
        %v2346 = vunpack.c.l.bf16 %v2083
        %v2347 = vunpack.c.h.bf16 %v2083
        %v2348 = vunpack.c.l.bf16 %v2084
        %v2349 = vunpack.c.l.bf16 %v2085
        %v2350 = vunpack.c.h.bf16 %v2085
        %v2351 = vunpack.c.l.bf16 %v2086
        %v2352 = vunpack.c.h.bf16 %v2086
        %v2353 = vunpack.c.l.bf16 %v2087
        %v2354 = vunpack.c.l.bf16 %v2088
        %v2355 = vunpack.c.h.bf16 %v2088
        %v2356 = vunpack.c.l.bf16 %v2089
        %v2357 = vunpack.c.h.bf16 %v2089
        %v2358 = vunpack.c.l.bf16 %v2090
        %v2359 = vunpack.c.l.bf16 %v2091
        %v2360 = vunpack.c.h.bf16 %v2091
        %v2361 = vunpack.c.l.bf16 %v2092
        %v2362 = vunpack.c.h.bf16 %v2092
        %v2363 = vunpack.c.l.bf16 %v2093
        %v2364 = vunpack.c.l.bf16 %v2094
        %v2365 = vunpack.c.h.bf16 %v2094
        %v2366 = vunpack.c.l.bf16 %v2095
        %v2367 = vunpack.c.h.bf16 %v2095
        %v2368 = vunpack.c.l.bf16 %v2096
        %v2369 = vunpack.c.l.bf16 %v2097
        %v2370 = vunpack.c.h.bf16 %v2097
        %v2371 = vunpack.c.l.bf16 %v2098
        %v2372 = vunpack.c.h.bf16 %v2098
        %v2373 = vunpack.c.l.bf16 %v2099
        %v2374 = vunpack.c.l.bf16 %v2100
        %v2375 = vunpack.c.h.bf16 %v2100
        %v2376 = vunpack.c.l.bf16 %v2101
        %v2377 = vunpack.c.h.bf16 %v2101
        %v2378 = vunpack.c.l.bf16 %v2102
        %v2379 = vunpack.c.l.bf16 %v2103
        %v2380 = vunpack.c.h.bf16 %v2103
        %v2381 = vunpack.c.l.bf16 %v2104
        %v2382 = vunpack.c.h.bf16 %v2104
        %v2383 = vunpack.c.l.bf16 %v2105
        %v2384 = vunpack.c.l.bf16 %v2106
        %v2385 = vunpack.c.h.bf16 %v2106
        %v2386 = vunpack.c.l.bf16 %v2107
        %v2387 = vunpack.c.h.bf16 %v2107
        %v2388 = vunpack.c.l.bf16 %v2108
        %v2389 = vunpack.c.l.bf16 %v2109
        %v2390 = vunpack.c.h.bf16 %v2109
        %v2391 = vunpack.c.l.bf16 %v2110
        %v2392 = vunpack.c.h.bf16 %v2110
        %v2393 = vunpack.c.l.bf16 %v2111
        %v2394 = vunpack.c.l.bf16 %v2112
        %v2395 = vunpack.c.h.bf16 %v2112
        %v2396 = vunpack.c.l.bf16 %v2113
        %v2397 = vunpack.c.h.bf16 %v2113
        %v2398 = vunpack.c.l.bf16 %v2114
        %v2399 = vunpack.c.l.bf16 %v2115
        %v2400 = vunpack.c.h.bf16 %v2115
        %v2401 = vunpack.c.l.bf16 %v2116
        %v2402 = vunpack.c.h.bf16 %v2116
        %v2403 = vunpack.c.l.bf16 %v2117
        %v2404 = vunpack.c.l.bf16 %v2118
        %v2405 = vunpack.c.h.bf16 %v2118
        %v2406 = vunpack.c.l.bf16 %v2119
        %v2407 = vunpack.c.h.bf16 %v2119
        %v2408 = vunpack.c.l.bf16 %v2120
        %v2409 = vunpack.c.l.bf16 %v2121
        %v2410 = vunpack.c.h.bf16 %v2121
        %v2411 = vunpack.c.l.bf16 %v2122
        %v2412 = vunpack.c.h.bf16 %v2122
        %v2413 = vunpack.c.l.bf16 %v2123
        %v2414 = vunpack.c.l.bf16 %v2124
        %v2415 = vunpack.c.h.bf16 %v2124
        %v2416 = vunpack.c.l.bf16 %v2125
        %v2417 = vunpack.c.h.bf16 %v2125
        %v2418 = vunpack.c.l.bf16 %v2126
        %v2419 = vunpack.c.l.bf16 %v2127
        %v2420 = vunpack.c.h.bf16 %v2127
        %v2421 = vunpack.c.l.bf16 %v2128
        %v2422 = vunpack.c.h.bf16 %v2128
        %v2423 = vunpack.c.l.bf16 %v2129
        %v2424 = vunpack.c.l.bf16 %v2130
        %v2425 = vunpack.c.h.bf16 %v2130
        %v2426 = vunpack.c.l.bf16 %v2131
        %v2427 = vunpack.c.h.bf16 %v2131
        %v2428 = vunpack.c.l.bf16 %v2132
        %v2429 = vunpack.c.l.bf16 %v2133
        %v2430 = vunpack.c.h.bf16 %v2133
        %v2431 = vunpack.c.l.bf16 %v2134
        %v2432 = vunpack.c.h.bf16 %v2134
        %v2433 = vunpack.c.l.bf16 %v2135
        %v2434 = vunpack.c.l.bf16 %v2136
        %v2435 = vunpack.c.h.bf16 %v2136
        %v2436 = vunpack.c.l.bf16 %v2137
        %v2437 = vunpack.c.h.bf16 %v2137
        %v2438 = vunpack.c.l.bf16 %v2138
        %v2439 = vunpack.c.l.bf16 %v2139
        %v2440 = vunpack.c.h.bf16 %v2139
        %v2441 = vunpack.c.l.bf16 %v2140
        %v2442 = vunpack.c.h.bf16 %v2140
        %v2443 = vunpack.c.l.bf16 %v2141
        %v2444 = vunpack.c.l.bf16 %v2142
        %v2445 = vunpack.c.h.bf16 %v2142
        %v2446 = vunpack.c.l.bf16 %v2143
        %v2447 = vunpack.c.h.bf16 %v2143
        %v2448 = vunpack.c.l.bf16 %v2144
        %v2449 = vunpack.c.l.bf16 %v2145
        %v2450 = vunpack.c.h.bf16 %v2145
        %v2451 = vunpack.c.l.bf16 %v2146
        %v2452 = vunpack.c.h.bf16 %v2146
        %v2453 = vunpack.c.l.bf16 %v2147
        %v2454 = vunpack.c.l.bf16 %v2148
        %v2455 = vunpack.c.h.bf16 %v2148
        %v2456 = vunpack.c.l.bf16 %v2149
        %v2457 = vunpack.c.h.bf16 %v2149
        %v2458 = vunpack.c.l.bf16 %v2150
        %v2459 = vunpack.c.l.bf16 %v2151
        %v2460 = vunpack.c.h.bf16 %v2151
        %v2461 = vunpack.c.l.bf16 %v2152
        %v2462 = vunpack.c.h.bf16 %v2152
        %v2463 = vunpack.c.l.bf16 %v2153
        %v2464 = vunpack.c.l.bf16 %v2154
        %v2465 = vunpack.c.h.bf16 %v2154
        %v2466 = vunpack.c.l.bf16 %v2155
        %v2467 = vunpack.c.h.bf16 %v2155
        %v2468 = vunpack.c.l.bf16 %v2156
        %v2469 = vunpack.c.l.bf16 %v2157
        %v2470 = vunpack.c.h.bf16 %v2157
        %v2471 = vunpack.c.l.bf16 %v2158
        %v2472 = vunpack.c.h.bf16 %v2158
        %v2473 = vunpack.c.l.bf16 %v2159
        %v2474 = vunpack.c.l.bf16 %v2160
        %v2475 = vunpack.c.h.bf16 %v2160
        %v2476 = vunpack.c.l.bf16 %v2161
        %v2477 = vunpack.c.h.bf16 %v2161
        %v2478 = vunpack.c.l.bf16 %v2162
        %v2479 = vunpack.c.l.bf16 %v2163
        %v2480 = vunpack.c.h.bf16 %v2163
        %v2481 = vunpack.c.l.bf16 %v2164
        %v2482 = vunpack.c.h.bf16 %v2164
        %v2483 = vunpack.c.l.bf16 %v2165
        %v2484 = vunpack.c.l.bf16 %v2166
        %v2485 = vunpack.c.h.bf16 %v2166
        %v2486 = vunpack.c.l.bf16 %v2167
        %v2487 = vunpack.c.h.bf16 %v2167
        %v2488 = vunpack.c.l.bf16 %v2168
        %v2489 = vunpack.c.l.bf16 %v2169
        %v2490 = vunpack.c.h.bf16 %v2169
        %v2491 = vunpack.c.l.bf16 %v2170
        %v2492 = vunpack.c.h.bf16 %v2170
        %v2493 = vunpack.c.l.bf16 %v2171
        %v2494 = vunpack.c.l.bf16 %v2172
        %v2495 = vunpack.c.h.bf16 %v2172
        %v2496 = vunpack.c.l.bf16 %v2173
        %v2497 = vunpack.c.h.bf16 %v2173
        %v2498 = vunpack.c.l.bf16 %v2174
        %v2499 = vunpack.c.l.bf16 %v2175
        %v2500 = vunpack.c.h.bf16 %v2175
        %v2501 = vunpack.c.l.bf16 %v2176
        %v2502 = vunpack.c.h.bf16 %v2176
        %v2503 = vunpack.c.l.bf16 %v2177
        %v2504 = vunpack.c.l.bf16 %v2178
        %v2505 = vunpack.c.h.bf16 %v2178
        %v2506 = vunpack.c.l.bf16 %v2179
        %v2507 = vunpack.c.h.bf16 %v2179
        %v2508 = vunpack.c.l.bf16 %v2180
        %v2509 = vunpack.c.l.bf16 %v2181
        %v2510 = vunpack.c.h.bf16 %v2181
        %v2511 = vunpack.c.l.bf16 %v2182
        %v2512 = vunpack.c.h.bf16 %v2182
        %v2513 = vunpack.c.l.bf16 %v2183
        %v2514 = vunpack.c.l.bf16 %v2184
        %v2515 = vunpack.c.h.bf16 %v2184
        %v2516 = vunpack.c.l.bf16 %v2185
        %v2517 = vunpack.c.h.bf16 %v2185
        %v2518 = vunpack.c.l.bf16 %v2186
        %v2519 = vunpack.c.l.bf16 %v2187
        %v2520 = vunpack.c.h.bf16 %v2187
        %v2521 = vunpack.c.l.bf16 %v2188
        %v2522 = vunpack.c.h.bf16 %v2188
        %v2523 = vunpack.c.l.bf16 %v2189
        %v2524 = vunpack.c.l.bf16 %v2190
        %v2525 = vunpack.c.h.bf16 %v2190
        %v2526 = vunpack.c.l.bf16 %v2191
        %v2527 = vunpack.c.h.bf16 %v2191
        %v2528 = vunpack.c.l.bf16 %v2192
        %v2529 = vunpack.c.l.bf16 %v2193
        %v2530 = vunpack.c.h.bf16 %v2193
        %v2531 = vunpack.c.l.bf16 %v2194
        %v2532 = vunpack.c.h.bf16 %v2194
        %v2533 = vunpack.c.l.bf16 %v2195
        %v2534 = vunpack.c.l.bf16 %v2196
        %v2535 = vunpack.c.h.bf16 %v2196
        %v2536 = vunpack.c.l.bf16 %v2197
        %v2537 = vunpack.c.h.bf16 %v2197
        %v2538 = vunpack.c.l.bf16 %v2198
        %v2539 = vunpack.c.l.bf16 %v2199
        %v2540 = vunpack.c.h.bf16 %v2199
        %v2541 = vunpack.c.l.bf16 %v2200
        %v2542 = vunpack.c.h.bf16 %v2200
        %v2543 = vunpack.c.l.bf16 %v2201
        %v2544 = vunpack.c.l.bf16 %v2202
        %v2545 = vunpack.c.h.bf16 %v2202
        %v2546 = vunpack.c.l.bf16 %v2203
        %v2547 = vunpack.c.h.bf16 %v2203
        %v2548 = vunpack.c.l.bf16 %v2204
        %v2549 = vunpack.c.l.bf16 %v2205
        %v2550 = vunpack.c.h.bf16 %v2205
        %v2551 = vunpack.c.l.bf16 %v2206
        %v2552 = vunpack.c.h.bf16 %v2206
        %v2553 = vunpack.c.l.bf16 %v2207
        %v2554 = vunpack.c.l.bf16 %v2208
        %v2555 = vunpack.c.h.bf16 %v2208
        %v2556 = vunpack.c.l.bf16 %v2209
        %v2557 = vunpack.c.h.bf16 %v2209
        %v2558 = vunpack.c.l.bf16 %v2210
        %v2559 = vunpack.c.l.bf16 %v2211
        %v2560 = vunpack.c.h.bf16 %v2211
        %v2561 = vunpack.c.l.bf16 %v2212
        %v2562 = vunpack.c.h.bf16 %v2212
        %v2563 = vunpack.c.l.bf16 %v2213
        %v2564 = vunpack.c.l.bf16 %v2214
        %v2565 = vunpack.c.h.bf16 %v2214
        %v2566 = vunpack.c.l.bf16 %v2215
        %v2567 = vunpack.c.h.bf16 %v2215
        %v2568 = vunpack.c.l.bf16 %v2216
        %v2569 = vunpack.c.l.bf16 %v2217
        %v2570 = vunpack.c.h.bf16 %v2217
        %v2571 = vunpack.c.l.bf16 %v2218
        %v2572 = vunpack.c.h.bf16 %v2218
        %v2573 = vunpack.c.l.bf16 %v2219
        %v2574 = vunpack.c.l.bf16 %v2220
        %v2575 = vunpack.c.h.bf16 %v2220
        %v2576 = vunpack.c.l.bf16 %v2221
        %v2577 = vunpack.c.h.bf16 %v2221
        %v2578 = vunpack.c.l.bf16 %v2222
        %v2579 = vunpack.c.l.bf16 %v2223
        %v2580 = vunpack.c.h.bf16 %v2223
        %v2581 = vunpack.c.l.bf16 %v2224
        %v2582 = vunpack.c.h.bf16 %v2224
        %v2583 = vunpack.c.l.bf16 %v2225
        %v2584 = vunpack.c.l.bf16 %v2226
        %v2585 = vunpack.c.h.bf16 %v2226
        %v2586 = vunpack.c.l.bf16 %v2227
        %v2587 = vunpack.c.h.bf16 %v2227
        %v2588 = vunpack.c.l.bf16 %v2228
        %v2589 = vunpack.c.l.bf16 %v2229
        %v2590 = vunpack.c.h.bf16 %v2229
        %v2591 = vunpack.c.l.bf16 %v2230
        %v2592 = vunpack.c.h.bf16 %v2230
        %v2593 = vunpack.c.l.bf16 %v2231
        %v2594 = vunpack.c.l.bf16 %v2232
        %v2595 = vunpack.c.h.bf16 %v2232
        %v2596 = vunpack.c.l.bf16 %v2233
        %v2597 = vunpack.c.h.bf16 %v2233
        %v2598 = vunpack.c.l.bf16 %v2234
        %v2599 = vunpack.c.l.bf16 %v2235
        %v2600 = vunpack.c.h.bf16 %v2235
        %v2601 = vunpack.c.l.bf16 %v2236
        %v2602 = vunpack.c.h.bf16 %v2236
        %v2603 = vunpack.c.l.bf16 %v2237
        %v2604 = vunpack.c.l.bf16 %v2238
        %v2605 = vunpack.c.h.bf16 %v2238
        %v2606 = vunpack.c.l.bf16 %v2239
        %v2607 = vunpack.c.h.bf16 %v2239
        %v2608 = vunpack.c.l.bf16 %v2240
        %v2609 = vunpack.c.l.bf16 %v2241
        %v2610 = vunpack.c.h.bf16 %v2241
        %v2611 = vunpack.c.l.bf16 %v2242
        %v2612 = vunpack.c.h.bf16 %v2242
        %v2613 = vunpack.c.l.bf16 %v2243
        %v2614 = vunpack.c.l.bf16 %v2244
        %v2615 = vunpack.c.h.bf16 %v2244
        %v2616 = vunpack.c.l.bf16 %v2245
        %v2617 = vunpack.c.h.bf16 %v2245
        %v2618 = vunpack.c.l.bf16 %v2246
        %v2619 = vunpack.c.l.bf16 %v2247
        %v2620 = vunpack.c.h.bf16 %v2247
        %v2621 = vunpack.c.l.bf16 %v2248
        %v2622 = vunpack.c.h.bf16 %v2248
        %v2623 = vunpack.c.l.bf16 %v2249
        %v2624 = vunpack.c.l.bf16 %v2250
        %v2625 = vunpack.c.h.bf16 %v2250
        %v2626 = vunpack.c.l.bf16 %v2251
        %v2627 = vunpack.c.h.bf16 %v2251
        %v2628 = vunpack.c.l.bf16 %v2252
        %v2629 = vunpack.c.l.bf16 %v2253
        %v2630 = vunpack.c.h.bf16 %v2253
        %v2631 = vunpack.c.l.bf16 %v2254
        %v2632 = vunpack.c.h.bf16 %v2254
        %v2633 = vunpack.c.l.bf16 %v2255
        %v2634 = vunpack.c.l.bf16 %v2256
        %v2635 = vunpack.c.h.bf16 %v2256
        %v2636 = vunpack.c.l.bf16 %v2257
        %v2637 = vunpack.c.h.bf16 %v2257
        %v2638 = vunpack.c.l.bf16 %v2258
        %v2639 = vunpack.c.l.bf16 %v2259
        %v2640 = vunpack.c.h.bf16 %v2259
        %v2641 = vunpack.c.l.bf16 %v2260
        %v2642 = vunpack.c.h.bf16 %v2260
        %v2643 = vunpack.c.l.bf16 %v2261
        %v2644 = vunpack.c.l.bf16 %v2262
        %v2645 = vunpack.c.h.bf16 %v2262
        %v2646 = vunpack.c.l.bf16 %v2263
        %v2647 = vunpack.c.h.bf16 %v2263
        %v2648 = vunpack.c.l.bf16 %v2264
        %v2649 = vunpack.c.l.bf16 %v2265
        %v2650 = vunpack.c.h.bf16 %v2265
        %v2651 = vunpack.c.l.bf16 %v2266
        %v2652 = vunpack.c.h.bf16 %v2266
        %v2653 = vunpack.c.l.bf16 %v2267
        %v2654 = vunpack.c.l.bf16 %v2268
        %v2655 = vunpack.c.h.bf16 %v2268
        %v2656 = vunpack.c.l.bf16 %v2269
        %v2657 = vunpack.c.h.bf16 %v2269
        %v2658 = vunpack.c.l.bf16 %v2270
        %v2659 = vunpack.c.l.bf16 %v2271
        %v2660 = vunpack.c.h.bf16 %v2271
        %v2661 = vunpack.c.l.bf16 %v2272
        %v2662 = vunpack.c.h.bf16 %v2272
        %v2663 = vunpack.c.l.bf16 %v2273
        %v2664 = vunpack.c.l.bf16 %v2274
        %v2665 = vunpack.c.h.bf16 %v2274
        %v2666 = vunpack.c.l.bf16 %v2275
        %v2667 = vunpack.c.h.bf16 %v2275
        %v2668 = vunpack.c.l.bf16 %v2276
        %v2669 = vunpack.c.l.bf16 %v2277
        %v2670 = vunpack.c.h.bf16 %v2277
        %v2671 = vunpack.c.l.bf16 %v2278
        %v2672 = vunpack.c.h.bf16 %v2278
        %v2673 = vunpack.c.l.bf16 %v2279
        %v2674 = vunpack.c.l.bf16 %v2280
        %v2675 = vunpack.c.h.bf16 %v2280
        %v2676 = vunpack.c.l.bf16 %v2281
        %v2677 = vunpack.c.h.bf16 %v2281
        %v2678 = vunpack.c.l.bf16 %v2282
        %v2679 = vunpack.c.l.bf16 %v2283
        %v2680 = vunpack.c.h.bf16 %v2283
        %v2681 = vunpack.c.l.bf16 %v2284
        %v2682 = vunpack.c.h.bf16 %v2284
        %v2683 = vunpack.c.l.bf16 %v2285
        %v2684 = vunpack.c.l.bf16 %v2286
        %v2685 = vunpack.c.h.bf16 %v2286
        %v2686 = vunpack.c.l.bf16 %v2287
        %v2687 = vunpack.c.h.bf16 %v2287
        %v2688 = vunpack.c.l.bf16 %v2288
        %v2689 = vld [vmem:[%s587] sm:$0x1f]
        %v2691 = vlaneseq
        %v2692 = vshrl.u32 %v2691, 7
        %v2693 = vsub.s32 0, %v2692
        %v2694 = vrot.slane %v2689, %v2693
        %v2695 = vlaneseq
        %v2696 = vshrl.u32 %v2695, 7
        %v2697 = vsub.s32 1, %v2696
        %v2698 = vrot.slane %v2689, %v2697
        %v2699 = vlaneseq
        %v2700 = vshrl.u32 %v2699, 7
        %v2701 = vsub.s32 2, %v2700
        %v2702 = vrot.slane %v2689, %v2701
        %v2703 = vlaneseq
        %v2704 = vshrl.u32 %v2703, 7
        %v2705 = vsub.s32 3, %v2704
        %v2706 = vrot.slane %v2689, %v2705
        %v2707 = vlaneseq
        %v2708 = vshrl.u32 %v2707, 7
        %v2709 = vsub.s32 4, %v2708
        %v2710 = vrot.slane %v2689, %v2709
        %2716 = vmatprep.subr.mxu0 %v1650
        %2717 = vmatpush1.msra.mxu0 %v1649
        %2718 = vmatprep.subr.mxu0 %v1655
        %2719 = vmatpush1.msra.mxu0 %v1654
        %2720 = vmatprep.subr.mxu0 %v1660
        %2721 = vmatpush1.msra.mxu0 %v1659
        %2722 = vmatprep.subr.mxu0 %v1665
        %2723 = vmatpush1.msra.mxu0 %v1664
        %2724 = vmatprep.subr.mxu0 %v1670
        %2725 = vmatpush1.msra.mxu0 %v1669
        %2726 = vmatprep.subr.mxu0 %v1675
        %2727 = vmatpush1.msra.mxu0 %v1674
        %2728 = vmatprep.subr.mxu0 %v1680
        %2729 = vmatpush1.msra.mxu0 %v1679
        %2730 = vmatprep.subr.mxu0 %v1685
        %2731 = vmatpush1.msra.mxu0 %v1684
        %2732 = vmatprep.subr.mxu0 %v1690
        %2733 = vmatpush1.msra.mxu0 %v1689
        %2734 = vmatprep.subr.mxu0 %v1695
        %2735 = vmatpush1.msra.mxu0 %v1694
        %2736 = vmatprep.subr.mxu0 %v1700
        %2737 = vmatpush1.msra.mxu0 %v1699
        %2738 = vmatprep.subr.mxu0 %v1705
        %2739 = vmatpush1.msra.mxu0 %v1704
        %2740 = vmatprep.subr.mxu0 %v1710
        %2741 = vmatpush1.msra.mxu0 %v1709
        %2742 = vmatprep.subr.mxu0 %v1715
        %2743 = vmatpush1.msra.mxu0 %v1714
        %2744 = vmatprep.subr.mxu0 %v1720
        %2745 = vmatpush1.msra.mxu0 %v1719
        %2746 = vmatprep.subr.mxu0 %v1725
        %2747 = vmatpush1.msra.mxu0 %v1724
        %2748 = vmatprep.subr.mxu0 %v1730
        %2749 = vmatpush1.msra.mxu0 %v1729
        %2750 = vmatprep.subr.mxu0 %v1735
        %2751 = vmatpush1.msra.mxu0 %v1734
        %2752 = vmatprep.subr.mxu0 %v1740
        %2753 = vmatpush1.msra.mxu0 %v1739
        %2754 = vmatprep.subr.mxu0 %v1745
        %2755 = vmatpush1.msra.mxu0 %v1744
        %2756 = vmatprep.subr.mxu0 %v1750
        %2757 = vmatpush1.msra.mxu0 %v1749
        %2758 = vmatprep.subr.mxu0 %v1755
        %2759 = vmatpush1.msra.mxu0 %v1754
        %2760 = vmatprep.subr.mxu0 %v1760
        %2761 = vmatpush1.msra.mxu0 %v1759
        %2762 = vmatprep.subr.mxu0 %v1765
        %2763 = vmatpush1.msra.mxu0 %v1764
        %2764 = vmatprep.subr.mxu0 %v1770
        %2765 = vmatpush1.msra.mxu0 %v1769
        %2766 = vmatprep.subr.mxu0 %v1775
        %2767 = vmatpush1.msra.mxu0 %v1774
        %2768 = vmatprep.subr.mxu0 %v1780
        %2769 = vmatpush1.msra.mxu0 %v1779
        %2770 = vmatprep.subr.mxu0 %v1785
        %2771 = vmatpush1.msra.mxu0 %v1784
        %2772 = vmatprep.subr.mxu0 %v1790
        %2773 = vmatpush1.msra.mxu0 %v1789
        %2774 = vmatprep.subr.mxu0 %v1795
        %2775 = vmatpush1.msra.mxu0 %v1794
        %2776 = vmatprep.subr.mxu0 %v1800
        %2777 = vmatpush1.msra.mxu0 %v1799
        %2778 = vmatprep.subr.mxu0 %v1805
        %2779 = vmatpush1.msra.mxu0 %v1804
        %2780 = vmatprep.mubr.f32.mxu0 %v1011
        %2781 = vmatmul.mubr.f32.gmra.mrb[0].mxu0 %v1009
        %v2782 = vpop.f32.mrb[0].mxu0
        %v2783 = vadd.f32 %v2694, %v2782
        %v2784 = vpop.f32.mrb[0].mxu0
        %v2785 = vadd.f32 %v2698, %v2784
        %2786 = vmatprep.mubr.f32.mxu0 %v1017
        %2787 = vmatmul.mubr.f32.gmra.mrb[0].mxu0 %v1015
        %v2788 = vpop.f32.mrb[0].mxu0
        %v2789 = vadd.f32 %v2694, %v2788
        %v2790 = vpop.f32.mrb[0].mxu0
        %v2791 = vadd.f32 %v2698, %v2790
        %2792 = vmatprep.mubr.f32.mxu0 %v1023
        %2793 = vmatmul.mubr.f32.gmra.mrb[0].mxu0 %v1021
        %v2794 = vpop.f32.mrb[0].mxu0
        %v2795 = vadd.f32 %v2694, %v2794
        %v2796 = vpop.f32.mrb[0].mxu0
        %v2797 = vadd.f32 %v2698, %v2796
        %2798 = vmatprep.mubr.f32.mxu0 %v1029
        %2799 = vmatmul.mubr.f32.gmra.mrb[0].mxu0 %v1027
        %v2800 = vpop.f32.mrb[0].mxu0
        %v2801 = vadd.f32 %v2694, %v2800
        %v2802 = vpop.f32.mrb[0].mxu0
        %v2803 = vadd.f32 %v2698, %v2802
        %2804 = vmatprep.mubr.f32.mxu0 %v1035
        %2805 = vmatmul.mubr.f32.gmra.mrb[0].mxu0 %v1033
        %v2806 = vpop.f32.mrb[0].mxu0
        %v2807 = vadd.f32 %v2694, %v2806
        %v2808 = vpop.f32.mrb[0].mxu0
        %v2809 = vadd.f32 %v2698, %v2808
        %2810 = vmatprep.mubr.f32.mxu0 %v1041
        %2811 = vmatmul.mubr.f32.gmra.mrb[0].mxu0 %v1039
        %v2812 = vpop.f32.mrb[0].mxu0
        %v2813 = vadd.f32 %v2694, %v2812
        %v2814 = vpop.f32.mrb[0].mxu0
        %v2815 = vadd.f32 %v2698, %v2814
        %2816 = vmatprep.mubr.f32.mxu0 %v1047
        %2817 = vmatmul.mubr.f32.gmra.mrb[0].mxu0 %v1045
        %v2818 = vpop.f32.mrb[0].mxu0
        %v2819 = vadd.f32 %v2694, %v2818
        %v2820 = vpop.f32.mrb[0].mxu0
        %v2821 = vadd.f32 %v2698, %v2820
        %2822 = vmatprep.mubr.f32.mxu0 %v1053
        %2823 = vmatmul.mubr.f32.gmra.mrb[0].mxu0 %v1051
        %v2824 = vpop.f32.mrb[0].mxu0
        %v2825 = vadd.f32 %v2694, %v2824
        %v2826 = vpop.f32.mrb[0].mxu0
        %v2827 = vadd.f32 %v2698, %v2826
        %2828 = vmatprep.mubr.f32.mxu0 %v1059
        %2829 = vmatmul.mubr.f32.gmra.mrb[0].mxu0 %v1057
        %v2830 = vpop.f32.mrb[0].mxu0
        %v2831 = vadd.f32 %v2694, %v2830
        %v2832 = vpop.f32.mrb[0].mxu0
        %v2833 = vadd.f32 %v2698, %v2832
        %2834 = vmatprep.mubr.f32.mxu0 %v1065
        %2835 = vmatmul.mubr.f32.gmra.mrb[0].mxu0 %v1063
        %v2836 = vpop.f32.mrb[0].mxu0
        %v2837 = vadd.f32 %v2694, %v2836
        %v2838 = vpop.f32.mrb[0].mxu0
        %v2839 = vadd.f32 %v2698, %v2838
        %2840 = vmatprep.mubr.f32.mxu0 %v1071
        %2841 = vmatmul.mubr.f32.gmra.mrb[0].mxu0 %v1069
        %v2842 = vpop.f32.mrb[0].mxu0
        %v2843 = vadd.f32 %v2694, %v2842
        %v2844 = vpop.f32.mrb[0].mxu0
        %v2845 = vadd.f32 %v2698, %v2844
        %2846 = vmatprep.mubr.f32.mxu0 %v1077
        %2847 = vmatmul.mubr.f32.gmra.mrb[0].mxu0 %v1075
        %v2848 = vpop.f32.mrb[0].mxu0
        %v2849 = vadd.f32 %v2694, %v2848
        %v2850 = vpop.f32.mrb[0].mxu0
        %v2851 = vadd.f32 %v2698, %v2850
        %2852 = vmatprep.mubr.f32.mxu0 %v1083
        %2853 = vmatmul.mubr.f32.gmra.mrb[0].mxu0 %v1081
        %v2854 = vpop.f32.mrb[0].mxu0
        %v2855 = vadd.f32 %v2694, %v2854
        %v2856 = vpop.f32.mrb[0].mxu0
        %v2857 = vadd.f32 %v2698, %v2856
        %2858 = vmatprep.mubr.f32.mxu0 %v1089
        %2859 = vmatmul.mubr.f32.gmra.mrb[0].mxu0 %v1087
        %v2860 = vpop.f32.mrb[0].mxu0
        %v2861 = vadd.f32 %v2694, %v2860
        %v2862 = vpop.f32.mrb[0].mxu0
        %v2863 = vadd.f32 %v2698, %v2862
        %2864 = vmatprep.mubr.f32.mxu0 %v1095
        %2865 = vmatmul.mubr.f32.gmra.mrb[0].mxu0 %v1093
        %v2866 = vpop.f32.mrb[0].mxu0
        %v2867 = vadd.f32 %v2694, %v2866
        %v2868 = vpop.f32.mrb[0].mxu0
        %v2869 = vadd.f32 %v2698, %v2868
        %2870 = vmatprep.mubr.f32.mxu0 %v1101
        %2871 = vmatmul.mubr.f32.gmra.mrb[0].mxu0 %v1099
        %v2872 = vpop.f32.mrb[0].mxu0
        %v2873 = vadd.f32 %v2694, %v2872
        %v2874 = vpop.f32.mrb[0].mxu0
        %v2875 = vadd.f32 %v2698, %v2874
        %2876 = vdwg.mxu0
        %2877 = vmatprep.subr.mxu0 %v1810
        %2878 = vmatpush1.msra.mxu0 %v1809
        %2879 = vmatprep.subr.mxu0 %v1815
        %2880 = vmatpush1.msra.mxu0 %v1814
        %2881 = vmatprep.subr.mxu0 %v1820
        %2882 = vmatpush1.msra.mxu0 %v1819
        %2883 = vmatprep.subr.mxu0 %v1825
        %2884 = vmatpush1.msra.mxu0 %v1824
        %2885 = vmatprep.subr.mxu0 %v1830
        %2886 = vmatpush1.msra.mxu0 %v1829
        %2887 = vmatprep.subr.mxu0 %v1835
        %2888 = vmatpush1.msra.mxu0 %v1834
        %2889 = vmatprep.subr.mxu0 %v1840
        %2890 = vmatpush1.msra.mxu0 %v1839
        %2891 = vmatprep.subr.mxu0 %v1845
        %2892 = vmatpush1.msra.mxu0 %v1844
        %2893 = vmatprep.subr.mxu0 %v1850
        %2894 = vmatpush1.msra.mxu0 %v1849
        %2895 = vmatprep.subr.mxu0 %v1855
        %2896 = vmatpush1.msra.mxu0 %v1854
        %2897 = vmatprep.subr.mxu0 %v1860
        %2898 = vmatpush1.msra.mxu0 %v1859
        %2899 = vmatprep.subr.mxu0 %v1865
        %2900 = vmatpush1.msra.mxu0 %v1864
        %2901 = vmatprep.subr.mxu0 %v1870
        %2902 = vmatpush1.msra.mxu0 %v1869
        %2903 = vmatprep.subr.mxu0 %v1875
        %2904 = vmatpush1.msra.mxu0 %v1874
        %2905 = vmatprep.subr.mxu0 %v1880
        %2906 = vmatpush1.msra.mxu0 %v1879
        %2907 = vmatprep.subr.mxu0 %v1885
        %2908 = vmatpush1.msra.mxu0 %v1884
        %2909 = vmatprep.subr.mxu0 %v1890
        %2910 = vmatpush1.msra.mxu0 %v1889
        %2911 = vmatprep.subr.mxu0 %v1895
        %2912 = vmatpush1.msra.mxu0 %v1894
        %2913 = vmatprep.subr.mxu0 %v1900
        %2914 = vmatpush1.msra.mxu0 %v1899
        %2915 = vmatprep.subr.mxu0 %v1905
        %2916 = vmatpush1.msra.mxu0 %v1904
        %2917 = vmatprep.subr.mxu0 %v1910
        %2918 = vmatpush1.msra.mxu0 %v1909
        %2919 = vmatprep.subr.mxu0 %v1915
        %2920 = vmatpush1.msra.mxu0 %v1914
        %2921 = vmatprep.subr.mxu0 %v1920
        %2922 = vmatpush1.msra.mxu0 %v1919
        %2923 = vmatprep.subr.mxu0 %v1925
        %2924 = vmatpush1.msra.mxu0 %v1924
        %2925 = vmatprep.subr.mxu0 %v1930
        %2926 = vmatpush1.msra.mxu0 %v1929
        %2927 = vmatprep.subr.mxu0 %v1935
        %2928 = vmatpush1.msra.mxu0 %v1934
        %2929 = vmatprep.subr.mxu0 %v1940
        %2930 = vmatpush1.msra.mxu0 %v1939
        %2931 = vmatprep.subr.mxu0 %v1945
        %2932 = vmatpush1.msra.mxu0 %v1944
        %2933 = vmatprep.subr.mxu0 %v1950
        %2934 = vmatpush1.msra.mxu0 %v1949
        %2935 = vmatprep.subr.mxu0 %v1955
        %2936 = vmatpush1.msra.mxu0 %v1954
        %2937 = vmatprep.subr.mxu0 %v1960
        %2938 = vmatpush1.msra.mxu0 %v1959
        %2939 = vmatprep.subr.mxu0 %v1965
        %2940 = vmatpush1.msra.mxu0 %v1964
        %2941 = vmatprep.mubr.f32.mxu0 %v1172
        %2942 = vmatmul.mubr.f32.gmra.mrb[0].mxu0 %v1170
        %v2943 = vpop.f32.mrb[0].mxu0
        %v2944 = vadd.f32 %v2783, %v2943
        %v2945 = vpop.f32.mrb[0].mxu0
        %v2946 = vadd.f32 %v2785, %v2945
        %2947 = vmatprep.mubr.f32.mxu0 %v1178
        %2948 = vmatmul.mubr.f32.gmra.mrb[0].mxu0 %v1176
        %v2949 = vpop.f32.mrb[0].mxu0
        %v2950 = vadd.f32 %v2789, %v2949
        %v2951 = vpop.f32.mrb[0].mxu0
        %v2952 = vadd.f32 %v2791, %v2951
        %2953 = vmatprep.mubr.f32.mxu0 %v1184
        %2954 = vmatmul.mubr.f32.gmra.mrb[0].mxu0 %v1182
        %v2955 = vpop.f32.mrb[0].mxu0
        %v2956 = vadd.f32 %v2795, %v2955
        %v2957 = vpop.f32.mrb[0].mxu0
        %v2958 = vadd.f32 %v2797, %v2957
        %2959 = vmatprep.mubr.f32.mxu0 %v1190
        %2960 = vmatmul.mubr.f32.gmra.mrb[0].mxu0 %v1188
        %v2961 = vpop.f32.mrb[0].mxu0
        %v2962 = vadd.f32 %v2801, %v2961
        %v2963 = vpop.f32.mrb[0].mxu0
        %v2964 = vadd.f32 %v2803, %v2963
        %2965 = vmatprep.mubr.f32.mxu0 %v1196
        %2966 = vmatmul.mubr.f32.gmra.mrb[0].mxu0 %v1194
        %v2967 = vpop.f32.mrb[0].mxu0
        %v2968 = vadd.f32 %v2807, %v2967
        %v2969 = vpop.f32.mrb[0].mxu0
        %v2970 = vadd.f32 %v2809, %v2969
        %2971 = vmatprep.mubr.f32.mxu0 %v1202
        %2972 = vmatmul.mubr.f32.gmra.mrb[0].mxu0 %v1200
        %v2973 = vpop.f32.mrb[0].mxu0
        %v2974 = vadd.f32 %v2813, %v2973
        %v2975 = vpop.f32.mrb[0].mxu0
        %v2976 = vadd.f32 %v2815, %v2975
        %2977 = vmatprep.mubr.f32.mxu0 %v1208
        %2978 = vmatmul.mubr.f32.gmra.mrb[0].mxu0 %v1206
        %v2979 = vpop.f32.mrb[0].mxu0
        %v2980 = vadd.f32 %v2819, %v2979
        %v2981 = vpop.f32.mrb[0].mxu0
        %v2982 = vadd.f32 %v2821, %v2981
        %2983 = vmatprep.mubr.f32.mxu0 %v1214
        %2984 = vmatmul.mubr.f32.gmra.mrb[0].mxu0 %v1212
        %v2985 = vpop.f32.mrb[0].mxu0
        %v2986 = vadd.f32 %v2825, %v2985
        %v2987 = vpop.f32.mrb[0].mxu0
        %v2988 = vadd.f32 %v2827, %v2987
        %2989 = vmatprep.mubr.f32.mxu0 %v1220
        %2990 = vmatmul.mubr.f32.gmra.mrb[0].mxu0 %v1218
        %v2991 = vpop.f32.mrb[0].mxu0
        %v2992 = vadd.f32 %v2831, %v2991
        %v2993 = vpop.f32.mrb[0].mxu0
        %v2994 = vadd.f32 %v2833, %v2993
        %2995 = vmatprep.mubr.f32.mxu0 %v1226
        %2996 = vmatmul.mubr.f32.gmra.mrb[0].mxu0 %v1224
        %v2997 = vpop.f32.mrb[0].mxu0
        %v2998 = vadd.f32 %v2837, %v2997
        %v2999 = vpop.f32.mrb[0].mxu0
        %v3000 = vadd.f32 %v2839, %v2999
        %3001 = vmatprep.mubr.f32.mxu0 %v1232
        %3002 = vmatmul.mubr.f32.gmra.mrb[0].mxu0 %v1230
        %v3003 = vpop.f32.mrb[0].mxu0
        %v3004 = vadd.f32 %v2843, %v3003
        %v3005 = vpop.f32.mrb[0].mxu0
        %v3006 = vadd.f32 %v2845, %v3005
        %3007 = vmatprep.mubr.f32.mxu0 %v1238
        %3008 = vmatmul.mubr.f32.gmra.mrb[0].mxu0 %v1236
        %v3009 = vpop.f32.mrb[0].mxu0
        %v3010 = vadd.f32 %v2849, %v3009
        %v3011 = vpop.f32.mrb[0].mxu0
        %v3012 = vadd.f32 %v2851, %v3011
        %3013 = vmatprep.mubr.f32.mxu0 %v1244
        %3014 = vmatmul.mubr.f32.gmra.mrb[0].mxu0 %v1242
        %v3015 = vpop.f32.mrb[0].mxu0
        %v3016 = vadd.f32 %v2855, %v3015
        %v3017 = vpop.f32.mrb[0].mxu0
        %v3018 = vadd.f32 %v2857, %v3017
        %3019 = vmatprep.mubr.f32.mxu0 %v1250
        %3020 = vmatmul.mubr.f32.gmra.mrb[0].mxu0 %v1248
        %v3021 = vpop.f32.mrb[0].mxu0
        %v3022 = vadd.f32 %v2861, %v3021
        %v3023 = vpop.f32.mrb[0].mxu0
        %v3024 = vadd.f32 %v2863, %v3023
        %3025 = vmatprep.mubr.f32.mxu0 %v1256
        %3026 = vmatmul.mubr.f32.gmra.mrb[0].mxu0 %v1254
        %v3027 = vpop.f32.mrb[0].mxu0
        %v3028 = vadd.f32 %v2867, %v3027
        %v3029 = vpop.f32.mrb[0].mxu0
        %v3030 = vadd.f32 %v2869, %v3029
        %3031 = vmatprep.mubr.f32.mxu0 %v1262
        %3032 = vmatmul.mubr.f32.gmra.mrb[0].mxu0 %v1260
        %v3033 = vpop.f32.mrb[0].mxu0
        %v3034 = vadd.f32 %v2873, %v3033
        %v3035 = vpop.f32.mrb[0].mxu0
        %v3036 = vadd.f32 %v2875, %v3035
        %3037 = vdwg.mxu0
        %3038 = vmatprep.subr.mxu0 %v1970
        %3039 = vmatpush1.msra.mxu0 %v1969
        %3040 = vmatprep.subr.mxu0 %v1975
        %3041 = vmatpush1.msra.mxu0 %v1974
        %3042 = vmatprep.subr.mxu0 %v1980
        %3043 = vmatpush1.msra.mxu0 %v1979
        %3044 = vmatprep.subr.mxu0 %v1985
        %3045 = vmatpush1.msra.mxu0 %v1984
        %3046 = vmatprep.subr.mxu0 %v1990
        %3047 = vmatpush1.msra.mxu0 %v1989
        %3048 = vmatprep.subr.mxu0 %v1995
        %3049 = vmatpush1.msra.mxu0 %v1994
        %3050 = vmatprep.subr.mxu0 %v2000
        %3051 = vmatpush1.msra.mxu0 %v1999
        %3052 = vmatprep.subr.mxu0 %v2005
        %3053 = vmatpush1.msra.mxu0 %v2004
        %3054 = vmatprep.subr.mxu0 %v2010
        %3055 = vmatpush1.msra.mxu0 %v2009
        %3056 = vmatprep.subr.mxu0 %v2015
        %3057 = vmatpush1.msra.mxu0 %v2014
        %3058 = vmatprep.subr.mxu0 %v2020
        %3059 = vmatpush1.msra.mxu0 %v2019
        %3060 = vmatprep.subr.mxu0 %v2025
        %3061 = vmatpush1.msra.mxu0 %v2024
        %3062 = vmatprep.subr.mxu0 %v2030
        %3063 = vmatpush1.msra.mxu0 %v2029
        %3064 = vmatprep.subr.mxu0 %v2035
        %3065 = vmatpush1.msra.mxu0 %v2034
        %3066 = vmatprep.subr.mxu0 %v2040
        %3067 = vmatpush1.msra.mxu0 %v2039
        %3068 = vmatprep.subr.mxu0 %v2045
        %3069 = vmatpush1.msra.mxu0 %v2044
        %3070 = vmatprep.subr.mxu0 0.0
        %3071 = vmatpush1.msra.mxu0 0.0
        %3072 = vmatprep.subr.mxu0 0.0
        %3073 = vmatpush1.msra.mxu0 0.0
        %3074 = vmatprep.subr.mxu0 0.0
        %3075 = vmatpush1.msra.mxu0 0.0
        %3076 = vmatprep.subr.mxu0 0.0
        %3077 = vmatpush1.msra.mxu0 0.0
        %3078 = vmatprep.subr.mxu0 0.0
        %3079 = vmatpush1.msra.mxu0 0.0
        %3080 = vmatprep.subr.mxu0 0.0
        %3081 = vmatpush1.msra.mxu0 0.0
        %3082 = vmatprep.subr.mxu0 0.0
        %3083 = vmatpush1.msra.mxu0 0.0
        %3084 = vmatprep.subr.mxu0 0.0
        %3085 = vmatpush1.msra.mxu0 0.0
        %3086 = vmatprep.subr.mxu0 0.0
        %3087 = vmatpush1.msra.mxu0 0.0
        %3088 = vmatprep.subr.mxu0 0.0
        %3089 = vmatpush1.msra.mxu0 0.0
        %3090 = vmatprep.subr.mxu0 0.0
        %3091 = vmatpush1.msra.mxu0 0.0
        %3092 = vmatprep.subr.mxu0 0.0
        %3093 = vmatpush1.msra.mxu0 0.0
        %3094 = vmatprep.subr.mxu0 0.0
        %3095 = vmatpush1.msra.mxu0 0.0
        %3096 = vmatprep.subr.mxu0 0.0
        %3097 = vmatpush1.msra.mxu0 0.0
        %3098 = vmatprep.subr.mxu0 0.0
        %3099 = vmatpush1.msra.mxu0 0.0
        %3100 = vmatprep.subr.mxu0 0.0
        %3101 = vmatpush1.msra.mxu0 0.0
        %3102 = vmatprep.mubr.f32.mxu0 0.0
        %3103 = vmatmul.mubr.f32.gmra.mrb[0].mxu0 %v1331
        %v3104 = vpop.f32.mrb[0].mxu0
        %v3105 = vadd.f32 %v2944, %v3104
        %v3106 = vpop.f32.mrb[0].mxu0
        %v3107 = vadd.f32 %v2946, %v3106
        %3108 = vmatprep.mubr.f32.mxu0 0.0
        %3109 = vmatmul.mubr.f32.gmra.mrb[0].mxu0 %v1336
        %v3110 = vpop.f32.mrb[0].mxu0
        %v3111 = vadd.f32 %v2950, %v3110
        %v3112 = vpop.f32.mrb[0].mxu0
        %v3113 = vadd.f32 %v2952, %v3112
        %3114 = vmatprep.mubr.f32.mxu0 0.0
        %3115 = vmatmul.mubr.f32.gmra.mrb[0].mxu0 %v1341
        %v3116 = vpop.f32.mrb[0].mxu0
        %v3117 = vadd.f32 %v2956, %v3116
        %v3118 = vpop.f32.mrb[0].mxu0
        %v3119 = vadd.f32 %v2958, %v3118
        %3120 = vmatprep.mubr.f32.mxu0 0.0
        %3121 = vmatmul.mubr.f32.gmra.mrb[0].mxu0 %v1346
        %v3122 = vpop.f32.mrb[0].mxu0
        %v3123 = vadd.f32 %v2962, %v3122
        %v3124 = vpop.f32.mrb[0].mxu0
        %v3125 = vadd.f32 %v2964, %v3124
        %3126 = vmatprep.mubr.f32.mxu0 0.0
        %3127 = vmatmul.mubr.f32.gmra.mrb[0].mxu0 %v1351
        %v3128 = vpop.f32.mrb[0].mxu0
        %v3129 = vadd.f32 %v2968, %v3128
        %v3130 = vpop.f32.mrb[0].mxu0
        %v3131 = vadd.f32 %v2970, %v3130
        %3132 = vmatprep.mubr.f32.mxu0 0.0
        %3133 = vmatmul.mubr.f32.gmra.mrb[0].mxu0 %v1356
        %v3134 = vpop.f32.mrb[0].mxu0
        %v3135 = vadd.f32 %v2974, %v3134
        %v3136 = vpop.f32.mrb[0].mxu0
        %v3137 = vadd.f32 %v2976, %v3136
        %3138 = vmatprep.mubr.f32.mxu0 0.0
        %3139 = vmatmul.mubr.f32.gmra.mrb[0].mxu0 %v1361
        %v3140 = vpop.f32.mrb[0].mxu0
        %v3141 = vadd.f32 %v2980, %v3140
        %v3142 = vpop.f32.mrb[0].mxu0
        %v3143 = vadd.f32 %v2982, %v3142
        %3144 = vmatprep.mubr.f32.mxu0 0.0
        %3145 = vmatmul.mubr.f32.gmra.mrb[0].mxu0 %v1366
        %v3146 = vpop.f32.mrb[0].mxu0
        %v3147 = vadd.f32 %v2986, %v3146
        %v3148 = vpop.f32.mrb[0].mxu0
        %v3149 = vadd.f32 %v2988, %v3148
        %3150 = vmatprep.mubr.f32.mxu0 0.0
        %3151 = vmatmul.mubr.f32.gmra.mrb[0].mxu0 %v1371
        %v3152 = vpop.f32.mrb[0].mxu0
        %v3153 = vadd.f32 %v2992, %v3152
        %v3154 = vpop.f32.mrb[0].mxu0
        %v3155 = vadd.f32 %v2994, %v3154
        %3156 = vmatprep.mubr.f32.mxu0 0.0
        %3157 = vmatmul.mubr.f32.gmra.mrb[0].mxu0 %v1376
        %v3158 = vpop.f32.mrb[0].mxu0
        %v3159 = vadd.f32 %v2998, %v3158
        %v3160 = vpop.f32.mrb[0].mxu0
        %v3161 = vadd.f32 %v3000, %v3160
        %3162 = vmatprep.mubr.f32.mxu0 0.0
        %3163 = vmatmul.mubr.f32.gmra.mrb[0].mxu0 %v1381
        %v3164 = vpop.f32.mrb[0].mxu0
        %v3165 = vadd.f32 %v3004, %v3164
        %v3166 = vpop.f32.mrb[0].mxu0
        %v3167 = vadd.f32 %v3006, %v3166
        %3168 = vmatprep.mubr.f32.mxu0 0.0
        %3169 = vmatmul.mubr.f32.gmra.mrb[0].mxu0 %v1386
        %v3170 = vpop.f32.mrb[0].mxu0
        %v3171 = vadd.f32 %v3010, %v3170
        %v3172 = vpop.f32.mrb[0].mxu0
        %v3173 = vadd.f32 %v3012, %v3172
        %3174 = vmatprep.mubr.f32.mxu0 0.0
        %3175 = vmatmul.mubr.f32.gmra.mrb[0].mxu0 %v1391
        %v3176 = vpop.f32.mrb[0].mxu0
        %v3177 = vadd.f32 %v3016, %v3176
        %v3178 = vpop.f32.mrb[0].mxu0
        %v3179 = vadd.f32 %v3018, %v3178
        %3180 = vmatprep.mubr.f32.mxu0 0.0
        %3181 = vmatmul.mubr.f32.gmra.mrb[0].mxu0 %v1396
        %v3182 = vpop.f32.mrb[0].mxu0
        %v3183 = vadd.f32 %v3022, %v3182
        %v3184 = vpop.f32.mrb[0].mxu0
        %v3185 = vadd.f32 %v3024, %v3184
        %3186 = vmatprep.mubr.f32.mxu0 0.0
        %3187 = vmatmul.mubr.f32.gmra.mrb[0].mxu0 %v1401
        %v3188 = vpop.f32.mrb[0].mxu0
        %v3189 = vadd.f32 %v3028, %v3188
        %v3190 = vpop.f32.mrb[0].mxu0
        %v3191 = vadd.f32 %v3030, %v3190
        %3192 = vmatprep.mubr.f32.mxu0 0.0
        %3193 = vmatmul.mubr.f32.gmra.mrb[0].mxu0 %v1406
        %v3194 = vpop.f32.mrb[0].mxu0
        %v3195 = vadd.f32 %v3034, %v3194
        %v3196 = vpop.f32.mrb[0].mxu0
        %v3197 = vadd.f32 %v3036, %v3196
        %3198 = vdwg.mxu0
        %3199 = vmatprep.subr.mxu0 %v1652
        %3200 = vmatpush1.msra.mxu0 %v1651
        %3201 = vmatprep.subr.mxu0 %v1657
        %3202 = vmatpush1.msra.mxu0 %v1656
        %3203 = vmatprep.subr.mxu0 %v1662
        %3204 = vmatpush1.msra.mxu0 %v1661
        %3205 = vmatprep.subr.mxu0 %v1667
        %3206 = vmatpush1.msra.mxu0 %v1666
        %3207 = vmatprep.subr.mxu0 %v1672
        %3208 = vmatpush1.msra.mxu0 %v1671
        %3209 = vmatprep.subr.mxu0 %v1677
        %3210 = vmatpush1.msra.mxu0 %v1676
        %3211 = vmatprep.subr.mxu0 %v1682
        %3212 = vmatpush1.msra.mxu0 %v1681
        %3213 = vmatprep.subr.mxu0 %v1687
        %3214 = vmatpush1.msra.mxu0 %v1686
        %3215 = vmatprep.subr.mxu0 %v1692
        %3216 = vmatpush1.msra.mxu0 %v1691
        %3217 = vmatprep.subr.mxu0 %v1697
        %3218 = vmatpush1.msra.mxu0 %v1696
        %3219 = vmatprep.subr.mxu0 %v1702
        %3220 = vmatpush1.msra.mxu0 %v1701
        %3221 = vmatprep.subr.mxu0 %v1707
        %3222 = vmatpush1.msra.mxu0 %v1706
        %3223 = vmatprep.subr.mxu0 %v1712
        %3224 = vmatpush1.msra.mxu0 %v1711
        %3225 = vmatprep.subr.mxu0 %v1717
        %3226 = vmatpush1.msra.mxu0 %v1716
        %3227 = vmatprep.subr.mxu0 %v1722
        %3228 = vmatpush1.msra.mxu0 %v1721
        %3229 = vmatprep.subr.mxu0 %v1727
        %3230 = vmatpush1.msra.mxu0 %v1726
        %3231 = vmatprep.subr.mxu0 %v1732
        %3232 = vmatpush1.msra.mxu0 %v1731
        %3233 = vmatprep.subr.mxu0 %v1737
        %3234 = vmatpush1.msra.mxu0 %v1736
        %3235 = vmatprep.subr.mxu0 %v1742
        %3236 = vmatpush1.msra.mxu0 %v1741
        %3237 = vmatprep.subr.mxu0 %v1747
        %3238 = vmatpush1.msra.mxu0 %v1746
        %3239 = vmatprep.subr.mxu0 %v1752
        %3240 = vmatpush1.msra.mxu0 %v1751
        %3241 = vmatprep.subr.mxu0 %v1757
        %3242 = vmatpush1.msra.mxu0 %v1756
        %3243 = vmatprep.subr.mxu0 %v1762
        %3244 = vmatpush1.msra.mxu0 %v1761
        %3245 = vmatprep.subr.mxu0 %v1767
        %3246 = vmatpush1.msra.mxu0 %v1766
        %3247 = vmatprep.subr.mxu0 %v1772
        %3248 = vmatpush1.msra.mxu0 %v1771
        %3249 = vmatprep.subr.mxu0 %v1777
        %3250 = vmatpush1.msra.mxu0 %v1776
        %3251 = vmatprep.subr.mxu0 %v1782
        %3252 = vmatpush1.msra.mxu0 %v1781
        %3253 = vmatprep.subr.mxu0 %v1787
        %3254 = vmatpush1.msra.mxu0 %v1786
        %3255 = vmatprep.subr.mxu0 %v1792
        %3256 = vmatpush1.msra.mxu0 %v1791
        %3257 = vmatprep.subr.mxu0 %v1797
        %3258 = vmatpush1.msra.mxu0 %v1796
        %3259 = vmatprep.subr.mxu0 %v1802
        %3260 = vmatpush1.msra.mxu0 %v1801
        %3261 = vmatprep.subr.mxu0 %v1807
        %3262 = vmatpush1.msra.mxu0 %v1806
        %3263 = vmatprep.mubr.f32.mxu0 %v1011
        %3264 = vmatmul.mubr.f32.gmra.mrb[0].mxu0 %v1009
        %v3265 = vpop.f32.mrb[0].mxu0
        %v3266 = vadd.f32 %v2702, %v3265
        %v3267 = vpop.f32.mrb[0].mxu0
        %v3268 = vadd.f32 %v2706, %v3267
        %3269 = vmatprep.mubr.f32.mxu0 %v1017
        %3270 = vmatmul.mubr.f32.gmra.mrb[0].mxu0 %v1015
        %v3271 = vpop.f32.mrb[0].mxu0
        %v3272 = vadd.f32 %v2702, %v3271
        %v3273 = vpop.f32.mrb[0].mxu0
        %v3274 = vadd.f32 %v2706, %v3273
        %3275 = vmatprep.mubr.f32.mxu0 %v1023
        %3276 = vmatmul.mubr.f32.gmra.mrb[0].mxu0 %v1021
        %v3277 = vpop.f32.mrb[0].mxu0
        %v3278 = vadd.f32 %v2702, %v3277
        %v3279 = vpop.f32.mrb[0].mxu0
        %v3280 = vadd.f32 %v2706, %v3279
        %3281 = vmatprep.mubr.f32.mxu0 %v1029
        %3282 = vmatmul.mubr.f32.gmra.mrb[0].mxu0 %v1027
        %v3283 = vpop.f32.mrb[0].mxu0
        %v3284 = vadd.f32 %v2702, %v3283
        %v3285 = vpop.f32.mrb[0].mxu0
        %v3286 = vadd.f32 %v2706, %v3285
        %3287 = vmatprep.mubr.f32.mxu0 %v1035
        %3288 = vmatmul.mubr.f32.gmra.mrb[0].mxu0 %v1033
        %v3289 = vpop.f32.mrb[0].mxu0
        %v3290 = vadd.f32 %v2702, %v3289
        %v3291 = vpop.f32.mrb[0].mxu0
        %v3292 = vadd.f32 %v2706, %v3291
        %3293 = vmatprep.mubr.f32.mxu0 %v1041
        %3294 = vmatmul.mubr.f32.gmra.mrb[0].mxu0 %v1039
        %v3295 = vpop.f32.mrb[0].mxu0
        %v3296 = vadd.f32 %v2702, %v3295
        %v3297 = vpop.f32.mrb[0].mxu0
        %v3298 = vadd.f32 %v2706, %v3297
        %3299 = vmatprep.mubr.f32.mxu0 %v1047
        %3300 = vmatmul.mubr.f32.gmra.mrb[0].mxu0 %v1045
        %v3301 = vpop.f32.mrb[0].mxu0
        %v3302 = vadd.f32 %v2702, %v3301
        %v3303 = vpop.f32.mrb[0].mxu0
        %v3304 = vadd.f32 %v2706, %v3303
        %3305 = vmatprep.mubr.f32.mxu0 %v1053
        %3306 = vmatmul.mubr.f32.gmra.mrb[0].mxu0 %v1051
        %v3307 = vpop.f32.mrb[0].mxu0
        %v3308 = vadd.f32 %v2702, %v3307
        %v3309 = vpop.f32.mrb[0].mxu0
        %v3310 = vadd.f32 %v2706, %v3309
        %3311 = vmatprep.mubr.f32.mxu0 %v1059
        %3312 = vmatmul.mubr.f32.gmra.mrb[0].mxu0 %v1057
        %v3313 = vpop.f32.mrb[0].mxu0
        %v3314 = vadd.f32 %v2702, %v3313
        %v3315 = vpop.f32.mrb[0].mxu0
        %v3316 = vadd.f32 %v2706, %v3315
        %3317 = vmatprep.mubr.f32.mxu0 %v1065
        %3318 = vmatmul.mubr.f32.gmra.mrb[0].mxu0 %v1063
        %v3319 = vpop.f32.mrb[0].mxu0
        %v3320 = vadd.f32 %v2702, %v3319
        %v3321 = vpop.f32.mrb[0].mxu0
        %v3322 = vadd.f32 %v2706, %v3321
        %3323 = vmatprep.mubr.f32.mxu0 %v1071
        %3324 = vmatmul.mubr.f32.gmra.mrb[0].mxu0 %v1069
        %v3325 = vpop.f32.mrb[0].mxu0
        %v3326 = vadd.f32 %v2702, %v3325
        %v3327 = vpop.f32.mrb[0].mxu0
        %v3328 = vadd.f32 %v2706, %v3327
        %3329 = vmatprep.mubr.f32.mxu0 %v1077
        %3330 = vmatmul.mubr.f32.gmra.mrb[0].mxu0 %v1075
        %v3331 = vpop.f32.mrb[0].mxu0
        %v3332 = vadd.f32 %v2702, %v3331
        %v3333 = vpop.f32.mrb[0].mxu0
        %v3334 = vadd.f32 %v2706, %v3333
        %3335 = vmatprep.mubr.f32.mxu0 %v1083
        %3336 = vmatmul.mubr.f32.gmra.mrb[0].mxu0 %v1081
        %v3337 = vpop.f32.mrb[0].mxu0
        %v3338 = vadd.f32 %v2702, %v3337
        %v3339 = vpop.f32.mrb[0].mxu0
        %v3340 = vadd.f32 %v2706, %v3339
        %3341 = vmatprep.mubr.f32.mxu0 %v1089
        %3342 = vmatmul.mubr.f32.gmra.mrb[0].mxu0 %v1087
        %v3343 = vpop.f32.mrb[0].mxu0
        %v3344 = vadd.f32 %v2702, %v3343
        %v3345 = vpop.f32.mrb[0].mxu0
        %v3346 = vadd.f32 %v2706, %v3345
        %3347 = vmatprep.mubr.f32.mxu0 %v1095
        %3348 = vmatmul.mubr.f32.gmra.mrb[0].mxu0 %v1093
        %v3349 = vpop.f32.mrb[0].mxu0
        %v3350 = vadd.f32 %v2702, %v3349
        %v3351 = vpop.f32.mrb[0].mxu0
        %v3352 = vadd.f32 %v2706, %v3351
        %3353 = vmatprep.mubr.f32.mxu0 %v1101
        %3354 = vmatmul.mubr.f32.gmra.mrb[0].mxu0 %v1099
        %v3355 = vpop.f32.mrb[0].mxu0
        %v3356 = vadd.f32 %v2702, %v3355
        %v3357 = vpop.f32.mrb[0].mxu0
        %v3358 = vadd.f32 %v2706, %v3357
        %3359 = vdwg.mxu0
        %3360 = vmatprep.subr.mxu0 %v1812
        %3361 = vmatpush1.msra.mxu0 %v1811
        %3362 = vmatprep.subr.mxu0 %v1817
        %3363 = vmatpush1.msra.mxu0 %v1816
        %3364 = vmatprep.subr.mxu0 %v1822
        %3365 = vmatpush1.msra.mxu0 %v1821
        %3366 = vmatprep.subr.mxu0 %v1827
        %3367 = vmatpush1.msra.mxu0 %v1826
        %3368 = vmatprep.subr.mxu0 %v1832
        %3369 = vmatpush1.msra.mxu0 %v1831
        %3370 = vmatprep.subr.mxu0 %v1837
        %3371 = vmatpush1.msra.mxu0 %v1836
        %3372 = vmatprep.subr.mxu0 %v1842
        %3373 = vmatpush1.msra.mxu0 %v1841
        %3374 = vmatprep.subr.mxu0 %v1847
        %3375 = vmatpush1.msra.mxu0 %v1846
        %3376 = vmatprep.subr.mxu0 %v1852
        %3377 = vmatpush1.msra.mxu0 %v1851
        %3378 = vmatprep.subr.mxu0 %v1857
        %3379 = vmatpush1.msra.mxu0 %v1856
        %3380 = vmatprep.subr.mxu0 %v1862
        %3381 = vmatpush1.msra.mxu0 %v1861
        %3382 = vmatprep.subr.mxu0 %v1867
        %3383 = vmatpush1.msra.mxu0 %v1866
        %3384 = vmatprep.subr.mxu0 %v1872
        %3385 = vmatpush1.msra.mxu0 %v1871
        %3386 = vmatprep.subr.mxu0 %v1877
        %3387 = vmatpush1.msra.mxu0 %v1876
        %3388 = vmatprep.subr.mxu0 %v1882
        %3389 = vmatpush1.msra.mxu0 %v1881
        %3390 = vmatprep.subr.mxu0 %v1887
        %3391 = vmatpush1.msra.mxu0 %v1886
        %3392 = vmatprep.subr.mxu0 %v1892
        %3393 = vmatpush1.msra.mxu0 %v1891
        %3394 = vmatprep.subr.mxu0 %v1897
        %3395 = vmatpush1.msra.mxu0 %v1896
        %3396 = vmatprep.subr.mxu0 %v1902
        %3397 = vmatpush1.msra.mxu0 %v1901
        %3398 = vmatprep.subr.mxu0 %v1907
        %3399 = vmatpush1.msra.mxu0 %v1906
        %3400 = vmatprep.subr.mxu0 %v1912
        %3401 = vmatpush1.msra.mxu0 %v1911
        %3402 = vmatprep.subr.mxu0 %v1917
        %3403 = vmatpush1.msra.mxu0 %v1916
        %3404 = vmatprep.subr.mxu0 %v1922
        %3405 = vmatpush1.msra.mxu0 %v1921
        %3406 = vmatprep.subr.mxu0 %v1927
        %3407 = vmatpush1.msra.mxu0 %v1926
        %3408 = vmatprep.subr.mxu0 %v1932
        %3409 = vmatpush1.msra.mxu0 %v1931
        %3410 = vmatprep.subr.mxu0 %v1937
        %3411 = vmatpush1.msra.mxu0 %v1936
        %3412 = vmatprep.subr.mxu0 %v1942
        %3413 = vmatpush1.msra.mxu0 %v1941
        %3414 = vmatprep.subr.mxu0 %v1947
        %3415 = vmatpush1.msra.mxu0 %v1946
        %3416 = vmatprep.subr.mxu0 %v1952
        %3417 = vmatpush1.msra.mxu0 %v1951
        %3418 = vmatprep.subr.mxu0 %v1957
        %3419 = vmatpush1.msra.mxu0 %v1956
        %3420 = vmatprep.subr.mxu0 %v1962
        %3421 = vmatpush1.msra.mxu0 %v1961
        %3422 = vmatprep.subr.mxu0 %v1967
        %3423 = vmatpush1.msra.mxu0 %v1966
        %3424 = vmatprep.mubr.f32.mxu0 %v1172
        %3425 = vmatmul.mubr.f32.gmra.mrb[0].mxu0 %v1170
        %v3426 = vpop.f32.mrb[0].mxu0
        %v3427 = vadd.f32 %v3266, %v3426
        %v3428 = vpop.f32.mrb[0].mxu0
        %v3429 = vadd.f32 %v3268, %v3428
        %3430 = vmatprep.mubr.f32.mxu0 %v1178
        %3431 = vmatmul.mubr.f32.gmra.mrb[0].mxu0 %v1176
        %v3432 = vpop.f32.mrb[0].mxu0
        %v3433 = vadd.f32 %v3272, %v3432
        %v3434 = vpop.f32.mrb[0].mxu0
        %v3435 = vadd.f32 %v3274, %v3434
        %3436 = vmatprep.mubr.f32.mxu0 %v1184
        %3437 = vmatmul.mubr.f32.gmra.mrb[0].mxu0 %v1182
        %v3438 = vpop.f32.mrb[0].mxu0
        %v3439 = vadd.f32 %v3278, %v3438
        %v3440 = vpop.f32.mrb[0].mxu0
        %v3441 = vadd.f32 %v3280, %v3440
        %3442 = vmatprep.mubr.f32.mxu0 %v1190
        %3443 = vmatmul.mubr.f32.gmra.mrb[0].mxu0 %v1188
        %v3444 = vpop.f32.mrb[0].mxu0
        %v3445 = vadd.f32 %v3284, %v3444
        %v3446 = vpop.f32.mrb[0].mxu0
        %v3447 = vadd.f32 %v3286, %v3446
        %3448 = vmatprep.mubr.f32.mxu0 %v1196
        %3449 = vmatmul.mubr.f32.gmra.mrb[0].mxu0 %v1194
        %v3450 = vpop.f32.mrb[0].mxu0
        %v3451 = vadd.f32 %v3290, %v3450
        %v3452 = vpop.f32.mrb[0].mxu0
        %v3453 = vadd.f32 %v3292, %v3452
        %3454 = vmatprep.mubr.f32.mxu0 %v1202
        %3455 = vmatmul.mubr.f32.gmra.mrb[0].mxu0 %v1200
        %v3456 = vpop.f32.mrb[0].mxu0
        %v3457 = vadd.f32 %v3296, %v3456
        %v3458 = vpop.f32.mrb[0].mxu0
        %v3459 = vadd.f32 %v3298, %v3458
        %3460 = vmatprep.mubr.f32.mxu0 %v1208
        %3461 = vmatmul.mubr.f32.gmra.mrb[0].mxu0 %v1206
        %v3462 = vpop.f32.mrb[0].mxu0
        %v3463 = vadd.f32 %v3302, %v3462
        %v3464 = vpop.f32.mrb[0].mxu0
        %v3465 = vadd.f32 %v3304, %v3464
        %3466 = vmatprep.mubr.f32.mxu0 %v1214
        %3467 = vmatmul.mubr.f32.gmra.mrb[0].mxu0 %v1212
        %v3468 = vpop.f32.mrb[0].mxu0
        %v3469 = vadd.f32 %v3308, %v3468
        %v3470 = vpop.f32.mrb[0].mxu0
        %v3471 = vadd.f32 %v3310, %v3470
        %3472 = vmatprep.mubr.f32.mxu0 %v1220
        %3473 = vmatmul.mubr.f32.gmra.mrb[0].mxu0 %v1218
        %v3474 = vpop.f32.mrb[0].mxu0
        %v3475 = vadd.f32 %v3314, %v3474
        %v3476 = vpop.f32.mrb[0].mxu0
        %v3477 = vadd.f32 %v3316, %v3476
        %3478 = vmatprep.mubr.f32.mxu0 %v1226
        %3479 = vmatmul.mubr.f32.gmra.mrb[0].mxu0 %v1224
        %v3480 = vpop.f32.mrb[0].mxu0
        %v3481 = vadd.f32 %v3320, %v3480
        %v3482 = vpop.f32.mrb[0].mxu0
        %v3483 = vadd.f32 %v3322, %v3482
        %3484 = vmatprep.mubr.f32.mxu0 %v1232
        %3485 = vmatmul.mubr.f32.gmra.mrb[0].mxu0 %v1230
        %v3486 = vpop.f32.mrb[0].mxu0
        %v3487 = vadd.f32 %v3326, %v3486
        %v3488 = vpop.f32.mrb[0].mxu0
        %v3489 = vadd.f32 %v3328, %v3488
        %3490 = vmatprep.mubr.f32.mxu0 %v1238
        %3491 = vmatmul.mubr.f32.gmra.mrb[0].mxu0 %v1236
        %v3492 = vpop.f32.mrb[0].mxu0
        %v3493 = vadd.f32 %v3332, %v3492
        %v3494 = vpop.f32.mrb[0].mxu0
        %v3495 = vadd.f32 %v3334, %v3494
        %3496 = vmatprep.mubr.f32.mxu0 %v1244
        %3497 = vmatmul.mubr.f32.gmra.mrb[0].mxu0 %v1242
        %v3498 = vpop.f32.mrb[0].mxu0
        %v3499 = vadd.f32 %v3338, %v3498
        %v3500 = vpop.f32.mrb[0].mxu0
        %v3501 = vadd.f32 %v3340, %v3500
        %3502 = vmatprep.mubr.f32.mxu0 %v1250
        %3503 = vmatmul.mubr.f32.gmra.mrb[0].mxu0 %v1248
        %v3504 = vpop.f32.mrb[0].mxu0
        %v3505 = vadd.f32 %v3344, %v3504
        %v3506 = vpop.f32.mrb[0].mxu0
        %v3507 = vadd.f32 %v3346, %v3506
        %3508 = vmatprep.mubr.f32.mxu0 %v1256
        %3509 = vmatmul.mubr.f32.gmra.mrb[0].mxu0 %v1254
        %v3510 = vpop.f32.mrb[0].mxu0
        %v3511 = vadd.f32 %v3350, %v3510
        %v3512 = vpop.f32.mrb[0].mxu0
        %v3513 = vadd.f32 %v3352, %v3512
        %3514 = vmatprep.mubr.f32.mxu0 %v1262
        %3515 = vmatmul.mubr.f32.gmra.mrb[0].mxu0 %v1260
        %v3516 = vpop.f32.mrb[0].mxu0
        %v3517 = vadd.f32 %v3356, %v3516
        %v3518 = vpop.f32.mrb[0].mxu0
        %v3519 = vadd.f32 %v3358, %v3518
        %3520 = vdwg.mxu0
        %3521 = vmatprep.subr.mxu0 %v1972
        %3522 = vmatpush1.msra.mxu0 %v1971
        %3523 = vmatprep.subr.mxu0 %v1977
        %3524 = vmatpush1.msra.mxu0 %v1976
        %3525 = vmatprep.subr.mxu0 %v1982
        %3526 = vmatpush1.msra.mxu0 %v1981
        %3527 = vmatprep.subr.mxu0 %v1987
        %3528 = vmatpush1.msra.mxu0 %v1986
        %3529 = vmatprep.subr.mxu0 %v1992
        %3530 = vmatpush1.msra.mxu0 %v1991
        %3531 = vmatprep.subr.mxu0 %v1997
        %3532 = vmatpush1.msra.mxu0 %v1996
        %3533 = vmatprep.subr.mxu0 %v2002
        %3534 = vmatpush1.msra.mxu0 %v2001
        %3535 = vmatprep.subr.mxu0 %v2007
        %3536 = vmatpush1.msra.mxu0 %v2006
        %3537 = vmatprep.subr.mxu0 %v2012
        %3538 = vmatpush1.msra.mxu0 %v2011
        %3539 = vmatprep.subr.mxu0 %v2017
        %3540 = vmatpush1.msra.mxu0 %v2016
        %3541 = vmatprep.subr.mxu0 %v2022
        %3542 = vmatpush1.msra.mxu0 %v2021
        %3543 = vmatprep.subr.mxu0 %v2027
        %3544 = vmatpush1.msra.mxu0 %v2026
        %3545 = vmatprep.subr.mxu0 %v2032
        %3546 = vmatpush1.msra.mxu0 %v2031
        %3547 = vmatprep.subr.mxu0 %v2037
        %3548 = vmatpush1.msra.mxu0 %v2036
        %3549 = vmatprep.subr.mxu0 %v2042
        %3550 = vmatpush1.msra.mxu0 %v2041
        %3551 = vmatprep.subr.mxu0 %v2047
        %3552 = vmatpush1.msra.mxu0 %v2046
        %3553 = vmatprep.subr.mxu0 0.0
        %3554 = vmatpush1.msra.mxu0 0.0
        %3555 = vmatprep.subr.mxu0 0.0
        %3556 = vmatpush1.msra.mxu0 0.0
        %3557 = vmatprep.subr.mxu0 0.0
        %3558 = vmatpush1.msra.mxu0 0.0
        %3559 = vmatprep.subr.mxu0 0.0
        %3560 = vmatpush1.msra.mxu0 0.0
        %3561 = vmatprep.subr.mxu0 0.0
        %3562 = vmatpush1.msra.mxu0 0.0
        %3563 = vmatprep.subr.mxu0 0.0
        %3564 = vmatpush1.msra.mxu0 0.0
        %3565 = vmatprep.subr.mxu0 0.0
        %3566 = vmatpush1.msra.mxu0 0.0
        %3567 = vmatprep.subr.mxu0 0.0
        %3568 = vmatpush1.msra.mxu0 0.0
        %3569 = vmatprep.subr.mxu0 0.0
        %3570 = vmatpush1.msra.mxu0 0.0
        %3571 = vmatprep.subr.mxu0 0.0
        %3572 = vmatpush1.msra.mxu0 0.0
        %3573 = vmatprep.subr.mxu0 0.0
        %3574 = vmatpush1.msra.mxu0 0.0
        %3575 = vmatprep.subr.mxu0 0.0
        %3576 = vmatpush1.msra.mxu0 0.0
        %3577 = vmatprep.subr.mxu0 0.0
        %3578 = vmatpush1.msra.mxu0 0.0
        %3579 = vmatprep.subr.mxu0 0.0
        %3580 = vmatpush1.msra.mxu0 0.0
        %3581 = vmatprep.subr.mxu0 0.0
        %3582 = vmatpush1.msra.mxu0 0.0
        %3583 = vmatprep.subr.mxu0 0.0
        %3584 = vmatpush1.msra.mxu0 0.0
        %3585 = vmatprep.mubr.f32.mxu0 0.0
        %3586 = vmatmul.mubr.f32.gmra.mrb[0].mxu0 %v1331
        %v3587 = vpop.f32.mrb[0].mxu0
        %v3588 = vadd.f32 %v3427, %v3587
        %v3589 = vpop.f32.mrb[0].mxu0
        %v3590 = vadd.f32 %v3429, %v3589
        %3591 = vmatprep.mubr.f32.mxu0 0.0
        %3592 = vmatmul.mubr.f32.gmra.mrb[0].mxu0 %v1336
        %v3593 = vpop.f32.mrb[0].mxu0
        %v3594 = vadd.f32 %v3433, %v3593
        %v3595 = vpop.f32.mrb[0].mxu0
        %v3596 = vadd.f32 %v3435, %v3595
        %3597 = vmatprep.mubr.f32.mxu0 0.0
        %3598 = vmatmul.mubr.f32.gmra.mrb[0].mxu0 %v1341
        %v3599 = vpop.f32.mrb[0].mxu0
        %v3600 = vadd.f32 %v3439, %v3599
        %v3601 = vpop.f32.mrb[0].mxu0
        %v3602 = vadd.f32 %v3441, %v3601
        %3603 = vmatprep.mubr.f32.mxu0 0.0
        %3604 = vmatmul.mubr.f32.gmra.mrb[0].mxu0 %v1346
        %v3605 = vpop.f32.mrb[0].mxu0
        %v3606 = vadd.f32 %v3445, %v3605
        %v3607 = vpop.f32.mrb[0].mxu0
        %v3608 = vadd.f32 %v3447, %v3607
        %3609 = vmatprep.mubr.f32.mxu0 0.0
        %3610 = vmatmul.mubr.f32.gmra.mrb[0].mxu0 %v1351
        %v3611 = vpop.f32.mrb[0].mxu0
        %v3612 = vadd.f32 %v3451, %v3611
        %v3613 = vpop.f32.mrb[0].mxu0
        %v3614 = vadd.f32 %v3453, %v3613
        %3615 = vmatprep.mubr.f32.mxu0 0.0
        %3616 = vmatmul.mubr.f32.gmra.mrb[0].mxu0 %v1356
        %v3617 = vpop.f32.mrb[0].mxu0
        %v3618 = vadd.f32 %v3457, %v3617
        %v3619 = vpop.f32.mrb[0].mxu0
        %v3620 = vadd.f32 %v3459, %v3619
        %3621 = vmatprep.mubr.f32.mxu0 0.0
        %3622 = vmatmul.mubr.f32.gmra.mrb[0].mxu0 %v1361
        %v3623 = vpop.f32.mrb[0].mxu0
        %v3624 = vadd.f32 %v3463, %v3623
        %v3625 = vpop.f32.mrb[0].mxu0
        %v3626 = vadd.f32 %v3465, %v3625
        %3627 = vmatprep.mubr.f32.mxu0 0.0
        %3628 = vmatmul.mubr.f32.gmra.mrb[0].mxu0 %v1366
        %v3629 = vpop.f32.mrb[0].mxu0
        %v3630 = vadd.f32 %v3469, %v3629
        %v3631 = vpop.f32.mrb[0].mxu0
        %v3632 = vadd.f32 %v3471, %v3631
        %3633 = vmatprep.mubr.f32.mxu0 0.0
        %3634 = vmatmul.mubr.f32.gmra.mrb[0].mxu0 %v1371
        %v3635 = vpop.f32.mrb[0].mxu0
        %v3636 = vadd.f32 %v3475, %v3635
        %v3637 = vpop.f32.mrb[0].mxu0
        %v3638 = vadd.f32 %v3477, %v3637
        %3639 = vmatprep.mubr.f32.mxu0 0.0
        %3640 = vmatmul.mubr.f32.gmra.mrb[0].mxu0 %v1376
        %v3641 = vpop.f32.mrb[0].mxu0
        %v3642 = vadd.f32 %v3481, %v3641
        %v3643 = vpop.f32.mrb[0].mxu0
        %v3644 = vadd.f32 %v3483, %v3643
        %3645 = vmatprep.mubr.f32.mxu0 0.0
        %3646 = vmatmul.mubr.f32.gmra.mrb[0].mxu0 %v1381
        %v3647 = vpop.f32.mrb[0].mxu0
        %v3648 = vadd.f32 %v3487, %v3647
        %v3649 = vpop.f32.mrb[0].mxu0
        %v3650 = vadd.f32 %v3489, %v3649
        %3651 = vmatprep.mubr.f32.mxu0 0.0
        %3652 = vmatmul.mubr.f32.gmra.mrb[0].mxu0 %v1386
        %v3653 = vpop.f32.mrb[0].mxu0
        %v3654 = vadd.f32 %v3493, %v3653
        %v3655 = vpop.f32.mrb[0].mxu0
        %v3656 = vadd.f32 %v3495, %v3655
        %3657 = vmatprep.mubr.f32.mxu0 0.0
        %3658 = vmatmul.mubr.f32.gmra.mrb[0].mxu0 %v1391
        %v3659 = vpop.f32.mrb[0].mxu0
        %v3660 = vadd.f32 %v3499, %v3659
        %v3661 = vpop.f32.mrb[0].mxu0
        %v3662 = vadd.f32 %v3501, %v3661
        %3663 = vmatprep.mubr.f32.mxu0 0.0
        %3664 = vmatmul.mubr.f32.gmra.mrb[0].mxu0 %v1396
        %v3665 = vpop.f32.mrb[0].mxu0
        %v3666 = vadd.f32 %v3505, %v3665
        %v3667 = vpop.f32.mrb[0].mxu0
        %v3668 = vadd.f32 %v3507, %v3667
        %3669 = vmatprep.mubr.f32.mxu0 0.0
        %3670 = vmatmul.mubr.f32.gmra.mrb[0].mxu0 %v1401
        %v3671 = vpop.f32.mrb[0].mxu0
        %v3672 = vadd.f32 %v3511, %v3671
        %v3673 = vpop.f32.mrb[0].mxu0
        %v3674 = vadd.f32 %v3513, %v3673
        %3675 = vmatprep.mubr.f32.mxu0 0.0
        %3676 = vmatmul.mubr.f32.gmra.mrb[0].mxu0 %v1406
        %v3677 = vpop.f32.mrb[0].mxu0
        %v3678 = vadd.f32 %v3517, %v3677
        %v3679 = vpop.f32.mrb[0].mxu0
        %v3680 = vadd.f32 %v3519, %v3679
        %3681 = vdwg.mxu0
        %3682 = vmatprep.subr.mxu0 0.0
        %3683 = vmatpush1.msra.mxu0 %v1653
        %3684 = vmatprep.subr.mxu0 0.0
        %3685 = vmatpush1.msra.mxu0 %v1658
        %3686 = vmatprep.subr.mxu0 0.0
        %3687 = vmatpush1.msra.mxu0 %v1663
        %3688 = vmatprep.subr.mxu0 0.0
        %3689 = vmatpush1.msra.mxu0 %v1668
        %3690 = vmatprep.subr.mxu0 0.0
        %3691 = vmatpush1.msra.mxu0 %v1673
        %3692 = vmatprep.subr.mxu0 0.0
        %3693 = vmatpush1.msra.mxu0 %v1678
        %3694 = vmatprep.subr.mxu0 0.0
        %3695 = vmatpush1.msra.mxu0 %v1683
        %3696 = vmatprep.subr.mxu0 0.0
        %3697 = vmatpush1.msra.mxu0 %v1688
        %3698 = vmatprep.subr.mxu0 0.0
        %3699 = vmatpush1.msra.mxu0 %v1693
        %3700 = vmatprep.subr.mxu0 0.0
        %3701 = vmatpush1.msra.mxu0 %v1698
        %3702 = vmatprep.subr.mxu0 0.0
        %3703 = vmatpush1.msra.mxu0 %v1703
        %3704 = vmatprep.subr.mxu0 0.0
        %3705 = vmatpush1.msra.mxu0 %v1708
        %3706 = vmatprep.subr.mxu0 0.0
        %3707 = vmatpush1.msra.mxu0 %v1713
        %3708 = vmatprep.subr.mxu0 0.0
        %3709 = vmatpush1.msra.mxu0 %v1718
        %3710 = vmatprep.subr.mxu0 0.0
        %3711 = vmatpush1.msra.mxu0 %v1723
        %3712 = vmatprep.subr.mxu0 0.0
        %3713 = vmatpush1.msra.mxu0 %v1728
        %3714 = vmatprep.subr.mxu0 0.0
        %3715 = vmatpush1.msra.mxu0 %v1733
        %3716 = vmatprep.subr.mxu0 0.0
        %3717 = vmatpush1.msra.mxu0 %v1738
        %3718 = vmatprep.subr.mxu0 0.0
        %3719 = vmatpush1.msra.mxu0 %v1743
        %3720 = vmatprep.subr.mxu0 0.0
        %3721 = vmatpush1.msra.mxu0 %v1748
        %3722 = vmatprep.subr.mxu0 0.0
        %3723 = vmatpush1.msra.mxu0 %v1753
        %3724 = vmatprep.subr.mxu0 0.0
        %3725 = vmatpush1.msra.mxu0 %v1758
        %3726 = vmatprep.subr.mxu0 0.0
        %3727 = vmatpush1.msra.mxu0 %v1763
        %3728 = vmatprep.subr.mxu0 0.0
        %3729 = vmatpush1.msra.mxu0 %v1768
        %3730 = vmatprep.subr.mxu0 0.0
        %3731 = vmatpush1.msra.mxu0 %v1773
        %3732 = vmatprep.subr.mxu0 0.0
        %3733 = vmatpush1.msra.mxu0 %v1778
        %3734 = vmatprep.subr.mxu0 0.0
        %3735 = vmatpush1.msra.mxu0 %v1783
        %3736 = vmatprep.subr.mxu0 0.0
        %3737 = vmatpush1.msra.mxu0 %v1788
        %3738 = vmatprep.subr.mxu0 0.0
        %3739 = vmatpush1.msra.mxu0 %v1793
        %3740 = vmatprep.subr.mxu0 0.0
        %3741 = vmatpush1.msra.mxu0 %v1798
        %3742 = vmatprep.subr.mxu0 0.0
        %3743 = vmatpush1.msra.mxu0 %v1803
        %3744 = vmatprep.subr.mxu0 0.0
        %3745 = vmatpush1.msra.mxu0 %v1808
        %3746 = vmatprep.mubr.f32.mxu0 %v1011
        %3747 = vmatmul.mubr.f32.gmra.mrb[0].mxu0 %v1009
        %v3748 = vpop.f32.mrb[0].mxu0
        %v3749 = vadd.f32 %v2710, %v3748
        %v3750 = vpop.f32.mrb[0].mxu0
        %3751 = vmatprep.mubr.f32.mxu0 %v1017
        %3752 = vmatmul.mubr.f32.gmra.mrb[0].mxu0 %v1015
        %v3753 = vpop.f32.mrb[0].mxu0
        %v3754 = vadd.f32 %v2710, %v3753
        %v3755 = vpop.f32.mrb[0].mxu0
        %3756 = vmatprep.mubr.f32.mxu0 %v1023
        %3757 = vmatmul.mubr.f32.gmra.mrb[0].mxu0 %v1021
        %v3758 = vpop.f32.mrb[0].mxu0
        %v3759 = vadd.f32 %v2710, %v3758
        %v3760 = vpop.f32.mrb[0].mxu0
        %3761 = vmatprep.mubr.f32.mxu0 %v1029
        %3762 = vmatmul.mubr.f32.gmra.mrb[0].mxu0 %v1027
        %v3763 = vpop.f32.mrb[0].mxu0
        %v3764 = vadd.f32 %v2710, %v3763
        %v3765 = vpop.f32.mrb[0].mxu0
        %3766 = vmatprep.mubr.f32.mxu0 %v1035
        %3767 = vmatmul.mubr.f32.gmra.mrb[0].mxu0 %v1033
        %v3768 = vpop.f32.mrb[0].mxu0
        %v3769 = vadd.f32 %v2710, %v3768
        %v3770 = vpop.f32.mrb[0].mxu0
        %3771 = vmatprep.mubr.f32.mxu0 %v1041
        %3772 = vmatmul.mubr.f32.gmra.mrb[0].mxu0 %v1039
        %v3773 = vpop.f32.mrb[0].mxu0
        %v3774 = vadd.f32 %v2710, %v3773
        %v3775 = vpop.f32.mrb[0].mxu0
        %3776 = vmatprep.mubr.f32.mxu0 %v1047
        %3777 = vmatmul.mubr.f32.gmra.mrb[0].mxu0 %v1045
        %v3778 = vpop.f32.mrb[0].mxu0
        %v3779 = vadd.f32 %v2710, %v3778
        %v3780 = vpop.f32.mrb[0].mxu0
        %3781 = vmatprep.mubr.f32.mxu0 %v1053
        %3782 = vmatmul.mubr.f32.gmra.mrb[0].mxu0 %v1051
        %v3783 = vpop.f32.mrb[0].mxu0
        %v3784 = vadd.f32 %v2710, %v3783
        %v3785 = vpop.f32.mrb[0].mxu0
        %3786 = vmatprep.mubr.f32.mxu0 %v1059
        %3787 = vmatmul.mubr.f32.gmra.mrb[0].mxu0 %v1057
        %v3788 = vpop.f32.mrb[0].mxu0
        %v3789 = vadd.f32 %v2710, %v3788
        %v3790 = vpop.f32.mrb[0].mxu0
        %3791 = vmatprep.mubr.f32.mxu0 %v1065
        %3792 = vmatmul.mubr.f32.gmra.mrb[0].mxu0 %v1063
        %v3793 = vpop.f32.mrb[0].mxu0
        %v3794 = vadd.f32 %v2710, %v3793
        %v3795 = vpop.f32.mrb[0].mxu0
        %3796 = vmatprep.mubr.f32.mxu0 %v1071
        %3797 = vmatmul.mubr.f32.gmra.mrb[0].mxu0 %v1069
        %v3798 = vpop.f32.mrb[0].mxu0
        %v3799 = vadd.f32 %v2710, %v3798
        %v3800 = vpop.f32.mrb[0].mxu0
        %3801 = vmatprep.mubr.f32.mxu0 %v1077
        %3802 = vmatmul.mubr.f32.gmra.mrb[0].mxu0 %v1075
        %v3803 = vpop.f32.mrb[0].mxu0
        %v3804 = vadd.f32 %v2710, %v3803
        %v3805 = vpop.f32.mrb[0].mxu0
        %3806 = vmatprep.mubr.f32.mxu0 %v1083
        %3807 = vmatmul.mubr.f32.gmra.mrb[0].mxu0 %v1081
        %v3808 = vpop.f32.mrb[0].mxu0
        %v3809 = vadd.f32 %v2710, %v3808
        %v3810 = vpop.f32.mrb[0].mxu0
        %3811 = vmatprep.mubr.f32.mxu0 %v1089
        %3812 = vmatmul.mubr.f32.gmra.mrb[0].mxu0 %v1087
        %v3813 = vpop.f32.mrb[0].mxu0
        %v3814 = vadd.f32 %v2710, %v3813
        %v3815 = vpop.f32.mrb[0].mxu0
        %3816 = vmatprep.mubr.f32.mxu0 %v1095
        %3817 = vmatmul.mubr.f32.gmra.mrb[0].mxu0 %v1093
        %v3818 = vpop.f32.mrb[0].mxu0
        %v3819 = vadd.f32 %v2710, %v3818
        %v3820 = vpop.f32.mrb[0].mxu0
        %3821 = vmatprep.mubr.f32.mxu0 %v1101
        %3822 = vmatmul.mubr.f32.gmra.mrb[0].mxu0 %v1099
        %v3823 = vpop.f32.mrb[0].mxu0
        %v3824 = vadd.f32 %v2710, %v3823
        %v3825 = vpop.f32.mrb[0].mxu0
        %3826 = vdwg.mxu0
        %3827 = vmatprep.subr.mxu0 0.0
        %3828 = vmatpush1.msra.mxu0 %v1813
        %3829 = vmatprep.subr.mxu0 0.0
        %3830 = vmatpush1.msra.mxu0 %v1818
        %3831 = vmatprep.subr.mxu0 0.0
        %3832 = vmatpush1.msra.mxu0 %v1823
        %3833 = vmatprep.subr.mxu0 0.0
        %3834 = vmatpush1.msra.mxu0 %v1828
        %3835 = vmatprep.subr.mxu0 0.0
        %3836 = vmatpush1.msra.mxu0 %v1833
        %3837 = vmatprep.subr.mxu0 0.0
        %3838 = vmatpush1.msra.mxu0 %v1838
        %3839 = vmatprep.subr.mxu0 0.0
        %3840 = vmatpush1.msra.mxu0 %v1843
        %3841 = vmatprep.subr.mxu0 0.0
        %3842 = vmatpush1.msra.mxu0 %v1848
        %3843 = vmatprep.subr.mxu0 0.0
        %3844 = vmatpush1.msra.mxu0 %v1853
        %3845 = vmatprep.subr.mxu0 0.0
        %3846 = vmatpush1.msra.mxu0 %v1858
        %3847 = vmatprep.subr.mxu0 0.0
        %3848 = vmatpush1.msra.mxu0 %v1863
        %3849 = vmatprep.subr.mxu0 0.0
        %3850 = vmatpush1.msra.mxu0 %v1868
        %3851 = vmatprep.subr.mxu0 0.0
        %3852 = vmatpush1.msra.mxu0 %v1873
        %3853 = vmatprep.subr.mxu0 0.0
        %3854 = vmatpush1.msra.mxu0 %v1878
        %3855 = vmatprep.subr.mxu0 0.0
        %3856 = vmatpush1.msra.mxu0 %v1883
        %3857 = vmatprep.subr.mxu0 0.0
        %3858 = vmatpush1.msra.mxu0 %v1888
        %3859 = vmatprep.subr.mxu0 0.0
        %3860 = vmatpush1.msra.mxu0 %v1893
        %3861 = vmatprep.subr.mxu0 0.0
        %3862 = vmatpush1.msra.mxu0 %v1898
        %3863 = vmatprep.subr.mxu0 0.0
        %3864 = vmatpush1.msra.mxu0 %v1903
        %3865 = vmatprep.subr.mxu0 0.0
        %3866 = vmatpush1.msra.mxu0 %v1908
        %3867 = vmatprep.subr.mxu0 0.0
        %3868 = vmatpush1.msra.mxu0 %v1913
        %3869 = vmatprep.subr.mxu0 0.0
        %3870 = vmatpush1.msra.mxu0 %v1918
        %3871 = vmatprep.subr.mxu0 0.0
        %3872 = vmatpush1.msra.mxu0 %v1923
        %3873 = vmatprep.subr.mxu0 0.0
        %3874 = vmatpush1.msra.mxu0 %v1928
        %3875 = vmatprep.subr.mxu0 0.0
        %3876 = vmatpush1.msra.mxu0 %v1933
        %3877 = vmatprep.subr.mxu0 0.0
        %3878 = vmatpush1.msra.mxu0 %v1938
        %3879 = vmatprep.subr.mxu0 0.0
        %3880 = vmatpush1.msra.mxu0 %v1943
        %3881 = vmatprep.subr.mxu0 0.0
        %3882 = vmatpush1.msra.mxu0 %v1948
        %3883 = vmatprep.subr.mxu0 0.0
        %3884 = vmatpush1.msra.mxu0 %v1953
        %3885 = vmatprep.subr.mxu0 0.0
        %3886 = vmatpush1.msra.mxu0 %v1958
        %3887 = vmatprep.subr.mxu0 0.0
        %3888 = vmatpush1.msra.mxu0 %v1963
        %3889 = vmatprep.subr.mxu0 0.0
        %3890 = vmatpush1.msra.mxu0 %v1968
        %3891 = vmatprep.mubr.f32.mxu0 %v1172
        %3892 = vmatmul.mubr.f32.gmra.mrb[0].mxu0 %v1170
        %v3893 = vpop.f32.mrb[0].mxu0
        %v3894 = vadd.f32 %v3749, %v3893
        %v3895 = vpop.f32.mrb[0].mxu0
        %3896 = vmatprep.mubr.f32.mxu0 %v1178
        %3897 = vmatmul.mubr.f32.gmra.mrb[0].mxu0 %v1176
        %v3898 = vpop.f32.mrb[0].mxu0
        %v3899 = vadd.f32 %v3754, %v3898
        %v3900 = vpop.f32.mrb[0].mxu0
        %3901 = vmatprep.mubr.f32.mxu0 %v1184
        %3902 = vmatmul.mubr.f32.gmra.mrb[0].mxu0 %v1182
        %v3903 = vpop.f32.mrb[0].mxu0
        %v3904 = vadd.f32 %v3759, %v3903
        %v3905 = vpop.f32.mrb[0].mxu0
        %3906 = vmatprep.mubr.f32.mxu0 %v1190
        %3907 = vmatmul.mubr.f32.gmra.mrb[0].mxu0 %v1188
        %v3908 = vpop.f32.mrb[0].mxu0
        %v3909 = vadd.f32 %v3764, %v3908
        %v3910 = vpop.f32.mrb[0].mxu0
        %3911 = vmatprep.mubr.f32.mxu0 %v1196
        %3912 = vmatmul.mubr.f32.gmra.mrb[0].mxu0 %v1194
        %v3913 = vpop.f32.mrb[0].mxu0
        %v3914 = vadd.f32 %v3769, %v3913
        %v3915 = vpop.f32.mrb[0].mxu0
        %3916 = vmatprep.mubr.f32.mxu0 %v1202
        %3917 = vmatmul.mubr.f32.gmra.mrb[0].mxu0 %v1200
        %v3918 = vpop.f32.mrb[0].mxu0
        %v3919 = vadd.f32 %v3774, %v3918
        %v3920 = vpop.f32.mrb[0].mxu0
        %3921 = vmatprep.mubr.f32.mxu0 %v1208
        %3922 = vmatmul.mubr.f32.gmra.mrb[0].mxu0 %v1206
        %v3923 = vpop.f32.mrb[0].mxu0
        %v3924 = vadd.f32 %v3779, %v3923
        %v3925 = vpop.f32.mrb[0].mxu0
        %3926 = vmatprep.mubr.f32.mxu0 %v1214
        %3927 = vmatmul.mubr.f32.gmra.mrb[0].mxu0 %v1212
        %v3928 = vpop.f32.mrb[0].mxu0
        %v3929 = vadd.f32 %v3784, %v3928
        %v3930 = vpop.f32.mrb[0].mxu0
        %3931 = vmatprep.mubr.f32.mxu0 %v1220
        %3932 = vmatmul.mubr.f32.gmra.mrb[0].mxu0 %v1218
        %v3933 = vpop.f32.mrb[0].mxu0
        %v3934 = vadd.f32 %v3789, %v3933
        %v3935 = vpop.f32.mrb[0].mxu0
        %3936 = vmatprep.mubr.f32.mxu0 %v1226
        %3937 = vmatmul.mubr.f32.gmra.mrb[0].mxu0 %v1224
        %v3938 = vpop.f32.mrb[0].mxu0
        %v3939 = vadd.f32 %v3794, %v3938
        %v3940 = vpop.f32.mrb[0].mxu0
        %3941 = vmatprep.mubr.f32.mxu0 %v1232
        %3942 = vmatmul.mubr.f32.gmra.mrb[0].mxu0 %v1230
        %v3943 = vpop.f32.mrb[0].mxu0
        %v3944 = vadd.f32 %v3799, %v3943
        %v3945 = vpop.f32.mrb[0].mxu0
        %3946 = vmatprep.mubr.f32.mxu0 %v1238
        %3947 = vmatmul.mubr.f32.gmra.mrb[0].mxu0 %v1236
        %v3948 = vpop.f32.mrb[0].mxu0
        %v3949 = vadd.f32 %v3804, %v3948
        %v3950 = vpop.f32.mrb[0].mxu0
        %3951 = vmatprep.mubr.f32.mxu0 %v1244
        %3952 = vmatmul.mubr.f32.gmra.mrb[0].mxu0 %v1242
        %v3953 = vpop.f32.mrb[0].mxu0
        %v3954 = vadd.f32 %v3809, %v3953
        %v3955 = vpop.f32.mrb[0].mxu0
        %3956 = vmatprep.mubr.f32.mxu0 %v1250
        %3957 = vmatmul.mubr.f32.gmra.mrb[0].mxu0 %v1248
        %v3958 = vpop.f32.mrb[0].mxu0
        %v3959 = vadd.f32 %v3814, %v3958
        %v3960 = vpop.f32.mrb[0].mxu0
        %3961 = vmatprep.mubr.f32.mxu0 %v1256
        %3962 = vmatmul.mubr.f32.gmra.mrb[0].mxu0 %v1254
        %v3963 = vpop.f32.mrb[0].mxu0
        %v3964 = vadd.f32 %v3819, %v3963
        %v3965 = vpop.f32.mrb[0].mxu0
        %3966 = vmatprep.mubr.f32.mxu0 %v1262
        %3967 = vmatmul.mubr.f32.gmra.mrb[0].mxu0 %v1260
        %v3968 = vpop.f32.mrb[0].mxu0
        %v3969 = vadd.f32 %v3824, %v3968
        %v3970 = vpop.f32.mrb[0].mxu0
        %3971 = vdwg.mxu0
        %3972 = vmatprep.subr.mxu0 0.0
        %3973 = vmatpush1.msra.mxu0 %v1973
        %3974 = vmatprep.subr.mxu0 0.0
        %3975 = vmatpush1.msra.mxu0 %v1978
        %3976 = vmatprep.subr.mxu0 0.0
        %3977 = vmatpush1.msra.mxu0 %v1983
        %3978 = vmatprep.subr.mxu0 0.0
        %3979 = vmatpush1.msra.mxu0 %v1988
        %3980 = vmatprep.subr.mxu0 0.0
        %3981 = vmatpush1.msra.mxu0 %v1993
        %3982 = vmatprep.subr.mxu0 0.0
        %3983 = vmatpush1.msra.mxu0 %v1998
        %3984 = vmatprep.subr.mxu0 0.0
        %3985 = vmatpush1.msra.mxu0 %v2003
        %3986 = vmatprep.subr.mxu0 0.0
        %3987 = vmatpush1.msra.mxu0 %v2008
        %3988 = vmatprep.subr.mxu0 0.0
        %3989 = vmatpush1.msra.mxu0 %v2013
        %3990 = vmatprep.subr.mxu0 0.0
        %3991 = vmatpush1.msra.mxu0 %v2018
        %3992 = vmatprep.subr.mxu0 0.0
        %3993 = vmatpush1.msra.mxu0 %v2023
        %3994 = vmatprep.subr.mxu0 0.0
        %3995 = vmatpush1.msra.mxu0 %v2028
        %3996 = vmatprep.subr.mxu0 0.0
        %3997 = vmatpush1.msra.mxu0 %v2033
        %3998 = vmatprep.subr.mxu0 0.0
        %3999 = vmatpush1.msra.mxu0 %v2038
        %4000 = vmatprep.subr.mxu0 0.0
        %4001 = vmatpush1.msra.mxu0 %v2043
        %4002 = vmatprep.subr.mxu0 0.0
        %4003 = vmatpush1.msra.mxu0 %v2048
        %4004 = vmatprep.subr.mxu0 0.0
        %4005 = vmatpush1.msra.mxu0 0.0
        %4006 = vmatprep.subr.mxu0 0.0
        %4007 = vmatpush1.msra.mxu0 0.0
        %4008 = vmatprep.subr.mxu0 0.0
        %4009 = vmatpush1.msra.mxu0 0.0
        %4010 = vmatprep.subr.mxu0 0.0
        %4011 = vmatpush1.msra.mxu0 0.0
        %4012 = vmatprep.subr.mxu0 0.0
        %4013 = vmatpush1.msra.mxu0 0.0
        %4014 = vmatprep.subr.mxu0 0.0
        %4015 = vmatpush1.msra.mxu0 0.0
        %4016 = vmatprep.subr.mxu0 0.0
        %4017 = vmatpush1.msra.mxu0 0.0
        %4018 = vmatprep.subr.mxu0 0.0
        %4019 = vmatpush1.msra.mxu0 0.0
        %4020 = vmatprep.subr.mxu0 0.0
        %4021 = vmatpush1.msra.mxu0 0.0
        %4022 = vmatprep.subr.mxu0 0.0
        %4023 = vmatpush1.msra.mxu0 0.0
        %4024 = vmatprep.subr.mxu0 0.0
        %4025 = vmatpush1.msra.mxu0 0.0
        %4026 = vmatprep.subr.mxu0 0.0
        %4027 = vmatpush1.msra.mxu0 0.0
        %4028 = vmatprep.subr.mxu0 0.0
        %4029 = vmatpush1.msra.mxu0 0.0
        %4030 = vmatprep.subr.mxu0 0.0
        %4031 = vmatpush1.msra.mxu0 0.0
        %4032 = vmatprep.subr.mxu0 0.0
        %4033 = vmatpush1.msra.mxu0 0.0
        %4034 = vmatprep.subr.mxu0 0.0
        %4035 = vmatpush1.msra.mxu0 0.0
        %4036 = vmatprep.mubr.f32.mxu0 0.0
        %4037 = vmatmul.mubr.f32.gmra.mrb[0].mxu0 %v1331
        %v4038 = vpop.f32.mrb[0].mxu0
        %v4039 = vadd.f32 %v3894, %v4038
        %v4040 = vpop.f32.mrb[0].mxu0
        %4041 = vmatprep.mubr.f32.mxu0 0.0
        %4042 = vmatmul.mubr.f32.gmra.mrb[0].mxu0 %v1336
        %v4043 = vpop.f32.mrb[0].mxu0
        %v4044 = vadd.f32 %v3899, %v4043
        %v4045 = vpop.f32.mrb[0].mxu0
        %4046 = vmatprep.mubr.f32.mxu0 0.0
        %4047 = vmatmul.mubr.f32.gmra.mrb[0].mxu0 %v1341
        %v4048 = vpop.f32.mrb[0].mxu0
        %v4049 = vadd.f32 %v3904, %v4048
        %v4050 = vpop.f32.mrb[0].mxu0
        %4051 = vmatprep.mubr.f32.mxu0 0.0
        %4052 = vmatmul.mubr.f32.gmra.mrb[0].mxu0 %v1346
        %v4053 = vpop.f32.mrb[0].mxu0
        %v4054 = vadd.f32 %v3909, %v4053
        %v4055 = vpop.f32.mrb[0].mxu0
        %4056 = vmatprep.mubr.f32.mxu0 0.0
        %4057 = vmatmul.mubr.f32.gmra.mrb[0].mxu0 %v1351
        %v4058 = vpop.f32.mrb[0].mxu0
        %v4059 = vadd.f32 %v3914, %v4058
        %v4060 = vpop.f32.mrb[0].mxu0
        %4061 = vmatprep.mubr.f32.mxu0 0.0
        %4062 = vmatmul.mubr.f32.gmra.mrb[0].mxu0 %v1356
        %v4063 = vpop.f32.mrb[0].mxu0
        %v4064 = vadd.f32 %v3919, %v4063
        %v4065 = vpop.f32.mrb[0].mxu0
        %4066 = vmatprep.mubr.f32.mxu0 0.0
        %4067 = vmatmul.mubr.f32.gmra.mrb[0].mxu0 %v1361
        %v4068 = vpop.f32.mrb[0].mxu0
        %v4069 = vadd.f32 %v3924, %v4068
        %v4070 = vpop.f32.mrb[0].mxu0
        %4071 = vmatprep.mubr.f32.mxu0 0.0
        %4072 = vmatmul.mubr.f32.gmra.mrb[0].mxu0 %v1366
        %v4073 = vpop.f32.mrb[0].mxu0
        %v4074 = vadd.f32 %v3929, %v4073
        %v4075 = vpop.f32.mrb[0].mxu0
        %4076 = vmatprep.mubr.f32.mxu0 0.0
        %4077 = vmatmul.mubr.f32.gmra.mrb[0].mxu0 %v1371
        %v4078 = vpop.f32.mrb[0].mxu0
        %v4079 = vadd.f32 %v3934, %v4078
        %v4080 = vpop.f32.mrb[0].mxu0
        %4081 = vmatprep.mubr.f32.mxu0 0.0
        %4082 = vmatmul.mubr.f32.gmra.mrb[0].mxu0 %v1376
        %v4083 = vpop.f32.mrb[0].mxu0
        %v4084 = vadd.f32 %v3939, %v4083
        %v4085 = vpop.f32.mrb[0].mxu0
        %4086 = vmatprep.mubr.f32.mxu0 0.0
        %4087 = vmatmul.mubr.f32.gmra.mrb[0].mxu0 %v1381
        %v4088 = vpop.f32.mrb[0].mxu0
        %v4089 = vadd.f32 %v3944, %v4088
        %v4090 = vpop.f32.mrb[0].mxu0
        %4091 = vmatprep.mubr.f32.mxu0 0.0
        %4092 = vmatmul.mubr.f32.gmra.mrb[0].mxu0 %v1386
        %v4093 = vpop.f32.mrb[0].mxu0
        %v4094 = vadd.f32 %v3949, %v4093
        %v4095 = vpop.f32.mrb[0].mxu0
        %4096 = vmatprep.mubr.f32.mxu0 0.0
        %4097 = vmatmul.mubr.f32.gmra.mrb[0].mxu0 %v1391
        %v4098 = vpop.f32.mrb[0].mxu0
        %v4099 = vadd.f32 %v3954, %v4098
        %v4100 = vpop.f32.mrb[0].mxu0
        %4101 = vmatprep.mubr.f32.mxu0 0.0
        %4102 = vmatmul.mubr.f32.gmra.mrb[0].mxu0 %v1396
        %v4103 = vpop.f32.mrb[0].mxu0
        %v4104 = vadd.f32 %v3959, %v4103
        %v4105 = vpop.f32.mrb[0].mxu0
        %4106 = vmatprep.mubr.f32.mxu0 0.0
        %4107 = vmatmul.mubr.f32.gmra.mrb[0].mxu0 %v1401
        %v4108 = vpop.f32.mrb[0].mxu0
        %v4109 = vadd.f32 %v3964, %v4108
        %v4110 = vpop.f32.mrb[0].mxu0
        %4111 = vmatprep.mubr.f32.mxu0 0.0
        %4112 = vmatmul.mubr.f32.gmra.mrb[0].mxu0 %v1406
        %v4113 = vpop.f32.mrb[0].mxu0
        %v4114 = vadd.f32 %v3969, %v4113
        %v4115 = vpop.f32.mrb[0].mxu0
        %4116 = vdwg.mxu0
        %v4117 = vmax.f32 %v3105, 0.0
        %v4118 = vmax.f32 %v3107, 0.0
        %v4119 = vmax.f32 %v3588, 0.0
        %v4120 = vmax.f32 %v3590, 0.0
        %v4121 = vmax.f32 %v4039, 0.0
        %v4122 = vmax.f32 %v3111, 0.0
        %v4123 = vmax.f32 %v3113, 0.0
        %v4124 = vmax.f32 %v3594, 0.0
        %v4125 = vmax.f32 %v3596, 0.0
        %v4126 = vmax.f32 %v4044, 0.0
        %v4127 = vmax.f32 %v3117, 0.0
        %v4128 = vmax.f32 %v3119, 0.0
        %v4129 = vmax.f32 %v3600, 0.0
        %v4130 = vmax.f32 %v3602, 0.0
        %v4131 = vmax.f32 %v4049, 0.0
        %v4132 = vmax.f32 %v3123, 0.0
        %v4133 = vmax.f32 %v3125, 0.0
        %v4134 = vmax.f32 %v3606, 0.0
        %v4135 = vmax.f32 %v3608, 0.0
        %v4136 = vmax.f32 %v4054, 0.0
        %v4137 = vmax.f32 %v3129, 0.0
        %v4138 = vmax.f32 %v3131, 0.0
        %v4139 = vmax.f32 %v3612, 0.0
        %v4140 = vmax.f32 %v3614, 0.0
        %v4141 = vmax.f32 %v4059, 0.0
        %v4142 = vmax.f32 %v3135, 0.0
        %v4143 = vmax.f32 %v3137, 0.0
        %v4144 = vmax.f32 %v3618, 0.0
        %v4145 = vmax.f32 %v3620, 0.0
        %v4146 = vmax.f32 %v4064, 0.0
        %v4147 = vmax.f32 %v3141, 0.0
        %v4148 = vmax.f32 %v3143, 0.0
        %v4149 = vmax.f32 %v3624, 0.0
        %v4150 = vmax.f32 %v3626, 0.0
        %v4151 = vmax.f32 %v4069, 0.0
        %v4152 = vmax.f32 %v3147, 0.0
        %v4153 = vmax.f32 %v3149, 0.0
        %v4154 = vmax.f32 %v3630, 0.0
        %v4155 = vmax.f32 %v3632, 0.0
        %v4156 = vmax.f32 %v4074, 0.0
        %v4157 = vmax.f32 %v3153, 0.0
        %v4158 = vmax.f32 %v3155, 0.0
        %v4159 = vmax.f32 %v3636, 0.0
        %v4160 = vmax.f32 %v3638, 0.0
        %v4161 = vmax.f32 %v4079, 0.0
        %v4162 = vmax.f32 %v3159, 0.0
        %v4163 = vmax.f32 %v3161, 0.0
        %v4164 = vmax.f32 %v3642, 0.0
        %v4165 = vmax.f32 %v3644, 0.0
        %v4166 = vmax.f32 %v4084, 0.0
        %v4167 = vmax.f32 %v3165, 0.0
        %v4168 = vmax.f32 %v3167, 0.0
        %v4169 = vmax.f32 %v3648, 0.0
        %v4170 = vmax.f32 %v3650, 0.0
        %v4171 = vmax.f32 %v4089, 0.0
        %v4172 = vmax.f32 %v3171, 0.0
        %v4173 = vmax.f32 %v3173, 0.0
        %v4174 = vmax.f32 %v3654, 0.0
        %v4175 = vmax.f32 %v3656, 0.0
        %v4176 = vmax.f32 %v4094, 0.0
        %v4177 = vmax.f32 %v3177, 0.0
        %v4178 = vmax.f32 %v3179, 0.0
        %v4179 = vmax.f32 %v3660, 0.0
        %v4180 = vmax.f32 %v3662, 0.0
        %v4181 = vmax.f32 %v4099, 0.0
        %v4182 = vmax.f32 %v3183, 0.0
        %v4183 = vmax.f32 %v3185, 0.0
        %v4184 = vmax.f32 %v3666, 0.0
        %v4185 = vmax.f32 %v3668, 0.0
        %v4186 = vmax.f32 %v4104, 0.0
        %v4187 = vmax.f32 %v3189, 0.0
        %v4188 = vmax.f32 %v3191, 0.0
        %v4189 = vmax.f32 %v3672, 0.0
        %v4190 = vmax.f32 %v3674, 0.0
        %v4191 = vmax.f32 %v4109, 0.0
        %v4192 = vmax.f32 %v3195, 0.0
        %v4193 = vmax.f32 %v3197, 0.0
        %v4194 = vmax.f32 %v3678, 0.0
        %v4195 = vmax.f32 %v3680, 0.0
        %v4196 = vmax.f32 %v4114, 0.0
        %v4197 = vld [vmem:[%s605] sm:$0x1f]
        %v4199 = vlaneseq
        %v4200 = vshrl.u32 %v4199, 7
        %v4201 = vsub.s32 0, %v4200
        %v4202 = vrot.slane %v4197, %v4201
        %v4203 = vlaneseq
        %v4204 = vshrl.u32 %v4203, 7
        %v4205 = vsub.s32 1, %v4204
        %v4206 = vrot.slane %v4197, %v4205
        %v4207 = vlaneseq
        %v4208 = vshrl.u32 %v4207, 7
        %v4209 = vsub.s32 2, %v4208
        %v4210 = vrot.slane %v4197, %v4209
        %v4211 = vlaneseq
        %v4212 = vshrl.u32 %v4211, 7
        %v4213 = vsub.s32 3, %v4212
        %v4214 = vrot.slane %v4197, %v4213
        %v4215 = vlaneseq
        %v4216 = vshrl.u32 %v4215, 7
        %v4217 = vsub.s32 4, %v4216
        %v4218 = vrot.slane %v4197, %v4217
        %4224 = vmatprep.subr.mxu0 %v2290
        %4225 = vmatpush1.msra.mxu0 %v2289
        %4226 = vmatprep.subr.mxu0 %v2295
        %4227 = vmatpush1.msra.mxu0 %v2294
        %4228 = vmatprep.subr.mxu0 %v2300
        %4229 = vmatpush1.msra.mxu0 %v2299
        %4230 = vmatprep.subr.mxu0 %v2305
        %4231 = vmatpush1.msra.mxu0 %v2304
        %4232 = vmatprep.subr.mxu0 %v2310
        %4233 = vmatpush1.msra.mxu0 %v2309
        %4234 = vmatprep.subr.mxu0 %v2315
        %4235 = vmatpush1.msra.mxu0 %v2314
        %4236 = vmatprep.subr.mxu0 %v2320
        %4237 = vmatpush1.msra.mxu0 %v2319
        %4238 = vmatprep.subr.mxu0 %v2325
        %4239 = vmatpush1.msra.mxu0 %v2324
        %4240 = vmatprep.subr.mxu0 %v2330
        %4241 = vmatpush1.msra.mxu0 %v2329
        %4242 = vmatprep.subr.mxu0 %v2335
        %4243 = vmatpush1.msra.mxu0 %v2334
        %4244 = vmatprep.subr.mxu0 %v2340
        %4245 = vmatpush1.msra.mxu0 %v2339
        %4246 = vmatprep.subr.mxu0 %v2345
        %4247 = vmatpush1.msra.mxu0 %v2344
        %4248 = vmatprep.subr.mxu0 %v2350
        %4249 = vmatpush1.msra.mxu0 %v2349
        %4250 = vmatprep.subr.mxu0 %v2355
        %4251 = vmatpush1.msra.mxu0 %v2354
        %4252 = vmatprep.subr.mxu0 %v2360
        %4253 = vmatpush1.msra.mxu0 %v2359
        %4254 = vmatprep.subr.mxu0 %v2365
        %4255 = vmatpush1.msra.mxu0 %v2364
        %4256 = vmatprep.subr.mxu0 %v2370
        %4257 = vmatpush1.msra.mxu0 %v2369
        %4258 = vmatprep.subr.mxu0 %v2375
        %4259 = vmatpush1.msra.mxu0 %v2374
        %4260 = vmatprep.subr.mxu0 %v2380
        %4261 = vmatpush1.msra.mxu0 %v2379
        %4262 = vmatprep.subr.mxu0 %v2385
        %4263 = vmatpush1.msra.mxu0 %v2384
        %4264 = vmatprep.subr.mxu0 %v2390
        %4265 = vmatpush1.msra.mxu0 %v2389
        %4266 = vmatprep.subr.mxu0 %v2395
        %4267 = vmatpush1.msra.mxu0 %v2394
        %4268 = vmatprep.subr.mxu0 %v2400
        %4269 = vmatpush1.msra.mxu0 %v2399
        %4270 = vmatprep.subr.mxu0 %v2405
        %4271 = vmatpush1.msra.mxu0 %v2404
        %4272 = vmatprep.subr.mxu0 %v2410
        %4273 = vmatpush1.msra.mxu0 %v2409
        %4274 = vmatprep.subr.mxu0 %v2415
        %4275 = vmatpush1.msra.mxu0 %v2414
        %4276 = vmatprep.subr.mxu0 %v2420
        %4277 = vmatpush1.msra.mxu0 %v2419
        %4278 = vmatprep.subr.mxu0 %v2425
        %4279 = vmatpush1.msra.mxu0 %v2424
        %4280 = vmatprep.subr.mxu0 %v2430
        %4281 = vmatpush1.msra.mxu0 %v2429
        %4282 = vmatprep.subr.mxu0 %v2435
        %4283 = vmatpush1.msra.mxu0 %v2434
        %4284 = vmatprep.subr.mxu0 %v2440
        %4285 = vmatpush1.msra.mxu0 %v2439
        %4286 = vmatprep.subr.mxu0 %v2445
        %4287 = vmatpush1.msra.mxu0 %v2444
        %4288 = vmatprep.mubr.f32.mxu0 %v4118
        %4289 = vmatmul.mubr.f32.gmra.mrb[0].mxu0 %v4117
        %v4290 = vpop.f32.mrb[0].mxu0
        %v4291 = vadd.f32 %v4202, %v4290
        %v4292 = vpop.f32.mrb[0].mxu0
        %v4293 = vadd.f32 %v4206, %v4292
        %4294 = vmatprep.mubr.f32.mxu0 %v4123
        %4295 = vmatmul.mubr.f32.gmra.mrb[0].mxu0 %v4122
        %v4296 = vpop.f32.mrb[0].mxu0
        %v4297 = vadd.f32 %v4202, %v4296
        %v4298 = vpop.f32.mrb[0].mxu0
        %v4299 = vadd.f32 %v4206, %v4298
        %4300 = vmatprep.mubr.f32.mxu0 %v4128
        %4301 = vmatmul.mubr.f32.gmra.mrb[0].mxu0 %v4127
        %v4302 = vpop.f32.mrb[0].mxu0
        %v4303 = vadd.f32 %v4202, %v4302
        %v4304 = vpop.f32.mrb[0].mxu0
        %v4305 = vadd.f32 %v4206, %v4304
        %4306 = vmatprep.mubr.f32.mxu0 %v4133
        %4307 = vmatmul.mubr.f32.gmra.mrb[0].mxu0 %v4132
        %v4308 = vpop.f32.mrb[0].mxu0
        %v4309 = vadd.f32 %v4202, %v4308
        %v4310 = vpop.f32.mrb[0].mxu0
        %v4311 = vadd.f32 %v4206, %v4310
        %4312 = vmatprep.mubr.f32.mxu0 %v4138
        %4313 = vmatmul.mubr.f32.gmra.mrb[0].mxu0 %v4137
        %v4314 = vpop.f32.mrb[0].mxu0
        %v4315 = vadd.f32 %v4202, %v4314
        %v4316 = vpop.f32.mrb[0].mxu0
        %v4317 = vadd.f32 %v4206, %v4316
        %4318 = vmatprep.mubr.f32.mxu0 %v4143
        %4319 = vmatmul.mubr.f32.gmra.mrb[0].mxu0 %v4142
        %v4320 = vpop.f32.mrb[0].mxu0
        %v4321 = vadd.f32 %v4202, %v4320
        %v4322 = vpop.f32.mrb[0].mxu0
        %v4323 = vadd.f32 %v4206, %v4322
        %4324 = vmatprep.mubr.f32.mxu0 %v4148
        %4325 = vmatmul.mubr.f32.gmra.mrb[0].mxu0 %v4147
        %v4326 = vpop.f32.mrb[0].mxu0
        %v4327 = vadd.f32 %v4202, %v4326
        %v4328 = vpop.f32.mrb[0].mxu0
        %v4329 = vadd.f32 %v4206, %v4328
        %4330 = vmatprep.mubr.f32.mxu0 %v4153
        %4331 = vmatmul.mubr.f32.gmra.mrb[0].mxu0 %v4152
        %v4332 = vpop.f32.mrb[0].mxu0
        %v4333 = vadd.f32 %v4202, %v4332
        %v4334 = vpop.f32.mrb[0].mxu0
        %v4335 = vadd.f32 %v4206, %v4334
        %4336 = vmatprep.mubr.f32.mxu0 %v4158
        %4337 = vmatmul.mubr.f32.gmra.mrb[0].mxu0 %v4157
        %v4338 = vpop.f32.mrb[0].mxu0
        %v4339 = vadd.f32 %v4202, %v4338
        %v4340 = vpop.f32.mrb[0].mxu0
        %v4341 = vadd.f32 %v4206, %v4340
        %4342 = vmatprep.mubr.f32.mxu0 %v4163
        %4343 = vmatmul.mubr.f32.gmra.mrb[0].mxu0 %v4162
        %v4344 = vpop.f32.mrb[0].mxu0
        %v4345 = vadd.f32 %v4202, %v4344
        %v4346 = vpop.f32.mrb[0].mxu0
        %v4347 = vadd.f32 %v4206, %v4346
        %4348 = vmatprep.mubr.f32.mxu0 %v4168
        %4349 = vmatmul.mubr.f32.gmra.mrb[0].mxu0 %v4167
        %v4350 = vpop.f32.mrb[0].mxu0
        %v4351 = vadd.f32 %v4202, %v4350
        %v4352 = vpop.f32.mrb[0].mxu0
        %v4353 = vadd.f32 %v4206, %v4352
        %4354 = vmatprep.mubr.f32.mxu0 %v4173
        %4355 = vmatmul.mubr.f32.gmra.mrb[0].mxu0 %v4172
        %v4356 = vpop.f32.mrb[0].mxu0
        %v4357 = vadd.f32 %v4202, %v4356
        %v4358 = vpop.f32.mrb[0].mxu0
        %v4359 = vadd.f32 %v4206, %v4358
        %4360 = vmatprep.mubr.f32.mxu0 %v4178
        %4361 = vmatmul.mubr.f32.gmra.mrb[0].mxu0 %v4177
        %v4362 = vpop.f32.mrb[0].mxu0
        %v4363 = vadd.f32 %v4202, %v4362
        %v4364 = vpop.f32.mrb[0].mxu0
        %v4365 = vadd.f32 %v4206, %v4364
        %4366 = vmatprep.mubr.f32.mxu0 %v4183
        %4367 = vmatmul.mubr.f32.gmra.mrb[0].mxu0 %v4182
        %v4368 = vpop.f32.mrb[0].mxu0
        %v4369 = vadd.f32 %v4202, %v4368
        %v4370 = vpop.f32.mrb[0].mxu0
        %v4371 = vadd.f32 %v4206, %v4370
        %4372 = vmatprep.mubr.f32.mxu0 %v4188
        %4373 = vmatmul.mubr.f32.gmra.mrb[0].mxu0 %v4187
        %v4374 = vpop.f32.mrb[0].mxu0
        %v4375 = vadd.f32 %v4202, %v4374
        %v4376 = vpop.f32.mrb[0].mxu0
        %v4377 = vadd.f32 %v4206, %v4376
        %4378 = vmatprep.mubr.f32.mxu0 %v4193
        %4379 = vmatmul.mubr.f32.gmra.mrb[0].mxu0 %v4192
        %v4380 = vpop.f32.mrb[0].mxu0
        %v4381 = vadd.f32 %v4202, %v4380
        %v4382 = vpop.f32.mrb[0].mxu0
        %v4383 = vadd.f32 %v4206, %v4382
        %4384 = vdwg.mxu0
        %4385 = vmatprep.subr.mxu0 %v2450
        %4386 = vmatpush1.msra.mxu0 %v2449
        %4387 = vmatprep.subr.mxu0 %v2455
        %4388 = vmatpush1.msra.mxu0 %v2454
        %4389 = vmatprep.subr.mxu0 %v2460
        %4390 = vmatpush1.msra.mxu0 %v2459
        %4391 = vmatprep.subr.mxu0 %v2465
        %4392 = vmatpush1.msra.mxu0 %v2464
        %4393 = vmatprep.subr.mxu0 %v2470
        %4394 = vmatpush1.msra.mxu0 %v2469
        %4395 = vmatprep.subr.mxu0 %v2475
        %4396 = vmatpush1.msra.mxu0 %v2474
        %4397 = vmatprep.subr.mxu0 %v2480
        %4398 = vmatpush1.msra.mxu0 %v2479
        %4399 = vmatprep.subr.mxu0 %v2485
        %4400 = vmatpush1.msra.mxu0 %v2484
        %4401 = vmatprep.subr.mxu0 %v2490
        %4402 = vmatpush1.msra.mxu0 %v2489
        %4403 = vmatprep.subr.mxu0 %v2495
        %4404 = vmatpush1.msra.mxu0 %v2494
        %4405 = vmatprep.subr.mxu0 %v2500
        %4406 = vmatpush1.msra.mxu0 %v2499
        %4407 = vmatprep.subr.mxu0 %v2505
        %4408 = vmatpush1.msra.mxu0 %v2504
        %4409 = vmatprep.subr.mxu0 %v2510
        %4410 = vmatpush1.msra.mxu0 %v2509
        %4411 = vmatprep.subr.mxu0 %v2515
        %4412 = vmatpush1.msra.mxu0 %v2514
        %4413 = vmatprep.subr.mxu0 %v2520
        %4414 = vmatpush1.msra.mxu0 %v2519
        %4415 = vmatprep.subr.mxu0 %v2525
        %4416 = vmatpush1.msra.mxu0 %v2524
        %4417 = vmatprep.subr.mxu0 %v2530
        %4418 = vmatpush1.msra.mxu0 %v2529
        %4419 = vmatprep.subr.mxu0 %v2535
        %4420 = vmatpush1.msra.mxu0 %v2534
        %4421 = vmatprep.subr.mxu0 %v2540
        %4422 = vmatpush1.msra.mxu0 %v2539
        %4423 = vmatprep.subr.mxu0 %v2545
        %4424 = vmatpush1.msra.mxu0 %v2544
        %4425 = vmatprep.subr.mxu0 %v2550
        %4426 = vmatpush1.msra.mxu0 %v2549
        %4427 = vmatprep.subr.mxu0 %v2555
        %4428 = vmatpush1.msra.mxu0 %v2554
        %4429 = vmatprep.subr.mxu0 %v2560
        %4430 = vmatpush1.msra.mxu0 %v2559
        %4431 = vmatprep.subr.mxu0 %v2565
        %4432 = vmatpush1.msra.mxu0 %v2564
        %4433 = vmatprep.subr.mxu0 %v2570
        %4434 = vmatpush1.msra.mxu0 %v2569
        %4435 = vmatprep.subr.mxu0 %v2575
        %4436 = vmatpush1.msra.mxu0 %v2574
        %4437 = vmatprep.subr.mxu0 %v2580
        %4438 = vmatpush1.msra.mxu0 %v2579
        %4439 = vmatprep.subr.mxu0 %v2585
        %4440 = vmatpush1.msra.mxu0 %v2584
        %4441 = vmatprep.subr.mxu0 %v2590
        %4442 = vmatpush1.msra.mxu0 %v2589
        %4443 = vmatprep.subr.mxu0 %v2595
        %4444 = vmatpush1.msra.mxu0 %v2594
        %4445 = vmatprep.subr.mxu0 %v2600
        %4446 = vmatpush1.msra.mxu0 %v2599
        %4447 = vmatprep.subr.mxu0 %v2605
        %4448 = vmatpush1.msra.mxu0 %v2604
        %4449 = vmatprep.mubr.f32.mxu0 %v4120
        %4450 = vmatmul.mubr.f32.gmra.mrb[0].mxu0 %v4119
        %v4451 = vpop.f32.mrb[0].mxu0
        %v4452 = vadd.f32 %v4291, %v4451
        %v4453 = vpop.f32.mrb[0].mxu0
        %v4454 = vadd.f32 %v4293, %v4453
        %4455 = vmatprep.mubr.f32.mxu0 %v4125
        %4456 = vmatmul.mubr.f32.gmra.mrb[0].mxu0 %v4124
        %v4457 = vpop.f32.mrb[0].mxu0
        %v4458 = vadd.f32 %v4297, %v4457
        %v4459 = vpop.f32.mrb[0].mxu0
        %v4460 = vadd.f32 %v4299, %v4459
        %4461 = vmatprep.mubr.f32.mxu0 %v4130
        %4462 = vmatmul.mubr.f32.gmra.mrb[0].mxu0 %v4129
        %v4463 = vpop.f32.mrb[0].mxu0
        %v4464 = vadd.f32 %v4303, %v4463
        %v4465 = vpop.f32.mrb[0].mxu0
        %v4466 = vadd.f32 %v4305, %v4465
        %4467 = vmatprep.mubr.f32.mxu0 %v4135
        %4468 = vmatmul.mubr.f32.gmra.mrb[0].mxu0 %v4134
        %v4469 = vpop.f32.mrb[0].mxu0
        %v4470 = vadd.f32 %v4309, %v4469
        %v4471 = vpop.f32.mrb[0].mxu0
        %v4472 = vadd.f32 %v4311, %v4471
        %4473 = vmatprep.mubr.f32.mxu0 %v4140
        %4474 = vmatmul.mubr.f32.gmra.mrb[0].mxu0 %v4139
        %v4475 = vpop.f32.mrb[0].mxu0
        %v4476 = vadd.f32 %v4315, %v4475
        %v4477 = vpop.f32.mrb[0].mxu0
        %v4478 = vadd.f32 %v4317, %v4477
        %4479 = vmatprep.mubr.f32.mxu0 %v4145
        %4480 = vmatmul.mubr.f32.gmra.mrb[0].mxu0 %v4144
        %v4481 = vpop.f32.mrb[0].mxu0
        %v4482 = vadd.f32 %v4321, %v4481
        %v4483 = vpop.f32.mrb[0].mxu0
        %v4484 = vadd.f32 %v4323, %v4483
        %4485 = vmatprep.mubr.f32.mxu0 %v4150
        %4486 = vmatmul.mubr.f32.gmra.mrb[0].mxu0 %v4149
        %v4487 = vpop.f32.mrb[0].mxu0
        %v4488 = vadd.f32 %v4327, %v4487
        %v4489 = vpop.f32.mrb[0].mxu0
        %v4490 = vadd.f32 %v4329, %v4489
        %4491 = vmatprep.mubr.f32.mxu0 %v4155
        %4492 = vmatmul.mubr.f32.gmra.mrb[0].mxu0 %v4154
        %v4493 = vpop.f32.mrb[0].mxu0
        %v4494 = vadd.f32 %v4333, %v4493
        %v4495 = vpop.f32.mrb[0].mxu0
        %v4496 = vadd.f32 %v4335, %v4495
        %4497 = vmatprep.mubr.f32.mxu0 %v4160
        %4498 = vmatmul.mubr.f32.gmra.mrb[0].mxu0 %v4159
        %v4499 = vpop.f32.mrb[0].mxu0
        %v4500 = vadd.f32 %v4339, %v4499
        %v4501 = vpop.f32.mrb[0].mxu0
        %v4502 = vadd.f32 %v4341, %v4501
        %4503 = vmatprep.mubr.f32.mxu0 %v4165
        %4504 = vmatmul.mubr.f32.gmra.mrb[0].mxu0 %v4164
        %v4505 = vpop.f32.mrb[0].mxu0
        %v4506 = vadd.f32 %v4345, %v4505
        %v4507 = vpop.f32.mrb[0].mxu0
        %v4508 = vadd.f32 %v4347, %v4507
        %4509 = vmatprep.mubr.f32.mxu0 %v4170
        %4510 = vmatmul.mubr.f32.gmra.mrb[0].mxu0 %v4169
        %v4511 = vpop.f32.mrb[0].mxu0
        %v4512 = vadd.f32 %v4351, %v4511
        %v4513 = vpop.f32.mrb[0].mxu0
        %v4514 = vadd.f32 %v4353, %v4513
        %4515 = vmatprep.mubr.f32.mxu0 %v4175
        %4516 = vmatmul.mubr.f32.gmra.mrb[0].mxu0 %v4174
        %v4517 = vpop.f32.mrb[0].mxu0
        %v4518 = vadd.f32 %v4357, %v4517
        %v4519 = vpop.f32.mrb[0].mxu0
        %v4520 = vadd.f32 %v4359, %v4519
        %4521 = vmatprep.mubr.f32.mxu0 %v4180
        %4522 = vmatmul.mubr.f32.gmra.mrb[0].mxu0 %v4179
        %v4523 = vpop.f32.mrb[0].mxu0
        %v4524 = vadd.f32 %v4363, %v4523
        %v4525 = vpop.f32.mrb[0].mxu0
        %v4526 = vadd.f32 %v4365, %v4525
        %4527 = vmatprep.mubr.f32.mxu0 %v4185
        %4528 = vmatmul.mubr.f32.gmra.mrb[0].mxu0 %v4184
        %v4529 = vpop.f32.mrb[0].mxu0
        %v4530 = vadd.f32 %v4369, %v4529
        %v4531 = vpop.f32.mrb[0].mxu0
        %v4532 = vadd.f32 %v4371, %v4531
        %4533 = vmatprep.mubr.f32.mxu0 %v4190
        %4534 = vmatmul.mubr.f32.gmra.mrb[0].mxu0 %v4189
        %v4535 = vpop.f32.mrb[0].mxu0
        %v4536 = vadd.f32 %v4375, %v4535
        %v4537 = vpop.f32.mrb[0].mxu0
        %v4538 = vadd.f32 %v4377, %v4537
        %4539 = vmatprep.mubr.f32.mxu0 %v4195
        %4540 = vmatmul.mubr.f32.gmra.mrb[0].mxu0 %v4194
        %v4541 = vpop.f32.mrb[0].mxu0
        %v4542 = vadd.f32 %v4381, %v4541
        %v4543 = vpop.f32.mrb[0].mxu0
        %v4544 = vadd.f32 %v4383, %v4543
        %4545 = vdwg.mxu0
        %4546 = vmatprep.subr.mxu0 %v2610
        %4547 = vmatpush1.msra.mxu0 %v2609
        %4548 = vmatprep.subr.mxu0 %v2615
        %4549 = vmatpush1.msra.mxu0 %v2614
        %4550 = vmatprep.subr.mxu0 %v2620
        %4551 = vmatpush1.msra.mxu0 %v2619
        %4552 = vmatprep.subr.mxu0 %v2625
        %4553 = vmatpush1.msra.mxu0 %v2624
        %4554 = vmatprep.subr.mxu0 %v2630
        %4555 = vmatpush1.msra.mxu0 %v2629
        %4556 = vmatprep.subr.mxu0 %v2635
        %4557 = vmatpush1.msra.mxu0 %v2634
        %4558 = vmatprep.subr.mxu0 %v2640
        %4559 = vmatpush1.msra.mxu0 %v2639
        %4560 = vmatprep.subr.mxu0 %v2645
        %4561 = vmatpush1.msra.mxu0 %v2644
        %4562 = vmatprep.subr.mxu0 %v2650
        %4563 = vmatpush1.msra.mxu0 %v2649
        %4564 = vmatprep.subr.mxu0 %v2655
        %4565 = vmatpush1.msra.mxu0 %v2654
        %4566 = vmatprep.subr.mxu0 %v2660
        %4567 = vmatpush1.msra.mxu0 %v2659
        %4568 = vmatprep.subr.mxu0 %v2665
        %4569 = vmatpush1.msra.mxu0 %v2664
        %4570 = vmatprep.subr.mxu0 %v2670
        %4571 = vmatpush1.msra.mxu0 %v2669
        %4572 = vmatprep.subr.mxu0 %v2675
        %4573 = vmatpush1.msra.mxu0 %v2674
        %4574 = vmatprep.subr.mxu0 %v2680
        %4575 = vmatpush1.msra.mxu0 %v2679
        %4576 = vmatprep.subr.mxu0 %v2685
        %4577 = vmatpush1.msra.mxu0 %v2684
        %4578 = vmatprep.subr.mxu0 0.0
        %4579 = vmatpush1.msra.mxu0 0.0
        %4580 = vmatprep.subr.mxu0 0.0
        %4581 = vmatpush1.msra.mxu0 0.0
        %4582 = vmatprep.subr.mxu0 0.0
        %4583 = vmatpush1.msra.mxu0 0.0
        %4584 = vmatprep.subr.mxu0 0.0
        %4585 = vmatpush1.msra.mxu0 0.0
        %4586 = vmatprep.subr.mxu0 0.0
        %4587 = vmatpush1.msra.mxu0 0.0
        %4588 = vmatprep.subr.mxu0 0.0
        %4589 = vmatpush1.msra.mxu0 0.0
        %4590 = vmatprep.subr.mxu0 0.0
        %4591 = vmatpush1.msra.mxu0 0.0
        %4592 = vmatprep.subr.mxu0 0.0
        %4593 = vmatpush1.msra.mxu0 0.0
        %4594 = vmatprep.subr.mxu0 0.0
        %4595 = vmatpush1.msra.mxu0 0.0
        %4596 = vmatprep.subr.mxu0 0.0
        %4597 = vmatpush1.msra.mxu0 0.0
        %4598 = vmatprep.subr.mxu0 0.0
        %4599 = vmatpush1.msra.mxu0 0.0
        %4600 = vmatprep.subr.mxu0 0.0
        %4601 = vmatpush1.msra.mxu0 0.0
        %4602 = vmatprep.subr.mxu0 0.0
        %4603 = vmatpush1.msra.mxu0 0.0
        %4604 = vmatprep.subr.mxu0 0.0
        %4605 = vmatpush1.msra.mxu0 0.0
        %4606 = vmatprep.subr.mxu0 0.0
        %4607 = vmatpush1.msra.mxu0 0.0
        %4608 = vmatprep.subr.mxu0 0.0
        %4609 = vmatpush1.msra.mxu0 0.0
        %4610 = vmatprep.mubr.f32.mxu0 0.0
        %4611 = vmatmul.mubr.f32.gmra.mrb[0].mxu0 %v4121
        %v4612 = vpop.f32.mrb[0].mxu0
        %v4613 = vadd.f32 %v4452, %v4612
        %v4614 = vpop.f32.mrb[0].mxu0
        %v4615 = vadd.f32 %v4454, %v4614
        %4616 = vmatprep.mubr.f32.mxu0 0.0
        %4617 = vmatmul.mubr.f32.gmra.mrb[0].mxu0 %v4126
        %v4618 = vpop.f32.mrb[0].mxu0
        %v4619 = vadd.f32 %v4458, %v4618
        %v4620 = vpop.f32.mrb[0].mxu0
        %v4621 = vadd.f32 %v4460, %v4620
        %4622 = vmatprep.mubr.f32.mxu0 0.0
        %4623 = vmatmul.mubr.f32.gmra.mrb[0].mxu0 %v4131
        %v4624 = vpop.f32.mrb[0].mxu0
        %v4625 = vadd.f32 %v4464, %v4624
        %v4626 = vpop.f32.mrb[0].mxu0
        %v4627 = vadd.f32 %v4466, %v4626
        %4628 = vmatprep.mubr.f32.mxu0 0.0
        %4629 = vmatmul.mubr.f32.gmra.mrb[0].mxu0 %v4136
        %v4630 = vpop.f32.mrb[0].mxu0
        %v4631 = vadd.f32 %v4470, %v4630
        %v4632 = vpop.f32.mrb[0].mxu0
        %v4633 = vadd.f32 %v4472, %v4632
        %4634 = vmatprep.mubr.f32.mxu0 0.0
        %4635 = vmatmul.mubr.f32.gmra.mrb[0].mxu0 %v4141
        %v4636 = vpop.f32.mrb[0].mxu0
        %v4637 = vadd.f32 %v4476, %v4636
        %v4638 = vpop.f32.mrb[0].mxu0
        %v4639 = vadd.f32 %v4478, %v4638
        %4640 = vmatprep.mubr.f32.mxu0 0.0
        %4641 = vmatmul.mubr.f32.gmra.mrb[0].mxu0 %v4146
        %v4642 = vpop.f32.mrb[0].mxu0
        %v4643 = vadd.f32 %v4482, %v4642
        %v4644 = vpop.f32.mrb[0].mxu0
        %v4645 = vadd.f32 %v4484, %v4644
        %4646 = vmatprep.mubr.f32.mxu0 0.0
        %4647 = vmatmul.mubr.f32.gmra.mrb[0].mxu0 %v4151
        %v4648 = vpop.f32.mrb[0].mxu0
        %v4649 = vadd.f32 %v4488, %v4648
        %v4650 = vpop.f32.mrb[0].mxu0
        %v4651 = vadd.f32 %v4490, %v4650
        %4652 = vmatprep.mubr.f32.mxu0 0.0
        %4653 = vmatmul.mubr.f32.gmra.mrb[0].mxu0 %v4156
        %v4654 = vpop.f32.mrb[0].mxu0
        %v4655 = vadd.f32 %v4494, %v4654
        %v4656 = vpop.f32.mrb[0].mxu0
        %v4657 = vadd.f32 %v4496, %v4656
        %4658 = vmatprep.mubr.f32.mxu0 0.0
        %4659 = vmatmul.mubr.f32.gmra.mrb[0].mxu0 %v4161
        %v4660 = vpop.f32.mrb[0].mxu0
        %v4661 = vadd.f32 %v4500, %v4660
        %v4662 = vpop.f32.mrb[0].mxu0
        %v4663 = vadd.f32 %v4502, %v4662
        %4664 = vmatprep.mubr.f32.mxu0 0.0
        %4665 = vmatmul.mubr.f32.gmra.mrb[0].mxu0 %v4166
        %v4666 = vpop.f32.mrb[0].mxu0
        %v4667 = vadd.f32 %v4506, %v4666
        %v4668 = vpop.f32.mrb[0].mxu0
        %v4669 = vadd.f32 %v4508, %v4668
        %4670 = vmatprep.mubr.f32.mxu0 0.0
        %4671 = vmatmul.mubr.f32.gmra.mrb[0].mxu0 %v4171
        %v4672 = vpop.f32.mrb[0].mxu0
        %v4673 = vadd.f32 %v4512, %v4672
        %v4674 = vpop.f32.mrb[0].mxu0
        %v4675 = vadd.f32 %v4514, %v4674
        %4676 = vmatprep.mubr.f32.mxu0 0.0
        %4677 = vmatmul.mubr.f32.gmra.mrb[0].mxu0 %v4176
        %v4678 = vpop.f32.mrb[0].mxu0
        %v4679 = vadd.f32 %v4518, %v4678
        %v4680 = vpop.f32.mrb[0].mxu0
        %v4681 = vadd.f32 %v4520, %v4680
        %4682 = vmatprep.mubr.f32.mxu0 0.0
        %4683 = vmatmul.mubr.f32.gmra.mrb[0].mxu0 %v4181
        %v4684 = vpop.f32.mrb[0].mxu0
        %v4685 = vadd.f32 %v4524, %v4684
        %v4686 = vpop.f32.mrb[0].mxu0
        %v4687 = vadd.f32 %v4526, %v4686
        %4688 = vmatprep.mubr.f32.mxu0 0.0
        %4689 = vmatmul.mubr.f32.gmra.mrb[0].mxu0 %v4186
        %v4690 = vpop.f32.mrb[0].mxu0
        %v4691 = vadd.f32 %v4530, %v4690
        %v4692 = vpop.f32.mrb[0].mxu0
        %v4693 = vadd.f32 %v4532, %v4692
        %4694 = vmatprep.mubr.f32.mxu0 0.0
        %4695 = vmatmul.mubr.f32.gmra.mrb[0].mxu0 %v4191
        %v4696 = vpop.f32.mrb[0].mxu0
        %v4697 = vadd.f32 %v4536, %v4696
        %v4698 = vpop.f32.mrb[0].mxu0
        %v4699 = vadd.f32 %v4538, %v4698
        %4700 = vmatprep.mubr.f32.mxu0 0.0
        %4701 = vmatmul.mubr.f32.gmra.mrb[0].mxu0 %v4196
        %v4702 = vpop.f32.mrb[0].mxu0
        %v4703 = vadd.f32 %v4542, %v4702
        %v4704 = vpop.f32.mrb[0].mxu0
        %v4705 = vadd.f32 %v4544, %v4704
        %4706 = vdwg.mxu0
        %4707 = vmatprep.subr.mxu0 %v2292
        %4708 = vmatpush1.msra.mxu0 %v2291
        %4709 = vmatprep.subr.mxu0 %v2297
        %4710 = vmatpush1.msra.mxu0 %v2296
        %4711 = vmatprep.subr.mxu0 %v2302
        %4712 = vmatpush1.msra.mxu0 %v2301
        %4713 = vmatprep.subr.mxu0 %v2307
        %4714 = vmatpush1.msra.mxu0 %v2306
        %4715 = vmatprep.subr.mxu0 %v2312
        %4716 = vmatpush1.msra.mxu0 %v2311
        %4717 = vmatprep.subr.mxu0 %v2317
        %4718 = vmatpush1.msra.mxu0 %v2316
        %4719 = vmatprep.subr.mxu0 %v2322
        %4720 = vmatpush1.msra.mxu0 %v2321
        %4721 = vmatprep.subr.mxu0 %v2327
        %4722 = vmatpush1.msra.mxu0 %v2326
        %4723 = vmatprep.subr.mxu0 %v2332
        %4724 = vmatpush1.msra.mxu0 %v2331
        %4725 = vmatprep.subr.mxu0 %v2337
        %4726 = vmatpush1.msra.mxu0 %v2336
        %4727 = vmatprep.subr.mxu0 %v2342
        %4728 = vmatpush1.msra.mxu0 %v2341
        %4729 = vmatprep.subr.mxu0 %v2347
        %4730 = vmatpush1.msra.mxu0 %v2346
        %4731 = vmatprep.subr.mxu0 %v2352
        %4732 = vmatpush1.msra.mxu0 %v2351
        %4733 = vmatprep.subr.mxu0 %v2357
        %4734 = vmatpush1.msra.mxu0 %v2356
        %4735 = vmatprep.subr.mxu0 %v2362
        %4736 = vmatpush1.msra.mxu0 %v2361
        %4737 = vmatprep.subr.mxu0 %v2367
        %4738 = vmatpush1.msra.mxu0 %v2366
        %4739 = vmatprep.subr.mxu0 %v2372
        %4740 = vmatpush1.msra.mxu0 %v2371
        %4741 = vmatprep.subr.mxu0 %v2377
        %4742 = vmatpush1.msra.mxu0 %v2376
        %4743 = vmatprep.subr.mxu0 %v2382
        %4744 = vmatpush1.msra.mxu0 %v2381
        %4745 = vmatprep.subr.mxu0 %v2387
        %4746 = vmatpush1.msra.mxu0 %v2386
        %4747 = vmatprep.subr.mxu0 %v2392
        %4748 = vmatpush1.msra.mxu0 %v2391
        %4749 = vmatprep.subr.mxu0 %v2397
        %4750 = vmatpush1.msra.mxu0 %v2396
        %4751 = vmatprep.subr.mxu0 %v2402
        %4752 = vmatpush1.msra.mxu0 %v2401
        %4753 = vmatprep.subr.mxu0 %v2407
        %4754 = vmatpush1.msra.mxu0 %v2406
        %4755 = vmatprep.subr.mxu0 %v2412
        %4756 = vmatpush1.msra.mxu0 %v2411
        %4757 = vmatprep.subr.mxu0 %v2417
        %4758 = vmatpush1.msra.mxu0 %v2416
        %4759 = vmatprep.subr.mxu0 %v2422
        %4760 = vmatpush1.msra.mxu0 %v2421
        %4761 = vmatprep.subr.mxu0 %v2427
        %4762 = vmatpush1.msra.mxu0 %v2426
        %4763 = vmatprep.subr.mxu0 %v2432
        %4764 = vmatpush1.msra.mxu0 %v2431
        %4765 = vmatprep.subr.mxu0 %v2437
        %4766 = vmatpush1.msra.mxu0 %v2436
        %4767 = vmatprep.subr.mxu0 %v2442
        %4768 = vmatpush1.msra.mxu0 %v2441
        %4769 = vmatprep.subr.mxu0 %v2447
        %4770 = vmatpush1.msra.mxu0 %v2446
        %4771 = vmatprep.mubr.f32.mxu0 %v4118
        %4772 = vmatmul.mubr.f32.gmra.mrb[0].mxu0 %v4117
        %v4773 = vpop.f32.mrb[0].mxu0
        %v4774 = vadd.f32 %v4210, %v4773
        %v4775 = vpop.f32.mrb[0].mxu0
        %v4776 = vadd.f32 %v4214, %v4775
        %4777 = vmatprep.mubr.f32.mxu0 %v4123
        %4778 = vmatmul.mubr.f32.gmra.mrb[0].mxu0 %v4122
        %v4779 = vpop.f32.mrb[0].mxu0
        %v4780 = vadd.f32 %v4210, %v4779
        %v4781 = vpop.f32.mrb[0].mxu0
        %v4782 = vadd.f32 %v4214, %v4781
        %4783 = vmatprep.mubr.f32.mxu0 %v4128
        %4784 = vmatmul.mubr.f32.gmra.mrb[0].mxu0 %v4127
        %v4785 = vpop.f32.mrb[0].mxu0
        %v4786 = vadd.f32 %v4210, %v4785
        %v4787 = vpop.f32.mrb[0].mxu0
        %v4788 = vadd.f32 %v4214, %v4787
        %4789 = vmatprep.mubr.f32.mxu0 %v4133
        %4790 = vmatmul.mubr.f32.gmra.mrb[0].mxu0 %v4132
        %v4791 = vpop.f32.mrb[0].mxu0
        %v4792 = vadd.f32 %v4210, %v4791
        %v4793 = vpop.f32.mrb[0].mxu0
        %v4794 = vadd.f32 %v4214, %v4793
        %4795 = vmatprep.mubr.f32.mxu0 %v4138
        %4796 = vmatmul.mubr.f32.gmra.mrb[0].mxu0 %v4137
        %v4797 = vpop.f32.mrb[0].mxu0
        %v4798 = vadd.f32 %v4210, %v4797
        %v4799 = vpop.f32.mrb[0].mxu0
        %v4800 = vadd.f32 %v4214, %v4799
        %4801 = vmatprep.mubr.f32.mxu0 %v4143
        %4802 = vmatmul.mubr.f32.gmra.mrb[0].mxu0 %v4142
        %v4803 = vpop.f32.mrb[0].mxu0
        %v4804 = vadd.f32 %v4210, %v4803
        %v4805 = vpop.f32.mrb[0].mxu0
        %v4806 = vadd.f32 %v4214, %v4805
        %4807 = vmatprep.mubr.f32.mxu0 %v4148
        %4808 = vmatmul.mubr.f32.gmra.mrb[0].mxu0 %v4147
        %v4809 = vpop.f32.mrb[0].mxu0
        %v4810 = vadd.f32 %v4210, %v4809
        %v4811 = vpop.f32.mrb[0].mxu0
        %v4812 = vadd.f32 %v4214, %v4811
        %4813 = vmatprep.mubr.f32.mxu0 %v4153
        %4814 = vmatmul.mubr.f32.gmra.mrb[0].mxu0 %v4152
        %v4815 = vpop.f32.mrb[0].mxu0
        %v4816 = vadd.f32 %v4210, %v4815
        %v4817 = vpop.f32.mrb[0].mxu0
        %v4818 = vadd.f32 %v4214, %v4817
        %4819 = vmatprep.mubr.f32.mxu0 %v4158
        %4820 = vmatmul.mubr.f32.gmra.mrb[0].mxu0 %v4157
        %v4821 = vpop.f32.mrb[0].mxu0
        %v4822 = vadd.f32 %v4210, %v4821
        %v4823 = vpop.f32.mrb[0].mxu0
        %v4824 = vadd.f32 %v4214, %v4823
        %4825 = vmatprep.mubr.f32.mxu0 %v4163
        %4826 = vmatmul.mubr.f32.gmra.mrb[0].mxu0 %v4162
        %v4827 = vpop.f32.mrb[0].mxu0
        %v4828 = vadd.f32 %v4210, %v4827
        %v4829 = vpop.f32.mrb[0].mxu0
        %v4830 = vadd.f32 %v4214, %v4829
        %4831 = vmatprep.mubr.f32.mxu0 %v4168
        %4832 = vmatmul.mubr.f32.gmra.mrb[0].mxu0 %v4167
        %v4833 = vpop.f32.mrb[0].mxu0
        %v4834 = vadd.f32 %v4210, %v4833
        %v4835 = vpop.f32.mrb[0].mxu0
        %v4836 = vadd.f32 %v4214, %v4835
        %4837 = vmatprep.mubr.f32.mxu0 %v4173
        %4838 = vmatmul.mubr.f32.gmra.mrb[0].mxu0 %v4172
        %v4839 = vpop.f32.mrb[0].mxu0
        %v4840 = vadd.f32 %v4210, %v4839
        %v4841 = vpop.f32.mrb[0].mxu0
        %v4842 = vadd.f32 %v4214, %v4841
        %4843 = vmatprep.mubr.f32.mxu0 %v4178
        %4844 = vmatmul.mubr.f32.gmra.mrb[0].mxu0 %v4177
        %v4845 = vpop.f32.mrb[0].mxu0
        %v4846 = vadd.f32 %v4210, %v4845
        %v4847 = vpop.f32.mrb[0].mxu0
        %v4848 = vadd.f32 %v4214, %v4847
        %4849 = vmatprep.mubr.f32.mxu0 %v4183
        %4850 = vmatmul.mubr.f32.gmra.mrb[0].mxu0 %v4182
        %v4851 = vpop.f32.mrb[0].mxu0
        %v4852 = vadd.f32 %v4210, %v4851
        %v4853 = vpop.f32.mrb[0].mxu0
        %v4854 = vadd.f32 %v4214, %v4853
        %4855 = vmatprep.mubr.f32.mxu0 %v4188
        %4856 = vmatmul.mubr.f32.gmra.mrb[0].mxu0 %v4187
        %v4857 = vpop.f32.mrb[0].mxu0
        %v4858 = vadd.f32 %v4210, %v4857
        %v4859 = vpop.f32.mrb[0].mxu0
        %v4860 = vadd.f32 %v4214, %v4859
        %4861 = vmatprep.mubr.f32.mxu0 %v4193
        %4862 = vmatmul.mubr.f32.gmra.mrb[0].mxu0 %v4192
        %v4863 = vpop.f32.mrb[0].mxu0
        %v4864 = vadd.f32 %v4210, %v4863
        %v4865 = vpop.f32.mrb[0].mxu0
        %v4866 = vadd.f32 %v4214, %v4865
        %4867 = vdwg.mxu0
        %4868 = vmatprep.subr.mxu0 %v2452
        %4869 = vmatpush1.msra.mxu0 %v2451
        %4870 = vmatprep.subr.mxu0 %v2457
        %4871 = vmatpush1.msra.mxu0 %v2456
        %4872 = vmatprep.subr.mxu0 %v2462
        %4873 = vmatpush1.msra.mxu0 %v2461
        %4874 = vmatprep.subr.mxu0 %v2467
        %4875 = vmatpush1.msra.mxu0 %v2466
        %4876 = vmatprep.subr.mxu0 %v2472
        %4877 = vmatpush1.msra.mxu0 %v2471
        %4878 = vmatprep.subr.mxu0 %v2477
        %4879 = vmatpush1.msra.mxu0 %v2476
        %4880 = vmatprep.subr.mxu0 %v2482
        %4881 = vmatpush1.msra.mxu0 %v2481
        %4882 = vmatprep.subr.mxu0 %v2487
        %4883 = vmatpush1.msra.mxu0 %v2486
        %4884 = vmatprep.subr.mxu0 %v2492
        %4885 = vmatpush1.msra.mxu0 %v2491
        %4886 = vmatprep.subr.mxu0 %v2497
        %4887 = vmatpush1.msra.mxu0 %v2496
        %4888 = vmatprep.subr.mxu0 %v2502
        %4889 = vmatpush1.msra.mxu0 %v2501
        %4890 = vmatprep.subr.mxu0 %v2507
        %4891 = vmatpush1.msra.mxu0 %v2506
        %4892 = vmatprep.subr.mxu0 %v2512
        %4893 = vmatpush1.msra.mxu0 %v2511
        %4894 = vmatprep.subr.mxu0 %v2517
        %4895 = vmatpush1.msra.mxu0 %v2516
        %4896 = vmatprep.subr.mxu0 %v2522
        %4897 = vmatpush1.msra.mxu0 %v2521
        %4898 = vmatprep.subr.mxu0 %v2527
        %4899 = vmatpush1.msra.mxu0 %v2526
        %4900 = vmatprep.subr.mxu0 %v2532
        %4901 = vmatpush1.msra.mxu0 %v2531
        %4902 = vmatprep.subr.mxu0 %v2537
        %4903 = vmatpush1.msra.mxu0 %v2536
        %4904 = vmatprep.subr.mxu0 %v2542
        %4905 = vmatpush1.msra.mxu0 %v2541
        %4906 = vmatprep.subr.mxu0 %v2547
        %4907 = vmatpush1.msra.mxu0 %v2546
        %4908 = vmatprep.subr.mxu0 %v2552
        %4909 = vmatpush1.msra.mxu0 %v2551
        %4910 = vmatprep.subr.mxu0 %v2557
        %4911 = vmatpush1.msra.mxu0 %v2556
        %4912 = vmatprep.subr.mxu0 %v2562
        %4913 = vmatpush1.msra.mxu0 %v2561
        %4914 = vmatprep.subr.mxu0 %v2567
        %4915 = vmatpush1.msra.mxu0 %v2566
        %4916 = vmatprep.subr.mxu0 %v2572
        %4917 = vmatpush1.msra.mxu0 %v2571
        %4918 = vmatprep.subr.mxu0 %v2577
        %4919 = vmatpush1.msra.mxu0 %v2576
        %4920 = vmatprep.subr.mxu0 %v2582
        %4921 = vmatpush1.msra.mxu0 %v2581
        %4922 = vmatprep.subr.mxu0 %v2587
        %4923 = vmatpush1.msra.mxu0 %v2586
        %4924 = vmatprep.subr.mxu0 %v2592
        %4925 = vmatpush1.msra.mxu0 %v2591
        %4926 = vmatprep.subr.mxu0 %v2597
        %4927 = vmatpush1.msra.mxu0 %v2596
        %4928 = vmatprep.subr.mxu0 %v2602
        %4929 = vmatpush1.msra.mxu0 %v2601
        %4930 = vmatprep.subr.mxu0 %v2607
        %4931 = vmatpush1.msra.mxu0 %v2606
        %4932 = vmatprep.mubr.f32.mxu0 %v4120
        %4933 = vmatmul.mubr.f32.gmra.mrb[0].mxu0 %v4119
        %v4934 = vpop.f32.mrb[0].mxu0
        %v4935 = vadd.f32 %v4774, %v4934
        %v4936 = vpop.f32.mrb[0].mxu0
        %v4937 = vadd.f32 %v4776, %v4936
        %4938 = vmatprep.mubr.f32.mxu0 %v4125
        %4939 = vmatmul.mubr.f32.gmra.mrb[0].mxu0 %v4124
        %v4940 = vpop.f32.mrb[0].mxu0
        %v4941 = vadd.f32 %v4780, %v4940
        %v4942 = vpop.f32.mrb[0].mxu0
        %v4943 = vadd.f32 %v4782, %v4942
        %4944 = vmatprep.mubr.f32.mxu0 %v4130
        %4945 = vmatmul.mubr.f32.gmra.mrb[0].mxu0 %v4129
        %v4946 = vpop.f32.mrb[0].mxu0
        %v4947 = vadd.f32 %v4786, %v4946
        %v4948 = vpop.f32.mrb[0].mxu0
        %v4949 = vadd.f32 %v4788, %v4948
        %4950 = vmatprep.mubr.f32.mxu0 %v4135
        %4951 = vmatmul.mubr.f32.gmra.mrb[0].mxu0 %v4134
        %v4952 = vpop.f32.mrb[0].mxu0
        %v4953 = vadd.f32 %v4792, %v4952
        %v4954 = vpop.f32.mrb[0].mxu0
        %v4955 = vadd.f32 %v4794, %v4954
        %4956 = vmatprep.mubr.f32.mxu0 %v4140
        %4957 = vmatmul.mubr.f32.gmra.mrb[0].mxu0 %v4139
        %v4958 = vpop.f32.mrb[0].mxu0
        %v4959 = vadd.f32 %v4798, %v4958
        %v4960 = vpop.f32.mrb[0].mxu0
        %v4961 = vadd.f32 %v4800, %v4960
        %4962 = vmatprep.mubr.f32.mxu0 %v4145
        %4963 = vmatmul.mubr.f32.gmra.mrb[0].mxu0 %v4144
        %v4964 = vpop.f32.mrb[0].mxu0
        %v4965 = vadd.f32 %v4804, %v4964
        %v4966 = vpop.f32.mrb[0].mxu0
        %v4967 = vadd.f32 %v4806, %v4966
        %4968 = vmatprep.mubr.f32.mxu0 %v4150
        %4969 = vmatmul.mubr.f32.gmra.mrb[0].mxu0 %v4149
        %v4970 = vpop.f32.mrb[0].mxu0
        %v4971 = vadd.f32 %v4810, %v4970
        %v4972 = vpop.f32.mrb[0].mxu0
        %v4973 = vadd.f32 %v4812, %v4972
        %4974 = vmatprep.mubr.f32.mxu0 %v4155
        %4975 = vmatmul.mubr.f32.gmra.mrb[0].mxu0 %v4154
        %v4976 = vpop.f32.mrb[0].mxu0
        %v4977 = vadd.f32 %v4816, %v4976
        %v4978 = vpop.f32.mrb[0].mxu0
        %v4979 = vadd.f32 %v4818, %v4978
        %4980 = vmatprep.mubr.f32.mxu0 %v4160
        %4981 = vmatmul.mubr.f32.gmra.mrb[0].mxu0 %v4159
        %v4982 = vpop.f32.mrb[0].mxu0
        %v4983 = vadd.f32 %v4822, %v4982
        %v4984 = vpop.f32.mrb[0].mxu0
        %v4985 = vadd.f32 %v4824, %v4984
        %4986 = vmatprep.mubr.f32.mxu0 %v4165
        %4987 = vmatmul.mubr.f32.gmra.mrb[0].mxu0 %v4164
        %v4988 = vpop.f32.mrb[0].mxu0
        %v4989 = vadd.f32 %v4828, %v4988
        %v4990 = vpop.f32.mrb[0].mxu0
        %v4991 = vadd.f32 %v4830, %v4990
        %4992 = vmatprep.mubr.f32.mxu0 %v4170
        %4993 = vmatmul.mubr.f32.gmra.mrb[0].mxu0 %v4169
        %v4994 = vpop.f32.mrb[0].mxu0
        %v4995 = vadd.f32 %v4834, %v4994
        %v4996 = vpop.f32.mrb[0].mxu0
        %v4997 = vadd.f32 %v4836, %v4996
        %4998 = vmatprep.mubr.f32.mxu0 %v4175
        %4999 = vmatmul.mubr.f32.gmra.mrb[0].mxu0 %v4174
        %v5000 = vpop.f32.mrb[0].mxu0
        %v5001 = vadd.f32 %v4840, %v5000
        %v5002 = vpop.f32.mrb[0].mxu0
        %v5003 = vadd.f32 %v4842, %v5002
        %5004 = vmatprep.mubr.f32.mxu0 %v4180
        %5005 = vmatmul.mubr.f32.gmra.mrb[0].mxu0 %v4179
        %v5006 = vpop.f32.mrb[0].mxu0
        %v5007 = vadd.f32 %v4846, %v5006
        %v5008 = vpop.f32.mrb[0].mxu0
        %v5009 = vadd.f32 %v4848, %v5008
        %5010 = vmatprep.mubr.f32.mxu0 %v4185
        %5011 = vmatmul.mubr.f32.gmra.mrb[0].mxu0 %v4184
        %v5012 = vpop.f32.mrb[0].mxu0
        %v5013 = vadd.f32 %v4852, %v5012
        %v5014 = vpop.f32.mrb[0].mxu0
        %v5015 = vadd.f32 %v4854, %v5014
        %5016 = vmatprep.mubr.f32.mxu0 %v4190
        %5017 = vmatmul.mubr.f32.gmra.mrb[0].mxu0 %v4189
        %v5018 = vpop.f32.mrb[0].mxu0
        %v5019 = vadd.f32 %v4858, %v5018
        %v5020 = vpop.f32.mrb[0].mxu0
        %v5021 = vadd.f32 %v4860, %v5020
        %5022 = vmatprep.mubr.f32.mxu0 %v4195
        %5023 = vmatmul.mubr.f32.gmra.mrb[0].mxu0 %v4194
        %v5024 = vpop.f32.mrb[0].mxu0
        %v5025 = vadd.f32 %v4864, %v5024
        %v5026 = vpop.f32.mrb[0].mxu0
        %v5027 = vadd.f32 %v4866, %v5026
        %5028 = vdwg.mxu0
        %5029 = vmatprep.subr.mxu0 %v2612
        %5030 = vmatpush1.msra.mxu0 %v2611
        %5031 = vmatprep.subr.mxu0 %v2617
        %5032 = vmatpush1.msra.mxu0 %v2616
        %5033 = vmatprep.subr.mxu0 %v2622
        %5034 = vmatpush1.msra.mxu0 %v2621
        %5035 = vmatprep.subr.mxu0 %v2627
        %5036 = vmatpush1.msra.mxu0 %v2626
        %5037 = vmatprep.subr.mxu0 %v2632
        %5038 = vmatpush1.msra.mxu0 %v2631
        %5039 = vmatprep.subr.mxu0 %v2637
        %5040 = vmatpush1.msra.mxu0 %v2636
        %5041 = vmatprep.subr.mxu0 %v2642
        %5042 = vmatpush1.msra.mxu0 %v2641
        %5043 = vmatprep.subr.mxu0 %v2647
        %5044 = vmatpush1.msra.mxu0 %v2646
        %5045 = vmatprep.subr.mxu0 %v2652
        %5046 = vmatpush1.msra.mxu0 %v2651
        %5047 = vmatprep.subr.mxu0 %v2657
        %5048 = vmatpush1.msra.mxu0 %v2656
        %5049 = vmatprep.subr.mxu0 %v2662
        %5050 = vmatpush1.msra.mxu0 %v2661
        %5051 = vmatprep.subr.mxu0 %v2667
        %5052 = vmatpush1.msra.mxu0 %v2666
        %5053 = vmatprep.subr.mxu0 %v2672
        %5054 = vmatpush1.msra.mxu0 %v2671
        %5055 = vmatprep.subr.mxu0 %v2677
        %5056 = vmatpush1.msra.mxu0 %v2676
        %5057 = vmatprep.subr.mxu0 %v2682
        %5058 = vmatpush1.msra.mxu0 %v2681
        %5059 = vmatprep.subr.mxu0 %v2687
        %5060 = vmatpush1.msra.mxu0 %v2686
        %5061 = vmatprep.subr.mxu0 0.0
        %5062 = vmatpush1.msra.mxu0 0.0
        %5063 = vmatprep.subr.mxu0 0.0
        %5064 = vmatpush1.msra.mxu0 0.0
        %5065 = vmatprep.subr.mxu0 0.0
        %5066 = vmatpush1.msra.mxu0 0.0
        %5067 = vmatprep.subr.mxu0 0.0
        %5068 = vmatpush1.msra.mxu0 0.0
        %5069 = vmatprep.subr.mxu0 0.0
        %5070 = vmatpush1.msra.mxu0 0.0
        %5071 = vmatprep.subr.mxu0 0.0
        %5072 = vmatpush1.msra.mxu0 0.0
        %5073 = vmatprep.subr.mxu0 0.0
        %5074 = vmatpush1.msra.mxu0 0.0
        %5075 = vmatprep.subr.mxu0 0.0
        %5076 = vmatpush1.msra.mxu0 0.0
        %5077 = vmatprep.subr.mxu0 0.0
        %5078 = vmatpush1.msra.mxu0 0.0
        %5079 = vmatprep.subr.mxu0 0.0
        %5080 = vmatpush1.msra.mxu0 0.0
        %5081 = vmatprep.subr.mxu0 0.0
        %5082 = vmatpush1.msra.mxu0 0.0
        %5083 = vmatprep.subr.mxu0 0.0
        %5084 = vmatpush1.msra.mxu0 0.0
        %5085 = vmatprep.subr.mxu0 0.0
        %5086 = vmatpush1.msra.mxu0 0.0
        %5087 = vmatprep.subr.mxu0 0.0
        %5088 = vmatpush1.msra.mxu0 0.0
        %5089 = vmatprep.subr.mxu0 0.0
        %5090 = vmatpush1.msra.mxu0 0.0
        %5091 = vmatprep.subr.mxu0 0.0
        %5092 = vmatpush1.msra.mxu0 0.0
        %5093 = vmatprep.mubr.f32.mxu0 0.0
        %5094 = vmatmul.mubr.f32.gmra.mrb[0].mxu0 %v4121
        %v5095 = vpop.f32.mrb[0].mxu0
        %v5096 = vadd.f32 %v4935, %v5095
        %v5097 = vpop.f32.mrb[0].mxu0
        %v5098 = vadd.f32 %v4937, %v5097
        %5099 = vmatprep.mubr.f32.mxu0 0.0
        %5100 = vmatmul.mubr.f32.gmra.mrb[0].mxu0 %v4126
        %v5101 = vpop.f32.mrb[0].mxu0
        %v5102 = vadd.f32 %v4941, %v5101
        %v5103 = vpop.f32.mrb[0].mxu0
        %v5104 = vadd.f32 %v4943, %v5103
        %5105 = vmatprep.mubr.f32.mxu0 0.0
        %5106 = vmatmul.mubr.f32.gmra.mrb[0].mxu0 %v4131
        %v5107 = vpop.f32.mrb[0].mxu0
        %v5108 = vadd.f32 %v4947, %v5107
        %v5109 = vpop.f32.mrb[0].mxu0
        %v5110 = vadd.f32 %v4949, %v5109
        %5111 = vmatprep.mubr.f32.mxu0 0.0
        %5112 = vmatmul.mubr.f32.gmra.mrb[0].mxu0 %v4136
        %v5113 = vpop.f32.mrb[0].mxu0
        %v5114 = vadd.f32 %v4953, %v5113
        %v5115 = vpop.f32.mrb[0].mxu0
        %v5116 = vadd.f32 %v4955, %v5115
        %5117 = vmatprep.mubr.f32.mxu0 0.0
        %5118 = vmatmul.mubr.f32.gmra.mrb[0].mxu0 %v4141
        %v5119 = vpop.f32.mrb[0].mxu0
        %v5120 = vadd.f32 %v4959, %v5119
        %v5121 = vpop.f32.mrb[0].mxu0
        %v5122 = vadd.f32 %v4961, %v5121
        %5123 = vmatprep.mubr.f32.mxu0 0.0
        %5124 = vmatmul.mubr.f32.gmra.mrb[0].mxu0 %v4146
        %v5125 = vpop.f32.mrb[0].mxu0
        %v5126 = vadd.f32 %v4965, %v5125
        %v5127 = vpop.f32.mrb[0].mxu0
        %v5128 = vadd.f32 %v4967, %v5127
        %5129 = vmatprep.mubr.f32.mxu0 0.0
        %5130 = vmatmul.mubr.f32.gmra.mrb[0].mxu0 %v4151
        %v5131 = vpop.f32.mrb[0].mxu0
        %v5132 = vadd.f32 %v4971, %v5131
        %v5133 = vpop.f32.mrb[0].mxu0
        %v5134 = vadd.f32 %v4973, %v5133
        %5135 = vmatprep.mubr.f32.mxu0 0.0
        %5136 = vmatmul.mubr.f32.gmra.mrb[0].mxu0 %v4156
        %v5137 = vpop.f32.mrb[0].mxu0
        %v5138 = vadd.f32 %v4977, %v5137
        %v5139 = vpop.f32.mrb[0].mxu0
        %v5140 = vadd.f32 %v4979, %v5139
        %5141 = vmatprep.mubr.f32.mxu0 0.0
        %5142 = vmatmul.mubr.f32.gmra.mrb[0].mxu0 %v4161
        %v5143 = vpop.f32.mrb[0].mxu0
        %v5144 = vadd.f32 %v4983, %v5143
        %v5145 = vpop.f32.mrb[0].mxu0
        %v5146 = vadd.f32 %v4985, %v5145
        %5147 = vmatprep.mubr.f32.mxu0 0.0
        %5148 = vmatmul.mubr.f32.gmra.mrb[0].mxu0 %v4166
        %v5149 = vpop.f32.mrb[0].mxu0
        %v5150 = vadd.f32 %v4989, %v5149
        %v5151 = vpop.f32.mrb[0].mxu0
        %v5152 = vadd.f32 %v4991, %v5151
        %5153 = vmatprep.mubr.f32.mxu0 0.0
        %5154 = vmatmul.mubr.f32.gmra.mrb[0].mxu0 %v4171
        %v5155 = vpop.f32.mrb[0].mxu0
        %v5156 = vadd.f32 %v4995, %v5155
        %v5157 = vpop.f32.mrb[0].mxu0
        %v5158 = vadd.f32 %v4997, %v5157
        %5159 = vmatprep.mubr.f32.mxu0 0.0
        %5160 = vmatmul.mubr.f32.gmra.mrb[0].mxu0 %v4176
        %v5161 = vpop.f32.mrb[0].mxu0
        %v5162 = vadd.f32 %v5001, %v5161
        %v5163 = vpop.f32.mrb[0].mxu0
        %v5164 = vadd.f32 %v5003, %v5163
        %5165 = vmatprep.mubr.f32.mxu0 0.0
        %5166 = vmatmul.mubr.f32.gmra.mrb[0].mxu0 %v4181
        %v5167 = vpop.f32.mrb[0].mxu0
        %v5168 = vadd.f32 %v5007, %v5167
        %v5169 = vpop.f32.mrb[0].mxu0
        %v5170 = vadd.f32 %v5009, %v5169
        %5171 = vmatprep.mubr.f32.mxu0 0.0
        %5172 = vmatmul.mubr.f32.gmra.mrb[0].mxu0 %v4186
        %v5173 = vpop.f32.mrb[0].mxu0
        %v5174 = vadd.f32 %v5013, %v5173
        %v5175 = vpop.f32.mrb[0].mxu0
        %v5176 = vadd.f32 %v5015, %v5175
        %5177 = vmatprep.mubr.f32.mxu0 0.0
        %5178 = vmatmul.mubr.f32.gmra.mrb[0].mxu0 %v4191
        %v5179 = vpop.f32.mrb[0].mxu0
        %v5180 = vadd.f32 %v5019, %v5179
        %v5181 = vpop.f32.mrb[0].mxu0
        %v5182 = vadd.f32 %v5021, %v5181
        %5183 = vmatprep.mubr.f32.mxu0 0.0
        %5184 = vmatmul.mubr.f32.gmra.mrb[0].mxu0 %v4196
        %v5185 = vpop.f32.mrb[0].mxu0
        %v5186 = vadd.f32 %v5025, %v5185
        %v5187 = vpop.f32.mrb[0].mxu0
        %v5188 = vadd.f32 %v5027, %v5187
        %5189 = vdwg.mxu0
        %5190 = vmatprep.subr.mxu0 0.0
        %5191 = vmatpush1.msra.mxu0 %v2293
        %5192 = vmatprep.subr.mxu0 0.0
        %5193 = vmatpush1.msra.mxu0 %v2298
        %5194 = vmatprep.subr.mxu0 0.0
        %5195 = vmatpush1.msra.mxu0 %v2303
        %5196 = vmatprep.subr.mxu0 0.0
        %5197 = vmatpush1.msra.mxu0 %v2308
        %5198 = vmatprep.subr.mxu0 0.0
        %5199 = vmatpush1.msra.mxu0 %v2313
        %5200 = vmatprep.subr.mxu0 0.0
        %5201 = vmatpush1.msra.mxu0 %v2318
        %5202 = vmatprep.subr.mxu0 0.0
        %5203 = vmatpush1.msra.mxu0 %v2323
        %5204 = vmatprep.subr.mxu0 0.0
        %5205 = vmatpush1.msra.mxu0 %v2328
        %5206 = vmatprep.subr.mxu0 0.0
        %5207 = vmatpush1.msra.mxu0 %v2333
        %5208 = vmatprep.subr.mxu0 0.0
        %5209 = vmatpush1.msra.mxu0 %v2338
        %5210 = vmatprep.subr.mxu0 0.0
        %5211 = vmatpush1.msra.mxu0 %v2343
        %5212 = vmatprep.subr.mxu0 0.0
        %5213 = vmatpush1.msra.mxu0 %v2348
        %5214 = vmatprep.subr.mxu0 0.0
        %5215 = vmatpush1.msra.mxu0 %v2353
        %5216 = vmatprep.subr.mxu0 0.0
        %5217 = vmatpush1.msra.mxu0 %v2358
        %5218 = vmatprep.subr.mxu0 0.0
        %5219 = vmatpush1.msra.mxu0 %v2363
        %5220 = vmatprep.subr.mxu0 0.0
        %5221 = vmatpush1.msra.mxu0 %v2368
        %5222 = vmatprep.subr.mxu0 0.0
        %5223 = vmatpush1.msra.mxu0 %v2373
        %5224 = vmatprep.subr.mxu0 0.0
        %5225 = vmatpush1.msra.mxu0 %v2378
        %5226 = vmatprep.subr.mxu0 0.0
        %5227 = vmatpush1.msra.mxu0 %v2383
        %5228 = vmatprep.subr.mxu0 0.0
        %5229 = vmatpush1.msra.mxu0 %v2388
        %5230 = vmatprep.subr.mxu0 0.0
        %5231 = vmatpush1.msra.mxu0 %v2393
        %5232 = vmatprep.subr.mxu0 0.0
        %5233 = vmatpush1.msra.mxu0 %v2398
        %5234 = vmatprep.subr.mxu0 0.0
        %5235 = vmatpush1.msra.mxu0 %v2403
        %5236 = vmatprep.subr.mxu0 0.0
        %5237 = vmatpush1.msra.mxu0 %v2408
        %5238 = vmatprep.subr.mxu0 0.0
        %5239 = vmatpush1.msra.mxu0 %v2413
        %5240 = vmatprep.subr.mxu0 0.0
        %5241 = vmatpush1.msra.mxu0 %v2418
        %5242 = vmatprep.subr.mxu0 0.0
        %5243 = vmatpush1.msra.mxu0 %v2423
        %5244 = vmatprep.subr.mxu0 0.0
        %5245 = vmatpush1.msra.mxu0 %v2428
        %5246 = vmatprep.subr.mxu0 0.0
        %5247 = vmatpush1.msra.mxu0 %v2433
        %5248 = vmatprep.subr.mxu0 0.0
        %5249 = vmatpush1.msra.mxu0 %v2438
        %5250 = vmatprep.subr.mxu0 0.0
        %5251 = vmatpush1.msra.mxu0 %v2443
        %5252 = vmatprep.subr.mxu0 0.0
        %5253 = vmatpush1.msra.mxu0 %v2448
        %5254 = vmatprep.mubr.f32.mxu0 %v4118
        %5255 = vmatmul.mubr.f32.gmra.mrb[0].mxu0 %v4117
        %v5256 = vpop.f32.mrb[0].mxu0
        %v5257 = vadd.f32 %v4218, %v5256
        %v5258 = vpop.f32.mrb[0].mxu0
        %5259 = vmatprep.mubr.f32.mxu0 %v4123
        %5260 = vmatmul.mubr.f32.gmra.mrb[0].mxu0 %v4122
        %v5261 = vpop.f32.mrb[0].mxu0
        %v5262 = vadd.f32 %v4218, %v5261
        %v5263 = vpop.f32.mrb[0].mxu0
        %5264 = vmatprep.mubr.f32.mxu0 %v4128
        %5265 = vmatmul.mubr.f32.gmra.mrb[0].mxu0 %v4127
        %v5266 = vpop.f32.mrb[0].mxu0
        %v5267 = vadd.f32 %v4218, %v5266
        %v5268 = vpop.f32.mrb[0].mxu0
        %5269 = vmatprep.mubr.f32.mxu0 %v4133
        %5270 = vmatmul.mubr.f32.gmra.mrb[0].mxu0 %v4132
        %v5271 = vpop.f32.mrb[0].mxu0
        %v5272 = vadd.f32 %v4218, %v5271
        %v5273 = vpop.f32.mrb[0].mxu0
        %5274 = vmatprep.mubr.f32.mxu0 %v4138
        %5275 = vmatmul.mubr.f32.gmra.mrb[0].mxu0 %v4137
        %v5276 = vpop.f32.mrb[0].mxu0
        %v5277 = vadd.f32 %v4218, %v5276
        %v5278 = vpop.f32.mrb[0].mxu0
        %5279 = vmatprep.mubr.f32.mxu0 %v4143
        %5280 = vmatmul.mubr.f32.gmra.mrb[0].mxu0 %v4142
        %v5281 = vpop.f32.mrb[0].mxu0
        %v5282 = vadd.f32 %v4218, %v5281
        %v5283 = vpop.f32.mrb[0].mxu0
        %5284 = vmatprep.mubr.f32.mxu0 %v4148
        %5285 = vmatmul.mubr.f32.gmra.mrb[0].mxu0 %v4147
        %v5286 = vpop.f32.mrb[0].mxu0
        %v5287 = vadd.f32 %v4218, %v5286
        %v5288 = vpop.f32.mrb[0].mxu0
        %5289 = vmatprep.mubr.f32.mxu0 %v4153
        %5290 = vmatmul.mubr.f32.gmra.mrb[0].mxu0 %v4152
        %v5291 = vpop.f32.mrb[0].mxu0
        %v5292 = vadd.f32 %v4218, %v5291
        %v5293 = vpop.f32.mrb[0].mxu0
        %5294 = vmatprep.mubr.f32.mxu0 %v4158
        %5295 = vmatmul.mubr.f32.gmra.mrb[0].mxu0 %v4157
        %v5296 = vpop.f32.mrb[0].mxu0
        %v5297 = vadd.f32 %v4218, %v5296
        %v5298 = vpop.f32.mrb[0].mxu0
        %5299 = vmatprep.mubr.f32.mxu0 %v4163
        %5300 = vmatmul.mubr.f32.gmra.mrb[0].mxu0 %v4162
        %v5301 = vpop.f32.mrb[0].mxu0
        %v5302 = vadd.f32 %v4218, %v5301
        %v5303 = vpop.f32.mrb[0].mxu0
        %5304 = vmatprep.mubr.f32.mxu0 %v4168
        %5305 = vmatmul.mubr.f32.gmra.mrb[0].mxu0 %v4167
        %v5306 = vpop.f32.mrb[0].mxu0
        %v5307 = vadd.f32 %v4218, %v5306
        %v5308 = vpop.f32.mrb[0].mxu0
        %5309 = vmatprep.mubr.f32.mxu0 %v4173
        %5310 = vmatmul.mubr.f32.gmra.mrb[0].mxu0 %v4172
        %v5311 = vpop.f32.mrb[0].mxu0
        %v5312 = vadd.f32 %v4218, %v5311
        %v5313 = vpop.f32.mrb[0].mxu0
        %5314 = vmatprep.mubr.f32.mxu0 %v4178
        %5315 = vmatmul.mubr.f32.gmra.mrb[0].mxu0 %v4177
        %v5316 = vpop.f32.mrb[0].mxu0
        %v5317 = vadd.f32 %v4218, %v5316
        %v5318 = vpop.f32.mrb[0].mxu0
        %5319 = vmatprep.mubr.f32.mxu0 %v4183
        %5320 = vmatmul.mubr.f32.gmra.mrb[0].mxu0 %v4182
        %v5321 = vpop.f32.mrb[0].mxu0
        %v5322 = vadd.f32 %v4218, %v5321
        %v5323 = vpop.f32.mrb[0].mxu0
        %5324 = vmatprep.mubr.f32.mxu0 %v4188
        %5325 = vmatmul.mubr.f32.gmra.mrb[0].mxu0 %v4187
        %v5326 = vpop.f32.mrb[0].mxu0
        %v5327 = vadd.f32 %v4218, %v5326
        %v5328 = vpop.f32.mrb[0].mxu0
        %5329 = vmatprep.mubr.f32.mxu0 %v4193
        %5330 = vmatmul.mubr.f32.gmra.mrb[0].mxu0 %v4192
        %v5331 = vpop.f32.mrb[0].mxu0
        %v5332 = vadd.f32 %v4218, %v5331
        %v5333 = vpop.f32.mrb[0].mxu0
        %5334 = vdwg.mxu0
        %5335 = vmatprep.subr.mxu0 0.0
        %5336 = vmatpush1.msra.mxu0 %v2453
        %5337 = vmatprep.subr.mxu0 0.0
        %5338 = vmatpush1.msra.mxu0 %v2458
        %5339 = vmatprep.subr.mxu0 0.0
        %5340 = vmatpush1.msra.mxu0 %v2463
        %5341 = vmatprep.subr.mxu0 0.0
        %5342 = vmatpush1.msra.mxu0 %v2468
        %5343 = vmatprep.subr.mxu0 0.0
        %5344 = vmatpush1.msra.mxu0 %v2473
        %5345 = vmatprep.subr.mxu0 0.0
        %5346 = vmatpush1.msra.mxu0 %v2478
        %5347 = vmatprep.subr.mxu0 0.0
        %5348 = vmatpush1.msra.mxu0 %v2483
        %5349 = vmatprep.subr.mxu0 0.0
        %5350 = vmatpush1.msra.mxu0 %v2488
        %5351 = vmatprep.subr.mxu0 0.0
        %5352 = vmatpush1.msra.mxu0 %v2493
        %5353 = vmatprep.subr.mxu0 0.0
        %5354 = vmatpush1.msra.mxu0 %v2498
        %5355 = vmatprep.subr.mxu0 0.0
        %5356 = vmatpush1.msra.mxu0 %v2503
        %5357 = vmatprep.subr.mxu0 0.0
        %5358 = vmatpush1.msra.mxu0 %v2508
        %5359 = vmatprep.subr.mxu0 0.0
        %5360 = vmatpush1.msra.mxu0 %v2513
        %5361 = vmatprep.subr.mxu0 0.0
        %5362 = vmatpush1.msra.mxu0 %v2518
        %5363 = vmatprep.subr.mxu0 0.0
        %5364 = vmatpush1.msra.mxu0 %v2523
        %5365 = vmatprep.subr.mxu0 0.0
        %5366 = vmatpush1.msra.mxu0 %v2528
        %5367 = vmatprep.subr.mxu0 0.0
        %5368 = vmatpush1.msra.mxu0 %v2533
        %5369 = vmatprep.subr.mxu0 0.0
        %5370 = vmatpush1.msra.mxu0 %v2538
        %5371 = vmatprep.subr.mxu0 0.0
        %5372 = vmatpush1.msra.mxu0 %v2543
        %5373 = vmatprep.subr.mxu0 0.0
        %5374 = vmatpush1.msra.mxu0 %v2548
        %5375 = vmatprep.subr.mxu0 0.0
        %5376 = vmatpush1.msra.mxu0 %v2553
        %5377 = vmatprep.subr.mxu0 0.0
        %5378 = vmatpush1.msra.mxu0 %v2558
        %5379 = vmatprep.subr.mxu0 0.0
        %5380 = vmatpush1.msra.mxu0 %v2563
        %5381 = vmatprep.subr.mxu0 0.0
        %5382 = vmatpush1.msra.mxu0 %v2568
        %5383 = vmatprep.subr.mxu0 0.0
        %5384 = vmatpush1.msra.mxu0 %v2573
        %5385 = vmatprep.subr.mxu0 0.0
        %5386 = vmatpush1.msra.mxu0 %v2578
        %5387 = vmatprep.subr.mxu0 0.0
        %5388 = vmatpush1.msra.mxu0 %v2583
        %5389 = vmatprep.subr.mxu0 0.0
        %5390 = vmatpush1.msra.mxu0 %v2588
        %5391 = vmatprep.subr.mxu0 0.0
        %5392 = vmatpush1.msra.mxu0 %v2593
        %5393 = vmatprep.subr.mxu0 0.0
        %5394 = vmatpush1.msra.mxu0 %v2598
        %5395 = vmatprep.subr.mxu0 0.0
        %5396 = vmatpush1.msra.mxu0 %v2603
        %5397 = vmatprep.subr.mxu0 0.0
        %5398 = vmatpush1.msra.mxu0 %v2608
        %5399 = vmatprep.mubr.f32.mxu0 %v4120
        %5400 = vmatmul.mubr.f32.gmra.mrb[0].mxu0 %v4119
        %v5401 = vpop.f32.mrb[0].mxu0
        %v5402 = vadd.f32 %v5257, %v5401
        %v5403 = vpop.f32.mrb[0].mxu0
        %5404 = vmatprep.mubr.f32.mxu0 %v4125
        %5405 = vmatmul.mubr.f32.gmra.mrb[0].mxu0 %v4124
        %v5406 = vpop.f32.mrb[0].mxu0
        %v5407 = vadd.f32 %v5262, %v5406
        %v5408 = vpop.f32.mrb[0].mxu0
        %5409 = vmatprep.mubr.f32.mxu0 %v4130
        %5410 = vmatmul.mubr.f32.gmra.mrb[0].mxu0 %v4129
        %v5411 = vpop.f32.mrb[0].mxu0
        %v5412 = vadd.f32 %v5267, %v5411
        %v5413 = vpop.f32.mrb[0].mxu0
        %5414 = vmatprep.mubr.f32.mxu0 %v4135
        %5415 = vmatmul.mubr.f32.gmra.mrb[0].mxu0 %v4134
        %v5416 = vpop.f32.mrb[0].mxu0
        %v5417 = vadd.f32 %v5272, %v5416
        %v5418 = vpop.f32.mrb[0].mxu0
        %5419 = vmatprep.mubr.f32.mxu0 %v4140
        %5420 = vmatmul.mubr.f32.gmra.mrb[0].mxu0 %v4139
        %v5421 = vpop.f32.mrb[0].mxu0
        %v5422 = vadd.f32 %v5277, %v5421
        %v5423 = vpop.f32.mrb[0].mxu0
        %5424 = vmatprep.mubr.f32.mxu0 %v4145
        %5425 = vmatmul.mubr.f32.gmra.mrb[0].mxu0 %v4144
        %v5426 = vpop.f32.mrb[0].mxu0
        %v5427 = vadd.f32 %v5282, %v5426
        %v5428 = vpop.f32.mrb[0].mxu0
        %5429 = vmatprep.mubr.f32.mxu0 %v4150
        %5430 = vmatmul.mubr.f32.gmra.mrb[0].mxu0 %v4149
        %v5431 = vpop.f32.mrb[0].mxu0
        %v5432 = vadd.f32 %v5287, %v5431
        %v5433 = vpop.f32.mrb[0].mxu0
        %5434 = vmatprep.mubr.f32.mxu0 %v4155
        %5435 = vmatmul.mubr.f32.gmra.mrb[0].mxu0 %v4154
        %v5436 = vpop.f32.mrb[0].mxu0
        %v5437 = vadd.f32 %v5292, %v5436
        %v5438 = vpop.f32.mrb[0].mxu0
        %5439 = vmatprep.mubr.f32.mxu0 %v4160
        %5440 = vmatmul.mubr.f32.gmra.mrb[0].mxu0 %v4159
        %v5441 = vpop.f32.mrb[0].mxu0
        %v5442 = vadd.f32 %v5297, %v5441
        %v5443 = vpop.f32.mrb[0].mxu0
        %5444 = vmatprep.mubr.f32.mxu0 %v4165
        %5445 = vmatmul.mubr.f32.gmra.mrb[0].mxu0 %v4164
        %v5446 = vpop.f32.mrb[0].mxu0
        %v5447 = vadd.f32 %v5302, %v5446
        %v5448 = vpop.f32.mrb[0].mxu0
        %5449 = vmatprep.mubr.f32.mxu0 %v4170
        %5450 = vmatmul.mubr.f32.gmra.mrb[0].mxu0 %v4169
        %v5451 = vpop.f32.mrb[0].mxu0
        %v5452 = vadd.f32 %v5307, %v5451
        %v5453 = vpop.f32.mrb[0].mxu0
        %5454 = vmatprep.mubr.f32.mxu0 %v4175
        %5455 = vmatmul.mubr.f32.gmra.mrb[0].mxu0 %v4174
        %v5456 = vpop.f32.mrb[0].mxu0
        %v5457 = vadd.f32 %v5312, %v5456
        %v5458 = vpop.f32.mrb[0].mxu0
        %5459 = vmatprep.mubr.f32.mxu0 %v4180
        %5460 = vmatmul.mubr.f32.gmra.mrb[0].mxu0 %v4179
        %v5461 = vpop.f32.mrb[0].mxu0
        %v5462 = vadd.f32 %v5317, %v5461
        %v5463 = vpop.f32.mrb[0].mxu0
        %5464 = vmatprep.mubr.f32.mxu0 %v4185
        %5465 = vmatmul.mubr.f32.gmra.mrb[0].mxu0 %v4184
        %v5466 = vpop.f32.mrb[0].mxu0
        %v5467 = vadd.f32 %v5322, %v5466
        %v5468 = vpop.f32.mrb[0].mxu0
        %5469 = vmatprep.mubr.f32.mxu0 %v4190
        %5470 = vmatmul.mubr.f32.gmra.mrb[0].mxu0 %v4189
        %v5471 = vpop.f32.mrb[0].mxu0
        %v5472 = vadd.f32 %v5327, %v5471
        %v5473 = vpop.f32.mrb[0].mxu0
        %5474 = vmatprep.mubr.f32.mxu0 %v4195
        %5475 = vmatmul.mubr.f32.gmra.mrb[0].mxu0 %v4194
        %v5476 = vpop.f32.mrb[0].mxu0
        %v5477 = vadd.f32 %v5332, %v5476
        %v5478 = vpop.f32.mrb[0].mxu0
        %5479 = vdwg.mxu0
        %5480 = vmatprep.subr.mxu0 0.0
        %5481 = vmatpush1.msra.mxu0 %v2613
        %5482 = vmatprep.subr.mxu0 0.0
        %5483 = vmatpush1.msra.mxu0 %v2618
        %5484 = vmatprep.subr.mxu0 0.0
        %5485 = vmatpush1.msra.mxu0 %v2623
        %5486 = vmatprep.subr.mxu0 0.0
        %5487 = vmatpush1.msra.mxu0 %v2628
        %5488 = vmatprep.subr.mxu0 0.0
        %5489 = vmatpush1.msra.mxu0 %v2633
        %5490 = vmatprep.subr.mxu0 0.0
        %5491 = vmatpush1.msra.mxu0 %v2638
        %5492 = vmatprep.subr.mxu0 0.0
        %5493 = vmatpush1.msra.mxu0 %v2643
        %5494 = vmatprep.subr.mxu0 0.0
        %5495 = vmatpush1.msra.mxu0 %v2648
        %5496 = vmatprep.subr.mxu0 0.0
        %5497 = vmatpush1.msra.mxu0 %v2653
        %5498 = vmatprep.subr.mxu0 0.0
        %5499 = vmatpush1.msra.mxu0 %v2658
        %5500 = vmatprep.subr.mxu0 0.0
        %5501 = vmatpush1.msra.mxu0 %v2663
        %5502 = vmatprep.subr.mxu0 0.0
        %5503 = vmatpush1.msra.mxu0 %v2668
        %5504 = vmatprep.subr.mxu0 0.0
        %5505 = vmatpush1.msra.mxu0 %v2673
        %5506 = vmatprep.subr.mxu0 0.0
        %5507 = vmatpush1.msra.mxu0 %v2678
        %5508 = vmatprep.subr.mxu0 0.0
        %5509 = vmatpush1.msra.mxu0 %v2683
        %5510 = vmatprep.subr.mxu0 0.0
        %5511 = vmatpush1.msra.mxu0 %v2688
        %5512 = vmatprep.subr.mxu0 0.0
        %5513 = vmatpush1.msra.mxu0 0.0
        %5514 = vmatprep.subr.mxu0 0.0
        %5515 = vmatpush1.msra.mxu0 0.0
        %5516 = vmatprep.subr.mxu0 0.0
        %5517 = vmatpush1.msra.mxu0 0.0
        %5518 = vmatprep.subr.mxu0 0.0
        %5519 = vmatpush1.msra.mxu0 0.0
        %5520 = vmatprep.subr.mxu0 0.0
        %5521 = vmatpush1.msra.mxu0 0.0
        %5522 = vmatprep.subr.mxu0 0.0
        %5523 = vmatpush1.msra.mxu0 0.0
        %5524 = vmatprep.subr.mxu0 0.0
        %5525 = vmatpush1.msra.mxu0 0.0
        %5526 = vmatprep.subr.mxu0 0.0
        %5527 = vmatpush1.msra.mxu0 0.0
        %5528 = vmatprep.subr.mxu0 0.0
        %5529 = vmatpush1.msra.mxu0 0.0
        %5530 = vmatprep.subr.mxu0 0.0
        %5531 = vmatpush1.msra.mxu0 0.0
        %5532 = vmatprep.subr.mxu0 0.0
        %5533 = vmatpush1.msra.mxu0 0.0
        %5534 = vmatprep.subr.mxu0 0.0
        %5535 = vmatpush1.msra.mxu0 0.0
        %5536 = vmatprep.subr.mxu0 0.0
        %5537 = vmatpush1.msra.mxu0 0.0
        %5538 = vmatprep.subr.mxu0 0.0
        %5539 = vmatpush1.msra.mxu0 0.0
        %5540 = vmatprep.subr.mxu0 0.0
        %5541 = vmatpush1.msra.mxu0 0.0
        %5542 = vmatprep.subr.mxu0 0.0
        %5543 = vmatpush1.msra.mxu0 0.0
        %5544 = vmatprep.mubr.f32.mxu0 0.0
        %5545 = vmatmul.mubr.f32.gmra.mrb[0].mxu0 %v4121
        %v5546 = vpop.f32.mrb[0].mxu0
        %v5547 = vadd.f32 %v5402, %v5546
        %v5548 = vpop.f32.mrb[0].mxu0
        %5549 = vmatprep.mubr.f32.mxu0 0.0
        %5550 = vmatmul.mubr.f32.gmra.mrb[0].mxu0 %v4126
        %v5551 = vpop.f32.mrb[0].mxu0
        %v5552 = vadd.f32 %v5407, %v5551
        %v5553 = vpop.f32.mrb[0].mxu0
        %5554 = vmatprep.mubr.f32.mxu0 0.0
        %5555 = vmatmul.mubr.f32.gmra.mrb[0].mxu0 %v4131
        %v5556 = vpop.f32.mrb[0].mxu0
        %v5557 = vadd.f32 %v5412, %v5556
        %v5558 = vpop.f32.mrb[0].mxu0
        %5559 = vmatprep.mubr.f32.mxu0 0.0
        %5560 = vmatmul.mubr.f32.gmra.mrb[0].mxu0 %v4136
        %v5561 = vpop.f32.mrb[0].mxu0
        %v5562 = vadd.f32 %v5417, %v5561
        %v5563 = vpop.f32.mrb[0].mxu0
        %5564 = vmatprep.mubr.f32.mxu0 0.0
        %5565 = vmatmul.mubr.f32.gmra.mrb[0].mxu0 %v4141
        %v5566 = vpop.f32.mrb[0].mxu0
        %v5567 = vadd.f32 %v5422, %v5566
        %v5568 = vpop.f32.mrb[0].mxu0
        %5569 = vmatprep.mubr.f32.mxu0 0.0
        %5570 = vmatmul.mubr.f32.gmra.mrb[0].mxu0 %v4146
        %v5571 = vpop.f32.mrb[0].mxu0
        %v5572 = vadd.f32 %v5427, %v5571
        %v5573 = vpop.f32.mrb[0].mxu0
        %5574 = vmatprep.mubr.f32.mxu0 0.0
        %5575 = vmatmul.mubr.f32.gmra.mrb[0].mxu0 %v4151
        %v5576 = vpop.f32.mrb[0].mxu0
        %v5577 = vadd.f32 %v5432, %v5576
        %v5578 = vpop.f32.mrb[0].mxu0
        %5579 = vmatprep.mubr.f32.mxu0 0.0
        %5580 = vmatmul.mubr.f32.gmra.mrb[0].mxu0 %v4156
        %v5581 = vpop.f32.mrb[0].mxu0
        %v5582 = vadd.f32 %v5437, %v5581
        %v5583 = vpop.f32.mrb[0].mxu0
        %5584 = vmatprep.mubr.f32.mxu0 0.0
        %5585 = vmatmul.mubr.f32.gmra.mrb[0].mxu0 %v4161
        %v5586 = vpop.f32.mrb[0].mxu0
        %v5587 = vadd.f32 %v5442, %v5586
        %v5588 = vpop.f32.mrb[0].mxu0
        %5589 = vmatprep.mubr.f32.mxu0 0.0
        %5590 = vmatmul.mubr.f32.gmra.mrb[0].mxu0 %v4166
        %v5591 = vpop.f32.mrb[0].mxu0
        %v5592 = vadd.f32 %v5447, %v5591
        %v5593 = vpop.f32.mrb[0].mxu0
        %5594 = vmatprep.mubr.f32.mxu0 0.0
        %5595 = vmatmul.mubr.f32.gmra.mrb[0].mxu0 %v4171
        %v5596 = vpop.f32.mrb[0].mxu0
        %v5597 = vadd.f32 %v5452, %v5596
        %v5598 = vpop.f32.mrb[0].mxu0
        %5599 = vmatprep.mubr.f32.mxu0 0.0
        %5600 = vmatmul.mubr.f32.gmra.mrb[0].mxu0 %v4176
        %v5601 = vpop.f32.mrb[0].mxu0
        %v5602 = vadd.f32 %v5457, %v5601
        %v5603 = vpop.f32.mrb[0].mxu0
        %5604 = vmatprep.mubr.f32.mxu0 0.0
        %5605 = vmatmul.mubr.f32.gmra.mrb[0].mxu0 %v4181
        %v5606 = vpop.f32.mrb[0].mxu0
        %v5607 = vadd.f32 %v5462, %v5606
        %v5608 = vpop.f32.mrb[0].mxu0
        %5609 = vmatprep.mubr.f32.mxu0 0.0
        %5610 = vmatmul.mubr.f32.gmra.mrb[0].mxu0 %v4186
        %v5611 = vpop.f32.mrb[0].mxu0
        %v5612 = vadd.f32 %v5467, %v5611
        %v5613 = vpop.f32.mrb[0].mxu0
        %5614 = vmatprep.mubr.f32.mxu0 0.0
        %5615 = vmatmul.mubr.f32.gmra.mrb[0].mxu0 %v4191
        %v5616 = vpop.f32.mrb[0].mxu0
        %v5617 = vadd.f32 %v5472, %v5616
        %v5618 = vpop.f32.mrb[0].mxu0
        %5619 = vmatprep.mubr.f32.mxu0 0.0
        %5620 = vmatmul.mubr.f32.gmra.mrb[0].mxu0 %v4196
        %v5621 = vpop.f32.mrb[0].mxu0
        %v5622 = vadd.f32 %v5477, %v5621
        %v5623 = vpop.f32.mrb[0].mxu0
        %5624 = vdwg.mxu0
        %p5625 = scmp.lt.s32.totalorder %s36, 4
        // Predicated region
        $region129: #{tpu_custom_call.1} parent=71 // pred_check
          %p5626 = pneg %p5625
        $region130: #{tpu_custom_call.1} parent=71 // pred_check_branch
          %5628 = sbr.rel (%p5626) target = $region132
        $region131: #{tpu_custom_call.1} parent=71 // pred_region
          %v5629 = vmax.f32 %v4613, 0.0
          %v5630 = vmax.f32 %v4615, 0.0
          %v5631 = vmax.f32 %v5096, 0.0
          %v5632 = vmax.f32 %v5098, 0.0
          %v5633 = vmax.f32 %v5547, 0.0
          %v5634 = vmax.f32 %v4619, 0.0
          %v5635 = vmax.f32 %v4621, 0.0
          %v5636 = vmax.f32 %v5102, 0.0
          %v5637 = vmax.f32 %v5104, 0.0
          %v5638 = vmax.f32 %v5552, 0.0
          %v5639 = vmax.f32 %v4625, 0.0
          %v5640 = vmax.f32 %v4627, 0.0
          %v5641 = vmax.f32 %v5108, 0.0
          %v5642 = vmax.f32 %v5110, 0.0
          %v5643 = vmax.f32 %v5557, 0.0
          %v5644 = vmax.f32 %v4631, 0.0
          %v5645 = vmax.f32 %v4633, 0.0
          %v5646 = vmax.f32 %v5114, 0.0
          %v5647 = vmax.f32 %v5116, 0.0
          %v5648 = vmax.f32 %v5562, 0.0
          %v5649 = vmax.f32 %v4637, 0.0
          %v5650 = vmax.f32 %v4639, 0.0
          %v5651 = vmax.f32 %v5120, 0.0
          %v5652 = vmax.f32 %v5122, 0.0
          %v5653 = vmax.f32 %v5567, 0.0
          %v5654 = vmax.f32 %v4643, 0.0
          %v5655 = vmax.f32 %v4645, 0.0
          %v5656 = vmax.f32 %v5126, 0.0
          %v5657 = vmax.f32 %v5128, 0.0
          %v5658 = vmax.f32 %v5572, 0.0
          %v5659 = vmax.f32 %v4649, 0.0
          %v5660 = vmax.f32 %v4651, 0.0
          %v5661 = vmax.f32 %v5132, 0.0
          %v5662 = vmax.f32 %v5134, 0.0
          %v5663 = vmax.f32 %v5577, 0.0
          %v5664 = vmax.f32 %v4655, 0.0
          %v5665 = vmax.f32 %v4657, 0.0
          %v5666 = vmax.f32 %v5138, 0.0
          %v5667 = vmax.f32 %v5140, 0.0
          %v5668 = vmax.f32 %v5582, 0.0
          %v5669 = vmax.f32 %v4661, 0.0
          %v5670 = vmax.f32 %v4663, 0.0
          %v5671 = vmax.f32 %v5144, 0.0
          %v5672 = vmax.f32 %v5146, 0.0
          %v5673 = vmax.f32 %v5587, 0.0
          %v5674 = vmax.f32 %v4667, 0.0
          %v5675 = vmax.f32 %v4669, 0.0
          %v5676 = vmax.f32 %v5150, 0.0
          %v5677 = vmax.f32 %v5152, 0.0
          %v5678 = vmax.f32 %v5592, 0.0
          %v5679 = vmax.f32 %v4673, 0.0
          %v5680 = vmax.f32 %v4675, 0.0
          %v5681 = vmax.f32 %v5156, 0.0
          %v5682 = vmax.f32 %v5158, 0.0
          %v5683 = vmax.f32 %v5597, 0.0
          %v5684 = vmax.f32 %v4679, 0.0
          %v5685 = vmax.f32 %v4681, 0.0
          %v5686 = vmax.f32 %v5162, 0.0
          %v5687 = vmax.f32 %v5164, 0.0
          %v5688 = vmax.f32 %v5602, 0.0
          %v5689 = vmax.f32 %v4685, 0.0
          %v5690 = vmax.f32 %v4687, 0.0
          %v5691 = vmax.f32 %v5168, 0.0
          %v5692 = vmax.f32 %v5170, 0.0
          %v5693 = vmax.f32 %v5607, 0.0
          %v5694 = vmax.f32 %v4691, 0.0
          %v5695 = vmax.f32 %v4693, 0.0
          %v5696 = vmax.f32 %v5174, 0.0
          %v5697 = vmax.f32 %v5176, 0.0
          %v5698 = vmax.f32 %v5612, 0.0
          %v5699 = vmax.f32 %v4697, 0.0
          %v5700 = vmax.f32 %v4699, 0.0
          %v5701 = vmax.f32 %v5180, 0.0
          %v5702 = vmax.f32 %v5182, 0.0
          %v5703 = vmax.f32 %v5617, 0.0
          %v5704 = vmax.f32 %v4703, 0.0
          %v5705 = vmax.f32 %v4705, 0.0
          %v5706 = vmax.f32 %v5186, 0.0
          %v5707 = vmax.f32 %v5188, 0.0
          %v5708 = vmax.f32 %v5622, 0.0
          %5709 = vst [vmem:[#allocation2] sm:$0xff] %v5629
          %5710 = vst [vmem:[#allocation2 + $0x8] sm:$0xff] %v5630
          %5711 = vst [vmem:[#allocation2 + $0x10] sm:$0xff] %v5631
          %5712 = vst [vmem:[#allocation2 + $0x18] sm:$0xff] %v5632
          %5713 = vst [vmem:[#allocation2 + $0x20] sm:$0xff] %v5633
          %5714 = vst [vmem:[#allocation2 + $0x28] sm:$0xff] %v5634
          %5715 = vst [vmem:[#allocation2 + $0x30] sm:$0xff] %v5635
          %5716 = vst [vmem:[#allocation2 + $0x38] sm:$0xff] %v5636
          %5717 = vst [vmem:[#allocation2 + $0x40] sm:$0xff] %v5637
          %5718 = vst [vmem:[#allocation2 + $0x48] sm:$0xff] %v5638
          %5719 = vst [vmem:[#allocation2 + $0x50] sm:$0xff] %v5639
          %5720 = vst [vmem:[#allocation2 + $0x58] sm:$0xff] %v5640
          %5721 = vst [vmem:[#allocation2 + $0x60] sm:$0xff] %v5641
          %5722 = vst [vmem:[#allocation2 + $0x68] sm:$0xff] %v5642
          %5723 = vst [vmem:[#allocation2 + $0x70] sm:$0xff] %v5643
          %5724 = vst [vmem:[#allocation2 + $0x78] sm:$0xff] %v5644
          %5725 = vst [vmem:[#allocation2 + $0x80] sm:$0xff] %v5645
          %5726 = vst [vmem:[#allocation2 + $0x88] sm:$0xff] %v5646
          %5727 = vst [vmem:[#allocation2 + $0x90] sm:$0xff] %v5647
          %5728 = vst [vmem:[#allocation2 + $0x98] sm:$0xff] %v5648
          %5729 = vst [vmem:[#allocation2 + $0xa0] sm:$0xff] %v5649
          %5730 = vst [vmem:[#allocation2 + $0xa8] sm:$0xff] %v5650
          %5731 = vst [vmem:[#allocation2 + $0xb0] sm:$0xff] %v5651
          %5732 = vst [vmem:[#allocation2 + $0xb8] sm:$0xff] %v5652
          %5733 = vst [vmem:[#allocation2 + $0xc0] sm:$0xff] %v5653
          %5734 = vst [vmem:[#allocation2 + $0xc8] sm:$0xff] %v5654
          %5735 = vst [vmem:[#allocation2 + $0xd0] sm:$0xff] %v5655
          %5736 = vst [vmem:[#allocation2 + $0xd8] sm:$0xff] %v5656
          %5737 = vst [vmem:[#allocation2 + $0xe0] sm:$0xff] %v5657
          %5738 = vst [vmem:[#allocation2 + $0xe8] sm:$0xff] %v5658
          %5739 = vst [vmem:[#allocation2 + $0xf0] sm:$0xff] %v5659
          %5740 = vst [vmem:[#allocation2 + $0xf8] sm:$0xff] %v5660
          %5741 = vst [vmem:[#allocation2 + $0x100] sm:$0xff] %v5661
          %5742 = vst [vmem:[#allocation2 + $0x108] sm:$0xff] %v5662
          %5743 = vst [vmem:[#allocation2 + $0x110] sm:$0xff] %v5663
          %5744 = vst [vmem:[#allocation2 + $0x118] sm:$0xff] %v5664
          %5745 = vst [vmem:[#allocation2 + $0x120] sm:$0xff] %v5665
          %5746 = vst [vmem:[#allocation2 + $0x128] sm:$0xff] %v5666
          %5747 = vst [vmem:[#allocation2 + $0x130] sm:$0xff] %v5667
          %5748 = vst [vmem:[#allocation2 + $0x138] sm:$0xff] %v5668
          %5749 = vst [vmem:[#allocation2 + $0x140] sm:$0xff] %v5669
          %5750 = vst [vmem:[#allocation2 + $0x148] sm:$0xff] %v5670
          %5751 = vst [vmem:[#allocation2 + $0x150] sm:$0xff] %v5671
          %5752 = vst [vmem:[#allocation2 + $0x158] sm:$0xff] %v5672
          %5753 = vst [vmem:[#allocation2 + $0x160] sm:$0xff] %v5673
          %5754 = vst [vmem:[#allocation2 + $0x168] sm:$0xff] %v5674
          %5755 = vst [vmem:[#allocation2 + $0x170] sm:$0xff] %v5675
          %5756 = vst [vmem:[#allocation2 + $0x178] sm:$0xff] %v5676
          %5757 = vst [vmem:[#allocation2 + $0x180] sm:$0xff] %v5677
          %5758 = vst [vmem:[#allocation2 + $0x188] sm:$0xff] %v5678
          %5759 = vst [vmem:[#allocation2 + $0x190] sm:$0xff] %v5679
          %5760 = vst [vmem:[#allocation2 + $0x198] sm:$0xff] %v5680
          %5761 = vst [vmem:[#allocation2 + $0x1a0] sm:$0xff] %v5681
          %5762 = vst [vmem:[#allocation2 + $0x1a8] sm:$0xff] %v5682
          %5763 = vst [vmem:[#allocation2 + $0x1b0] sm:$0xff] %v5683
          %5764 = vst [vmem:[#allocation2 + $0x1b8] sm:$0xff] %v5684
          %5765 = vst [vmem:[#allocation2 + $0x1c0] sm:$0xff] %v5685
          %5766 = vst [vmem:[#allocation2 + $0x1c8] sm:$0xff] %v5686
          %5767 = vst [vmem:[#allocation2 + $0x1d0] sm:$0xff] %v5687
          %5768 = vst [vmem:[#allocation2 + $0x1d8] sm:$0xff] %v5688
          %5769 = vst [vmem:[#allocation2 + $0x1e0] sm:$0xff] %v5689
          %5770 = vst [vmem:[#allocation2 + $0x1e8] sm:$0xff] %v5690
          %5771 = vst [vmem:[#allocation2 + $0x1f0] sm:$0xff] %v5691
          %5772 = vst [vmem:[#allocation2 + $0x1f8] sm:$0xff] %v5692
          %5773 = vst [vmem:[#allocation2 + $0x200] sm:$0xff] %v5693
          %5774 = vst [vmem:[#allocation2 + $0x208] sm:$0xff] %v5694
          %5775 = vst [vmem:[#allocation2 + $0x210] sm:$0xff] %v5695
          %5776 = vst [vmem:[#allocation2 + $0x218] sm:$0xff] %v5696
          %5777 = vst [vmem:[#allocation2 + $0x220] sm:$0xff] %v5697
          %5778 = vst [vmem:[#allocation2 + $0x228] sm:$0xff] %v5698
          %5779 = vst [vmem:[#allocation2 + $0x230] sm:$0xff] %v5699
          %5780 = vst [vmem:[#allocation2 + $0x238] sm:$0xff] %v5700
          %5781 = vst [vmem:[#allocation2 + $0x240] sm:$0xff] %v5701
          %5782 = vst [vmem:[#allocation2 + $0x248] sm:$0xff] %v5702
          %5783 = vst [vmem:[#allocation2 + $0x250] sm:$0xff] %v5703
          %5784 = vst [vmem:[#allocation2 + $0x258] sm:$0xff] %v5704
          %5785 = vst [vmem:[#allocation2 + $0x260] sm:$0xff] %v5705
          %5786 = vst [vmem:[#allocation2 + $0x268] sm:$0xff] %v5706
          %5787 = vst [vmem:[#allocation2 + $0x270] sm:$0xff] %v5707
          %5788 = vst [vmem:[#allocation2 + $0x278] sm:$0xff] %v5708
        $region132: #{tpu_custom_call.1} parent=71 // pred_fallthru
          _
        %p5789 = scmp.eq.s32.totalorder %s36, 4
        // Predicated region
        $region133: #{tpu_custom_call.1} parent=71 // pred_check
          %p5790 = pneg %p5789
        $region134: #{tpu_custom_call.1} parent=71 // pred_check_branch
          %5792 = sbr.rel (%p5790) target = $region136
        $region135: #{tpu_custom_call.1} parent=71 // pred_region
          %v5793 = vld [vmem:[#allocation8] sm:$0xff]
          %v5794 = vld [vmem:[#allocation8 + $0x8] sm:$0xff]
          %5795 = vmatprep.subr.mxu0 %v4615
          %5796 = vmatpush1.msra.mxu0 %v4613
          %5797 = vmatprep.subr.mxu0 %v4621
          %5798 = vmatpush1.msra.mxu0 %v4619
          %5799 = vmatprep.subr.mxu0 %v4627
          %5800 = vmatpush1.msra.mxu0 %v4625
          %5801 = vmatprep.subr.mxu0 %v4633
          %5802 = vmatpush1.msra.mxu0 %v4631
          %5803 = vmatprep.subr.mxu0 %v4639
          %5804 = vmatpush1.msra.mxu0 %v4637
          %5805 = vmatprep.subr.mxu0 %v4645
          %5806 = vmatpush1.msra.mxu0 %v4643
          %5807 = vmatprep.subr.mxu0 %v4651
          %5808 = vmatpush1.msra.mxu0 %v4649
          %5809 = vmatprep.subr.mxu0 %v4657
          %5810 = vmatpush1.msra.mxu0 %v4655
          %5811 = vmatprep.subr.mxu0 %v4663
          %5812 = vmatpush1.msra.mxu0 %v4661
          %5813 = vmatprep.subr.mxu0 %v4669
          %5814 = vmatpush1.msra.mxu0 %v4667
          %5815 = vmatprep.subr.mxu0 %v4675
          %5816 = vmatpush1.msra.mxu0 %v4673
          %5817 = vmatprep.subr.mxu0 %v4681
          %5818 = vmatpush1.msra.mxu0 %v4679
          %5819 = vmatprep.subr.mxu0 %v4687
          %5820 = vmatpush1.msra.mxu0 %v4685
          %5821 = vmatprep.subr.mxu0 %v4693
          %5822 = vmatpush1.msra.mxu0 %v4691
          %5823 = vmatprep.subr.mxu0 %v4699
          %5824 = vmatpush1.msra.mxu0 %v4697
          %5825 = vmatprep.subr.mxu0 %v4705
          %5826 = vmatpush1.msra.mxu0 %v4703
          %5827 = vmatprep.subr.mxu0 0.0
          %5828 = vmatpush1.msra.mxu0 0.0
          %5829 = vmatprep.subr.mxu0 0.0
          %5830 = vmatpush1.msra.mxu0 0.0
          %5831 = vmatprep.subr.mxu0 0.0
          %5832 = vmatpush1.msra.mxu0 0.0
          %5833 = vmatprep.subr.mxu0 0.0
          %5834 = vmatpush1.msra.mxu0 0.0
          %5835 = vmatprep.subr.mxu0 0.0
          %5836 = vmatpush1.msra.mxu0 0.0
          %5837 = vmatprep.subr.mxu0 0.0
          %5838 = vmatpush1.msra.mxu0 0.0
          %5839 = vmatprep.subr.mxu0 0.0
          %5840 = vmatpush1.msra.mxu0 0.0
          %5841 = vmatprep.subr.mxu0 0.0
          %5842 = vmatpush1.msra.mxu0 0.0
          %5843 = vmatprep.subr.mxu0 0.0
          %5844 = vmatpush1.msra.mxu0 0.0
          %5845 = vmatprep.subr.mxu0 0.0
          %5846 = vmatpush1.msra.mxu0 0.0
          %5847 = vmatprep.subr.mxu0 0.0
          %5848 = vmatpush1.msra.mxu0 0.0
          %5849 = vmatprep.subr.mxu0 0.0
          %5850 = vmatpush1.msra.mxu0 0.0
          %5851 = vmatprep.subr.mxu0 0.0
          %5852 = vmatpush1.msra.mxu0 0.0
          %5853 = vmatprep.subr.mxu0 0.0
          %5854 = vmatpush1.msra.mxu0 0.0
          %5855 = vmatprep.subr.mxu0 0.0
          %5856 = vmatpush1.msra.mxu0 0.0
          %5857 = vmatprep.subr.mxu0 0.0
          %5858 = vmatpush1.msra.mxu0 0.0
          %5859 = vmatprep.mubr.f32.mxu0 0.0
          %5860 = vmatmul.mubr.f32.gmra.mrb[0].mxu0 %v5793
          %v5861 = vpop.f32.mrb[0].mxu0
          %v5862 = vadd.f32 0.0, %v5861
          %v5863 = vpop.f32.mrb[0].mxu0
          %v5864 = vadd.f32 0.0, %v5863
          %5865 = vmatprep.mubr.f32.mxu0 0.0
          %5866 = vmatmul.mubr.f32.gmra.mrb[0].mxu0 %v5794
          %v5867 = vpop.f32.mrb[0].mxu0
          %v5868 = vadd.f32 0.0, %v5867
          %v5869 = vpop.f32.mrb[0].mxu0
          %v5870 = vadd.f32 0.0, %v5869
          %5871 = vdwg.mxu0
          %5872 = vmatprep.subr.mxu0 %v5098
          %5873 = vmatpush1.msra.mxu0 %v5096
          %5874 = vmatprep.subr.mxu0 %v5104
          %5875 = vmatpush1.msra.mxu0 %v5102
          %5876 = vmatprep.subr.mxu0 %v5110
          %5877 = vmatpush1.msra.mxu0 %v5108
          %5878 = vmatprep.subr.mxu0 %v5116
          %5879 = vmatpush1.msra.mxu0 %v5114
          %5880 = vmatprep.subr.mxu0 %v5122
          %5881 = vmatpush1.msra.mxu0 %v5120
          %5882 = vmatprep.subr.mxu0 %v5128
          %5883 = vmatpush1.msra.mxu0 %v5126
          %5884 = vmatprep.subr.mxu0 %v5134
          %5885 = vmatpush1.msra.mxu0 %v5132
          %5886 = vmatprep.subr.mxu0 %v5140
          %5887 = vmatpush1.msra.mxu0 %v5138
          %5888 = vmatprep.subr.mxu0 %v5146
          %5889 = vmatpush1.msra.mxu0 %v5144
          %5890 = vmatprep.subr.mxu0 %v5152
          %5891 = vmatpush1.msra.mxu0 %v5150
          %5892 = vmatprep.subr.mxu0 %v5158
          %5893 = vmatpush1.msra.mxu0 %v5156
          %5894 = vmatprep.subr.mxu0 %v5164
          %5895 = vmatpush1.msra.mxu0 %v5162
          %5896 = vmatprep.subr.mxu0 %v5170
          %5897 = vmatpush1.msra.mxu0 %v5168
          %5898 = vmatprep.subr.mxu0 %v5176
          %5899 = vmatpush1.msra.mxu0 %v5174
          %5900 = vmatprep.subr.mxu0 %v5182
          %5901 = vmatpush1.msra.mxu0 %v5180
          %5902 = vmatprep.subr.mxu0 %v5188
          %5903 = vmatpush1.msra.mxu0 %v5186
          %5904 = vmatprep.subr.mxu0 0.0
          %5905 = vmatpush1.msra.mxu0 0.0
          %5906 = vmatprep.subr.mxu0 0.0
          %5907 = vmatpush1.msra.mxu0 0.0
          %5908 = vmatprep.subr.mxu0 0.0
          %5909 = vmatpush1.msra.mxu0 0.0
          %5910 = vmatprep.subr.mxu0 0.0
          %5911 = vmatpush1.msra.mxu0 0.0
          %5912 = vmatprep.subr.mxu0 0.0
          %5913 = vmatpush1.msra.mxu0 0.0
          %5914 = vmatprep.subr.mxu0 0.0
          %5915 = vmatpush1.msra.mxu0 0.0
          %5916 = vmatprep.subr.mxu0 0.0
          %5917 = vmatpush1.msra.mxu0 0.0
          %5918 = vmatprep.subr.mxu0 0.0
          %5919 = vmatpush1.msra.mxu0 0.0
          %5920 = vmatprep.subr.mxu0 0.0
          %5921 = vmatpush1.msra.mxu0 0.0
          %5922 = vmatprep.subr.mxu0 0.0
          %5923 = vmatpush1.msra.mxu0 0.0
          %5924 = vmatprep.subr.mxu0 0.0
          %5925 = vmatpush1.msra.mxu0 0.0
          %5926 = vmatprep.subr.mxu0 0.0
          %5927 = vmatpush1.msra.mxu0 0.0
          %5928 = vmatprep.subr.mxu0 0.0
          %5929 = vmatpush1.msra.mxu0 0.0
          %5930 = vmatprep.subr.mxu0 0.0
          %5931 = vmatpush1.msra.mxu0 0.0
          %5932 = vmatprep.subr.mxu0 0.0
          %5933 = vmatpush1.msra.mxu0 0.0
          %5934 = vmatprep.subr.mxu0 0.0
          %5935 = vmatpush1.msra.mxu0 0.0
          %5936 = vmatprep.mubr.f32.mxu0 0.0
          %5937 = vmatmul.mubr.f32.gmra.mrb[0].mxu0 %v5793
          %v5938 = vpop.f32.mrb[0].mxu0
          %v5939 = vadd.f32 0.0, %v5938
          %v5940 = vpop.f32.mrb[0].mxu0
          %v5941 = vadd.f32 0.0, %v5940
          %5942 = vmatprep.mubr.f32.mxu0 0.0
          %5943 = vmatmul.mubr.f32.gmra.mrb[0].mxu0 %v5794
          %v5944 = vpop.f32.mrb[0].mxu0
          %v5945 = vadd.f32 0.0, %v5944
          %v5946 = vpop.f32.mrb[0].mxu0
          %v5947 = vadd.f32 0.0, %v5946
          %5948 = vdwg.mxu0
          %5949 = vmatprep.subr.mxu0 0.0
          %5950 = vmatpush1.msra.mxu0 %v5547
          %5951 = vmatprep.subr.mxu0 0.0
          %5952 = vmatpush1.msra.mxu0 %v5552
          %5953 = vmatprep.subr.mxu0 0.0
          %5954 = vmatpush1.msra.mxu0 %v5557
          %5955 = vmatprep.subr.mxu0 0.0
          %5956 = vmatpush1.msra.mxu0 %v5562
          %5957 = vmatprep.subr.mxu0 0.0
          %5958 = vmatpush1.msra.mxu0 %v5567
          %5959 = vmatprep.subr.mxu0 0.0
          %5960 = vmatpush1.msra.mxu0 %v5572
          %5961 = vmatprep.subr.mxu0 0.0
          %5962 = vmatpush1.msra.mxu0 %v5577
          %5963 = vmatprep.subr.mxu0 0.0
          %5964 = vmatpush1.msra.mxu0 %v5582
          %5965 = vmatprep.subr.mxu0 0.0
          %5966 = vmatpush1.msra.mxu0 %v5587
          %5967 = vmatprep.subr.mxu0 0.0
          %5968 = vmatpush1.msra.mxu0 %v5592
          %5969 = vmatprep.subr.mxu0 0.0
          %5970 = vmatpush1.msra.mxu0 %v5597
          %5971 = vmatprep.subr.mxu0 0.0
          %5972 = vmatpush1.msra.mxu0 %v5602
          %5973 = vmatprep.subr.mxu0 0.0
          %5974 = vmatpush1.msra.mxu0 %v5607
          %5975 = vmatprep.subr.mxu0 0.0
          %5976 = vmatpush1.msra.mxu0 %v5612
          %5977 = vmatprep.subr.mxu0 0.0
          %5978 = vmatpush1.msra.mxu0 %v5617
          %5979 = vmatprep.subr.mxu0 0.0
          %5980 = vmatpush1.msra.mxu0 %v5622
          %5981 = vmatprep.subr.mxu0 0.0
          %5982 = vmatpush1.msra.mxu0 0.0
          %5983 = vmatprep.subr.mxu0 0.0
          %5984 = vmatpush1.msra.mxu0 0.0
          %5985 = vmatprep.subr.mxu0 0.0
          %5986 = vmatpush1.msra.mxu0 0.0
          %5987 = vmatprep.subr.mxu0 0.0
          %5988 = vmatpush1.msra.mxu0 0.0
          %5989 = vmatprep.subr.mxu0 0.0
          %5990 = vmatpush1.msra.mxu0 0.0
          %5991 = vmatprep.subr.mxu0 0.0
          %5992 = vmatpush1.msra.mxu0 0.0
          %5993 = vmatprep.subr.mxu0 0.0
          %5994 = vmatpush1.msra.mxu0 0.0
          %5995 = vmatprep.subr.mxu0 0.0
          %5996 = vmatpush1.msra.mxu0 0.0
          %5997 = vmatprep.subr.mxu0 0.0
          %5998 = vmatpush1.msra.mxu0 0.0
          %5999 = vmatprep.subr.mxu0 0.0
          %6000 = vmatpush1.msra.mxu0 0.0
          %6001 = vmatprep.subr.mxu0 0.0
          %6002 = vmatpush1.msra.mxu0 0.0
          %6003 = vmatprep.subr.mxu0 0.0
          %6004 = vmatpush1.msra.mxu0 0.0
          %6005 = vmatprep.subr.mxu0 0.0
          %6006 = vmatpush1.msra.mxu0 0.0
          %6007 = vmatprep.subr.mxu0 0.0
          %6008 = vmatpush1.msra.mxu0 0.0
          %6009 = vmatprep.subr.mxu0 0.0
          %6010 = vmatpush1.msra.mxu0 0.0
          %6011 = vmatprep.subr.mxu0 0.0
          %6012 = vmatpush1.msra.mxu0 0.0
          %6013 = vmatprep.mubr.f32.mxu0 0.0
          %6014 = vmatmul.mubr.f32.gmra.mrb[0].mxu0 %v5793
          %v6015 = vpop.f32.mrb[0].mxu0
          %v6016 = vadd.f32 0.0, %v6015
          %v6017 = vpop.f32.mrb[0].mxu0
          %6018 = vmatprep.mubr.f32.mxu0 0.0
          %6019 = vmatmul.mubr.f32.gmra.mrb[0].mxu0 %v5794
          %v6020 = vpop.f32.mrb[0].mxu0
          %v6021 = vadd.f32 0.0, %v6020
          %v6022 = vpop.f32.mrb[0].mxu0
          %6023 = vdwg.mxu0
          %v6024 = vld [vmem:[#allocation15] sm:$0xff]
          %v6025 = vld [vmem:[#allocation15 + $0x8] sm:$0xff]
          %v6026 = vld [vmem:[#allocation15 + $0x10] sm:$0xff]
          %v6027 = vld [vmem:[#allocation15 + $0x18] sm:$0xff]
          %v6028 = vld [vmem:[#allocation15 + $0x20] sm:$0xff]
          %v6029 = vld [vmem:[#allocation15 + $0x28] sm:$0xff]
          %v6030 = vld [vmem:[#allocation15 + $0x30] sm:$0xff]
          %v6031 = vld [vmem:[#allocation15 + $0x38] sm:$0xff]
          %v6032 = vld [vmem:[#allocation15 + $0x40] sm:$0xff]
          %v6033 = vld [vmem:[#allocation15 + $0x48] sm:$0xff]
          %v6034 = vld [vmem:[#allocation15 + $0x50] sm:$0xff]
          %v6035 = vld [vmem:[#allocation15 + $0x58] sm:$0xff]
          %v6036 = vld [vmem:[#allocation15 + $0x60] sm:$0xff]
          %v6037 = vld [vmem:[#allocation15 + $0x68] sm:$0xff]
          %v6038 = vld [vmem:[#allocation15 + $0x70] sm:$0xff]
          %v6039 = vld [vmem:[#allocation15 + $0x78] sm:$0xff]
          %v6040 = vld [vmem:[#allocation15 + $0x80] sm:$0xff]
          %v6041 = vld [vmem:[#allocation15 + $0x88] sm:$0xff]
          %v6042 = vld [vmem:[#allocation15 + $0x90] sm:$0xff]
          %v6043 = vld [vmem:[#allocation15 + $0x98] sm:$0xff]
          %v6044 = vld [vmem:[#allocation15 + $0xa0] sm:$0xff]
          %v6045 = vld [vmem:[#allocation15 + $0xa8] sm:$0xff]
          %v6046 = vld [vmem:[#allocation15 + $0xb0] sm:$0xff]
          %v6047 = vld [vmem:[#allocation15 + $0xb8] sm:$0xff]
          %v6048 = vld [vmem:[#allocation15 + $0xc0] sm:$0xff]
          %v6049 = vld [vmem:[#allocation15 + $0xc8] sm:$0xff]
          %v6050 = vld [vmem:[#allocation15 + $0xd0] sm:$0xff]
          %v6051 = vld [vmem:[#allocation15 + $0xd8] sm:$0xff]
          %v6052 = vld [vmem:[#allocation15 + $0xe0] sm:$0xff]
          %v6053 = vld [vmem:[#allocation15 + $0xe8] sm:$0xff]
          %v6054 = vld [vmem:[#allocation15 + $0xf0] sm:$0xff]
          %v6055 = vld [vmem:[#allocation15 + $0xf8] sm:$0xff]
          %v6056 = vld [vmem:[#allocation15 + $0x100] sm:$0xff]
          %v6057 = vld [vmem:[#allocation15 + $0x108] sm:$0xff]
          %v6058 = vld [vmem:[#allocation15 + $0x110] sm:$0xff]
          %v6059 = vld [vmem:[#allocation15 + $0x118] sm:$0xff]
          %v6060 = vld [vmem:[#allocation15 + $0x120] sm:$0xff]
          %v6061 = vld [vmem:[#allocation15 + $0x128] sm:$0xff]
          %v6062 = vld [vmem:[#allocation15 + $0x130] sm:$0xff]
          %v6063 = vld [vmem:[#allocation15 + $0x138] sm:$0xff]
          %v6064 = vld [vmem:[#allocation15 + $0x140] sm:$0xff]
          %v6065 = vld [vmem:[#allocation15 + $0x148] sm:$0xff]
          %v6066 = vld [vmem:[#allocation15 + $0x150] sm:$0xff]
          %v6067 = vld [vmem:[#allocation15 + $0x158] sm:$0xff]
          %v6068 = vld [vmem:[#allocation15 + $0x160] sm:$0xff]
          %v6069 = vld [vmem:[#allocation15 + $0x168] sm:$0xff]
          %v6070 = vld [vmem:[#allocation15 + $0x170] sm:$0xff]
          %v6071 = vld [vmem:[#allocation15 + $0x178] sm:$0xff]
          %v6072 = vld [vmem:[#allocation15 + $0x180] sm:$0xff]
          %v6073 = vld [vmem:[#allocation15 + $0x188] sm:$0xff]
          %v6074 = vld [vmem:[#allocation15 + $0x190] sm:$0xff]
          %v6075 = vld [vmem:[#allocation15 + $0x198] sm:$0xff]
          %v6076 = vld [vmem:[#allocation15 + $0x1a0] sm:$0xff]
          %v6077 = vld [vmem:[#allocation15 + $0x1a8] sm:$0xff]
          %v6078 = vld [vmem:[#allocation15 + $0x1b0] sm:$0xff]
          %v6079 = vld [vmem:[#allocation15 + $0x1b8] sm:$0xff]
          %v6080 = vld [vmem:[#allocation15 + $0x1c0] sm:$0xff]
          %v6081 = vld [vmem:[#allocation15 + $0x1c8] sm:$0xff]
          %v6082 = vld [vmem:[#allocation15 + $0x1d0] sm:$0xff]
          %v6083 = vld [vmem:[#allocation15 + $0x1d8] sm:$0xff]
          %v6084 = vld [vmem:[#allocation15 + $0x1e0] sm:$0xff]
          %v6085 = vld [vmem:[#allocation15 + $0x1e8] sm:$0xff]
          %v6086 = vld [vmem:[#allocation15 + $0x1f0] sm:$0xff]
          %v6087 = vld [vmem:[#allocation15 + $0x1f8] sm:$0xff]
          %v6088 = vld [vmem:[#allocation15 + $0x200] sm:$0xff]
          %v6089 = vld [vmem:[#allocation15 + $0x208] sm:$0xff]
          %v6090 = vld [vmem:[#allocation15 + $0x210] sm:$0xff]
          %v6091 = vld [vmem:[#allocation15 + $0x218] sm:$0xff]
          %v6092 = vld [vmem:[#allocation15 + $0x220] sm:$0xff]
          %v6093 = vld [vmem:[#allocation15 + $0x228] sm:$0xff]
          %v6094 = vld [vmem:[#allocation15 + $0x230] sm:$0xff]
          %v6095 = vld [vmem:[#allocation15 + $0x238] sm:$0xff]
          %v6096 = vld [vmem:[#allocation15 + $0x240] sm:$0xff]
          %v6097 = vld [vmem:[#allocation15 + $0x248] sm:$0xff]
          %v6098 = vld [vmem:[#allocation15 + $0x250] sm:$0xff]
          %v6099 = vld [vmem:[#allocation15 + $0x258] sm:$0xff]
          %v6100 = vld [vmem:[#allocation15 + $0x260] sm:$0xff]
          %v6101 = vld [vmem:[#allocation15 + $0x268] sm:$0xff]
          %v6102 = vld [vmem:[#allocation15 + $0x270] sm:$0xff]
          %v6103 = vld [vmem:[#allocation15 + $0x278] sm:$0xff]
          %v6104 = vunpack.c.l.bf16 %v6024
          %v6105 = vunpack.c.h.bf16 %v6024
          %v6106 = vunpack.c.l.bf16 %v6025
          %v6107 = vunpack.c.h.bf16 %v6025
          %v6108 = vunpack.c.l.bf16 %v6026
          %v6109 = vunpack.c.h.bf16 %v6026
          %v6110 = vunpack.c.l.bf16 %v6027
          %v6111 = vunpack.c.h.bf16 %v6027
          %v6112 = vunpack.c.l.bf16 %v6028
          %v6113 = vunpack.c.h.bf16 %v6028
          %v6114 = vunpack.c.l.bf16 %v6029
          %v6115 = vunpack.c.h.bf16 %v6029
          %v6116 = vunpack.c.l.bf16 %v6030
          %v6117 = vunpack.c.h.bf16 %v6030
          %v6118 = vunpack.c.l.bf16 %v6031
          %v6119 = vunpack.c.h.bf16 %v6031
          %v6120 = vunpack.c.l.bf16 %v6032
          %v6121 = vunpack.c.h.bf16 %v6032
          %v6122 = vunpack.c.l.bf16 %v6033
          %v6123 = vunpack.c.h.bf16 %v6033
          %v6124 = vunpack.c.l.bf16 %v6034
          %v6125 = vunpack.c.h.bf16 %v6034
          %v6126 = vunpack.c.l.bf16 %v6035
          %v6127 = vunpack.c.h.bf16 %v6035
          %v6128 = vunpack.c.l.bf16 %v6036
          %v6129 = vunpack.c.h.bf16 %v6036
          %v6130 = vunpack.c.l.bf16 %v6037
          %v6131 = vunpack.c.h.bf16 %v6037
          %v6132 = vunpack.c.l.bf16 %v6038
          %v6133 = vunpack.c.h.bf16 %v6038
          %v6134 = vunpack.c.l.bf16 %v6039
          %v6135 = vunpack.c.h.bf16 %v6039
          %v6136 = vunpack.c.l.bf16 %v6040
          %v6137 = vunpack.c.h.bf16 %v6040
          %v6138 = vunpack.c.l.bf16 %v6041
          %v6139 = vunpack.c.h.bf16 %v6041
          %v6140 = vunpack.c.l.bf16 %v6042
          %v6141 = vunpack.c.h.bf16 %v6042
          %v6142 = vunpack.c.l.bf16 %v6043
          %v6143 = vunpack.c.h.bf16 %v6043
          %v6144 = vunpack.c.l.bf16 %v6044
          %v6145 = vunpack.c.h.bf16 %v6044
          %v6146 = vunpack.c.l.bf16 %v6045
          %v6147 = vunpack.c.h.bf16 %v6045
          %v6148 = vunpack.c.l.bf16 %v6046
          %v6149 = vunpack.c.h.bf16 %v6046
          %v6150 = vunpack.c.l.bf16 %v6047
          %v6151 = vunpack.c.h.bf16 %v6047
          %v6152 = vunpack.c.l.bf16 %v6048
          %v6153 = vunpack.c.h.bf16 %v6048
          %v6154 = vunpack.c.l.bf16 %v6049
          %v6155 = vunpack.c.h.bf16 %v6049
          %v6156 = vunpack.c.l.bf16 %v6050
          %v6157 = vunpack.c.h.bf16 %v6050
          %v6158 = vunpack.c.l.bf16 %v6051
          %v6159 = vunpack.c.h.bf16 %v6051
          %v6160 = vunpack.c.l.bf16 %v6052
          %v6161 = vunpack.c.h.bf16 %v6052
          %v6162 = vunpack.c.l.bf16 %v6053
          %v6163 = vunpack.c.h.bf16 %v6053
          %v6164 = vunpack.c.l.bf16 %v6054
          %v6165 = vunpack.c.h.bf16 %v6054
          %v6166 = vunpack.c.l.bf16 %v6055
          %v6167 = vunpack.c.h.bf16 %v6055
          %v6168 = vunpack.c.l.bf16 %v6056
          %v6169 = vunpack.c.h.bf16 %v6056
          %v6170 = vunpack.c.l.bf16 %v6057
          %v6171 = vunpack.c.h.bf16 %v6057
          %v6172 = vunpack.c.l.bf16 %v6058
          %v6173 = vunpack.c.h.bf16 %v6058
          %v6174 = vunpack.c.l.bf16 %v6059
          %v6175 = vunpack.c.h.bf16 %v6059
          %v6176 = vunpack.c.l.bf16 %v6060
          %v6177 = vunpack.c.h.bf16 %v6060
          %v6178 = vunpack.c.l.bf16 %v6061
          %v6179 = vunpack.c.h.bf16 %v6061
          %v6180 = vunpack.c.l.bf16 %v6062
          %v6181 = vunpack.c.h.bf16 %v6062
          %v6182 = vunpack.c.l.bf16 %v6063
          %v6183 = vunpack.c.h.bf16 %v6063
          %v6184 = vunpack.c.l.bf16 %v6064
          %v6185 = vunpack.c.h.bf16 %v6064
          %v6186 = vunpack.c.l.bf16 %v6065
          %v6187 = vunpack.c.h.bf16 %v6065
          %v6188 = vunpack.c.l.bf16 %v6066
          %v6189 = vunpack.c.h.bf16 %v6066
          %v6190 = vunpack.c.l.bf16 %v6067
          %v6191 = vunpack.c.h.bf16 %v6067
          %v6192 = vunpack.c.l.bf16 %v6068
          %v6193 = vunpack.c.h.bf16 %v6068
          %v6194 = vunpack.c.l.bf16 %v6069
          %v6195 = vunpack.c.h.bf16 %v6069
          %v6196 = vunpack.c.l.bf16 %v6070
          %v6197 = vunpack.c.h.bf16 %v6070
          %v6198 = vunpack.c.l.bf16 %v6071
          %v6199 = vunpack.c.h.bf16 %v6071
          %v6200 = vunpack.c.l.bf16 %v6072
          %v6201 = vunpack.c.h.bf16 %v6072
          %v6202 = vunpack.c.l.bf16 %v6073
          %v6203 = vunpack.c.h.bf16 %v6073
          %v6204 = vunpack.c.l.bf16 %v6074
          %v6205 = vunpack.c.h.bf16 %v6074
          %v6206 = vunpack.c.l.bf16 %v6075
          %v6207 = vunpack.c.h.bf16 %v6075
          %v6208 = vunpack.c.l.bf16 %v6076
          %v6209 = vunpack.c.h.bf16 %v6076
          %v6210 = vunpack.c.l.bf16 %v6077
          %v6211 = vunpack.c.h.bf16 %v6077
          %v6212 = vunpack.c.l.bf16 %v6078
          %v6213 = vunpack.c.h.bf16 %v6078
          %v6214 = vunpack.c.l.bf16 %v6079
          %v6215 = vunpack.c.h.bf16 %v6079
          %v6216 = vunpack.c.l.bf16 %v6080
          %v6217 = vunpack.c.h.bf16 %v6080
          %v6218 = vunpack.c.l.bf16 %v6081
          %v6219 = vunpack.c.h.bf16 %v6081
          %v6220 = vunpack.c.l.bf16 %v6082
          %v6221 = vunpack.c.h.bf16 %v6082
          %v6222 = vunpack.c.l.bf16 %v6083
          %v6223 = vunpack.c.h.bf16 %v6083
          %v6224 = vunpack.c.l.bf16 %v6084
          %v6225 = vunpack.c.h.bf16 %v6084
          %v6226 = vunpack.c.l.bf16 %v6085
          %v6227 = vunpack.c.h.bf16 %v6085
          %v6228 = vunpack.c.l.bf16 %v6086
          %v6229 = vunpack.c.h.bf16 %v6086
          %v6230 = vunpack.c.l.bf16 %v6087
          %v6231 = vunpack.c.h.bf16 %v6087
          %v6232 = vunpack.c.l.bf16 %v6088
          %v6233 = vunpack.c.h.bf16 %v6088
          %v6234 = vunpack.c.l.bf16 %v6089
          %v6235 = vunpack.c.h.bf16 %v6089
          %v6236 = vunpack.c.l.bf16 %v6090
          %v6237 = vunpack.c.h.bf16 %v6090
          %v6238 = vunpack.c.l.bf16 %v6091
          %v6239 = vunpack.c.h.bf16 %v6091
          %v6240 = vunpack.c.l.bf16 %v6092
          %v6241 = vunpack.c.h.bf16 %v6092
          %v6242 = vunpack.c.l.bf16 %v6093
          %v6243 = vunpack.c.h.bf16 %v6093
          %v6244 = vunpack.c.l.bf16 %v6094
          %v6245 = vunpack.c.h.bf16 %v6094
          %v6246 = vunpack.c.l.bf16 %v6095
          %v6247 = vunpack.c.h.bf16 %v6095
          %v6248 = vunpack.c.l.bf16 %v6096
          %v6249 = vunpack.c.h.bf16 %v6096
          %v6250 = vunpack.c.l.bf16 %v6097
          %v6251 = vunpack.c.h.bf16 %v6097
          %v6252 = vunpack.c.l.bf16 %v6098
          %v6253 = vunpack.c.h.bf16 %v6098
          %v6254 = vunpack.c.l.bf16 %v6099
          %v6255 = vunpack.c.h.bf16 %v6099
          %v6256 = vunpack.c.l.bf16 %v6100
          %v6257 = vunpack.c.h.bf16 %v6100
          %v6258 = vunpack.c.l.bf16 %v6101
          %v6259 = vunpack.c.h.bf16 %v6101
          %v6260 = vunpack.c.l.bf16 %v6102
          %v6261 = vunpack.c.h.bf16 %v6102
          %v6262 = vunpack.c.l.bf16 %v6103
          %v6263 = vunpack.c.h.bf16 %v6103
          %v6264 = vld [vmem:[#allocation17] sm:$0x3]
          %v6266 = vlaneseq
          %v6267 = vshrl.u32 %v6266, 7
          %v6268 = vsub.s32 0, %v6267
          %v6269 = vrot.slane %v6264, %v6268
          %v6270 = vlaneseq
          %v6271 = vshrl.u32 %v6270, 7
          %v6272 = vsub.s32 1, %v6271
          %v6273 = vrot.slane %v6264, %v6272
          %6276 = vmatprep.subr.mxu0 %v6105
          %6277 = vmatpush1.msra.mxu0 %v6104
          %6278 = vmatprep.subr.mxu0 %v6107
          %6279 = vmatpush1.msra.mxu0 %v6106
          %6280 = vmatprep.subr.mxu0 %v6109
          %6281 = vmatpush1.msra.mxu0 %v6108
          %6282 = vmatprep.subr.mxu0 %v6111
          %6283 = vmatpush1.msra.mxu0 %v6110
          %6284 = vmatprep.subr.mxu0 %v6113
          %6285 = vmatpush1.msra.mxu0 %v6112
          %6286 = vmatprep.subr.mxu0 %v6115
          %6287 = vmatpush1.msra.mxu0 %v6114
          %6288 = vmatprep.subr.mxu0 %v6117
          %6289 = vmatpush1.msra.mxu0 %v6116
          %6290 = vmatprep.subr.mxu0 %v6119
          %6291 = vmatpush1.msra.mxu0 %v6118
          %6292 = vmatprep.subr.mxu0 %v6121
          %6293 = vmatpush1.msra.mxu0 %v6120
          %6294 = vmatprep.subr.mxu0 %v6123
          %6295 = vmatpush1.msra.mxu0 %v6122
          %6296 = vmatprep.subr.mxu0 %v6125
          %6297 = vmatpush1.msra.mxu0 %v6124
          %6298 = vmatprep.subr.mxu0 %v6127
          %6299 = vmatpush1.msra.mxu0 %v6126
          %6300 = vmatprep.subr.mxu0 %v6129
          %6301 = vmatpush1.msra.mxu0 %v6128
          %6302 = vmatprep.subr.mxu0 %v6131
          %6303 = vmatpush1.msra.mxu0 %v6130
          %6304 = vmatprep.subr.mxu0 %v6133
          %6305 = vmatpush1.msra.mxu0 %v6132
          %6306 = vmatprep.subr.mxu0 %v6135
          %6307 = vmatpush1.msra.mxu0 %v6134
          %6308 = vmatprep.subr.mxu0 %v6137
          %6309 = vmatpush1.msra.mxu0 %v6136
          %6310 = vmatprep.subr.mxu0 %v6139
          %6311 = vmatpush1.msra.mxu0 %v6138
          %6312 = vmatprep.subr.mxu0 %v6141
          %6313 = vmatpush1.msra.mxu0 %v6140
          %6314 = vmatprep.subr.mxu0 %v6143
          %6315 = vmatpush1.msra.mxu0 %v6142
          %6316 = vmatprep.subr.mxu0 %v6145
          %6317 = vmatpush1.msra.mxu0 %v6144
          %6318 = vmatprep.subr.mxu0 %v6147
          %6319 = vmatpush1.msra.mxu0 %v6146
          %6320 = vmatprep.subr.mxu0 %v6149
          %6321 = vmatpush1.msra.mxu0 %v6148
          %6322 = vmatprep.subr.mxu0 %v6151
          %6323 = vmatpush1.msra.mxu0 %v6150
          %6324 = vmatprep.subr.mxu0 %v6153
          %6325 = vmatpush1.msra.mxu0 %v6152
          %6326 = vmatprep.subr.mxu0 %v6155
          %6327 = vmatpush1.msra.mxu0 %v6154
          %6328 = vmatprep.subr.mxu0 %v6157
          %6329 = vmatpush1.msra.mxu0 %v6156
          %6330 = vmatprep.subr.mxu0 %v6159
          %6331 = vmatpush1.msra.mxu0 %v6158
          %6332 = vmatprep.subr.mxu0 %v6161
          %6333 = vmatpush1.msra.mxu0 %v6160
          %6334 = vmatprep.subr.mxu0 %v6163
          %6335 = vmatpush1.msra.mxu0 %v6162
          %6336 = vmatprep.subr.mxu0 %v6165
          %6337 = vmatpush1.msra.mxu0 %v6164
          %6338 = vmatprep.subr.mxu0 %v6167
          %6339 = vmatpush1.msra.mxu0 %v6166
          %6340 = vmatprep.mubr.f32.mxu0 %v5864
          %6341 = vmatmul.mubr.f32.gmra.mrb[0].mxu0 %v5862
          %v6342 = vpop.f32.mrb[0].mxu0
          %v6343 = vadd.f32 %v6269, %v6342
          %v6344 = vpop.f32.mrb[0].mxu0
          %v6345 = vadd.f32 %v6273, %v6344
          %6346 = vmatprep.mubr.f32.mxu0 %v5870
          %6347 = vmatmul.mubr.f32.gmra.mrb[0].mxu0 %v5868
          %v6348 = vpop.f32.mrb[0].mxu0
          %v6349 = vadd.f32 %v6269, %v6348
          %v6350 = vpop.f32.mrb[0].mxu0
          %v6351 = vadd.f32 %v6273, %v6350
          %6352 = vdwg.mxu0
          %6353 = vmatprep.subr.mxu0 %v6169
          %6354 = vmatpush1.msra.mxu0 %v6168
          %6355 = vmatprep.subr.mxu0 %v6171
          %6356 = vmatpush1.msra.mxu0 %v6170
          %6357 = vmatprep.subr.mxu0 %v6173
          %6358 = vmatpush1.msra.mxu0 %v6172
          %6359 = vmatprep.subr.mxu0 %v6175
          %6360 = vmatpush1.msra.mxu0 %v6174
          %6361 = vmatprep.subr.mxu0 %v6177
          %6362 = vmatpush1.msra.mxu0 %v6176
          %6363 = vmatprep.subr.mxu0 %v6179
          %6364 = vmatpush1.msra.mxu0 %v6178
          %6365 = vmatprep.subr.mxu0 %v6181
          %6366 = vmatpush1.msra.mxu0 %v6180
          %6367 = vmatprep.subr.mxu0 %v6183
          %6368 = vmatpush1.msra.mxu0 %v6182
          %6369 = vmatprep.subr.mxu0 %v6185
          %6370 = vmatpush1.msra.mxu0 %v6184
          %6371 = vmatprep.subr.mxu0 %v6187
          %6372 = vmatpush1.msra.mxu0 %v6186
          %6373 = vmatprep.subr.mxu0 %v6189
          %6374 = vmatpush1.msra.mxu0 %v6188
          %6375 = vmatprep.subr.mxu0 %v6191
          %6376 = vmatpush1.msra.mxu0 %v6190
          %6377 = vmatprep.subr.mxu0 %v6193
          %6378 = vmatpush1.msra.mxu0 %v6192
          %6379 = vmatprep.subr.mxu0 %v6195
          %6380 = vmatpush1.msra.mxu0 %v6194
          %6381 = vmatprep.subr.mxu0 %v6197
          %6382 = vmatpush1.msra.mxu0 %v6196
          %6383 = vmatprep.subr.mxu0 %v6199
          %6384 = vmatpush1.msra.mxu0 %v6198
          %6385 = vmatprep.subr.mxu0 %v6201
          %6386 = vmatpush1.msra.mxu0 %v6200
          %6387 = vmatprep.subr.mxu0 %v6203
          %6388 = vmatpush1.msra.mxu0 %v6202
          %6389 = vmatprep.subr.mxu0 %v6205
          %6390 = vmatpush1.msra.mxu0 %v6204
          %6391 = vmatprep.subr.mxu0 %v6207
          %6392 = vmatpush1.msra.mxu0 %v6206
          %6393 = vmatprep.subr.mxu0 %v6209
          %6394 = vmatpush1.msra.mxu0 %v6208
          %6395 = vmatprep.subr.mxu0 %v6211
          %6396 = vmatpush1.msra.mxu0 %v6210
          %6397 = vmatprep.subr.mxu0 %v6213
          %6398 = vmatpush1.msra.mxu0 %v6212
          %6399 = vmatprep.subr.mxu0 %v6215
          %6400 = vmatpush1.msra.mxu0 %v6214
          %6401 = vmatprep.subr.mxu0 %v6217
          %6402 = vmatpush1.msra.mxu0 %v6216
          %6403 = vmatprep.subr.mxu0 %v6219
          %6404 = vmatpush1.msra.mxu0 %v6218
          %6405 = vmatprep.subr.mxu0 %v6221
          %6406 = vmatpush1.msra.mxu0 %v6220
          %6407 = vmatprep.subr.mxu0 %v6223
          %6408 = vmatpush1.msra.mxu0 %v6222
          %6409 = vmatprep.subr.mxu0 %v6225
          %6410 = vmatpush1.msra.mxu0 %v6224
          %6411 = vmatprep.subr.mxu0 %v6227
          %6412 = vmatpush1.msra.mxu0 %v6226
          %6413 = vmatprep.subr.mxu0 %v6229
          %6414 = vmatpush1.msra.mxu0 %v6228
          %6415 = vmatprep.subr.mxu0 %v6231
          %6416 = vmatpush1.msra.mxu0 %v6230
          %6417 = vmatprep.mubr.f32.mxu0 %v5941
          %6418 = vmatmul.mubr.f32.gmra.mrb[0].mxu0 %v5939
          %v6419 = vpop.f32.mrb[0].mxu0
          %v6420 = vadd.f32 %v6343, %v6419
          %v6421 = vpop.f32.mrb[0].mxu0
          %v6422 = vadd.f32 %v6345, %v6421
          %6423 = vmatprep.mubr.f32.mxu0 %v5947
          %6424 = vmatmul.mubr.f32.gmra.mrb[0].mxu0 %v5945
          %v6425 = vpop.f32.mrb[0].mxu0
          %v6426 = vadd.f32 %v6349, %v6425
          %v6427 = vpop.f32.mrb[0].mxu0
          %v6428 = vadd.f32 %v6351, %v6427
          %6429 = vdwg.mxu0
          %6430 = vmatprep.subr.mxu0 %v6233
          %6431 = vmatpush1.msra.mxu0 %v6232
          %6432 = vmatprep.subr.mxu0 %v6235
          %6433 = vmatpush1.msra.mxu0 %v6234
          %6434 = vmatprep.subr.mxu0 %v6237
          %6435 = vmatpush1.msra.mxu0 %v6236
          %6436 = vmatprep.subr.mxu0 %v6239
          %6437 = vmatpush1.msra.mxu0 %v6238
          %6438 = vmatprep.subr.mxu0 %v6241
          %6439 = vmatpush1.msra.mxu0 %v6240
          %6440 = vmatprep.subr.mxu0 %v6243
          %6441 = vmatpush1.msra.mxu0 %v6242
          %6442 = vmatprep.subr.mxu0 %v6245
          %6443 = vmatpush1.msra.mxu0 %v6244
          %6444 = vmatprep.subr.mxu0 %v6247
          %6445 = vmatpush1.msra.mxu0 %v6246
          %6446 = vmatprep.subr.mxu0 %v6249
          %6447 = vmatpush1.msra.mxu0 %v6248
          %6448 = vmatprep.subr.mxu0 %v6251
          %6449 = vmatpush1.msra.mxu0 %v6250
          %6450 = vmatprep.subr.mxu0 %v6253
          %6451 = vmatpush1.msra.mxu0 %v6252
          %6452 = vmatprep.subr.mxu0 %v6255
          %6453 = vmatpush1.msra.mxu0 %v6254
          %6454 = vmatprep.subr.mxu0 %v6257
          %6455 = vmatpush1.msra.mxu0 %v6256
          %6456 = vmatprep.subr.mxu0 %v6259
          %6457 = vmatpush1.msra.mxu0 %v6258
          %6458 = vmatprep.subr.mxu0 %v6261
          %6459 = vmatpush1.msra.mxu0 %v6260
          %6460 = vmatprep.subr.mxu0 %v6263
          %6461 = vmatpush1.msra.mxu0 %v6262
          %6462 = vmatprep.subr.mxu0 0.0
          %6463 = vmatpush1.msra.mxu0 0.0
          %6464 = vmatprep.subr.mxu0 0.0
          %6465 = vmatpush1.msra.mxu0 0.0
          %6466 = vmatprep.subr.mxu0 0.0
          %6467 = vmatpush1.msra.mxu0 0.0
          %6468 = vmatprep.subr.mxu0 0.0
          %6469 = vmatpush1.msra.mxu0 0.0
          %6470 = vmatprep.subr.mxu0 0.0
          %6471 = vmatpush1.msra.mxu0 0.0
          %6472 = vmatprep.subr.mxu0 0.0
          %6473 = vmatpush1.msra.mxu0 0.0
          %6474 = vmatprep.subr.mxu0 0.0
          %6475 = vmatpush1.msra.mxu0 0.0
          %6476 = vmatprep.subr.mxu0 0.0
          %6477 = vmatpush1.msra.mxu0 0.0
          %6478 = vmatprep.subr.mxu0 0.0
          %6479 = vmatpush1.msra.mxu0 0.0
          %6480 = vmatprep.subr.mxu0 0.0
          %6481 = vmatpush1.msra.mxu0 0.0
          %6482 = vmatprep.subr.mxu0 0.0
          %6483 = vmatpush1.msra.mxu0 0.0
          %6484 = vmatprep.subr.mxu0 0.0
          %6485 = vmatpush1.msra.mxu0 0.0
          %6486 = vmatprep.subr.mxu0 0.0
          %6487 = vmatpush1.msra.mxu0 0.0
          %6488 = vmatprep.subr.mxu0 0.0
          %6489 = vmatpush1.msra.mxu0 0.0
          %6490 = vmatprep.subr.mxu0 0.0
          %6491 = vmatpush1.msra.mxu0 0.0
          %6492 = vmatprep.subr.mxu0 0.0
          %6493 = vmatpush1.msra.mxu0 0.0
          %6494 = vmatprep.mubr.f32.mxu0 0.0
          %6495 = vmatmul.mubr.f32.gmra.mrb[0].mxu0 %v6016
          %v6496 = vpop.f32.mrb[0].mxu0
          %v6497 = vadd.f32 %v6420, %v6496
          %v6498 = vpop.f32.mrb[0].mxu0
          %v6499 = vadd.f32 %v6422, %v6498
          %6500 = vmatprep.mubr.f32.mxu0 0.0
          %6501 = vmatmul.mubr.f32.gmra.mrb[0].mxu0 %v6021
          %v6502 = vpop.f32.mrb[0].mxu0
          %v6503 = vadd.f32 %v6426, %v6502
          %v6504 = vpop.f32.mrb[0].mxu0
          %v6505 = vadd.f32 %v6428, %v6504
          %6506 = vdwg.mxu0
          %v6507 = vmax.f32 %v6497, 0.0
          %v6508 = vmax.f32 %v6499, 0.0
          %v6509 = vmax.f32 %v6503, 0.0
          %v6510 = vmax.f32 %v6505, 0.0
          %v6511 = vld [vmem:[#allocation18] sm:$0xff]
          %v6512 = vld [vmem:[#allocation18 + $0x8] sm:$0xff]
          %v6513 = vld [vmem:[#allocation18 + $0x10] sm:$0xff]
          %v6514 = vld [vmem:[#allocation18 + $0x18] sm:$0xff]
          %v6515 = vld [vmem:[#allocation18 + $0x20] sm:$0xff]
          %v6516 = vld [vmem:[#allocation18 + $0x28] sm:$0xff]
          %v6517 = vld [vmem:[#allocation18 + $0x30] sm:$0xff]
          %v6518 = vld [vmem:[#allocation18 + $0x38] sm:$0xff]
          %v6519 = vld [vmem:[#allocation18 + $0x40] sm:$0xff]
          %v6520 = vld [vmem:[#allocation18 + $0x48] sm:$0xff]
          %v6521 = vld [vmem:[#allocation18 + $0x50] sm:$0xff]
          %v6522 = vld [vmem:[#allocation18 + $0x58] sm:$0xff]
          %v6523 = vld [vmem:[#allocation18 + $0x60] sm:$0xff]
          %v6524 = vld [vmem:[#allocation18 + $0x68] sm:$0xff]
          %v6525 = vld [vmem:[#allocation18 + $0x70] sm:$0xff]
          %v6526 = vld [vmem:[#allocation18 + $0x78] sm:$0xff]
          %v6527 = vld [vmem:[#allocation18 + $0x80] sm:$0xff]
          %v6528 = vld [vmem:[#allocation18 + $0x88] sm:$0xff]
          %v6529 = vld [vmem:[#allocation18 + $0x90] sm:$0xff]
          %v6530 = vld [vmem:[#allocation18 + $0x98] sm:$0xff]
          %v6531 = vld [vmem:[#allocation18 + $0xa0] sm:$0xff]
          %v6532 = vld [vmem:[#allocation18 + $0xa8] sm:$0xff]
          %v6533 = vld [vmem:[#allocation18 + $0xb0] sm:$0xff]
          %v6534 = vld [vmem:[#allocation18 + $0xb8] sm:$0xff]
          %v6535 = vld [vmem:[#allocation18 + $0xc0] sm:$0xff]
          %v6536 = vld [vmem:[#allocation18 + $0xc8] sm:$0xff]
          %v6537 = vld [vmem:[#allocation18 + $0xd0] sm:$0xff]
          %v6538 = vld [vmem:[#allocation18 + $0xd8] sm:$0xff]
          %v6539 = vld [vmem:[#allocation18 + $0xe0] sm:$0xff]
          %v6540 = vld [vmem:[#allocation18 + $0xe8] sm:$0xff]
          %v6541 = vld [vmem:[#allocation18 + $0xf0] sm:$0xff]
          %v6542 = vld [vmem:[#allocation18 + $0xf8] sm:$0xff]
          %v6543 = vunpack.c.l.bf16 %v6511
          %v6544 = vunpack.c.h.bf16 %v6511
          %v6545 = vunpack.c.l.bf16 %v6512
          %v6546 = vunpack.c.h.bf16 %v6512
          %v6547 = vunpack.c.l.bf16 %v6513
          %v6548 = vunpack.c.h.bf16 %v6513
          %v6549 = vunpack.c.l.bf16 %v6514
          %v6550 = vunpack.c.h.bf16 %v6514
          %v6551 = vunpack.c.l.bf16 %v6515
          %v6552 = vunpack.c.h.bf16 %v6515
          %v6553 = vunpack.c.l.bf16 %v6516
          %v6554 = vunpack.c.h.bf16 %v6516
          %v6555 = vunpack.c.l.bf16 %v6517
          %v6556 = vunpack.c.h.bf16 %v6517
          %v6557 = vunpack.c.l.bf16 %v6518
          %v6558 = vunpack.c.h.bf16 %v6518
          %v6559 = vunpack.c.l.bf16 %v6519
          %v6560 = vunpack.c.h.bf16 %v6519
          %v6561 = vunpack.c.l.bf16 %v6520
          %v6562 = vunpack.c.h.bf16 %v6520
          %v6563 = vunpack.c.l.bf16 %v6521
          %v6564 = vunpack.c.h.bf16 %v6521
          %v6565 = vunpack.c.l.bf16 %v6522
          %v6566 = vunpack.c.h.bf16 %v6522
          %v6567 = vunpack.c.l.bf16 %v6523
          %v6568 = vunpack.c.h.bf16 %v6523
          %v6569 = vunpack.c.l.bf16 %v6524
          %v6570 = vunpack.c.h.bf16 %v6524
          %v6571 = vunpack.c.l.bf16 %v6525
          %v6572 = vunpack.c.h.bf16 %v6525
          %v6573 = vunpack.c.l.bf16 %v6526
          %v6574 = vunpack.c.h.bf16 %v6526
          %v6575 = vunpack.c.l.bf16 %v6527
          %v6576 = vunpack.c.h.bf16 %v6527
          %v6577 = vunpack.c.l.bf16 %v6528
          %v6578 = vunpack.c.h.bf16 %v6528
          %v6579 = vunpack.c.l.bf16 %v6529
          %v6580 = vunpack.c.h.bf16 %v6529
          %v6581 = vunpack.c.l.bf16 %v6530
          %v6582 = vunpack.c.h.bf16 %v6530
          %v6583 = vunpack.c.l.bf16 %v6531
          %v6584 = vunpack.c.h.bf16 %v6531
          %v6585 = vunpack.c.l.bf16 %v6532
          %v6586 = vunpack.c.h.bf16 %v6532
          %v6587 = vunpack.c.l.bf16 %v6533
          %v6588 = vunpack.c.h.bf16 %v6533
          %v6589 = vunpack.c.l.bf16 %v6534
          %v6590 = vunpack.c.h.bf16 %v6534
          %v6591 = vunpack.c.l.bf16 %v6535
          %v6592 = vunpack.c.h.bf16 %v6535
          %v6593 = vunpack.c.l.bf16 %v6536
          %v6594 = vunpack.c.h.bf16 %v6536
          %v6595 = vunpack.c.l.bf16 %v6537
          %v6596 = vunpack.c.h.bf16 %v6537
          %v6597 = vunpack.c.l.bf16 %v6538
          %v6598 = vunpack.c.h.bf16 %v6538
          %v6599 = vunpack.c.l.bf16 %v6539
          %v6600 = vunpack.c.h.bf16 %v6539
          %v6601 = vunpack.c.l.bf16 %v6540
          %v6602 = vunpack.c.h.bf16 %v6540
          %v6603 = vunpack.c.l.bf16 %v6541
          %v6604 = vunpack.c.h.bf16 %v6541
          %v6605 = vunpack.c.l.bf16 %v6542
          %v6606 = vunpack.c.h.bf16 %v6542
          %v6607 = vld [vmem:[#allocation20] sm:$0x3]
          %v6609 = vlaneseq
          %v6610 = vshrl.u32 %v6609, 7
          %v6611 = vsub.s32 0, %v6610
          %v6612 = vrot.slane %v6607, %v6611
          %v6613 = vlaneseq
          %v6614 = vshrl.u32 %v6613, 7
          %v6615 = vsub.s32 1, %v6614
          %v6616 = vrot.slane %v6607, %v6615
          %6619 = vmatprep.subr.mxu0 %v6544
          %6620 = vmatpush1.msra.mxu0 %v6543
          %6621 = vmatprep.subr.mxu0 %v6546
          %6622 = vmatpush1.msra.mxu0 %v6545
          %6623 = vmatprep.subr.mxu0 %v6548
          %6624 = vmatpush1.msra.mxu0 %v6547
          %6625 = vmatprep.subr.mxu0 %v6550
          %6626 = vmatpush1.msra.mxu0 %v6549
          %6627 = vmatprep.subr.mxu0 %v6552
          %6628 = vmatpush1.msra.mxu0 %v6551
          %6629 = vmatprep.subr.mxu0 %v6554
          %6630 = vmatpush1.msra.mxu0 %v6553
          %6631 = vmatprep.subr.mxu0 %v6556
          %6632 = vmatpush1.msra.mxu0 %v6555
          %6633 = vmatprep.subr.mxu0 %v6558
          %6634 = vmatpush1.msra.mxu0 %v6557
          %6635 = vmatprep.subr.mxu0 %v6560
          %6636 = vmatpush1.msra.mxu0 %v6559
          %6637 = vmatprep.subr.mxu0 %v6562
          %6638 = vmatpush1.msra.mxu0 %v6561
          %6639 = vmatprep.subr.mxu0 %v6564
          %6640 = vmatpush1.msra.mxu0 %v6563
          %6641 = vmatprep.subr.mxu0 %v6566
          %6642 = vmatpush1.msra.mxu0 %v6565
          %6643 = vmatprep.subr.mxu0 %v6568
          %6644 = vmatpush1.msra.mxu0 %v6567
          %6645 = vmatprep.subr.mxu0 %v6570
          %6646 = vmatpush1.msra.mxu0 %v6569
          %6647 = vmatprep.subr.mxu0 %v6572
          %6648 = vmatpush1.msra.mxu0 %v6571
          %6649 = vmatprep.subr.mxu0 %v6574
          %6650 = vmatpush1.msra.mxu0 %v6573
          %6651 = vmatprep.subr.mxu0 %v6576
          %6652 = vmatpush1.msra.mxu0 %v6575
          %6653 = vmatprep.subr.mxu0 %v6578
          %6654 = vmatpush1.msra.mxu0 %v6577
          %6655 = vmatprep.subr.mxu0 %v6580
          %6656 = vmatpush1.msra.mxu0 %v6579
          %6657 = vmatprep.subr.mxu0 %v6582
          %6658 = vmatpush1.msra.mxu0 %v6581
          %6659 = vmatprep.subr.mxu0 %v6584
          %6660 = vmatpush1.msra.mxu0 %v6583
          %6661 = vmatprep.subr.mxu0 %v6586
          %6662 = vmatpush1.msra.mxu0 %v6585
          %6663 = vmatprep.subr.mxu0 %v6588
          %6664 = vmatpush1.msra.mxu0 %v6587
          %6665 = vmatprep.subr.mxu0 %v6590
          %6666 = vmatpush1.msra.mxu0 %v6589
          %6667 = vmatprep.subr.mxu0 %v6592
          %6668 = vmatpush1.msra.mxu0 %v6591
          %6669 = vmatprep.subr.mxu0 %v6594
          %6670 = vmatpush1.msra.mxu0 %v6593
          %6671 = vmatprep.subr.mxu0 %v6596
          %6672 = vmatpush1.msra.mxu0 %v6595
          %6673 = vmatprep.subr.mxu0 %v6598
          %6674 = vmatpush1.msra.mxu0 %v6597
          %6675 = vmatprep.subr.mxu0 %v6600
          %6676 = vmatpush1.msra.mxu0 %v6599
          %6677 = vmatprep.subr.mxu0 %v6602
          %6678 = vmatpush1.msra.mxu0 %v6601
          %6679 = vmatprep.subr.mxu0 %v6604
          %6680 = vmatpush1.msra.mxu0 %v6603
          %6681 = vmatprep.subr.mxu0 %v6606
          %6682 = vmatpush1.msra.mxu0 %v6605
          %6683 = vmatprep.mubr.f32.mxu0 %v6508
          %6684 = vmatmul.mubr.f32.gmra.mrb[0].mxu0 %v6507
          %v6685 = vpop.f32.mrb[0].mxu0
          %v6686 = vadd.f32 %v6612, %v6685
          %v6687 = vpop.f32.mrb[0].mxu0
          %v6688 = vadd.f32 %v6616, %v6687
          %6689 = vmatprep.mubr.f32.mxu0 %v6510
          %6690 = vmatmul.mubr.f32.gmra.mrb[0].mxu0 %v6509
          %v6691 = vpop.f32.mrb[0].mxu0
          %v6692 = vadd.f32 %v6612, %v6691
          %v6693 = vpop.f32.mrb[0].mxu0
          %v6694 = vadd.f32 %v6616, %v6693
          %6695 = vdwg.mxu0
          %v6696 = vmax.f32 %v6686, 0.0
          %v6697 = vmax.f32 %v6688, 0.0
          %v6698 = vmax.f32 %v6692, 0.0
          %v6699 = vmax.f32 %v6694, 0.0
          %v6700 = vld [vmem:[#allocation21] sm:$0xf]
          %v6701 = vld [vmem:[#allocation21 + $0x4] sm:$0xf]
          %v6702 = vld [vmem:[#allocation21 + $0x8] sm:$0xf]
          %v6703 = vld [vmem:[#allocation21 + $0xc] sm:$0xf]
          %v6704 = vld [vmem:[#allocation21 + $0x10] sm:$0xf]
          %v6705 = vld [vmem:[#allocation21 + $0x14] sm:$0xf]
          %v6706 = vld [vmem:[#allocation21 + $0x18] sm:$0xf]
          %v6707 = vld [vmem:[#allocation21 + $0x1c] sm:$0xf]
          %v6708 = vld [vmem:[#allocation21 + $0x20] sm:$0xf]
          %v6709 = vld [vmem:[#allocation21 + $0x24] sm:$0xf]
          %v6710 = vld [vmem:[#allocation21 + $0x28] sm:$0xf]
          %v6711 = vld [vmem:[#allocation21 + $0x2c] sm:$0xf]
          %v6712 = vld [vmem:[#allocation21 + $0x30] sm:$0xf]
          %v6713 = vld [vmem:[#allocation21 + $0x34] sm:$0xf]
          %v6714 = vld [vmem:[#allocation21 + $0x38] sm:$0xf]
          %v6715 = vld [vmem:[#allocation21 + $0x3c] sm:$0xf]
          %v6716 = vld [vmem:[#allocation21 + $0x40] sm:$0xf]
          %v6717 = vld [vmem:[#allocation21 + $0x44] sm:$0xf]
          %v6718 = vld [vmem:[#allocation21 + $0x48] sm:$0xf]
          %v6719 = vld [vmem:[#allocation21 + $0x4c] sm:$0xf]
          %v6720 = vld [vmem:[#allocation21 + $0x50] sm:$0xf]
          %v6721 = vld [vmem:[#allocation21 + $0x54] sm:$0xf]
          %v6722 = vld [vmem:[#allocation21 + $0x58] sm:$0xf]
          %v6723 = vld [vmem:[#allocation21 + $0x5c] sm:$0xf]
          %v6724 = vld [vmem:[#allocation21 + $0x60] sm:$0xf]
          %v6725 = vld [vmem:[#allocation21 + $0x64] sm:$0xf]
          %v6726 = vld [vmem:[#allocation21 + $0x68] sm:$0xf]
          %v6727 = vld [vmem:[#allocation21 + $0x6c] sm:$0xf]
          %v6728 = vld [vmem:[#allocation21 + $0x70] sm:$0xf]
          %v6729 = vld [vmem:[#allocation21 + $0x74] sm:$0xf]
          %v6730 = vld [vmem:[#allocation21 + $0x78] sm:$0xf]
          %v6731 = vld [vmem:[#allocation21 + $0x7c] sm:$0xf]
          %v6732 = vunpack.c.l.bf16 %v6700
          %v6733 = vunpack.c.l.bf16 %v6701
          %v6734 = vunpack.c.l.bf16 %v6702
          %v6735 = vunpack.c.l.bf16 %v6703
          %v6736 = vunpack.c.l.bf16 %v6704
          %v6737 = vunpack.c.l.bf16 %v6705
          %v6738 = vunpack.c.l.bf16 %v6706
          %v6739 = vunpack.c.l.bf16 %v6707
          %v6740 = vunpack.c.l.bf16 %v6708
          %v6741 = vunpack.c.l.bf16 %v6709
          %v6742 = vunpack.c.l.bf16 %v6710
          %v6743 = vunpack.c.l.bf16 %v6711
          %v6744 = vunpack.c.l.bf16 %v6712
          %v6745 = vunpack.c.l.bf16 %v6713
          %v6746 = vunpack.c.l.bf16 %v6714
          %v6747 = vunpack.c.l.bf16 %v6715
          %v6748 = vunpack.c.l.bf16 %v6716
          %v6749 = vunpack.c.l.bf16 %v6717
          %v6750 = vunpack.c.l.bf16 %v6718
          %v6751 = vunpack.c.l.bf16 %v6719
          %v6752 = vunpack.c.l.bf16 %v6720
          %v6753 = vunpack.c.l.bf16 %v6721
          %v6754 = vunpack.c.l.bf16 %v6722
          %v6755 = vunpack.c.l.bf16 %v6723
          %v6756 = vunpack.c.l.bf16 %v6724
          %v6757 = vunpack.c.l.bf16 %v6725
          %v6758 = vunpack.c.l.bf16 %v6726
          %v6759 = vunpack.c.l.bf16 %v6727
          %v6760 = vunpack.c.l.bf16 %v6728
          %v6761 = vunpack.c.l.bf16 %v6729
          %v6762 = vunpack.c.l.bf16 %v6730
          %v6763 = vunpack.c.l.bf16 %v6731
          %v6764 = vld [vmem:[#allocation23] sm:$0x1]
          %v6766 = vlaneseq
          %v6767 = vshrl.u32 %v6766, 7
          %v6768 = vsub.s32 0, %v6767
          %v6769 = vrot.slane %v6764, %v6768
          %6771 = vmatprep.subr.mxu0 0.0
          %6772 = vmatpush1.msra.mxu0 %v6732
          %6773 = vmatprep.subr.mxu0 0.0
          %6774 = vmatpush1.msra.mxu0 %v6733
          %6775 = vmatprep.subr.mxu0 0.0
          %6776 = vmatpush1.msra.mxu0 %v6734
          %6777 = vmatprep.subr.mxu0 0.0
          %6778 = vmatpush1.msra.mxu0 %v6735
          %6779 = vmatprep.subr.mxu0 0.0
          %6780 = vmatpush1.msra.mxu0 %v6736
          %6781 = vmatprep.subr.mxu0 0.0
          %6782 = vmatpush1.msra.mxu0 %v6737
          %6783 = vmatprep.subr.mxu0 0.0
          %6784 = vmatpush1.msra.mxu0 %v6738
          %6785 = vmatprep.subr.mxu0 0.0
          %6786 = vmatpush1.msra.mxu0 %v6739
          %6787 = vmatprep.subr.mxu0 0.0
          %6788 = vmatpush1.msra.mxu0 %v6740
          %6789 = vmatprep.subr.mxu0 0.0
          %6790 = vmatpush1.msra.mxu0 %v6741
          %6791 = vmatprep.subr.mxu0 0.0
          %6792 = vmatpush1.msra.mxu0 %v6742
          %6793 = vmatprep.subr.mxu0 0.0
          %6794 = vmatpush1.msra.mxu0 %v6743
          %6795 = vmatprep.subr.mxu0 0.0
          %6796 = vmatpush1.msra.mxu0 %v6744
          %6797 = vmatprep.subr.mxu0 0.0
          %6798 = vmatpush1.msra.mxu0 %v6745
          %6799 = vmatprep.subr.mxu0 0.0
          %6800 = vmatpush1.msra.mxu0 %v6746
          %6801 = vmatprep.subr.mxu0 0.0
          %6802 = vmatpush1.msra.mxu0 %v6747
          %6803 = vmatprep.subr.mxu0 0.0
          %6804 = vmatpush1.msra.mxu0 %v6748
          %6805 = vmatprep.subr.mxu0 0.0
          %6806 = vmatpush1.msra.mxu0 %v6749
          %6807 = vmatprep.subr.mxu0 0.0
          %6808 = vmatpush1.msra.mxu0 %v6750
          %6809 = vmatprep.subr.mxu0 0.0
          %6810 = vmatpush1.msra.mxu0 %v6751
          %6811 = vmatprep.subr.mxu0 0.0
          %6812 = vmatpush1.msra.mxu0 %v6752
          %6813 = vmatprep.subr.mxu0 0.0
          %6814 = vmatpush1.msra.mxu0 %v6753
          %6815 = vmatprep.subr.mxu0 0.0
          %6816 = vmatpush1.msra.mxu0 %v6754
          %6817 = vmatprep.subr.mxu0 0.0
          %6818 = vmatpush1.msra.mxu0 %v6755
          %6819 = vmatprep.subr.mxu0 0.0
          %6820 = vmatpush1.msra.mxu0 %v6756
          %6821 = vmatprep.subr.mxu0 0.0
          %6822 = vmatpush1.msra.mxu0 %v6757
          %6823 = vmatprep.subr.mxu0 0.0
          %6824 = vmatpush1.msra.mxu0 %v6758
          %6825 = vmatprep.subr.mxu0 0.0
          %6826 = vmatpush1.msra.mxu0 %v6759
          %6827 = vmatprep.subr.mxu0 0.0
          %6828 = vmatpush1.msra.mxu0 %v6760
          %6829 = vmatprep.subr.mxu0 0.0
          %6830 = vmatpush1.msra.mxu0 %v6761
          %6831 = vmatprep.subr.mxu0 0.0
          %6832 = vmatpush1.msra.mxu0 %v6762
          %6833 = vmatprep.subr.mxu0 0.0
          %6834 = vmatpush1.msra.mxu0 %v6763
          %6835 = vmatprep.mubr.f32.mxu0 %v6697
          %6836 = vmatmul.mubr.f32.gmra.mrb[0].mxu0 %v6696
          %v6837 = vpop.f32.mrb[0].mxu0
          %v6838 = vadd.f32 %v6769, %v6837
          %v6839 = vpop.f32.mrb[0].mxu0
          %6840 = vmatprep.mubr.f32.mxu0 %v6699
          %6841 = vmatmul.mubr.f32.gmra.mrb[0].mxu0 %v6698
          %v6842 = vpop.f32.mrb[0].mxu0
          %v6843 = vadd.f32 %v6769, %v6842
          %v6844 = vpop.f32.mrb[0].mxu0
          %6845 = vdwg.mxu0
          %6846 = vst [vmem:[#allocation24] sm:$0xff] %v6838
          %6847 = vst [vmem:[#allocation24 + $0x8] sm:$0xff] %v6843
        $region136: #{tpu_custom_call.1} parent=71 // pred_fallthru
          _
        // Predicated region
        $region137: #{tpu_custom_call.1} parent=71 // pred_check
          %p6848 = pneg %p342
        $region138: #{tpu_custom_call.1} parent=71 // pred_check_branch
          %6850 = sbr.rel (%p6848) target = $region140
        $region139: #{tpu_custom_call.1} parent=71 // pred_region
          %s6852 = ssub.s32 256, 256
          %6853 = vsyncadd [#allocation5], %s6852
          %s6854 = sshll.u32 [#allocation24], 4
          %s6855 = int_to_ptr.vmem [resolvable:$true] %s6854
          %6860 = dma.vmem_to_hbm [thread:$0]  %s6855, 256, %s13, [#allocation5], 128, 128, 8
        $region140: #{tpu_custom_call.1} parent=71 // pred_fallthru
          _
        // Predicated region
        $region141: #{tpu_custom_call.1} parent=71 // pred_check
          %p6861 = pneg %p342
        $region142: #{tpu_custom_call.1} parent=71 // pred_check_branch
          %6863 = sbr.rel (%p6861) target = $region144
        $region143: #{tpu_custom_call.1} parent=71 // pred_region
          %6864 = dma.done [#allocation5], 256
        $region144: #{tpu_custom_call.1} parent=71 // pred_fallthru
          _
      $region72: #{tpu_custom_call.1} parent=5 // pred_fallthru
        _
      %p6865 = scmp.le.s32.totalorder 2, %s31
      // Predicated region
      $region145: #{tpu_custom_call.1} parent=5 // pred_check
        %p6866 = pneg %p6865
      $region146: #{tpu_custom_call.1} parent=5 // pred_check_branch
        %6868 = sbr.rel (%p6866) target = $region148
      $region147: #{tpu_custom_call.1} parent=5 // pred_region
        %s6869 = ssub.s32 %s31, 2
      $region148: #{tpu_custom_call.1} parent=5 // pred_fallthru
        _
    $region6: #{tpu_custom_call.1} parent=1 // loop_footer
      %s35 = sadd.s32 1, %s31
    $region7: #{tpu_custom_call.1} parent=1 // loop_footer_branch
      %30 = sbr.rel target = $region3
    $region8: #{tpu_custom_call.1} parent=1 // loop_exit
      _
    %6870 = vsyncpa [#allocation4], 1
    %s6871 = scalar_lea.sflag [#allocation4], 1
    %6872 = vsyncpa %s6871, 1
    %6873 = vsyncpa [#allocation7], 1
    %6874 = vsyncpa [#allocation10], 1
    %s6875 = scalar_lea.sflag [#allocation10], 1
    %6876 = vsyncpa %s6875, 1
    %6877 = vsyncpa [#allocation13], 1
    %s6878 = scalar_lea.sflag [#allocation13], 1
    %6879 = vsyncpa %s6878, 1
    %6880 = vsyncpa [#allocation16], 1
    %6881 = vsyncpa [#allocation19], 1
    %6882 = vsyncpa [#allocation22], 1
    %6883 = vsyncpa [#allocation5], 1
    %s6884 = scalar_lea.sflag [#allocation5], 1
    %6885 = vsyncpa %s6884, 1

</llo_original>
